<compile_context>
chip_gen: v5e
topology: v5e:2x2
jax: 0.10.0
libtpu: 0.0.40
codegen_flags: <defaults>
</compile_context>

<pallas_src>
import functools
import math

import jax
import jax.numpy as jnp
from jax.experimental import pallas as pl
from jax.experimental.pallas import tpu as pltpu

_BN_EPS = 1e-5
_ACT_DTYPE = jnp.bfloat16        # inter-layer activation storage dtype (stats stay f32)


def _round_up(x, m):
    return (x + m - 1) // m * m


def _cdiv(a, b):
    return (a + b - 1) // b


def _tpu_budget():
    """(vmem_limit_bytes, max_rows_per_tile) per TPU generation."""
    try:
        cap = getattr(pltpu.get_tpu_info(), "vmem_capacity_bytes", None)
    except Exception:                       # any failure -> conservative defaults
        cap = None
    if cap is None:
        return 32 * 1024 * 1024, 1024
    if cap >= 128 * 1024 * 1024:            # v5e / v6e: 128 MiB VMEM
        return 96 * 1024 * 1024, 2048
    return 48 * 1024 * 1024, 1024           # v7x-class: 64 MiB per TensorCore


_VMEM_LIMIT, _TILE_ROWS = _tpu_budget()


# ------------------------------ Pallas kernels ------------------------------

def _conv_relu_stats_kernel(x_ref, wt_ref, b_ref, y_ref, sum_ref, ssq_ref, *,
                            m_total, tile_m, tiles_per_core, need_mask):
    """One M-tile of y = relu(x @ Wt + b) (stored bf16); per-core channel sum / sum^2."""
    c = pl.program_id(0)
    i = pl.program_id(1)
    y = jnp.dot(x_ref[...], wt_ref[...], preferred_element_type=jnp.float32)
    y = jnp.maximum(y + b_ref[...], 0.0)
    y_ref[...] = y.astype(y_ref.dtype)

    if need_mask:  # exclude padded rows of a partial last tile from the BN statistics
        row = (c * tiles_per_core + i) * tile_m + jax.lax.broadcasted_iota(
            jnp.int32, y.shape, 0)
        y = jnp.where(row < m_total, y, 0.0)

    @pl.when(i == 0)
    def _():
        sum_ref[...] = jnp.zeros_like(sum_ref)
        ssq_ref[...] = jnp.zeros_like(ssq_ref)

    sum_ref[0] += jnp.sum(y, axis=0, keepdims=True)
    ssq_ref[0] += jnp.sum(y * y, axis=0, keepdims=True)


def conv_relu_stats(x2d, wt, b2d):
    """Pointwise Conv1d + ReLU tiled over M = batch*points (2-way core split when possible).
    Returns (pre-BN activation in bf16, exact full-M BN mean, invstd)."""
    m, cin = x2d.shape
    cout = wt.shape[1]
    tm = min(_round_up(m, 8), _TILE_ROWS)
    num_tiles = _cdiv(m, tm)
    ncores = 2 if (num_tiles >= 2 and num_tiles % 2 == 0) else 1
    tpc = num_tiles // ncores
    need_mask = (num_tiles * tm != m)

    kernel = functools.partial(_conv_relu_stats_kernel, m_total=m, tile_m=tm,
                               tiles_per_core=tpc, need_mask=need_mask)
    y, psum, pssq = pl.pallas_call(
        kernel,
        out_shape=(
            jax.ShapeDtypeStruct((m, cout), _ACT_DTYPE),
            jax.ShapeDtypeStruct((ncores, 1, cout), jnp.float32),
            jax.ShapeDtypeStruct((ncores, 1, cout), jnp.float32),
        ),
        grid=(ncores, tpc),
        in_specs=[
            pl.BlockSpec((tm, cin), lambda c, i: (c * tpc + i, 0)),
            pl.BlockSpec((cin, cout), lambda c, i: (0, 0)),     # resident weights
            pl.BlockSpec((1, cout), lambda c, i: (0, 0)),       # resident bias
        ],
        out_specs=[
            pl.BlockSpec((tm, cout), lambda c, i: (c * tpc + i, 0)),
            pl.BlockSpec((1, 1, cout), lambda c, i: (c, 0, 0)),  # per-core stat partials
            pl.BlockSpec((1, 1, cout), lambda c, i: (c, 0, 0)),
        ],
        compiler_params=pltpu.CompilerParams(
            dimension_semantics=("parallel", "arbitrary"),
            vmem_limit_bytes=_VMEM_LIMIT),
    )(x2d.astype(_ACT_DTYPE), wt.astype(_ACT_DTYPE), b2d)

    total_sum = jnp.sum(psum, axis=0)                    # (1, cout), f32
    total_ssq = jnp.sum(pssq, axis=0)
    mean = total_sum / m
    var = jnp.maximum(total_ssq / m - mean * mean, 0.0)  # biased variance, training mode
    invstd = jax.lax.rsqrt(var + _BN_EPS)
    return y, mean, invstd


def _conv_relu_max_kernel(x_ref, wt_ref, b_ref, mx_ref, sum_ref, ssq_ref, *,
                          n_total, tile_n, need_mask):
    """Final chain layer fused with the global max: y = relu(x @ Wt + b) on one point tile of
    one batch element; accumulate per-batch running max and per-batch sum / sum^2.
    The activation is never written to HBM."""
    t = pl.program_id(1)
    y = jnp.dot(x_ref[0], wt_ref[...], preferred_element_type=jnp.float32)
    y = jnp.maximum(y + b_ref[...], 0.0)

    if need_mask:
        row = t * tile_n + jax.lax.broadcasted_iota(jnp.int32, y.shape, 0)
        in_b = row < n_total
        ys = jnp.where(in_b, y, 0.0)
        ym = jnp.where(in_b, y, -jnp.inf)
    else:
        ys = ym = y

    @pl.when(t == 0)
    def _():
        mx_ref[...] = jnp.full(mx_ref.shape, -jnp.inf, mx_ref.dtype)
        sum_ref[...] = jnp.zeros_like(sum_ref)
        ssq_ref[...] = jnp.zeros_like(ssq_ref)

    mx_ref[0] = jnp.maximum(mx_ref[0], jnp.max(ym, axis=0, keepdims=True))
    sum_ref[0] += jnp.sum(ys, axis=0, keepdims=True)
    ssq_ref[0] += jnp.sum(ys * ys, axis=0, keepdims=True)


def conv_relu_stats_max(x_bnc, wt, b2d):
    """Fused conv + ReLU + BN-stat accumulation + max-over-points for the last layer of a
    chain.  BN (training mode, full batch*points stats) commutes with max, so the affine is
    applied to the tiny (bs, C) max outside the kernel.  Returns the (bs, C) global feature."""
    bs, n, cin = x_bnc.shape
    cout = wt.shape[1]
    tn = min(_round_up(n, 8), _TILE_ROWS)
    num_tiles = _cdiv(n, tn)
    need_mask = (num_tiles * tn != n)

    kernel = functools.partial(_conv_relu_max_kernel, n_total=n, tile_n=tn,
                               need_mask=need_mask)
    mx, psum, pssq = pl.pallas_call(
        kernel,
        out_shape=(
            jax.ShapeDtypeStruct((bs, 1, cout), jnp.float32),
            jax.ShapeDtypeStruct((bs, 1, cout), jnp.float32),
            jax.ShapeDtypeStruct((bs, 1, cout), jnp.float32),
        ),
        grid=(bs, num_tiles),
        in_specs=[
            pl.BlockSpec((1, tn, cin), lambda b, t: (b, t, 0)),
            pl.BlockSpec((cin, cout), lambda b, t: (0, 0)),     # resident weights
            pl.BlockSpec((1, cout), lambda b, t: (0, 0)),       # resident bias
        ],
        out_specs=[
            pl.BlockSpec((1, 1, cout), lambda b, t: (b, 0, 0)),  # resident per-batch max
            pl.BlockSpec((1, 1, cout), lambda b, t: (b, 0, 0)),  # per-batch stat partials
            pl.BlockSpec((1, 1, cout), lambda b, t: (b, 0, 0)),
        ],
        compiler_params=pltpu.CompilerParams(
            dimension_semantics=("parallel", "arbitrary"),
            vmem_limit_bytes=_VMEM_LIMIT),
    )(x_bnc.astype(_ACT_DTYPE), wt.astype(_ACT_DTYPE), b2d)

    m_total = bs * n
    mean = jnp.sum(psum, axis=0) / m_total                               # (1, cout)
    var = jnp.maximum(jnp.sum(pssq, axis=0) / m_total - mean * mean, 0.0)
    invstd = jax.lax.rsqrt(var + _BN_EPS)
    return (mx[:, 0, :] - mean) * invstd                                 # (bs, cout), f32


def _transform_kernel(x_ref, t_ref, mean_ref, invstd_ref, o_ref):
    """One (TILE_N, C) tile of BN(x) @ T for a single batch element (T resident per batch)."""
    x = (x_ref[0].astype(jnp.float32) - mean_ref[...]) * invstd_ref[...]
    o_ref[0] = jnp.dot(x, t_ref[0], preferred_element_type=jnp.float32).astype(o_ref.dtype)


def batched_transform(x_bnc, t_bcc, mean, invstd):
    """torch.bmm(bn(x).transpose(2,1), T).transpose(2,1) in channels-last layout.
    (mean, invstd) are the pending BatchNorm stats of x; pass zeros/ones for identity."""
    bs, n, c = x_bnc.shape
    tn = min(_round_up(n, 8), _TILE_ROWS)
    return pl.pallas_call(
        _transform_kernel,
        out_shape=jax.ShapeDtypeStruct((bs, n, c), _ACT_DTYPE),
        grid=(bs, _cdiv(n, tn)),
        in_specs=[
            pl.BlockSpec((1, tn, c), lambda b, t: (b, t, 0)),
            pl.BlockSpec((1, c, c), lambda b, t: (b, 0, 0)),    # resident per-batch transform
            pl.BlockSpec((1, c), lambda b, t: (0, 0)),
            pl.BlockSpec((1, c), lambda b, t: (0, 0)),
        ],
        out_specs=pl.BlockSpec((1, tn, c), lambda b, t: (b, t, 0)),
        compiler_params=pltpu.CompilerParams(
            dimension_semantics=("parallel", "parallel"),
            vmem_limit_bytes=_VMEM_LIMIT),
    )(x_bnc, t_bcc, mean, invstd)


def _tnet_tail_kernel(*refs, num_layers):
    """All TNet fully-connected layers (ReLU+BN on all but last) fused in one kernel.
    The input has only `bs` rows, so training-mode BN stats fit in a single block."""
    g_ref = refs[0]
    o_ref = refs[-1]
    h = g_ref[...]
    for j in range(num_layers):
        w_ref = refs[1 + 2 * j]
        b_ref = refs[2 + 2 * j]
        h = jnp.dot(h, w_ref[...], preferred_element_type=jnp.float32) + b_ref[...]
        if j < num_layers - 1:
            h = jnp.maximum(h, 0.0)                                 # ReLU
            mean = jnp.mean(h, axis=0, keepdims=True)               # training-mode BN
            var = jnp.mean((h - mean) ** 2, axis=0, keepdims=True)  # biased variance
            h = (h - mean) * jax.lax.rsqrt(var + _BN_EPS)
    o_ref[...] = h.astype(o_ref.dtype)


def tnet_tail(g, linear_params):
    """Single pallas_call for the whole TNet linear tail (avoids 3 tiny launches)."""
    bs = g.shape[0]
    cout = linear_params[-1][0].shape[1]
    flat = [g]
    for wt, b in linear_params:
        flat += [wt, b]
    return pl.pallas_call(
        functools.partial(_tnet_tail_kernel, num_layers=len(linear_params)),
        out_shape=jax.ShapeDtypeStruct((bs, cout), jnp.float32),
    )(*flat)


# ------------------------------ model forward ------------------------------

def _fold_bn(wt, b2d, mean, invstd):
    """Fold the producing layer's BatchNorm (gamma=1, beta=0) into the consuming matmul:
    BN(a) @ W + b == a @ (invstd*W) + (b - (mean*invstd) @ W)."""
    wt_eff = wt * jnp.transpose(invstd)              # (cin, cout), rows scaled per in-channel
    b_eff = b2d - jnp.dot(mean * invstd, wt)         # (1, cout)
    return wt_eff, b_eff


def shared_chain(x2d, layers, pending_bn=None):
    """Chain of shared conv layers, each bn(relu(conv(.))).  Returns the LAST layer's pre-BN
    activation (bf16) plus its (mean, invstd); BN of earlier layers folds into the next."""
    mean = invstd = None
    if pending_bn is not None:
        mean, invstd = pending_bn
    y = x2d
    for wt, b in layers:
        if mean is not None:
            wt, b = _fold_bn(wt, b, mean, invstd)
        y, mean, invstd = conv_relu_stats(y, wt, b)
    return y, mean, invstd


def shared_chain_max(x_bnc, layers, pending_bn=None):
    """Chain whose FINAL layer is fused with the global max-over-points.
    Returns the (bs, cout_last) BN'd global feature (f32)."""
    bs, n, cin = x_bnc.shape
    mean = invstd = None
    if pending_bn is not None:
        mean, invstd = pending_bn
    y2d = x_bnc.reshape(bs * n, cin)
    for wt, b in layers[:-1]:
        if mean is not None:
            wt, b = _fold_bn(wt, b, mean, invstd)
        y2d, mean, invstd = conv_relu_stats(y2d, wt, b)
    wt, b = layers[-1]
    if mean is not None:
        wt, b = _fold_bn(wt, b, mean, invstd)
    return conv_relu_stats_max(y2d.reshape(bs, n, wt.shape[0]), wt, b)


def tnet_forward(x_bnc, tnet_params, d, pending_bn=None):
    """TNet forward. x_bnc: (bs, N, Cin) input or pre-BN activation (with pending_bn stats).
    Returns the (bs, d, d) transform (identity added, like the PyTorch module)."""
    bs = x_bnc.shape[0]
    g = shared_chain_max(x_bnc, tnet_params["shared"], pending_bn)   # (bs, final_width)
    gdd = tnet_tail(g, tnet_params["linear"])                        # (bs, d*d)
    eye = jnp.eye(d, dtype=gdd.dtype)
    return gdd.reshape(bs, d, d) + eye[None]


def pointnet_encoder_forward(x_ncw, params):
    """x_ncw: PyTorch layout (batch, channels, points).  Returns (batch, global_feature_dim)."""
    bs, in_dim, n = x_ncw.shape
    x = jnp.transpose(x_ncw, (0, 2, 1)).astype(_ACT_DTYPE)           # (bs, N, in_dim)
    # TODO(synk): the C=3 stage could stay channels-first (lane-dense) instead of points-major.

    # Input transform (no pending BN on the raw input).
    t_input = tnet_forward(x, params["tnet_input"], in_dim)
    ident = (jnp.zeros((1, in_dim), jnp.float32), jnp.ones((1, in_dim), jnp.float32))
    x = batched_transform(x, t_input, *ident)                        # (bs, N, in_dim) bf16

    # shared_before chain; the last BN stays pending and is applied inside both consumers.
    y, mean_b, invstd_b = shared_chain(x.reshape(bs * n, in_dim), params["before"])
    fd = y.shape[1]
    y3 = y.reshape(bs, n, fd)

    # Feature transform.
    t_feature = tnet_forward(y3, params["tnet_inter"], fd, pending_bn=(mean_b, invstd_b))
    x = batched_transform(y3, t_feature, mean_b, invstd_b)           # (bs, N, fd) bf16

    # shared_after chain; the final conv is fused with BN-stats + global max-pool.
    return shared_chain_max(x, params["after"])                      # (bs, global_feature_dim)


# ------------------------------ parameter init ------------------------------

def _init_linear(key, fan_in, fan_out):
    kw, kb = jax.random.split(key)
    bound = 1.0 / math.sqrt(fan_in)
    w = jax.random.uniform(kw, (fan_out, fan_in), jnp.float32, -bound, bound)
    b = jax.random.uniform(kb, (fan_out,), jnp.float32, -bound, bound)
    return w.T, b.reshape(1, fan_out)   # weight pre-transposed for x @ Wt


def init_tnet(key, in_dim, h_nodes=64, multiplier=2, shared_layers=3, linear_layers=3):
    shared_dims = [in_dim] + [h_nodes * multiplier ** i for i in range(shared_layers)]
    final_width = h_nodes * multiplier ** (shared_layers - 1)
    lin_dims = [final_width // multiplier ** j for j in range(linear_layers)] + [in_dim * in_dim]
    keys = jax.random.split(key, shared_layers + linear_layers)
    shared = [_init_linear(keys[i], shared_dims[i], shared_dims[i + 1])
              for i in range(shared_layers)]
    linear = [_init_linear(keys[shared_layers + j], lin_dims[j], lin_dims[j + 1])
              for j in range(linear_layers)]
    return {"shared": shared, "linear": linear}


def init_pointnet_encoder(key, in_points, in_dim, shared_before, feature_dim,
                          shared_after, multiplier, global_feature_dim):
    k_ti, k_tf, k_layers = jax.random.split(key, 3)
    dims_before = [in_dim] + [feature_dim] * shared_before
    dims_after = ([feature_dim * multiplier ** j for j in range(shared_after)]
                  + [global_feature_dim])
    keys = jax.random.split(k_layers, shared_before + shared_after)
    before = [_init_linear(keys[i], dims_before[i], dims_before[i + 1])
              for i in range(shared_before)]
    after = [_init_linear(keys[shared_before + j], dims_after[j], dims_after[j + 1])
             for j in range(shared_after)]
    return {
        "tnet_input": init_tnet(k_ti, in_dim),
        "tnet_inter": init_tnet(k_tf, feature_dim),
        "before": before,
        "after": after,
    }


# ------------------------------------ main ------------------------------------

if __name__ == "__main__":
    # Small but representative config.
    bs = 2
    in_points = 64
    in_dim = 3
    shared_before = 2
    feature_dim = 8
    shared_after = 2
    multiplier = 2
    global_feature_dim = 32

    key = jax.random.PRNGKey(0)
    k_params, k_x = jax.random.split(key)
    params = init_pointnet_encoder(k_params, in_points, in_dim, shared_before,
                                   feature_dim, shared_after, multiplier,
                                   global_feature_dim)

    # PyTorch-style input: (batch, channels, points)
    x = jax.random.normal(k_x, (bs, in_dim, in_points), jnp.float32)

    fwd = jax.jit(pointnet_encoder_forward)
    out = fwd(x, params)
    out = jax.block_until_ready(out)

    assert out.shape == (bs, global_feature_dim), out.shape
    assert bool(jnp.all(jnp.isfinite(out)))
    print("KERNEL_OK")
</pallas_src>

<mosaic_0001>
module attributes {stable_mosaic.version = 11 : i64} {
  func.func @_conv_relu_stats_kernel(%arg0: i32, %arg1: i32, %arg2: memref<128x3xbf16, #tpu.memory_space<vmem>>, %arg3: memref<3x64xbf16, #tpu.memory_space<vmem>>, %arg4: memref<1x64xf32, #tpu.memory_space<vmem>>, %arg5: memref<128x64xbf16, #tpu.memory_space<vmem>>, %arg6: memref<1x1x64xf32, #tpu.memory_space<vmem>>, %arg7: memref<1x1x64xf32, #tpu.memory_space<vmem>>) attributes {dimension_semantics = [#tpu.dimension_semantics<parallel>, #tpu.dimension_semantics<arbitrary>], iteration_bounds = array<i64: 1, 1>, scalar_prefetch = 0 : i64, scratch_operands = 0 : i64, tpu.core_type = #tpu.core_type<tc>, window_params = [{transform_indices = @transform_0, window_bounds = array<i64: 128, 3>}, {pipeline_mode = #tpu.pipeline_mode<synchronous>, transform_indices = @transform_1, window_bounds = array<i64: 3, 64>}, {pipeline_mode = #tpu.pipeline_mode<synchronous>, transform_indices = @transform_2, window_bounds = array<i64: 1, 64>}, {transform_indices = @transform_3, window_bounds = array<i64: 128, 64>}, {transform_indices = @transform_4, window_bounds = array<i64: 1, 1, 64>}, {transform_indices = @transform_5, window_bounds = array<i64: 1, 1, 64>}]} {
    %c0 = arith.constant 0 : index
    %c0_0 = arith.constant 0 : index
    %0 = vector.load %arg2[%c0, %c0_0] : memref<128x3xbf16, #tpu.memory_space<vmem>>, vector<128x3xbf16>
    %c0_1 = arith.constant 0 : index
    %c0_2 = arith.constant 0 : index
    %1 = vector.load %arg3[%c0_1, %c0_2] : memref<3x64xbf16, #tpu.memory_space<vmem>>, vector<3x64xbf16>
    %cst = arith.constant dense<0.000000e+00> : vector<128x64xf32>
    %2 = tpu.matmul %0, %1, %cst {dimension_numbers = #tpu.dot_dimension_numbers<[1], [0], [0], [1], [0, 0, 1, 1], [], []>} : vector<128x3xbf16>, vector<3x64xbf16>, vector<128x64xf32> -> vector<128x64xf32>
    %c0_3 = arith.constant 0 : index
    %c0_4 = arith.constant 0 : index
    %3 = vector.load %arg4[%c0_3, %c0_4] : memref<1x64xf32, #tpu.memory_space<vmem>>, vector<1x64xf32>
    %4 = vector.broadcast %3 : vector<1x64xf32> to vector<128x64xf32>
    %5 = arith.addf %2, %4 : vector<128x64xf32>
    %cst_5 = arith.constant 0.000000e+00 : f32
    %6 = vector.broadcast %cst_5 : f32 to vector<128x64xf32>
    %7 = arith.maximumf %5, %6 : vector<128x64xf32>
    %8 = arith.truncf %7 : vector<128x64xf32> to vector<128x64xbf16>
    %c0_6 = arith.constant 0 : index
    %c0_7 = arith.constant 0 : index
    %9 = vector.load %arg5[%c0_6, %c0_7] : memref<128x64xbf16, #tpu.memory_space<vmem>>, vector<128x64xbf16>
    tpu.vector_store %arg5[%c0_6, %c0_7], %8 {strides = array<i32>} : memref<128x64xbf16, #tpu.memory_space<vmem>>, vector<128x64xbf16>,
    %c0_i32 = arith.constant 0 : i32
    %10 = arith.cmpi eq, %arg1, %c0_i32 : i32
    %11 = arith.extui %10 : i1 to i32
    %c0_i32_8 = arith.constant 0 : i32
    %12 = arith.cmpi ne, %11, %c0_i32_8 : i32
    scf.if %12 {
      %cst_23 = arith.constant 0.000000e+00 : f32
      %30 = vector.broadcast %cst_23 : f32 to vector<1x1x64xf32>
      %c0_24 = arith.constant 0 : index
      %c0_25 = arith.constant 0 : index
      %c0_26 = arith.constant 0 : index
      %31 = vector.load %arg6[%c0_24, %c0_25, %c0_26] : memref<1x1x64xf32, #tpu.memory_space<vmem>>, vector<1x1x64xf32>
      tpu.vector_store %arg6[%c0_24, %c0_25, %c0_26], %30 {strides = array<i32>} : memref<1x1x64xf32, #tpu.memory_space<vmem>>, vector<1x1x64xf32>,
      %cst_27 = arith.constant 0.000000e+00 : f32
      %32 = vector.broadcast %cst_27 : f32 to vector<1x1x64xf32>
      %c0_28 = arith.constant 0 : index
      %c0_29 = arith.constant 0 : index
      %c0_30 = arith.constant 0 : index
      %33 = vector.load %arg7[%c0_28, %c0_29, %c0_30] : memref<1x1x64xf32, #tpu.memory_space<vmem>>, vector<1x1x64xf32>
      tpu.vector_store %arg7[%c0_28, %c0_29, %c0_30], %32 {strides = array<i32>} : memref<1x1x64xf32, #tpu.memory_space<vmem>>, vector<1x1x64xf32>,
    } else {
    }
    %c0_9 = arith.constant 0 : index
    %c0_10 = arith.constant 0 : index
    %c0_11 = arith.constant 0 : index
    %13 = vector.load %arg6[%c0_9, %c0_10, %c0_11] : memref<1x1x64xf32, #tpu.memory_space<vmem>>, vector<1x1x64xf32>
    %14 = vector.shape_cast %13 : vector<1x1x64xf32> to vector<1x64xf32>
    %cst_12 = arith.constant dense<0.000000e+00> : vector<64xf32>
    %15 = vector.multi_reduction <add>, %7, %cst_12 [0] : vector<128x64xf32> to vector<64xf32>
    %16 = vector.shape_cast %15 : vector<64xf32> to vector<1x64xf32>
    %17 = arith.addf %14, %16 : vector<1x64xf32>
    %c0_13 = arith.constant 0 : index
    %c0_14 = arith.constant 0 : index
    %c0_15 = arith.constant 0 : index
    %18 = vector.load %arg6[%c0_13, %c0_14, %c0_15] : memref<1x1x64xf32, #tpu.memory_space<vmem>>, vector<1x1x64xf32>
    %19 = vector.shape_cast %18 : vector<1x1x64xf32> to vector<1x64xf32>
    %20 = vector.shape_cast %17 : vector<1x64xf32> to vector<1x1x64xf32>
    tpu.vector_store %arg6[%c0_13, %c0_14, %c0_15], %20 {strides = array<i32>} : memref<1x1x64xf32, #tpu.memory_space<vmem>>, vector<1x1x64xf32>,
    %c0_16 = arith.constant 0 : index
    %c0_17 = arith.constant 0 : index
    %c0_18 = arith.constant 0 : index
    %21 = vector.load %arg7[%c0_16, %c0_17, %c0_18] : memref<1x1x64xf32, #tpu.memory_space<vmem>>, vector<1x1x64xf32>
    %22 = vector.shape_cast %21 : vector<1x1x64xf32> to vector<1x64xf32>
    %23 = arith.mulf %7, %7 : vector<128x64xf32>
    %cst_19 = arith.constant dense<0.000000e+00> : vector<64xf32>
    %24 = vector.multi_reduction <add>, %23, %cst_19 [0] : vector<128x64xf32> to vector<64xf32>
    %25 = vector.shape_cast %24 : vector<64xf32> to vector<1x64xf32>
    %26 = arith.addf %22, %25 : vector<1x64xf32>
    %c0_20 = arith.constant 0 : index
    %c0_21 = arith.constant 0 : index
    %c0_22 = arith.constant 0 : index
    %27 = vector.load %arg7[%c0_20, %c0_21, %c0_22] : memref<1x1x64xf32, #tpu.memory_space<vmem>>, vector<1x1x64xf32>
    %28 = vector.shape_cast %27 : vector<1x1x64xf32> to vector<1x64xf32>
    %29 = vector.shape_cast %26 : vector<1x64xf32> to vector<1x1x64xf32>
    tpu.vector_store %arg7[%c0_20, %c0_21, %c0_22], %29 {strides = array<i32>} : memref<1x1x64xf32, #tpu.memory_space<vmem>>, vector<1x1x64xf32>,
    return
  }
  func.func @transform_0(%arg0: i32, %arg1: i32) -> (i32, i32) {
    %c1_i32 = arith.constant 1 : i32
    %0 = arith.muli %arg0, %c1_i32 : i32
    %1 = arith.addi %0, %arg1 : i32
    %c0_i32 = arith.constant 0 : i32
    %c0_i32_0 = arith.constant 0 : i32
    return %1, %c0_i32 : i32, i32
  }
  func.func @transform_1(%arg0: i32, %arg1: i32) -> (i32, i32) {
    %c0_i32 = arith.constant 0 : i32
    %c0_i32_0 = arith.constant 0 : i32
    %c0_i32_1 = arith.constant 0 : i32
    return %c0_i32, %c0_i32_0 : i32, i32
  }
  func.func @transform_2(%arg0: i32, %arg1: i32) -> (i32, i32) {
    %c0_i32 = arith.constant 0 : i32
    %c0_i32_0 = arith.constant 0 : i32
    %c0_i32_1 = arith.constant 0 : i32
    return %c0_i32, %c0_i32_0 : i32, i32
  }
  func.func @transform_3(%arg0: i32, %arg1: i32) -> (i32, i32) {
    %c1_i32 = arith.constant 1 : i32
    %0 = arith.muli %arg0, %c1_i32 : i32
    %1 = arith.addi %0, %arg1 : i32
    %c0_i32 = arith.constant 0 : i32
    %c0_i32_0 = arith.constant 0 : i32
    return %1, %c0_i32 : i32, i32
  }
  func.func @transform_4(%arg0: i32, %arg1: i32) -> (i32, i32, i32) {
    %c0_i32 = arith.constant 0 : i32
    %c0_i32_0 = arith.constant 0 : i32
    %c0_i32_1 = arith.constant 0 : i32
    return %arg0, %c0_i32, %c0_i32_0 : i32, i32, i32
  }
  func.func @transform_5(%arg0: i32, %arg1: i32) -> (i32, i32, i32) {
    %c0_i32 = arith.constant 0 : i32
    %c0_i32_0 = arith.constant 0 : i32
    %c0_i32_1 = arith.constant 0 : i32
    return %arg0, %c0_i32, %c0_i32_0 : i32, i32, i32
  }
}

module attributes {stable_mosaic.version = 11 : i64} {
  func.func @_conv_relu_stats_kernel(%arg0: i32, %arg1: i32, %arg2: memref<128x64xbf16, #tpu.memory_space<vmem>>, %arg3: memref<64x128xbf16, #tpu.memory_space<vmem>>, %arg4: memref<1x128xf32, #tpu.memory_space<vmem>>, %arg5: memref<128x128xbf16, #tpu.memory_space<vmem>>, %arg6: memref<1x1x128xf32, #tpu.memory_space<vmem>>, %arg7: memref<1x1x128xf32, #tpu.memory_space<vmem>>) attributes {dimension_semantics = [#tpu.dimension_semantics<parallel>, #tpu.dimension_semantics<arbitrary>], iteration_bounds = array<i64: 1, 1>, scalar_prefetch = 0 : i64, scratch_operands = 0 : i64, tpu.core_type = #tpu.core_type<tc>, window_params = [{transform_indices = @transform_0, window_bounds = array<i64: 128, 64>}, {pipeline_mode = #tpu.pipeline_mode<synchronous>, transform_indices = @transform_1, window_bounds = array<i64: 64, 128>}, {pipeline_mode = #tpu.pipeline_mode<synchronous>, transform_indices = @transform_2, window_bounds = array<i64: 1, 128>}, {transform_indices = @transform_3, window_bounds = array<i64: 128, 128>}, {transform_indices = @transform_4, window_bounds = array<i64: 1, 1, 128>}, {transform_indices = @transform_5, window_bounds = array<i64: 1, 1, 128>}]} {
    %c0 = arith.constant 0 : index
    %c0_0 = arith.constant 0 : index
    %0 = vector.load %arg2[%c0, %c0_0] : memref<128x64xbf16, #tpu.memory_space<vmem>>, vector<128x64xbf16>
    %c0_1 = arith.constant 0 : index
    %c0_2 = arith.constant 0 : index
    %1 = vector.load %arg3[%c0_1, %c0_2] : memref<64x128xbf16, #tpu.memory_space<vmem>>, vector<64x128xbf16>
    %cst = arith.constant dense<0.000000e+00> : vector<128x128xf32>
    %2 = tpu.matmul %0, %1, %cst {dimension_numbers = #tpu.dot_dimension_numbers<[1], [0], [0], [1], [0, 0, 1, 1], [], []>} : vector<128x64xbf16>, vector<64x128xbf16>, vector<128x128xf32> -> vector<128x128xf32>
    %c0_3 = arith.constant 0 : index
    %c0_4 = arith.constant 0 : index
    %3 = vector.load %arg4[%c0_3, %c0_4] : memref<1x128xf32, #tpu.memory_space<vmem>>, vector<1x128xf32>
    %4 = vector.broadcast %3 : vector<1x128xf32> to vector<128x128xf32>
    %5 = arith.addf %2, %4 : vector<128x128xf32>
    %cst_5 = arith.constant 0.000000e+00 : f32
    %6 = vector.broadcast %cst_5 : f32 to vector<128x128xf32>
    %7 = arith.maximumf %5, %6 : vector<128x128xf32>
    %8 = arith.truncf %7 : vector<128x128xf32> to vector<128x128xbf16>
    %c0_6 = arith.constant 0 : index
    %c0_7 = arith.constant 0 : index
    %9 = vector.load %arg5[%c0_6, %c0_7] : memref<128x128xbf16, #tpu.memory_space<vmem>>, vector<128x128xbf16>
    tpu.vector_store %arg5[%c0_6, %c0_7], %8 {strides = array<i32>} : memref<128x128xbf16, #tpu.memory_space<vmem>>, vector<128x128xbf16>,
    %c0_i32 = arith.constant 0 : i32
    %10 = arith.cmpi eq, %arg1, %c0_i32 : i32
    %11 = arith.extui %10 : i1 to i32
    %c0_i32_8 = arith.constant 0 : i32
    %12 = arith.cmpi ne, %11, %c0_i32_8 : i32
    scf.if %12 {
      %cst_23 = arith.constant 0.000000e+00 : f32
      %30 = vector.broadcast %cst_23 : f32 to vector<1x1x128xf32>
      %c0_24 = arith.constant 0 : index
      %c0_25 = arith.constant 0 : index
      %c0_26 = arith.constant 0 : index
      %31 = vector.load %arg6[%c0_24, %c0_25, %c0_26] : memref<1x1x128xf32, #tpu.memory_space<vmem>>, vector<1x1x128xf32>
      tpu.vector_store %arg6[%c0_24, %c0_25, %c0_26], %30 {strides = array<i32>} : memref<1x1x128xf32, #tpu.memory_space<vmem>>, vector<1x1x128xf32>,
      %cst_27 = arith.constant 0.000000e+00 : f32
      %32 = vector.broadcast %cst_27 : f32 to vector<1x1x128xf32>
      %c0_28 = arith.constant 0 : index
      %c0_29 = arith.constant 0 : index
      %c0_30 = arith.constant 0 : index
      %33 = vector.load %arg7[%c0_28, %c0_29, %c0_30] : memref<1x1x128xf32, #tpu.memory_space<vmem>>, vector<1x1x128xf32>
      tpu.vector_store %arg7[%c0_28, %c0_29, %c0_30], %32 {strides = array<i32>} : memref<1x1x128xf32, #tpu.memory_space<vmem>>, vector<1x1x128xf32>,
    } else {
    }
    %c0_9 = arith.constant 0 : index
    %c0_10 = arith.constant 0 : index
    %c0_11 = arith.constant 0 : index
    %13 = vector.load %arg6[%c0_9, %c0_10, %c0_11] : memref<1x1x128xf32, #tpu.memory_space<vmem>>, vector<1x1x128xf32>
    %14 = vector.shape_cast %13 : vector<1x1x128xf32> to vector<1x128xf32>
    %cst_12 = arith.constant dense<0.000000e+00> : vector<128xf32>
    %15 = vector.multi_reduction <add>, %7, %cst_12 [0] : vector<128x128xf32> to vector<128xf32>
    %16 = vector.shape_cast %15 : vector<128xf32> to vector<1x128xf32>
    %17 = arith.addf %14, %16 : vector<1x128xf32>
    %c0_13 = arith.constant 0 : index
    %c0_14 = arith.constant 0 : index
    %c0_15 = arith.constant 0 : index
    %18 = vector.load %arg6[%c0_13, %c0_14, %c0_15] : memref<1x1x128xf32, #tpu.memory_space<vmem>>, vector<1x1x128xf32>
    %19 = vector.shape_cast %18 : vector<1x1x128xf32> to vector<1x128xf32>
    %20 = vector.shape_cast %17 : vector<1x128xf32> to vector<1x1x128xf32>
    tpu.vector_store %arg6[%c0_13, %c0_14, %c0_15], %20 {strides = array<i32>} : memref<1x1x128xf32, #tpu.memory_space<vmem>>, vector<1x1x128xf32>,
    %c0_16 = arith.constant 0 : index
    %c0_17 = arith.constant 0 : index
    %c0_18 = arith.constant 0 : index
    %21 = vector.load %arg7[%c0_16, %c0_17, %c0_18] : memref<1x1x128xf32, #tpu.memory_space<vmem>>, vector<1x1x128xf32>
    %22 = vector.shape_cast %21 : vector<1x1x128xf32> to vector<1x128xf32>
    %23 = arith.mulf %7, %7 : vector<128x128xf32>
    %cst_19 = arith.constant dense<0.000000e+00> : vector<128xf32>
    %24 = vector.multi_reduction <add>, %23, %cst_19 [0] : vector<128x128xf32> to vector<128xf32>
    %25 = vector.shape_cast %24 : vector<128xf32> to vector<1x128xf32>
    %26 = arith.addf %22, %25 : vector<1x128xf32>
    %c0_20 = arith.constant 0 : index
    %c0_21 = arith.constant 0 : index
    %c0_22 = arith.constant 0 : index
    %27 = vector.load %arg7[%c0_20, %c0_21, %c0_22] : memref<1x1x128xf32, #tpu.memory_space<vmem>>, vector<1x1x128xf32>
    %28 = vector.shape_cast %27 : vector<1x1x128xf32> to vector<1x128xf32>
    %29 = vector.shape_cast %26 : vector<1x128xf32> to vector<1x1x128xf32>
    tpu.vector_store %arg7[%c0_20, %c0_21, %c0_22], %29 {strides = array<i32>} : memref<1x1x128xf32, #tpu.memory_space<vmem>>, vector<1x1x128xf32>,
    return
  }
  func.func @transform_0(%arg0: i32, %arg1: i32) -> (i32, i32) {
    %c1_i32 = arith.constant 1 : i32
    %0 = arith.muli %arg0, %c1_i32 : i32
    %1 = arith.addi %0, %arg1 : i32
    %c0_i32 = arith.constant 0 : i32
    %c0_i32_0 = arith.constant 0 : i32
    return %1, %c0_i32 : i32, i32
  }
  func.func @transform_1(%arg0: i32, %arg1: i32) -> (i32, i32) {
    %c0_i32 = arith.constant 0 : i32
    %c0_i32_0 = arith.constant 0 : i32
    %c0_i32_1 = arith.constant 0 : i32
    return %c0_i32, %c0_i32_0 : i32, i32
  }
  func.func @transform_2(%arg0: i32, %arg1: i32) -> (i32, i32) {
    %c0_i32 = arith.constant 0 : i32
    %c0_i32_0 = arith.constant 0 : i32
    %c0_i32_1 = arith.constant 0 : i32
    return %c0_i32, %c0_i32_0 : i32, i32
  }
  func.func @transform_3(%arg0: i32, %arg1: i32) -> (i32, i32) {
    %c1_i32 = arith.constant 1 : i32
    %0 = arith.muli %arg0, %c1_i32 : i32
    %1 = arith.addi %0, %arg1 : i32
    %c0_i32 = arith.constant 0 : i32
    %c0_i32_0 = arith.constant 0 : i32
    return %1, %c0_i32 : i32, i32
  }
  func.func @transform_4(%arg0: i32, %arg1: i32) -> (i32, i32, i32) {
    %c0_i32 = arith.constant 0 : i32
    %c0_i32_0 = arith.constant 0 : i32
    %c0_i32_1 = arith.constant 0 : i32
    return %arg0, %c0_i32, %c0_i32_0 : i32, i32, i32
  }
  func.func @transform_5(%arg0: i32, %arg1: i32) -> (i32, i32, i32) {
    %c0_i32 = arith.constant 0 : i32
    %c0_i32_0 = arith.constant 0 : i32
    %c0_i32_1 = arith.constant 0 : i32
    return %arg0, %c0_i32, %c0_i32_0 : i32, i32, i32
  }
}

module attributes {stable_mosaic.version = 11 : i64} {
  func.func @_conv_relu_max_kernel(%arg0: i32, %arg1: i32, %arg2: memref<1x64x128xbf16, #tpu.memory_space<vmem>>, %arg3: memref<128x256xbf16, #tpu.memory_space<vmem>>, %arg4: memref<1x256xf32, #tpu.memory_space<vmem>>, %arg5: memref<1x1x256xf32, #tpu.memory_space<vmem>>, %arg6: memref<1x1x256xf32, #tpu.memory_space<vmem>>, %arg7: memref<1x1x256xf32, #tpu.memory_space<vmem>>) attributes {dimension_semantics = [#tpu.dimension_semantics<parallel>, #tpu.dimension_semantics<arbitrary>], iteration_bounds = array<i64: 2, 1>, scalar_prefetch = 0 : i64, scratch_operands = 0 : i64, tpu.core_type = #tpu.core_type<tc>, window_params = [{transform_indices = @transform_0, window_bounds = array<i64: 1, 64, 128>}, {pipeline_mode = #tpu.pipeline_mode<synchronous>, transform_indices = @transform_1, window_bounds = array<i64: 128, 256>}, {pipeline_mode = #tpu.pipeline_mode<synchronous>, transform_indices = @transform_2, window_bounds = array<i64: 1, 256>}, {transform_indices = @transform_3, window_bounds = array<i64: 1, 1, 256>}, {transform_indices = @transform_4, window_bounds = array<i64: 1, 1, 256>}, {transform_indices = @transform_5, window_bounds = array<i64: 1, 1, 256>}]} {
    %c0 = arith.constant 0 : index
    %c0_0 = arith.constant 0 : index
    %c0_1 = arith.constant 0 : index
    %0 = vector.load %arg2[%c0, %c0_0, %c0_1] : memref<1x64x128xbf16, #tpu.memory_space<vmem>>, vector<1x64x128xbf16>
    %1 = vector.shape_cast %0 : vector<1x64x128xbf16> to vector<64x128xbf16>
    %c0_2 = arith.constant 0 : index
    %c0_3 = arith.constant 0 : index
    %2 = vector.load %arg3[%c0_2, %c0_3] : memref<128x256xbf16, #tpu.memory_space<vmem>>, vector<128x256xbf16>
    %cst = arith.constant dense<0.000000e+00> : vector<64x256xf32>
    %3 = tpu.matmul %1, %2, %cst {dimension_numbers = #tpu.dot_dimension_numbers<[1], [0], [0], [1], [0, 0, 1, 1], [], []>} : vector<64x128xbf16>, vector<128x256xbf16>, vector<64x256xf32> -> vector<64x256xf32>
    %c0_4 = arith.constant 0 : index
    %c0_5 = arith.constant 0 : index
    %4 = vector.load %arg4[%c0_4, %c0_5] : memref<1x256xf32, #tpu.memory_space<vmem>>, vector<1x256xf32>
    %5 = vector.broadcast %4 : vector<1x256xf32> to vector<64x256xf32>
    %6 = arith.addf %3, %5 : vector<64x256xf32>
    %cst_6 = arith.constant 0.000000e+00 : f32
    %7 = vector.broadcast %cst_6 : f32 to vector<64x256xf32>
    %8 = arith.maximumf %6, %7 : vector<64x256xf32>
    %c0_i32 = arith.constant 0 : i32
    %9 = arith.cmpi eq, %arg1, %c0_i32 : i32
    %10 = arith.extui %9 : i1 to i32
    %c0_i32_7 = arith.constant 0 : i32
    %11 = arith.cmpi ne, %10, %c0_i32_7 : i32
    scf.if %11 {
      %cst_29 = arith.constant 0xFF800000 : f32
      %37 = vector.broadcast %cst_29 : f32 to vector<1x1x256xf32>
      %c0_30 = arith.constant 0 : index
      %c0_31 = arith.constant 0 : index
      %c0_32 = arith.constant 0 : index
      %38 = vector.load %arg5[%c0_30, %c0_31, %c0_32] : memref<1x1x256xf32, #tpu.memory_space<vmem>>, vector<1x1x256xf32>
      tpu.vector_store %arg5[%c0_30, %c0_31, %c0_32], %37 {strides = array<i32>} : memref<1x1x256xf32, #tpu.memory_space<vmem>>, vector<1x1x256xf32>,
      %cst_33 = arith.constant 0.000000e+00 : f32
      %39 = vector.broadcast %cst_33 : f32 to vector<1x1x256xf32>
      %c0_34 = arith.constant 0 : index
      %c0_35 = arith.constant 0 : index
      %c0_36 = arith.constant 0 : index
      %40 = vector.load %arg6[%c0_34, %c0_35, %c0_36] : memref<1x1x256xf32, #tpu.memory_space<vmem>>, vector<1x1x256xf32>
      tpu.vector_store %arg6[%c0_34, %c0_35, %c0_36], %39 {strides = array<i32>} : memref<1x1x256xf32, #tpu.memory_space<vmem>>, vector<1x1x256xf32>,
      %cst_37 = arith.constant 0.000000e+00 : f32
      %41 = vector.broadcast %cst_37 : f32 to vector<1x1x256xf32>
      %c0_38 = arith.constant 0 : index
      %c0_39 = arith.constant 0 : index
      %c0_40 = arith.constant 0 : index
      %42 = vector.load %arg7[%c0_38, %c0_39, %c0_40] : memref<1x1x256xf32, #tpu.memory_space<vmem>>, vector<1x1x256xf32>
      tpu.vector_store %arg7[%c0_38, %c0_39, %c0_40], %41 {strides = array<i32>} : memref<1x1x256xf32, #tpu.memory_space<vmem>>, vector<1x1x256xf32>,
    } else {
    }
    %c0_8 = arith.constant 0 : index
    %c0_9 = arith.constant 0 : index
    %c0_10 = arith.constant 0 : index
    %12 = vector.load %arg5[%c0_8, %c0_9, %c0_10] : memref<1x1x256xf32, #tpu.memory_space<vmem>>, vector<1x1x256xf32>
    %13 = vector.shape_cast %12 : vector<1x1x256xf32> to vector<1x256xf32>
    %cst_11 = arith.constant dense<0xFF800000> : vector<256xf32>
    %14 = vector.multi_reduction <maximumf>, %8, %cst_11 [0] : vector<64x256xf32> to vector<256xf32>
    %15 = vector.shape_cast %14 : vector<256xf32> to vector<1x256xf32>
    %16 = arith.maximumf %13, %15 : vector<1x256xf32>
    %c0_12 = arith.constant 0 : index
    %c0_13 = arith.constant 0 : index
    %c0_14 = arith.constant 0 : index
    %17 = vector.load %arg5[%c0_12, %c0_13, %c0_14] : memref<1x1x256xf32, #tpu.memory_space<vmem>>, vector<1x1x256xf32>
    %18 = vector.shape_cast %17 : vector<1x1x256xf32> to vector<1x256xf32>
    %19 = vector.shape_cast %16 : vector<1x256xf32> to vector<1x1x256xf32>
    tpu.vector_store %arg5[%c0_12, %c0_13, %c0_14], %19 {strides = array<i32>} : memref<1x1x256xf32, #tpu.memory_space<vmem>>, vector<1x1x256xf32>,
    %c0_15 = arith.constant 0 : index
    %c0_16 = arith.constant 0 : index
    %c0_17 = arith.constant 0 : index
    %20 = vector.load %arg6[%c0_15, %c0_16, %c0_17] : memref<1x1x256xf32, #tpu.memory_space<vmem>>, vector<1x1x256xf32>
    %21 = vector.shape_cast %20 : vector<1x1x256xf32> to vector<1x256xf32>
    %cst_18 = arith.constant dense<0.000000e+00> : vector<256xf32>
    %22 = vector.multi_reduction <add>, %8, %cst_18 [0] : vector<64x256xf32> to vector<256xf32>
    %23 = vector.shape_cast %22 : vector<256xf32> to vector<1x256xf32>
    %24 = arith.addf %21, %23 : vector<1x256xf32>
    %c0_19 = arith.constant 0 : index
    %c0_20 = arith.constant 0 : index
    %c0_21 = arith.constant 0 : index
    %25 = vector.load %arg6[%c0_19, %c0_20, %c0_21] : memref<1x1x256xf32, #tpu.memory_space<vmem>>, vector<1x1x256xf32>
    %26 = vector.shape_cast %25 : vector<1x1x256xf32> to vector<1x256xf32>
    %27 = vector.shape_cast %24 : vector<1x256xf32> to vector<1x1x256xf32>
    tpu.vector_store %arg6[%c0_19, %c0_20, %c0_21], %27 {strides = array<i32>} : memref<1x1x256xf32, #tpu.memory_space<vmem>>, vector<1x1x256xf32>,
    %c0_22 = arith.constant 0 : index
    %c0_23 = arith.constant 0 : index
    %c0_24 = arith.constant 0 : index
    %28 = vector.load %arg7[%c0_22, %c0_23, %c0_24] : memref<1x1x256xf32, #tpu.memory_space<vmem>>, vector<1x1x256xf32>
    %29 = vector.shape_cast %28 : vector<1x1x256xf32> to vector<1x256xf32>
    %30 = arith.mulf %8, %8 : vector<64x256xf32>
    %cst_25 = arith.constant dense<0.000000e+00> : vector<256xf32>
    %31 = vector.multi_reduction <add>, %30, %cst_25 [0] : vector<64x256xf32> to vector<256xf32>
    %32 = vector.shape_cast %31 : vector<256xf32> to vector<1x256xf32>
    %33 = arith.addf %29, %32 : vector<1x256xf32>
    %c0_26 = arith.constant 0 : index
    %c0_27 = arith.constant 0 : index
    %c0_28 = arith.constant 0 : index
    %34 = vector.load %arg7[%c0_26, %c0_27, %c0_28] : memref<1x1x256xf32, #tpu.memory_space<vmem>>, vector<1x1x256xf32>
    %35 = vector.shape_cast %34 : vector<1x1x256xf32> to vector<1x256xf32>
    %36 = vector.shape_cast %33 : vector<1x256xf32> to vector<1x1x256xf32>
    tpu.vector_store %arg7[%c0_26, %c0_27, %c0_28], %36 {strides = array<i32>} : memref<1x1x256xf32, #tpu.memory_space<vmem>>, vector<1x1x256xf32>,
    return
  }
  func.func @transform_0(%arg0: i32, %arg1: i32) -> (i32, i32, i32) {
    %c0_i32 = arith.constant 0 : i32
    %c0_i32_0 = arith.constant 0 : i32
    return %arg0, %arg1, %c0_i32 : i32, i32, i32
  }
  func.func @transform_1(%arg0: i32, %arg1: i32) -> (i32, i32) {
    %c0_i32 = arith.constant 0 : i32
    %c0_i32_0 = arith.constant 0 : i32
    %c0_i32_1 = arith.constant 0 : i32
    return %c0_i32, %c0_i32_0 : i32, i32
  }
  func.func @transform_2(%arg0: i32, %arg1: i32) -> (i32, i32) {
    %c0_i32 = arith.constant 0 : i32
    %c0_i32_0 = arith.constant 0 : i32
    %c0_i32_1 = arith.constant 0 : i32
    return %c0_i32, %c0_i32_0 : i32, i32
  }
  func.func @transform_3(%arg0: i32, %arg1: i32) -> (i32, i32, i32) {
    %c0_i32 = arith.constant 0 : i32
    %c0_i32_0 = arith.constant 0 : i32
    %c0_i32_1 = arith.constant 0 : i32
    return %arg0, %c0_i32, %c0_i32_0 : i32, i32, i32
  }
  func.func @transform_4(%arg0: i32, %arg1: i32) -> (i32, i32, i32) {
    %c0_i32 = arith.constant 0 : i32
    %c0_i32_0 = arith.constant 0 : i32
    %c0_i32_1 = arith.constant 0 : i32
    return %arg0, %c0_i32, %c0_i32_0 : i32, i32, i32
  }
  func.func @transform_5(%arg0: i32, %arg1: i32) -> (i32, i32, i32) {
    %c0_i32 = arith.constant 0 : i32
    %c0_i32_0 = arith.constant 0 : i32
    %c0_i32_1 = arith.constant 0 : i32
    return %arg0, %c0_i32, %c0_i32_0 : i32, i32, i32
  }
}

module attributes {stable_mosaic.version = 11 : i64} {
  func.func @_tnet_tail_kernel(%arg0: memref<2x256xf32, #tpu.memory_space<vmem>>, %arg1: memref<256x128xf32, #tpu.memory_space<vmem>>, %arg2: memref<1x128xf32, #tpu.memory_space<vmem>>, %arg3: memref<128x64xf32, #tpu.memory_space<vmem>>, %arg4: memref<1x64xf32, #tpu.memory_space<vmem>>, %arg5: memref<64x9xf32, #tpu.memory_space<vmem>>, %arg6: memref<1x9xf32, #tpu.memory_space<vmem>>, %arg7: memref<2x9xf32, #tpu.memory_space<vmem>>) attributes {dimension_semantics = [], scalar_prefetch = 0 : i64, scratch_operands = 0 : i64, tpu.core_type = #tpu.core_type<tc>} {
    %c0 = arith.constant 0 : index
    %c0_0 = arith.constant 0 : index
    %0 = vector.load %arg0[%c0, %c0_0] : memref<2x256xf32, #tpu.memory_space<vmem>>, vector<2x256xf32>
    %c0_1 = arith.constant 0 : index
    %c0_2 = arith.constant 0 : index
    %1 = vector.load %arg1[%c0_1, %c0_2] : memref<256x128xf32, #tpu.memory_space<vmem>>, vector<256x128xf32>
    %cst = arith.constant dense<0.000000e+00> : vector<2x128xf32>
    %2 = tpu.matmul %0, %1, %cst {dimension_numbers = #tpu.dot_dimension_numbers<[1], [0], [0], [1], [0, 0, 1, 1], [], []>} : vector<2x256xf32>, vector<256x128xf32>, vector<2x128xf32> -> vector<2x128xf32>
    %c0_3 = arith.constant 0 : index
    %c0_4 = arith.constant 0 : index
    %3 = vector.load %arg2[%c0_3, %c0_4] : memref<1x128xf32, #tpu.memory_space<vmem>>, vector<1x128xf32>
    %4 = vector.broadcast %3 : vector<1x128xf32> to vector<2x128xf32>
    %5 = arith.addf %2, %4 : vector<2x128xf32>
    %cst_5 = arith.constant 0.000000e+00 : f32
    %6 = vector.broadcast %cst_5 : f32 to vector<2x128xf32>
    %7 = arith.maximumf %5, %6 : vector<2x128xf32>
    %cst_6 = arith.constant dense<0.000000e+00> : vector<128xf32>
    %8 = vector.multi_reduction <add>, %7, %cst_6 [0] : vector<2x128xf32> to vector<128xf32>
    %9 = vector.shape_cast %8 : vector<128xf32> to vector<1x128xf32>
    %cst_7 = arith.constant 2.000000e+00 : f32
    %10 = vector.broadcast %cst_7 : f32 to vector<1x128xf32>
    %11 = arith.divf %9, %10 : vector<1x128xf32>
    %12 = vector.broadcast %11 : vector<1x128xf32> to vector<2x128xf32>
    %13 = arith.subf %7, %12 : vector<2x128xf32>
    %14 = arith.mulf %13, %13 : vector<2x128xf32>
    %cst_8 = arith.constant dense<0.000000e+00> : vector<128xf32>
    %15 = vector.multi_reduction <add>, %14, %cst_8 [0] : vector<2x128xf32> to vector<128xf32>
    %16 = vector.shape_cast %15 : vector<128xf32> to vector<1x128xf32>
    %cst_9 = arith.constant 2.000000e+00 : f32
    %17 = vector.broadcast %cst_9 : f32 to vector<1x128xf32>
    %18 = arith.divf %16, %17 : vector<1x128xf32>
    %19 = vector.broadcast %11 : vector<1x128xf32> to vector<2x128xf32>
    %20 = arith.subf %7, %19 : vector<2x128xf32>
    %cst_10 = arith.constant 9.99999974E-6 : f32
    %21 = vector.broadcast %cst_10 : f32 to vector<1x128xf32>
    %22 = arith.addf %18, %21 : vector<1x128xf32>
    %23 = math.rsqrt %22 : vector<1x128xf32>
    %24 = vector.broadcast %23 : vector<1x128xf32> to vector<2x128xf32>
    %25 = arith.mulf %20, %24 : vector<2x128xf32>
    %c0_11 = arith.constant 0 : index
    %c0_12 = arith.constant 0 : index
    %26 = vector.load %arg3[%c0_11, %c0_12] : memref<128x64xf32, #tpu.memory_space<vmem>>, vector<128x64xf32>
    %cst_13 = arith.constant dense<0.000000e+00> : vector<2x64xf32>
    %27 = tpu.matmul %25, %26, %cst_13 {dimension_numbers = #tpu.dot_dimension_numbers<[1], [0], [0], [1], [0, 0, 1, 1], [], []>} : vector<2x128xf32>, vector<128x64xf32>, vector<2x64xf32> -> vector<2x64xf32>
    %c0_14 = arith.constant 0 : index
    %c0_15 = arith.constant 0 : index
    %28 = vector.load %arg4[%c0_14, %c0_15] : memref<1x64xf32, #tpu.memory_space<vmem>>, vector<1x64xf32>
    %29 = vector.broadcast %28 : vector<1x64xf32> to vector<2x64xf32>
    %30 = arith.addf %27, %29 : vector<2x64xf32>
    %cst_16 = arith.constant 0.000000e+00 : f32
    %31 = vector.broadcast %cst_16 : f32 to vector<2x64xf32>
    %32 = arith.maximumf %30, %31 : vector<2x64xf32>
    %cst_17 = arith.constant dense<0.000000e+00> : vector<64xf32>
    %33 = vector.multi_reduction <add>, %32, %cst_17 [0] : vector<2x64xf32> to vector<64xf32>
    %34 = vector.shape_cast %33 : vector<64xf32> to vector<1x64xf32>
    %cst_18 = arith.constant 2.000000e+00 : f32
    %35 = vector.broadcast %cst_18 : f32 to vector<1x64xf32>
    %36 = arith.divf %34, %35 : vector<1x64xf32>
    %37 = vector.broadcast %36 : vector<1x64xf32> to vector<2x64xf32>
    %38 = arith.subf %32, %37 : vector<2x64xf32>
    %39 = arith.mulf %38, %38 : vector<2x64xf32>
    %cst_19 = arith.constant dense<0.000000e+00> : vector<64xf32>
    %40 = vector.multi_reduction <add>, %39, %cst_19 [0] : vector<2x64xf32> to vector<64xf32>
    %41 = vector.shape_cast %40 : vector<64xf32> to vector<1x64xf32>
    %cst_20 = arith.constant 2.000000e+00 : f32
    %42 = vector.broadcast %cst_20 : f32 to vector<1x64xf32>
    %43 = arith.divf %41, %42 : vector<1x64xf32>
    %44 = vector.broadcast %36 : vector<1x64xf32> to vector<2x64xf32>
    %45 = arith.subf %32, %44 : vector<2x64xf32>
    %cst_21 = arith.constant 9.99999974E-6 : f32
    %46 = vector.broadcast %cst_21 : f32 to vector<1x64xf32>
    %47 = arith.addf %43, %46 : vector<1x64xf32>
    %48 = math.rsqrt %47 : vector<1x64xf32>
    %49 = vector.broadcast %48 : vector<1x64xf32> to vector<2x64xf32>
    %50 = arith.mulf %45, %49 : vector<2x64xf32>
    %c0_22 = arith.constant 0 : index
    %c0_23 = arith.constant 0 : index
    %51 = vector.load %arg5[%c0_22, %c0_23] : memref<64x9xf32, #tpu.memory_space<vmem>>, vector<64x9xf32>
    %cst_24 = arith.constant dense<0.000000e+00> : vector<2x9xf32>
    %52 = tpu.matmul %50, %51, %cst_24 {dimension_numbers = #tpu.dot_dimension_numbers<[1], [0], [0], [1], [0, 0, 1, 1], [], []>} : vector<2x64xf32>, vector<64x9xf32>, vector<2x9xf32> -> vector<2x9xf32>
    %c0_25 = arith.constant 0 : index
    %c0_26 = arith.constant 0 : index
    %53 = vector.load %arg6[%c0_25, %c0_26] : memref<1x9xf32, #tpu.memory_space<vmem>>, vector<1x9xf32>
    %54 = vector.broadcast %53 : vector<1x9xf32> to vector<2x9xf32>
    %55 = arith.addf %52, %54 : vector<2x9xf32>
    %c0_27 = arith.constant 0 : index
    %c0_28 = arith.constant 0 : index
    %56 = vector.load %arg7[%c0_27, %c0_28] : memref<2x9xf32, #tpu.memory_space<vmem>>, vector<2x9xf32>
    tpu.vector_store %arg7[%c0_27, %c0_28], %55 {strides = array<i32>} : memref<2x9xf32, #tpu.memory_space<vmem>>, vector<2x9xf32>,
    return
  }
}

module attributes {stable_mosaic.version = 11 : i64} {
  func.func @_transform_kernel(%arg0: i32, %arg1: i32, %arg2: memref<1x64x3xbf16, #tpu.memory_space<vmem>>, %arg3: memref<1x3x3xf32, #tpu.memory_space<vmem>>, %arg4: memref<1x3xf32, #tpu.memory_space<vmem>>, %arg5: memref<1x3xf32, #tpu.memory_space<vmem>>, %arg6: memref<1x64x3xbf16, #tpu.memory_space<vmem>>) attributes {dimension_semantics = [#tpu.dimension_semantics<parallel>, #tpu.dimension_semantics<parallel>], iteration_bounds = array<i64: 2, 1>, scalar_prefetch = 0 : i64, scratch_operands = 0 : i64, tpu.core_type = #tpu.core_type<tc>, window_params = [{transform_indices = @transform_0, window_bounds = array<i64: 1, 64, 3>}, {transform_indices = @transform_1, window_bounds = array<i64: 1, 3, 3>}, {pipeline_mode = #tpu.pipeline_mode<synchronous>, transform_indices = @transform_2, window_bounds = array<i64: 1, 3>}, {pipeline_mode = #tpu.pipeline_mode<synchronous>, transform_indices = @transform_3, window_bounds = array<i64: 1, 3>}, {transform_indices = @transform_4, window_bounds = array<i64: 1, 64, 3>}]} {
    %c0 = arith.constant 0 : index
    %c0_0 = arith.constant 0 : index
    %c0_1 = arith.constant 0 : index
    %0 = vector.load %arg2[%c0, %c0_0, %c0_1] : memref<1x64x3xbf16, #tpu.memory_space<vmem>>, vector<1x64x3xbf16>
    %1 = vector.shape_cast %0 : vector<1x64x3xbf16> to vector<64x3xbf16>
    %2 = arith.extf %1 : vector<64x3xbf16> to vector<64x3xf32>
    %c0_2 = arith.constant 0 : index
    %c0_3 = arith.constant 0 : index
    %3 = vector.load %arg4[%c0_2, %c0_3] : memref<1x3xf32, #tpu.memory_space<vmem>>, vector<1x3xf32>
    %4 = vector.broadcast %3 : vector<1x3xf32> to vector<64x3xf32>
    %5 = arith.subf %2, %4 : vector<64x3xf32>
    %c0_4 = arith.constant 0 : index
    %c0_5 = arith.constant 0 : index
    %6 = vector.load %arg5[%c0_4, %c0_5] : memref<1x3xf32, #tpu.memory_space<vmem>>, vector<1x3xf32>
    %7 = vector.broadcast %6 : vector<1x3xf32> to vector<64x3xf32>
    %8 = arith.mulf %5, %7 : vector<64x3xf32>
    %c0_6 = arith.constant 0 : index
    %c0_7 = arith.constant 0 : index
    %c0_8 = arith.constant 0 : index
    %9 = vector.load %arg3[%c0_6, %c0_7, %c0_8] : memref<1x3x3xf32, #tpu.memory_space<vmem>>, vector<1x3x3xf32>
    %10 = vector.shape_cast %9 : vector<1x3x3xf32> to vector<3x3xf32>
    %cst = arith.constant dense<0.000000e+00> : vector<64x3xf32>
    %11 = tpu.matmul %8, %10, %cst {dimension_numbers = #tpu.dot_dimension_numbers<[1], [0], [0], [1], [0, 0, 1, 1], [], []>} : vector<64x3xf32>, vector<3x3xf32>, vector<64x3xf32> -> vector<64x3xf32>
    %12 = arith.truncf %11 : vector<64x3xf32> to vector<64x3xbf16>
    %c0_9 = arith.constant 0 : index
    %c0_10 = arith.constant 0 : index
    %c0_11 = arith.constant 0 : index
    %13 = vector.load %arg6[%c0_9, %c0_10, %c0_11] : memref<1x64x3xbf16, #tpu.memory_space<vmem>>, vector<1x64x3xbf16>
    %14 = vector.shape_cast %13 : vector<1x64x3xbf16> to vector<64x3xbf16>
    %15 = vector.shape_cast %12 : vector<64x3xbf16> to vector<1x64x3xbf16>
    tpu.vector_store %arg6[%c0_9, %c0_10, %c0_11], %15 {strides = array<i32>} : memref<1x64x3xbf16, #tpu.memory_space<vmem>>, vector<1x64x3xbf16>,
    return
  }
  func.func @transform_0(%arg0: i32, %arg1: i32) -> (i32, i32, i32) {
    %c0_i32 = arith.constant 0 : i32
    %c0_i32_0 = arith.constant 0 : i32
    return %arg0, %arg1, %c0_i32 : i32, i32, i32
  }
  func.func @transform_1(%arg0: i32, %arg1: i32) -> (i32, i32, i32) {
    %c0_i32 = arith.constant 0 : i32
    %c0_i32_0 = arith.constant 0 : i32
    %c0_i32_1 = arith.constant 0 : i32
    return %arg0, %c0_i32, %c0_i32_0 : i32, i32, i32
  }
  func.func @transform_2(%arg0: i32, %arg1: i32) -> (i32, i32) {
    %c0_i32 = arith.constant 0 : i32
    %c0_i32_0 = arith.constant 0 : i32
    %c0_i32_1 = arith.constant 0 : i32
    return %c0_i32, %c0_i32_0 : i32, i32
  }
  func.func @transform_3(%arg0: i32, %arg1: i32) -> (i32, i32) {
    %c0_i32 = arith.constant 0 : i32
    %c0_i32_0 = arith.constant 0 : i32
    %c0_i32_1 = arith.constant 0 : i32
    return %c0_i32, %c0_i32_0 : i32, i32
  }
  func.func @transform_4(%arg0: i32, %arg1: i32) -> (i32, i32, i32) {
    %c0_i32 = arith.constant 0 : i32
    %c0_i32_0 = arith.constant 0 : i32
    return %arg0, %arg1, %c0_i32 : i32, i32, i32
  }
}

module attributes {stable_mosaic.version = 11 : i64} {
  func.func @_conv_relu_stats_kernel(%arg0: i32, %arg1: i32, %arg2: memref<128x8xbf16, #tpu.memory_space<vmem>>, %arg3: memref<8x8xbf16, #tpu.memory_space<vmem>>, %arg4: memref<1x8xf32, #tpu.memory_space<vmem>>, %arg5: memref<128x8xbf16, #tpu.memory_space<vmem>>, %arg6: memref<1x1x8xf32, #tpu.memory_space<vmem>>, %arg7: memref<1x1x8xf32, #tpu.memory_space<vmem>>) attributes {dimension_semantics = [#tpu.dimension_semantics<parallel>, #tpu.dimension_semantics<arbitrary>], iteration_bounds = array<i64: 1, 1>, scalar_prefetch = 0 : i64, scratch_operands = 0 : i64, tpu.core_type = #tpu.core_type<tc>, window_params = [{transform_indices = @transform_0, window_bounds = array<i64: 128, 8>}, {pipeline_mode = #tpu.pipeline_mode<synchronous>, transform_indices = @transform_1, window_bounds = array<i64: 8, 8>}, {pipeline_mode = #tpu.pipeline_mode<synchronous>, transform_indices = @transform_2, window_bounds = array<i64: 1, 8>}, {transform_indices = @transform_3, window_bounds = array<i64: 128, 8>}, {transform_indices = @transform_4, window_bounds = array<i64: 1, 1, 8>}, {transform_indices = @transform_5, window_bounds = array<i64: 1, 1, 8>}]} {
    %c0 = arith.constant 0 : index
    %c0_0 = arith.constant 0 : index
    %0 = vector.load %arg2[%c0, %c0_0] : memref<128x8xbf16, #tpu.memory_space<vmem>>, vector<128x8xbf16>
    %c0_1 = arith.constant 0 : index
    %c0_2 = arith.constant 0 : index
    %1 = vector.load %arg3[%c0_1, %c0_2] : memref<8x8xbf16, #tpu.memory_space<vmem>>, vector<8x8xbf16>
    %cst = arith.constant dense<0.000000e+00> : vector<128x8xf32>
    %2 = tpu.matmul %0, %1, %cst {dimension_numbers = #tpu.dot_dimension_numbers<[1], [0], [0], [1], [0, 0, 1, 1], [], []>} : vector<128x8xbf16>, vector<8x8xbf16>, vector<128x8xf32> -> vector<128x8xf32>
    %c0_3 = arith.constant 0 : index
    %c0_4 = arith.constant 0 : index
    %3 = vector.load %arg4[%c0_3, %c0_4] : memref<1x8xf32, #tpu.memory_space<vmem>>, vector<1x8xf32>
    %4 = vector.broadcast %3 : vector<1x8xf32> to vector<128x8xf32>
    %5 = arith.addf %2, %4 : vector<128x8xf32>
    %cst_5 = arith.constant 0.000000e+00 : f32
    %6 = vector.broadcast %cst_5 : f32 to vector<128x8xf32>
    %7 = arith.maximumf %5, %6 : vector<128x8xf32>
    %8 = arith.truncf %7 : vector<128x8xf32> to vector<128x8xbf16>
    %c0_6 = arith.constant 0 : index
    %c0_7 = arith.constant 0 : index
    %9 = vector.load %arg5[%c0_6, %c0_7] : memref<128x8xbf16, #tpu.memory_space<vmem>>, vector<128x8xbf16>
    tpu.vector_store %arg5[%c0_6, %c0_7], %8 {strides = array<i32>} : memref<128x8xbf16, #tpu.memory_space<vmem>>, vector<128x8xbf16>,
    %c0_i32 = arith.constant 0 : i32
    %10 = arith.cmpi eq, %arg1, %c0_i32 : i32
    %11 = arith.extui %10 : i1 to i32
    %c0_i32_8 = arith.constant 0 : i32
    %12 = arith.cmpi ne, %11, %c0_i32_8 : i32
    scf.if %12 {
      %cst_23 = arith.constant 0.000000e+00 : f32
      %30 = vector.broadcast %cst_23 : f32 to vector<1x1x8xf32>
      %c0_24 = arith.constant 0 : index
      %c0_25 = arith.constant 0 : index
      %c0_26 = arith.constant 0 : index
      %31 = vector.load %arg6[%c0_24, %c0_25, %c0_26] : memref<1x1x8xf32, #tpu.memory_space<vmem>>, vector<1x1x8xf32>
      tpu.vector_store %arg6[%c0_24, %c0_25, %c0_26], %30 {strides = array<i32>} : memref<1x1x8xf32, #tpu.memory_space<vmem>>, vector<1x1x8xf32>,
      %cst_27 = arith.constant 0.000000e+00 : f32
      %32 = vector.broadcast %cst_27 : f32 to vector<1x1x8xf32>
      %c0_28 = arith.constant 0 : index
      %c0_29 = arith.constant 0 : index
      %c0_30 = arith.constant 0 : index
      %33 = vector.load %arg7[%c0_28, %c0_29, %c0_30] : memref<1x1x8xf32, #tpu.memory_space<vmem>>, vector<1x1x8xf32>
      tpu.vector_store %arg7[%c0_28, %c0_29, %c0_30], %32 {strides = array<i32>} : memref<1x1x8xf32, #tpu.memory_space<vmem>>, vector<1x1x8xf32>,
    } else {
    }
    %c0_9 = arith.constant 0 : index
    %c0_10 = arith.constant 0 : index
    %c0_11 = arith.constant 0 : index
    %13 = vector.load %arg6[%c0_9, %c0_10, %c0_11] : memref<1x1x8xf32, #tpu.memory_space<vmem>>, vector<1x1x8xf32>
    %14 = vector.shape_cast %13 : vector<1x1x8xf32> to vector<1x8xf32>
    %cst_12 = arith.constant dense<0.000000e+00> : vector<8xf32>
    %15 = vector.multi_reduction <add>, %7, %cst_12 [0] : vector<128x8xf32> to vector<8xf32>
    %16 = vector.shape_cast %15 : vector<8xf32> to vector<1x8xf32>
    %17 = arith.addf %14, %16 : vector<1x8xf32>
    %c0_13 = arith.constant 0 : index
    %c0_14 = arith.constant 0 : index
    %c0_15 = arith.constant 0 : index
    %18 = vector.load %arg6[%c0_13, %c0_14, %c0_15] : memref<1x1x8xf32, #tpu.memory_space<vmem>>, vector<1x1x8xf32>
    %19 = vector.shape_cast %18 : vector<1x1x8xf32> to vector<1x8xf32>
    %20 = vector.shape_cast %17 : vector<1x8xf32> to vector<1x1x8xf32>
    tpu.vector_store %arg6[%c0_13, %c0_14, %c0_15], %20 {strides = array<i32>} : memref<1x1x8xf32, #tpu.memory_space<vmem>>, vector<1x1x8xf32>,
    %c0_16 = arith.constant 0 : index
    %c0_17 = arith.constant 0 : index
    %c0_18 = arith.constant 0 : index
    %21 = vector.load %arg7[%c0_16, %c0_17, %c0_18] : memref<1x1x8xf32, #tpu.memory_space<vmem>>, vector<1x1x8xf32>
    %22 = vector.shape_cast %21 : vector<1x1x8xf32> to vector<1x8xf32>
    %23 = arith.mulf %7, %7 : vector<128x8xf32>
    %cst_19 = arith.constant dense<0.000000e+00> : vector<8xf32>
    %24 = vector.multi_reduction <add>, %23, %cst_19 [0] : vector<128x8xf32> to vector<8xf32>
    %25 = vector.shape_cast %24 : vector<8xf32> to vector<1x8xf32>
    %26 = arith.addf %22, %25 : vector<1x8xf32>
    %c0_20 = arith.constant 0 : index
    %c0_21 = arith.constant 0 : index
    %c0_22 = arith.constant 0 : index
    %27 = vector.load %arg7[%c0_20, %c0_21, %c0_22] : memref<1x1x8xf32, #tpu.memory_space<vmem>>, vector<1x1x8xf32>
    %28 = vector.shape_cast %27 : vector<1x1x8xf32> to vector<1x8xf32>
    %29 = vector.shape_cast %26 : vector<1x8xf32> to vector<1x1x8xf32>
    tpu.vector_store %arg7[%c0_20, %c0_21, %c0_22], %29 {strides = array<i32>} : memref<1x1x8xf32, #tpu.memory_space<vmem>>, vector<1x1x8xf32>,
    return
  }
  func.func @transform_0(%arg0: i32, %arg1: i32) -> (i32, i32) {
    %c1_i32 = arith.constant 1 : i32
    %0 = arith.muli %arg0, %c1_i32 : i32
    %1 = arith.addi %0, %arg1 : i32
    %c0_i32 = arith.constant 0 : i32
    %c0_i32_0 = arith.constant 0 : i32
    return %1, %c0_i32 : i32, i32
  }
  func.func @transform_1(%arg0: i32, %arg1: i32) -> (i32, i32) {
    %c0_i32 = arith.constant 0 : i32
    %c0_i32_0 = arith.constant 0 : i32
    %c0_i32_1 = arith.constant 0 : i32
    return %c0_i32, %c0_i32_0 : i32, i32
  }
  func.func @transform_2(%arg0: i32, %arg1: i32) -> (i32, i32) {
    %c0_i32 = arith.constant 0 : i32
    %c0_i32_0 = arith.constant 0 : i32
    %c0_i32_1 = arith.constant 0 : i32
    return %c0_i32, %c0_i32_0 : i32, i32
  }
  func.func @transform_3(%arg0: i32, %arg1: i32) -> (i32, i32) {
    %c1_i32 = arith.constant 1 : i32
    %0 = arith.muli %arg0, %c1_i32 : i32
    %1 = arith.addi %0, %arg1 : i32
    %c0_i32 = arith.constant 0 : i32
    %c0_i32_0 = arith.constant 0 : i32
    return %1, %c0_i32 : i32, i32
  }
  func.func @transform_4(%arg0: i32, %arg1: i32) -> (i32, i32, i32) {
    %c0_i32 = arith.constant 0 : i32
    %c0_i32_0 = arith.constant 0 : i32
    %c0_i32_1 = arith.constant 0 : i32
    return %arg0, %c0_i32, %c0_i32_0 : i32, i32, i32
  }
  func.func @transform_5(%arg0: i32, %arg1: i32) -> (i32, i32, i32) {
    %c0_i32 = arith.constant 0 : i32
    %c0_i32_0 = arith.constant 0 : i32
    %c0_i32_1 = arith.constant 0 : i32
    return %arg0, %c0_i32, %c0_i32_0 : i32, i32, i32
  }
}

module attributes {stable_mosaic.version = 11 : i64} {
  func.func @_conv_relu_stats_kernel(%arg0: i32, %arg1: i32, %arg2: memref<128x3xbf16, #tpu.memory_space<vmem>>, %arg3: memref<3x8xbf16, #tpu.memory_space<vmem>>, %arg4: memref<1x8xf32, #tpu.memory_space<vmem>>, %arg5: memref<128x8xbf16, #tpu.memory_space<vmem>>, %arg6: memref<1x1x8xf32, #tpu.memory_space<vmem>>, %arg7: memref<1x1x8xf32, #tpu.memory_space<vmem>>) attributes {dimension_semantics = [#tpu.dimension_semantics<parallel>, #tpu.dimension_semantics<arbitrary>], iteration_bounds = array<i64: 1, 1>, scalar_prefetch = 0 : i64, scratch_operands = 0 : i64, tpu.core_type = #tpu.core_type<tc>, window_params = [{transform_indices = @transform_0, window_bounds = array<i64: 128, 3>}, {pipeline_mode = #tpu.pipeline_mode<synchronous>, transform_indices = @transform_1, window_bounds = array<i64: 3, 8>}, {pipeline_mode = #tpu.pipeline_mode<synchronous>, transform_indices = @transform_2, window_bounds = array<i64: 1, 8>}, {transform_indices = @transform_3, window_bounds = array<i64: 128, 8>}, {transform_indices = @transform_4, window_bounds = array<i64: 1, 1, 8>}, {transform_indices = @transform_5, window_bounds = array<i64: 1, 1, 8>}]} {
    %c0 = arith.constant 0 : index
    %c0_0 = arith.constant 0 : index
    %0 = vector.load %arg2[%c0, %c0_0] : memref<128x3xbf16, #tpu.memory_space<vmem>>, vector<128x3xbf16>
    %c0_1 = arith.constant 0 : index
    %c0_2 = arith.constant 0 : index
    %1 = vector.load %arg3[%c0_1, %c0_2] : memref<3x8xbf16, #tpu.memory_space<vmem>>, vector<3x8xbf16>
    %cst = arith.constant dense<0.000000e+00> : vector<128x8xf32>
    %2 = tpu.matmul %0, %1, %cst {dimension_numbers = #tpu.dot_dimension_numbers<[1], [0], [0], [1], [0, 0, 1, 1], [], []>} : vector<128x3xbf16>, vector<3x8xbf16>, vector<128x8xf32> -> vector<128x8xf32>
    %c0_3 = arith.constant 0 : index
    %c0_4 = arith.constant 0 : index
    %3 = vector.load %arg4[%c0_3, %c0_4] : memref<1x8xf32, #tpu.memory_space<vmem>>, vector<1x8xf32>
    %4 = vector.broadcast %3 : vector<1x8xf32> to vector<128x8xf32>
    %5 = arith.addf %2, %4 : vector<128x8xf32>
    %cst_5 = arith.constant 0.000000e+00 : f32
    %6 = vector.broadcast %cst_5 : f32 to vector<128x8xf32>
    %7 = arith.maximumf %5, %6 : vector<128x8xf32>
    %8 = arith.truncf %7 : vector<128x8xf32> to vector<128x8xbf16>
    %c0_6 = arith.constant 0 : index
    %c0_7 = arith.constant 0 : index
    %9 = vector.load %arg5[%c0_6, %c0_7] : memref<128x8xbf16, #tpu.memory_space<vmem>>, vector<128x8xbf16>
    tpu.vector_store %arg5[%c0_6, %c0_7], %8 {strides = array<i32>} : memref<128x8xbf16, #tpu.memory_space<vmem>>, vector<128x8xbf16>,
    %c0_i32 = arith.constant 0 : i32
    %10 = arith.cmpi eq, %arg1, %c0_i32 : i32
    %11 = arith.extui %10 : i1 to i32
    %c0_i32_8 = arith.constant 0 : i32
    %12 = arith.cmpi ne, %11, %c0_i32_8 : i32
    scf.if %12 {
      %cst_23 = arith.constant 0.000000e+00 : f32
      %30 = vector.broadcast %cst_23 : f32 to vector<1x1x8xf32>
      %c0_24 = arith.constant 0 : index
      %c0_25 = arith.constant 0 : index
      %c0_26 = arith.constant 0 : index
      %31 = vector.load %arg6[%c0_24, %c0_25, %c0_26] : memref<1x1x8xf32, #tpu.memory_space<vmem>>, vector<1x1x8xf32>
      tpu.vector_store %arg6[%c0_24, %c0_25, %c0_26], %30 {strides = array<i32>} : memref<1x1x8xf32, #tpu.memory_space<vmem>>, vector<1x1x8xf32>,
      %cst_27 = arith.constant 0.000000e+00 : f32
      %32 = vector.broadcast %cst_27 : f32 to vector<1x1x8xf32>
      %c0_28 = arith.constant 0 : index
      %c0_29 = arith.constant 0 : index
      %c0_30 = arith.constant 0 : index
      %33 = vector.load %arg7[%c0_28, %c0_29, %c0_30] : memref<1x1x8xf32, #tpu.memory_space<vmem>>, vector<1x1x8xf32>
      tpu.vector_store %arg7[%c0_28, %c0_29, %c0_30], %32 {strides = array<i32>} : memref<1x1x8xf32, #tpu.memory_space<vmem>>, vector<1x1x8xf32>,
    } else {
    }
    %c0_9 = arith.constant 0 : index
    %c0_10 = arith.constant 0 : index
    %c0_11 = arith.constant 0 : index
    %13 = vector.load %arg6[%c0_9, %c0_10, %c0_11] : memref<1x1x8xf32, #tpu.memory_space<vmem>>, vector<1x1x8xf32>
    %14 = vector.shape_cast %13 : vector<1x1x8xf32> to vector<1x8xf32>
    %cst_12 = arith.constant dense<0.000000e+00> : vector<8xf32>
    %15 = vector.multi_reduction <add>, %7, %cst_12 [0] : vector<128x8xf32> to vector<8xf32>
    %16 = vector.shape_cast %15 : vector<8xf32> to vector<1x8xf32>
    %17 = arith.addf %14, %16 : vector<1x8xf32>
    %c0_13 = arith.constant 0 : index
    %c0_14 = arith.constant 0 : index
    %c0_15 = arith.constant 0 : index
    %18 = vector.load %arg6[%c0_13, %c0_14, %c0_15] : memref<1x1x8xf32, #tpu.memory_space<vmem>>, vector<1x1x8xf32>
    %19 = vector.shape_cast %18 : vector<1x1x8xf32> to vector<1x8xf32>
    %20 = vector.shape_cast %17 : vector<1x8xf32> to vector<1x1x8xf32>
    tpu.vector_store %arg6[%c0_13, %c0_14, %c0_15], %20 {strides = array<i32>} : memref<1x1x8xf32, #tpu.memory_space<vmem>>, vector<1x1x8xf32>,
    %c0_16 = arith.constant 0 : index
    %c0_17 = arith.constant 0 : index
    %c0_18 = arith.constant 0 : index
    %21 = vector.load %arg7[%c0_16, %c0_17, %c0_18] : memref<1x1x8xf32, #tpu.memory_space<vmem>>, vector<1x1x8xf32>
    %22 = vector.shape_cast %21 : vector<1x1x8xf32> to vector<1x8xf32>
    %23 = arith.mulf %7, %7 : vector<128x8xf32>
    %cst_19 = arith.constant dense<0.000000e+00> : vector<8xf32>
    %24 = vector.multi_reduction <add>, %23, %cst_19 [0] : vector<128x8xf32> to vector<8xf32>
    %25 = vector.shape_cast %24 : vector<8xf32> to vector<1x8xf32>
    %26 = arith.addf %22, %25 : vector<1x8xf32>
    %c0_20 = arith.constant 0 : index
    %c0_21 = arith.constant 0 : index
    %c0_22 = arith.constant 0 : index
    %27 = vector.load %arg7[%c0_20, %c0_21, %c0_22] : memref<1x1x8xf32, #tpu.memory_space<vmem>>, vector<1x1x8xf32>
    %28 = vector.shape_cast %27 : vector<1x1x8xf32> to vector<1x8xf32>
    %29 = vector.shape_cast %26 : vector<1x8xf32> to vector<1x1x8xf32>
    tpu.vector_store %arg7[%c0_20, %c0_21, %c0_22], %29 {strides = array<i32>} : memref<1x1x8xf32, #tpu.memory_space<vmem>>, vector<1x1x8xf32>,
    return
  }
  func.func @transform_0(%arg0: i32, %arg1: i32) -> (i32, i32) {
    %c1_i32 = arith.constant 1 : i32
    %0 = arith.muli %arg0, %c1_i32 : i32
    %1 = arith.addi %0, %arg1 : i32
    %c0_i32 = arith.constant 0 : i32
    %c0_i32_0 = arith.constant 0 : i32
    return %1, %c0_i32 : i32, i32
  }
  func.func @transform_1(%arg0: i32, %arg1: i32) -> (i32, i32) {
    %c0_i32 = arith.constant 0 : i32
    %c0_i32_0 = arith.constant 0 : i32
    %c0_i32_1 = arith.constant 0 : i32
    return %c0_i32, %c0_i32_0 : i32, i32
  }
  func.func @transform_2(%arg0: i32, %arg1: i32) -> (i32, i32) {
    %c0_i32 = arith.constant 0 : i32
    %c0_i32_0 = arith.constant 0 : i32
    %c0_i32_1 = arith.constant 0 : i32
    return %c0_i32, %c0_i32_0 : i32, i32
  }
  func.func @transform_3(%arg0: i32, %arg1: i32) -> (i32, i32) {
    %c1_i32 = arith.constant 1 : i32
    %0 = arith.muli %arg0, %c1_i32 : i32
    %1 = arith.addi %0, %arg1 : i32
    %c0_i32 = arith.constant 0 : i32
    %c0_i32_0 = arith.constant 0 : i32
    return %1, %c0_i32 : i32, i32
  }
  func.func @transform_4(%arg0: i32, %arg1: i32) -> (i32, i32, i32) {
    %c0_i32 = arith.constant 0 : i32
    %c0_i32_0 = arith.constant 0 : i32
    %c0_i32_1 = arith.constant 0 : i32
    return %arg0, %c0_i32, %c0_i32_0 : i32, i32, i32
  }
  func.func @transform_5(%arg0: i32, %arg1: i32) -> (i32, i32, i32) {
    %c0_i32 = arith.constant 0 : i32
    %c0_i32_0 = arith.constant 0 : i32
    %c0_i32_1 = arith.constant 0 : i32
    return %arg0, %c0_i32, %c0_i32_0 : i32, i32, i32
  }
}

module attributes {stable_mosaic.version = 11 : i64} {
  func.func @_conv_relu_stats_kernel(%arg0: i32, %arg1: i32, %arg2: memref<128x8xbf16, #tpu.memory_space<vmem>>, %arg3: memref<8x64xbf16, #tpu.memory_space<vmem>>, %arg4: memref<1x64xf32, #tpu.memory_space<vmem>>, %arg5: memref<128x64xbf16, #tpu.memory_space<vmem>>, %arg6: memref<1x1x64xf32, #tpu.memory_space<vmem>>, %arg7: memref<1x1x64xf32, #tpu.memory_space<vmem>>) attributes {dimension_semantics = [#tpu.dimension_semantics<parallel>, #tpu.dimension_semantics<arbitrary>], iteration_bounds = array<i64: 1, 1>, scalar_prefetch = 0 : i64, scratch_operands = 0 : i64, tpu.core_type = #tpu.core_type<tc>, window_params = [{transform_indices = @transform_0, window_bounds = array<i64: 128, 8>}, {pipeline_mode = #tpu.pipeline_mode<synchronous>, transform_indices = @transform_1, window_bounds = array<i64: 8, 64>}, {pipeline_mode = #tpu.pipeline_mode<synchronous>, transform_indices = @transform_2, window_bounds = array<i64: 1, 64>}, {transform_indices = @transform_3, window_bounds = array<i64: 128, 64>}, {transform_indices = @transform_4, window_bounds = array<i64: 1, 1, 64>}, {transform_indices = @transform_5, window_bounds = array<i64: 1, 1, 64>}]} {
    %c0 = arith.constant 0 : index
    %c0_0 = arith.constant 0 : index
    %0 = vector.load %arg2[%c0, %c0_0] : memref<128x8xbf16, #tpu.memory_space<vmem>>, vector<128x8xbf16>
    %c0_1 = arith.constant 0 : index
    %c0_2 = arith.constant 0 : index
    %1 = vector.load %arg3[%c0_1, %c0_2] : memref<8x64xbf16, #tpu.memory_space<vmem>>, vector<8x64xbf16>
    %cst = arith.constant dense<0.000000e+00> : vector<128x64xf32>
    %2 = tpu.matmul %0, %1, %cst {dimension_numbers = #tpu.dot_dimension_numbers<[1], [0], [0], [1], [0, 0, 1, 1], [], []>} : vector<128x8xbf16>, vector<8x64xbf16>, vector<128x64xf32> -> vector<128x64xf32>
    %c0_3 = arith.constant 0 : index
    %c0_4 = arith.constant 0 : index
    %3 = vector.load %arg4[%c0_3, %c0_4] : memref<1x64xf32, #tpu.memory_space<vmem>>, vector<1x64xf32>
    %4 = vector.broadcast %3 : vector<1x64xf32> to vector<128x64xf32>
    %5 = arith.addf %2, %4 : vector<128x64xf32>
    %cst_5 = arith.constant 0.000000e+00 : f32
    %6 = vector.broadcast %cst_5 : f32 to vector<128x64xf32>
    %7 = arith.maximumf %5, %6 : vector<128x64xf32>
    %8 = arith.truncf %7 : vector<128x64xf32> to vector<128x64xbf16>
    %c0_6 = arith.constant 0 : index
    %c0_7 = arith.constant 0 : index
    %9 = vector.load %arg5[%c0_6, %c0_7] : memref<128x64xbf16, #tpu.memory_space<vmem>>, vector<128x64xbf16>
    tpu.vector_store %arg5[%c0_6, %c0_7], %8 {strides = array<i32>} : memref<128x64xbf16, #tpu.memory_space<vmem>>, vector<128x64xbf16>,
    %c0_i32 = arith.constant 0 : i32
    %10 = arith.cmpi eq, %arg1, %c0_i32 : i32
    %11 = arith.extui %10 : i1 to i32
    %c0_i32_8 = arith.constant 0 : i32
    %12 = arith.cmpi ne, %11, %c0_i32_8 : i32
    scf.if %12 {
      %cst_23 = arith.constant 0.000000e+00 : f32
      %30 = vector.broadcast %cst_23 : f32 to vector<1x1x64xf32>
      %c0_24 = arith.constant 0 : index
      %c0_25 = arith.constant 0 : index
      %c0_26 = arith.constant 0 : index
      %31 = vector.load %arg6[%c0_24, %c0_25, %c0_26] : memref<1x1x64xf32, #tpu.memory_space<vmem>>, vector<1x1x64xf32>
      tpu.vector_store %arg6[%c0_24, %c0_25, %c0_26], %30 {strides = array<i32>} : memref<1x1x64xf32, #tpu.memory_space<vmem>>, vector<1x1x64xf32>,
      %cst_27 = arith.constant 0.000000e+00 : f32
      %32 = vector.broadcast %cst_27 : f32 to vector<1x1x64xf32>
      %c0_28 = arith.constant 0 : index
      %c0_29 = arith.constant 0 : index
      %c0_30 = arith.constant 0 : index
      %33 = vector.load %arg7[%c0_28, %c0_29, %c0_30] : memref<1x1x64xf32, #tpu.memory_space<vmem>>, vector<1x1x64xf32>
      tpu.vector_store %arg7[%c0_28, %c0_29, %c0_30], %32 {strides = array<i32>} : memref<1x1x64xf32, #tpu.memory_space<vmem>>, vector<1x1x64xf32>,
    } else {
    }
    %c0_9 = arith.constant 0 : index
    %c0_10 = arith.constant 0 : index
    %c0_11 = arith.constant 0 : index
    %13 = vector.load %arg6[%c0_9, %c0_10, %c0_11] : memref<1x1x64xf32, #tpu.memory_space<vmem>>, vector<1x1x64xf32>
    %14 = vector.shape_cast %13 : vector<1x1x64xf32> to vector<1x64xf32>
    %cst_12 = arith.constant dense<0.000000e+00> : vector<64xf32>
    %15 = vector.multi_reduction <add>, %7, %cst_12 [0] : vector<128x64xf32> to vector<64xf32>
    %16 = vector.shape_cast %15 : vector<64xf32> to vector<1x64xf32>
    %17 = arith.addf %14, %16 : vector<1x64xf32>
    %c0_13 = arith.constant 0 : index
    %c0_14 = arith.constant 0 : index
    %c0_15 = arith.constant 0 : index
    %18 = vector.load %arg6[%c0_13, %c0_14, %c0_15] : memref<1x1x64xf32, #tpu.memory_space<vmem>>, vector<1x1x64xf32>
    %19 = vector.shape_cast %18 : vector<1x1x64xf32> to vector<1x64xf32>
    %20 = vector.shape_cast %17 : vector<1x64xf32> to vector<1x1x64xf32>
    tpu.vector_store %arg6[%c0_13, %c0_14, %c0_15], %20 {strides = array<i32>} : memref<1x1x64xf32, #tpu.memory_space<vmem>>, vector<1x1x64xf32>,
    %c0_16 = arith.constant 0 : index
    %c0_17 = arith.constant 0 : index
    %c0_18 = arith.constant 0 : index
    %21 = vector.load %arg7[%c0_16, %c0_17, %c0_18] : memref<1x1x64xf32, #tpu.memory_space<vmem>>, vector<1x1x64xf32>
    %22 = vector.shape_cast %21 : vector<1x1x64xf32> to vector<1x64xf32>
    %23 = arith.mulf %7, %7 : vector<128x64xf32>
    %cst_19 = arith.constant dense<0.000000e+00> : vector<64xf32>
    %24 = vector.multi_reduction <add>, %23, %cst_19 [0] : vector<128x64xf32> to vector<64xf32>
    %25 = vector.shape_cast %24 : vector<64xf32> to vector<1x64xf32>
    %26 = arith.addf %22, %25 : vector<1x64xf32>
    %c0_20 = arith.constant 0 : index
    %c0_21 = arith.constant 0 : index
    %c0_22 = arith.constant 0 : index
    %27 = vector.load %arg7[%c0_20, %c0_21, %c0_22] : memref<1x1x64xf32, #tpu.memory_space<vmem>>, vector<1x1x64xf32>
    %28 = vector.shape_cast %27 : vector<1x1x64xf32> to vector<1x64xf32>
    %29 = vector.shape_cast %26 : vector<1x64xf32> to vector<1x1x64xf32>
    tpu.vector_store %arg7[%c0_20, %c0_21, %c0_22], %29 {strides = array<i32>} : memref<1x1x64xf32, #tpu.memory_space<vmem>>, vector<1x1x64xf32>,
    return
  }
  func.func @transform_0(%arg0: i32, %arg1: i32) -> (i32, i32) {
    %c1_i32 = arith.constant 1 : i32
    %0 = arith.muli %arg0, %c1_i32 : i32
    %1 = arith.addi %0, %arg1 : i32
    %c0_i32 = arith.constant 0 : i32
    %c0_i32_0 = arith.constant 0 : i32
    return %1, %c0_i32 : i32, i32
  }
  func.func @transform_1(%arg0: i32, %arg1: i32) -> (i32, i32) {
    %c0_i32 = arith.constant 0 : i32
    %c0_i32_0 = arith.constant 0 : i32
    %c0_i32_1 = arith.constant 0 : i32
    return %c0_i32, %c0_i32_0 : i32, i32
  }
  func.func @transform_2(%arg0: i32, %arg1: i32) -> (i32, i32) {
    %c0_i32 = arith.constant 0 : i32
    %c0_i32_0 = arith.constant 0 : i32
    %c0_i32_1 = arith.constant 0 : i32
    return %c0_i32, %c0_i32_0 : i32, i32
  }
  func.func @transform_3(%arg0: i32, %arg1: i32) -> (i32, i32) {
    %c1_i32 = arith.constant 1 : i32
    %0 = arith.muli %arg0, %c1_i32 : i32
    %1 = arith.addi %0, %arg1 : i32
    %c0_i32 = arith.constant 0 : i32
    %c0_i32_0 = arith.constant 0 : i32
    return %1, %c0_i32 : i32, i32
  }
  func.func @transform_4(%arg0: i32, %arg1: i32) -> (i32, i32, i32) {
    %c0_i32 = arith.constant 0 : i32
    %c0_i32_0 = arith.constant 0 : i32
    %c0_i32_1 = arith.constant 0 : i32
    return %arg0, %c0_i32, %c0_i32_0 : i32, i32, i32
  }
  func.func @transform_5(%arg0: i32, %arg1: i32) -> (i32, i32, i32) {
    %c0_i32 = arith.constant 0 : i32
    %c0_i32_0 = arith.constant 0 : i32
    %c0_i32_1 = arith.constant 0 : i32
    return %arg0, %c0_i32, %c0_i32_0 : i32, i32, i32
  }
}

module attributes {stable_mosaic.version = 11 : i64} {
  func.func @_tnet_tail_kernel(%arg0: memref<2x256xf32, #tpu.memory_space<vmem>>, %arg1: memref<256x128xf32, #tpu.memory_space<vmem>>, %arg2: memref<1x128xf32, #tpu.memory_space<vmem>>, %arg3: memref<128x64xf32, #tpu.memory_space<vmem>>, %arg4: memref<1x64xf32, #tpu.memory_space<vmem>>, %arg5: memref<64x64xf32, #tpu.memory_space<vmem>>, %arg6: memref<1x64xf32, #tpu.memory_space<vmem>>, %arg7: memref<2x64xf32, #tpu.memory_space<vmem>>) attributes {dimension_semantics = [], scalar_prefetch = 0 : i64, scratch_operands = 0 : i64, tpu.core_type = #tpu.core_type<tc>} {
    %c0 = arith.constant 0 : index
    %c0_0 = arith.constant 0 : index
    %0 = vector.load %arg0[%c0, %c0_0] : memref<2x256xf32, #tpu.memory_space<vmem>>, vector<2x256xf32>
    %c0_1 = arith.constant 0 : index
    %c0_2 = arith.constant 0 : index
    %1 = vector.load %arg1[%c0_1, %c0_2] : memref<256x128xf32, #tpu.memory_space<vmem>>, vector<256x128xf32>
    %cst = arith.constant dense<0.000000e+00> : vector<2x128xf32>
    %2 = tpu.matmul %0, %1, %cst {dimension_numbers = #tpu.dot_dimension_numbers<[1], [0], [0], [1], [0, 0, 1, 1], [], []>} : vector<2x256xf32>, vector<256x128xf32>, vector<2x128xf32> -> vector<2x128xf32>
    %c0_3 = arith.constant 0 : index
    %c0_4 = arith.constant 0 : index
    %3 = vector.load %arg2[%c0_3, %c0_4] : memref<1x128xf32, #tpu.memory_space<vmem>>, vector<1x128xf32>
    %4 = vector.broadcast %3 : vector<1x128xf32> to vector<2x128xf32>
    %5 = arith.addf %2, %4 : vector<2x128xf32>
    %cst_5 = arith.constant 0.000000e+00 : f32
    %6 = vector.broadcast %cst_5 : f32 to vector<2x128xf32>
    %7 = arith.maximumf %5, %6 : vector<2x128xf32>
    %cst_6 = arith.constant dense<0.000000e+00> : vector<128xf32>
    %8 = vector.multi_reduction <add>, %7, %cst_6 [0] : vector<2x128xf32> to vector<128xf32>
    %9 = vector.shape_cast %8 : vector<128xf32> to vector<1x128xf32>
    %cst_7 = arith.constant 2.000000e+00 : f32
    %10 = vector.broadcast %cst_7 : f32 to vector<1x128xf32>
    %11 = arith.divf %9, %10 : vector<1x128xf32>
    %12 = vector.broadcast %11 : vector<1x128xf32> to vector<2x128xf32>
    %13 = arith.subf %7, %12 : vector<2x128xf32>
    %14 = arith.mulf %13, %13 : vector<2x128xf32>
    %cst_8 = arith.constant dense<0.000000e+00> : vector<128xf32>
    %15 = vector.multi_reduction <add>, %14, %cst_8 [0] : vector<2x128xf32> to vector<128xf32>
    %16 = vector.shape_cast %15 : vector<128xf32> to vector<1x128xf32>
    %cst_9 = arith.constant 2.000000e+00 : f32
    %17 = vector.broadcast %cst_9 : f32 to vector<1x128xf32>
    %18 = arith.divf %16, %17 : vector<1x128xf32>
    %19 = vector.broadcast %11 : vector<1x128xf32> to vector<2x128xf32>
    %20 = arith.subf %7, %19 : vector<2x128xf32>
    %cst_10 = arith.constant 9.99999974E-6 : f32
    %21 = vector.broadcast %cst_10 : f32 to vector<1x128xf32>
    %22 = arith.addf %18, %21 : vector<1x128xf32>
    %23 = math.rsqrt %22 : vector<1x128xf32>
    %24 = vector.broadcast %23 : vector<1x128xf32> to vector<2x128xf32>
    %25 = arith.mulf %20, %24 : vector<2x128xf32>
    %c0_11 = arith.constant 0 : index
    %c0_12 = arith.constant 0 : index
    %26 = vector.load %arg3[%c0_11, %c0_12] : memref<128x64xf32, #tpu.memory_space<vmem>>, vector<128x64xf32>
    %cst_13 = arith.constant dense<0.000000e+00> : vector<2x64xf32>
    %27 = tpu.matmul %25, %26, %cst_13 {dimension_numbers = #tpu.dot_dimension_numbers<[1], [0], [0], [1], [0, 0, 1, 1], [], []>} : vector<2x128xf32>, vector<128x64xf32>, vector<2x64xf32> -> vector<2x64xf32>
    %c0_14 = arith.constant 0 : index
    %c0_15 = arith.constant 0 : index
    %28 = vector.load %arg4[%c0_14, %c0_15] : memref<1x64xf32, #tpu.memory_space<vmem>>, vector<1x64xf32>
    %29 = vector.broadcast %28 : vector<1x64xf32> to vector<2x64xf32>
    %30 = arith.addf %27, %29 : vector<2x64xf32>
    %cst_16 = arith.constant 0.000000e+00 : f32
    %31 = vector.broadcast %cst_16 : f32 to vector<2x64xf32>
    %32 = arith.maximumf %30, %31 : vector<2x64xf32>
    %cst_17 = arith.constant dense<0.000000e+00> : vector<64xf32>
    %33 = vector.multi_reduction <add>, %32, %cst_17 [0] : vector<2x64xf32> to vector<64xf32>
    %34 = vector.shape_cast %33 : vector<64xf32> to vector<1x64xf32>
    %cst_18 = arith.constant 2.000000e+00 : f32
    %35 = vector.broadcast %cst_18 : f32 to vector<1x64xf32>
    %36 = arith.divf %34, %35 : vector<1x64xf32>
    %37 = vector.broadcast %36 : vector<1x64xf32> to vector<2x64xf32>
    %38 = arith.subf %32, %37 : vector<2x64xf32>
    %39 = arith.mulf %38, %38 : vector<2x64xf32>
    %cst_19 = arith.constant dense<0.000000e+00> : vector<64xf32>
    %40 = vector.multi_reduction <add>, %39, %cst_19 [0] : vector<2x64xf32> to vector<64xf32>
    %41 = vector.shape_cast %40 : vector<64xf32> to vector<1x64xf32>
    %cst_20 = arith.constant 2.000000e+00 : f32
    %42 = vector.broadcast %cst_20 : f32 to vector<1x64xf32>
    %43 = arith.divf %41, %42 : vector<1x64xf32>
    %44 = vector.broadcast %36 : vector<1x64xf32> to vector<2x64xf32>
    %45 = arith.subf %32, %44 : vector<2x64xf32>
    %cst_21 = arith.constant 9.99999974E-6 : f32
    %46 = vector.broadcast %cst_21 : f32 to vector<1x64xf32>
    %47 = arith.addf %43, %46 : vector<1x64xf32>
    %48 = math.rsqrt %47 : vector<1x64xf32>
    %49 = vector.broadcast %48 : vector<1x64xf32> to vector<2x64xf32>
    %50 = arith.mulf %45, %49 : vector<2x64xf32>
    %c0_22 = arith.constant 0 : index
    %c0_23 = arith.constant 0 : index
    %51 = vector.load %arg5[%c0_22, %c0_23] : memref<64x64xf32, #tpu.memory_space<vmem>>, vector<64x64xf32>
    %cst_24 = arith.constant dense<0.000000e+00> : vector<2x64xf32>
    %52 = tpu.matmul %50, %51, %cst_24 {dimension_numbers = #tpu.dot_dimension_numbers<[1], [0], [0], [1], [0, 0, 1, 1], [], []>} : vector<2x64xf32>, vector<64x64xf32>, vector<2x64xf32> -> vector<2x64xf32>
    %c0_25 = arith.constant 0 : index
    %c0_26 = arith.constant 0 : index
    %53 = vector.load %arg6[%c0_25, %c0_26] : memref<1x64xf32, #tpu.memory_space<vmem>>, vector<1x64xf32>
    %54 = vector.broadcast %53 : vector<1x64xf32> to vector<2x64xf32>
    %55 = arith.addf %52, %54 : vector<2x64xf32>
    %c0_27 = arith.constant 0 : index
    %c0_28 = arith.constant 0 : index
    %56 = vector.load %arg7[%c0_27, %c0_28] : memref<2x64xf32, #tpu.memory_space<vmem>>, vector<2x64xf32>
    tpu.vector_store %arg7[%c0_27, %c0_28], %55 {strides = array<i32>} : memref<2x64xf32, #tpu.memory_space<vmem>>, vector<2x64xf32>,
    return
  }
}

module attributes {stable_mosaic.version = 11 : i64} {
  func.func @_transform_kernel(%arg0: i32, %arg1: i32, %arg2: memref<1x64x8xbf16, #tpu.memory_space<vmem>>, %arg3: memref<1x8x8xf32, #tpu.memory_space<vmem>>, %arg4: memref<1x8xf32, #tpu.memory_space<vmem>>, %arg5: memref<1x8xf32, #tpu.memory_space<vmem>>, %arg6: memref<1x64x8xbf16, #tpu.memory_space<vmem>>) attributes {dimension_semantics = [#tpu.dimension_semantics<parallel>, #tpu.dimension_semantics<parallel>], iteration_bounds = array<i64: 2, 1>, scalar_prefetch = 0 : i64, scratch_operands = 0 : i64, tpu.core_type = #tpu.core_type<tc>, window_params = [{transform_indices = @transform_0, window_bounds = array<i64: 1, 64, 8>}, {transform_indices = @transform_1, window_bounds = array<i64: 1, 8, 8>}, {pipeline_mode = #tpu.pipeline_mode<synchronous>, transform_indices = @transform_2, window_bounds = array<i64: 1, 8>}, {pipeline_mode = #tpu.pipeline_mode<synchronous>, transform_indices = @transform_3, window_bounds = array<i64: 1, 8>}, {transform_indices = @transform_4, window_bounds = array<i64: 1, 64, 8>}]} {
    %c0 = arith.constant 0 : index
    %c0_0 = arith.constant 0 : index
    %c0_1 = arith.constant 0 : index
    %0 = vector.load %arg2[%c0, %c0_0, %c0_1] : memref<1x64x8xbf16, #tpu.memory_space<vmem>>, vector<1x64x8xbf16>
    %1 = vector.shape_cast %0 : vector<1x64x8xbf16> to vector<64x8xbf16>
    %2 = arith.extf %1 : vector<64x8xbf16> to vector<64x8xf32>
    %c0_2 = arith.constant 0 : index
    %c0_3 = arith.constant 0 : index
    %3 = vector.load %arg4[%c0_2, %c0_3] : memref<1x8xf32, #tpu.memory_space<vmem>>, vector<1x8xf32>
    %4 = vector.broadcast %3 : vector<1x8xf32> to vector<64x8xf32>
    %5 = arith.subf %2, %4 : vector<64x8xf32>
    %c0_4 = arith.constant 0 : index
    %c0_5 = arith.constant 0 : index
    %6 = vector.load %arg5[%c0_4, %c0_5] : memref<1x8xf32, #tpu.memory_space<vmem>>, vector<1x8xf32>
    %7 = vector.broadcast %6 : vector<1x8xf32> to vector<64x8xf32>
    %8 = arith.mulf %5, %7 : vector<64x8xf32>
    %c0_6 = arith.constant 0 : index
    %c0_7 = arith.constant 0 : index
    %c0_8 = arith.constant 0 : index
    %9 = vector.load %arg3[%c0_6, %c0_7, %c0_8] : memref<1x8x8xf32, #tpu.memory_space<vmem>>, vector<1x8x8xf32>
    %10 = vector.shape_cast %9 : vector<1x8x8xf32> to vector<8x8xf32>
    %cst = arith.constant dense<0.000000e+00> : vector<64x8xf32>
    %11 = tpu.matmul %8, %10, %cst {dimension_numbers = #tpu.dot_dimension_numbers<[1], [0], [0], [1], [0, 0, 1, 1], [], []>} : vector<64x8xf32>, vector<8x8xf32>, vector<64x8xf32> -> vector<64x8xf32>
    %12 = arith.truncf %11 : vector<64x8xf32> to vector<64x8xbf16>
    %c0_9 = arith.constant 0 : index
    %c0_10 = arith.constant 0 : index
    %c0_11 = arith.constant 0 : index
    %13 = vector.load %arg6[%c0_9, %c0_10, %c0_11] : memref<1x64x8xbf16, #tpu.memory_space<vmem>>, vector<1x64x8xbf16>
    %14 = vector.shape_cast %13 : vector<1x64x8xbf16> to vector<64x8xbf16>
    %15 = vector.shape_cast %12 : vector<64x8xbf16> to vector<1x64x8xbf16>
    tpu.vector_store %arg6[%c0_9, %c0_10, %c0_11], %15 {strides = array<i32>} : memref<1x64x8xbf16, #tpu.memory_space<vmem>>, vector<1x64x8xbf16>,
    return
  }
  func.func @transform_0(%arg0: i32, %arg1: i32) -> (i32, i32, i32) {
    %c0_i32 = arith.constant 0 : i32
    %c0_i32_0 = arith.constant 0 : i32
    return %arg0, %arg1, %c0_i32 : i32, i32, i32
  }
  func.func @transform_1(%arg0: i32, %arg1: i32) -> (i32, i32, i32) {
    %c0_i32 = arith.constant 0 : i32
    %c0_i32_0 = arith.constant 0 : i32
    %c0_i32_1 = arith.constant 0 : i32
    return %arg0, %c0_i32, %c0_i32_0 : i32, i32, i32
  }
  func.func @transform_2(%arg0: i32, %arg1: i32) -> (i32, i32) {
    %c0_i32 = arith.constant 0 : i32
    %c0_i32_0 = arith.constant 0 : i32
    %c0_i32_1 = arith.constant 0 : i32
    return %c0_i32, %c0_i32_0 : i32, i32
  }
  func.func @transform_3(%arg0: i32, %arg1: i32) -> (i32, i32) {
    %c0_i32 = arith.constant 0 : i32
    %c0_i32_0 = arith.constant 0 : i32
    %c0_i32_1 = arith.constant 0 : i32
    return %c0_i32, %c0_i32_0 : i32, i32
  }
  func.func @transform_4(%arg0: i32, %arg1: i32) -> (i32, i32, i32) {
    %c0_i32 = arith.constant 0 : i32
    %c0_i32_0 = arith.constant 0 : i32
    return %arg0, %arg1, %c0_i32 : i32, i32, i32
  }
}

module attributes {stable_mosaic.version = 11 : i64} {
  func.func @_conv_relu_stats_kernel(%arg0: i32, %arg1: i32, %arg2: memref<128x8xbf16, #tpu.memory_space<vmem>>, %arg3: memref<8x16xbf16, #tpu.memory_space<vmem>>, %arg4: memref<1x16xf32, #tpu.memory_space<vmem>>, %arg5: memref<128x16xbf16, #tpu.memory_space<vmem>>, %arg6: memref<1x1x16xf32, #tpu.memory_space<vmem>>, %arg7: memref<1x1x16xf32, #tpu.memory_space<vmem>>) attributes {dimension_semantics = [#tpu.dimension_semantics<parallel>, #tpu.dimension_semantics<arbitrary>], iteration_bounds = array<i64: 1, 1>, scalar_prefetch = 0 : i64, scratch_operands = 0 : i64, tpu.core_type = #tpu.core_type<tc>, window_params = [{transform_indices = @transform_0, window_bounds = array<i64: 128, 8>}, {pipeline_mode = #tpu.pipeline_mode<synchronous>, transform_indices = @transform_1, window_bounds = array<i64: 8, 16>}, {pipeline_mode = #tpu.pipeline_mode<synchronous>, transform_indices = @transform_2, window_bounds = array<i64: 1, 16>}, {transform_indices = @transform_3, window_bounds = array<i64: 128, 16>}, {transform_indices = @transform_4, window_bounds = array<i64: 1, 1, 16>}, {transform_indices = @transform_5, window_bounds = array<i64: 1, 1, 16>}]} {
    %c0 = arith.constant 0 : index
    %c0_0 = arith.constant 0 : index
    %0 = vector.load %arg2[%c0, %c0_0] : memref<128x8xbf16, #tpu.memory_space<vmem>>, vector<128x8xbf16>
    %c0_1 = arith.constant 0 : index
    %c0_2 = arith.constant 0 : index
    %1 = vector.load %arg3[%c0_1, %c0_2] : memref<8x16xbf16, #tpu.memory_space<vmem>>, vector<8x16xbf16>
    %cst = arith.constant dense<0.000000e+00> : vector<128x16xf32>
    %2 = tpu.matmul %0, %1, %cst {dimension_numbers = #tpu.dot_dimension_numbers<[1], [0], [0], [1], [0, 0, 1, 1], [], []>} : vector<128x8xbf16>, vector<8x16xbf16>, vector<128x16xf32> -> vector<128x16xf32>
    %c0_3 = arith.constant 0 : index
    %c0_4 = arith.constant 0 : index
    %3 = vector.load %arg4[%c0_3, %c0_4] : memref<1x16xf32, #tpu.memory_space<vmem>>, vector<1x16xf32>
    %4 = vector.broadcast %3 : vector<1x16xf32> to vector<128x16xf32>
    %5 = arith.addf %2, %4 : vector<128x16xf32>
    %cst_5 = arith.constant 0.000000e+00 : f32
    %6 = vector.broadcast %cst_5 : f32 to vector<128x16xf32>
    %7 = arith.maximumf %5, %6 : vector<128x16xf32>
    %8 = arith.truncf %7 : vector<128x16xf32> to vector<128x16xbf16>
    %c0_6 = arith.constant 0 : index
    %c0_7 = arith.constant 0 : index
    %9 = vector.load %arg5[%c0_6, %c0_7] : memref<128x16xbf16, #tpu.memory_space<vmem>>, vector<128x16xbf16>
    tpu.vector_store %arg5[%c0_6, %c0_7], %8 {strides = array<i32>} : memref<128x16xbf16, #tpu.memory_space<vmem>>, vector<128x16xbf16>,
    %c0_i32 = arith.constant 0 : i32
    %10 = arith.cmpi eq, %arg1, %c0_i32 : i32
    %11 = arith.extui %10 : i1 to i32
    %c0_i32_8 = arith.constant 0 : i32
    %12 = arith.cmpi ne, %11, %c0_i32_8 : i32
    scf.if %12 {
      %cst_23 = arith.constant 0.000000e+00 : f32
      %30 = vector.broadcast %cst_23 : f32 to vector<1x1x16xf32>
      %c0_24 = arith.constant 0 : index
      %c0_25 = arith.constant 0 : index
      %c0_26 = arith.constant 0 : index
      %31 = vector.load %arg6[%c0_24, %c0_25, %c0_26] : memref<1x1x16xf32, #tpu.memory_space<vmem>>, vector<1x1x16xf32>
      tpu.vector_store %arg6[%c0_24, %c0_25, %c0_26], %30 {strides = array<i32>} : memref<1x1x16xf32, #tpu.memory_space<vmem>>, vector<1x1x16xf32>,
      %cst_27 = arith.constant 0.000000e+00 : f32
      %32 = vector.broadcast %cst_27 : f32 to vector<1x1x16xf32>
      %c0_28 = arith.constant 0 : index
      %c0_29 = arith.constant 0 : index
      %c0_30 = arith.constant 0 : index
      %33 = vector.load %arg7[%c0_28, %c0_29, %c0_30] : memref<1x1x16xf32, #tpu.memory_space<vmem>>, vector<1x1x16xf32>
      tpu.vector_store %arg7[%c0_28, %c0_29, %c0_30], %32 {strides = array<i32>} : memref<1x1x16xf32, #tpu.memory_space<vmem>>, vector<1x1x16xf32>,
    } else {
    }
    %c0_9 = arith.constant 0 : index
    %c0_10 = arith.constant 0 : index
    %c0_11 = arith.constant 0 : index
    %13 = vector.load %arg6[%c0_9, %c0_10, %c0_11] : memref<1x1x16xf32, #tpu.memory_space<vmem>>, vector<1x1x16xf32>
    %14 = vector.shape_cast %13 : vector<1x1x16xf32> to vector<1x16xf32>
    %cst_12 = arith.constant dense<0.000000e+00> : vector<16xf32>
    %15 = vector.multi_reduction <add>, %7, %cst_12 [0] : vector<128x16xf32> to vector<16xf32>
    %16 = vector.shape_cast %15 : vector<16xf32> to vector<1x16xf32>
    %17 = arith.addf %14, %16 : vector<1x16xf32>
    %c0_13 = arith.constant 0 : index
    %c0_14 = arith.constant 0 : index
    %c0_15 = arith.constant 0 : index
    %18 = vector.load %arg6[%c0_13, %c0_14, %c0_15] : memref<1x1x16xf32, #tpu.memory_space<vmem>>, vector<1x1x16xf32>
    %19 = vector.shape_cast %18 : vector<1x1x16xf32> to vector<1x16xf32>
    %20 = vector.shape_cast %17 : vector<1x16xf32> to vector<1x1x16xf32>
    tpu.vector_store %arg6[%c0_13, %c0_14, %c0_15], %20 {strides = array<i32>} : memref<1x1x16xf32, #tpu.memory_space<vmem>>, vector<1x1x16xf32>,
    %c0_16 = arith.constant 0 : index
    %c0_17 = arith.constant 0 : index
    %c0_18 = arith.constant 0 : index
    %21 = vector.load %arg7[%c0_16, %c0_17, %c0_18] : memref<1x1x16xf32, #tpu.memory_space<vmem>>, vector<1x1x16xf32>
    %22 = vector.shape_cast %21 : vector<1x1x16xf32> to vector<1x16xf32>
    %23 = arith.mulf %7, %7 : vector<128x16xf32>
    %cst_19 = arith.constant dense<0.000000e+00> : vector<16xf32>
    %24 = vector.multi_reduction <add>, %23, %cst_19 [0] : vector<128x16xf32> to vector<16xf32>
    %25 = vector.shape_cast %24 : vector<16xf32> to vector<1x16xf32>
    %26 = arith.addf %22, %25 : vector<1x16xf32>
    %c0_20 = arith.constant 0 : index
    %c0_21 = arith.constant 0 : index
    %c0_22 = arith.constant 0 : index
    %27 = vector.load %arg7[%c0_20, %c0_21, %c0_22] : memref<1x1x16xf32, #tpu.memory_space<vmem>>, vector<1x1x16xf32>
    %28 = vector.shape_cast %27 : vector<1x1x16xf32> to vector<1x16xf32>
    %29 = vector.shape_cast %26 : vector<1x16xf32> to vector<1x1x16xf32>
    tpu.vector_store %arg7[%c0_20, %c0_21, %c0_22], %29 {strides = array<i32>} : memref<1x1x16xf32, #tpu.memory_space<vmem>>, vector<1x1x16xf32>,
    return
  }
  func.func @transform_0(%arg0: i32, %arg1: i32) -> (i32, i32) {
    %c1_i32 = arith.constant 1 : i32
    %0 = arith.muli %arg0, %c1_i32 : i32
    %1 = arith.addi %0, %arg1 : i32
    %c0_i32 = arith.constant 0 : i32
    %c0_i32_0 = arith.constant 0 : i32
    return %1, %c0_i32 : i32, i32
  }
  func.func @transform_1(%arg0: i32, %arg1: i32) -> (i32, i32) {
    %c0_i32 = arith.constant 0 : i32
    %c0_i32_0 = arith.constant 0 : i32
    %c0_i32_1 = arith.constant 0 : i32
    return %c0_i32, %c0_i32_0 : i32, i32
  }
  func.func @transform_2(%arg0: i32, %arg1: i32) -> (i32, i32) {
    %c0_i32 = arith.constant 0 : i32
    %c0_i32_0 = arith.constant 0 : i32
    %c0_i32_1 = arith.constant 0 : i32
    return %c0_i32, %c0_i32_0 : i32, i32
  }
  func.func @transform_3(%arg0: i32, %arg1: i32) -> (i32, i32) {
    %c1_i32 = arith.constant 1 : i32
    %0 = arith.muli %arg0, %c1_i32 : i32
    %1 = arith.addi %0, %arg1 : i32
    %c0_i32 = arith.constant 0 : i32
    %c0_i32_0 = arith.constant 0 : i32
    return %1, %c0_i32 : i32, i32
  }
  func.func @transform_4(%arg0: i32, %arg1: i32) -> (i32, i32, i32) {
    %c0_i32 = arith.constant 0 : i32
    %c0_i32_0 = arith.constant 0 : i32
    %c0_i32_1 = arith.constant 0 : i32
    return %arg0, %c0_i32, %c0_i32_0 : i32, i32, i32
  }
  func.func @transform_5(%arg0: i32, %arg1: i32) -> (i32, i32, i32) {
    %c0_i32 = arith.constant 0 : i32
    %c0_i32_0 = arith.constant 0 : i32
    %c0_i32_1 = arith.constant 0 : i32
    return %arg0, %c0_i32, %c0_i32_0 : i32, i32, i32
  }
}

module attributes {stable_mosaic.version = 11 : i64} {
  func.func @_conv_relu_max_kernel(%arg0: i32, %arg1: i32, %arg2: memref<1x64x16xbf16, #tpu.memory_space<vmem>>, %arg3: memref<16x32xbf16, #tpu.memory_space<vmem>>, %arg4: memref<1x32xf32, #tpu.memory_space<vmem>>, %arg5: memref<1x1x32xf32, #tpu.memory_space<vmem>>, %arg6: memref<1x1x32xf32, #tpu.memory_space<vmem>>, %arg7: memref<1x1x32xf32, #tpu.memory_space<vmem>>) attributes {dimension_semantics = [#tpu.dimension_semantics<parallel>, #tpu.dimension_semantics<arbitrary>], iteration_bounds = array<i64: 2, 1>, scalar_prefetch = 0 : i64, scratch_operands = 0 : i64, tpu.core_type = #tpu.core_type<tc>, window_params = [{transform_indices = @transform_0, window_bounds = array<i64: 1, 64, 16>}, {pipeline_mode = #tpu.pipeline_mode<synchronous>, transform_indices = @transform_1, window_bounds = array<i64: 16, 32>}, {pipeline_mode = #tpu.pipeline_mode<synchronous>, transform_indices = @transform_2, window_bounds = array<i64: 1, 32>}, {transform_indices = @transform_3, window_bounds = array<i64: 1, 1, 32>}, {transform_indices = @transform_4, window_bounds = array<i64: 1, 1, 32>}, {transform_indices = @transform_5, window_bounds = array<i64: 1, 1, 32>}]} {
    %c0 = arith.constant 0 : index
    %c0_0 = arith.constant 0 : index
    %c0_1 = arith.constant 0 : index
    %0 = vector.load %arg2[%c0, %c0_0, %c0_1] : memref<1x64x16xbf16, #tpu.memory_space<vmem>>, vector<1x64x16xbf16>
    %1 = vector.shape_cast %0 : vector<1x64x16xbf16> to vector<64x16xbf16>
    %c0_2 = arith.constant 0 : index
    %c0_3 = arith.constant 0 : index
    %2 = vector.load %arg3[%c0_2, %c0_3] : memref<16x32xbf16, #tpu.memory_space<vmem>>, vector<16x32xbf16>
    %cst = arith.constant dense<0.000000e+00> : vector<64x32xf32>
    %3 = tpu.matmul %1, %2, %cst {dimension_numbers = #tpu.dot_dimension_numbers<[1], [0], [0], [1], [0, 0, 1, 1], [], []>} : vector<64x16xbf16>, vector<16x32xbf16>, vector<64x32xf32> -> vector<64x32xf32>
    %c0_4 = arith.constant 0 : index
    %c0_5 = arith.constant 0 : index
    %4 = vector.load %arg4[%c0_4, %c0_5] : memref<1x32xf32, #tpu.memory_space<vmem>>, vector<1x32xf32>
    %5 = vector.broadcast %4 : vector<1x32xf32> to vector<64x32xf32>
    %6 = arith.addf %3, %5 : vector<64x32xf32>
    %cst_6 = arith.constant 0.000000e+00 : f32
    %7 = vector.broadcast %cst_6 : f32 to vector<64x32xf32>
    %8 = arith.maximumf %6, %7 : vector<64x32xf32>
    %c0_i32 = arith.constant 0 : i32
    %9 = arith.cmpi eq, %arg1, %c0_i32 : i32
    %10 = arith.extui %9 : i1 to i32
    %c0_i32_7 = arith.constant 0 : i32
    %11 = arith.cmpi ne, %10, %c0_i32_7 : i32
    scf.if %11 {
      %cst_29 = arith.constant 0xFF800000 : f32
      %37 = vector.broadcast %cst_29 : f32 to vector<1x1x32xf32>
      %c0_30 = arith.constant 0 : index
      %c0_31 = arith.constant 0 : index
      %c0_32 = arith.constant 0 : index
      %38 = vector.load %arg5[%c0_30, %c0_31, %c0_32] : memref<1x1x32xf32, #tpu.memory_space<vmem>>, vector<1x1x32xf32>
      tpu.vector_store %arg5[%c0_30, %c0_31, %c0_32], %37 {strides = array<i32>} : memref<1x1x32xf32, #tpu.memory_space<vmem>>, vector<1x1x32xf32>,
      %cst_33 = arith.constant 0.000000e+00 : f32
      %39 = vector.broadcast %cst_33 : f32 to vector<1x1x32xf32>
      %c0_34 = arith.constant 0 : index
      %c0_35 = arith.constant 0 : index
      %c0_36 = arith.constant 0 : index
      %40 = vector.load %arg6[%c0_34, %c0_35, %c0_36] : memref<1x1x32xf32, #tpu.memory_space<vmem>>, vector<1x1x32xf32>
      tpu.vector_store %arg6[%c0_34, %c0_35, %c0_36], %39 {strides = array<i32>} : memref<1x1x32xf32, #tpu.memory_space<vmem>>, vector<1x1x32xf32>,
      %cst_37 = arith.constant 0.000000e+00 : f32
      %41 = vector.broadcast %cst_37 : f32 to vector<1x1x32xf32>
      %c0_38 = arith.constant 0 : index
      %c0_39 = arith.constant 0 : index
      %c0_40 = arith.constant 0 : index
      %42 = vector.load %arg7[%c0_38, %c0_39, %c0_40] : memref<1x1x32xf32, #tpu.memory_space<vmem>>, vector<1x1x32xf32>
      tpu.vector_store %arg7[%c0_38, %c0_39, %c0_40], %41 {strides = array<i32>} : memref<1x1x32xf32, #tpu.memory_space<vmem>>, vector<1x1x32xf32>,
    } else {
    }
    %c0_8 = arith.constant 0 : index
    %c0_9 = arith.constant 0 : index
    %c0_10 = arith.constant 0 : index
    %12 = vector.load %arg5[%c0_8, %c0_9, %c0_10] : memref<1x1x32xf32, #tpu.memory_space<vmem>>, vector<1x1x32xf32>
    %13 = vector.shape_cast %12 : vector<1x1x32xf32> to vector<1x32xf32>
    %cst_11 = arith.constant dense<0xFF800000> : vector<32xf32>
    %14 = vector.multi_reduction <maximumf>, %8, %cst_11 [0] : vector<64x32xf32> to vector<32xf32>
    %15 = vector.shape_cast %14 : vector<32xf32> to vector<1x32xf32>
    %16 = arith.maximumf %13, %15 : vector<1x32xf32>
    %c0_12 = arith.constant 0 : index
    %c0_13 = arith.constant 0 : index
    %c0_14 = arith.constant 0 : index
    %17 = vector.load %arg5[%c0_12, %c0_13, %c0_14] : memref<1x1x32xf32, #tpu.memory_space<vmem>>, vector<1x1x32xf32>
    %18 = vector.shape_cast %17 : vector<1x1x32xf32> to vector<1x32xf32>
    %19 = vector.shape_cast %16 : vector<1x32xf32> to vector<1x1x32xf32>
    tpu.vector_store %arg5[%c0_12, %c0_13, %c0_14], %19 {strides = array<i32>} : memref<1x1x32xf32, #tpu.memory_space<vmem>>, vector<1x1x32xf32>,
    %c0_15 = arith.constant 0 : index
    %c0_16 = arith.constant 0 : index
    %c0_17 = arith.constant 0 : index
    %20 = vector.load %arg6[%c0_15, %c0_16, %c0_17] : memref<1x1x32xf32, #tpu.memory_space<vmem>>, vector<1x1x32xf32>
    %21 = vector.shape_cast %20 : vector<1x1x32xf32> to vector<1x32xf32>
    %cst_18 = arith.constant dense<0.000000e+00> : vector<32xf32>
    %22 = vector.multi_reduction <add>, %8, %cst_18 [0] : vector<64x32xf32> to vector<32xf32>
    %23 = vector.shape_cast %22 : vector<32xf32> to vector<1x32xf32>
    %24 = arith.addf %21, %23 : vector<1x32xf32>
    %c0_19 = arith.constant 0 : index
    %c0_20 = arith.constant 0 : index
    %c0_21 = arith.constant 0 : index
    %25 = vector.load %arg6[%c0_19, %c0_20, %c0_21] : memref<1x1x32xf32, #tpu.memory_space<vmem>>, vector<1x1x32xf32>
    %26 = vector.shape_cast %25 : vector<1x1x32xf32> to vector<1x32xf32>
    %27 = vector.shape_cast %24 : vector<1x32xf32> to vector<1x1x32xf32>
    tpu.vector_store %arg6[%c0_19, %c0_20, %c0_21], %27 {strides = array<i32>} : memref<1x1x32xf32, #tpu.memory_space<vmem>>, vector<1x1x32xf32>,
    %c0_22 = arith.constant 0 : index
    %c0_23 = arith.constant 0 : index
    %c0_24 = arith.constant 0 : index
    %28 = vector.load %arg7[%c0_22, %c0_23, %c0_24] : memref<1x1x32xf32, #tpu.memory_space<vmem>>, vector<1x1x32xf32>
    %29 = vector.shape_cast %28 : vector<1x1x32xf32> to vector<1x32xf32>
    %30 = arith.mulf %8, %8 : vector<64x32xf32>
    %cst_25 = arith.constant dense<0.000000e+00> : vector<32xf32>
    %31 = vector.multi_reduction <add>, %30, %cst_25 [0] : vector<64x32xf32> to vector<32xf32>
    %32 = vector.shape_cast %31 : vector<32xf32> to vector<1x32xf32>
    %33 = arith.addf %29, %32 : vector<1x32xf32>
    %c0_26 = arith.constant 0 : index
    %c0_27 = arith.constant 0 : index
    %c0_28 = arith.constant 0 : index
    %34 = vector.load %arg7[%c0_26, %c0_27, %c0_28] : memref<1x1x32xf32, #tpu.memory_space<vmem>>, vector<1x1x32xf32>
    %35 = vector.shape_cast %34 : vector<1x1x32xf32> to vector<1x32xf32>
    %36 = vector.shape_cast %33 : vector<1x32xf32> to vector<1x1x32xf32>
    tpu.vector_store %arg7[%c0_26, %c0_27, %c0_28], %36 {strides = array<i32>} : memref<1x1x32xf32, #tpu.memory_space<vmem>>, vector<1x1x32xf32>,
    return
  }
  func.func @transform_0(%arg0: i32, %arg1: i32) -> (i32, i32, i32) {
    %c0_i32 = arith.constant 0 : i32
    %c0_i32_0 = arith.constant 0 : i32
    return %arg0, %arg1, %c0_i32 : i32, i32, i32
  }
  func.func @transform_1(%arg0: i32, %arg1: i32) -> (i32, i32) {
    %c0_i32 = arith.constant 0 : i32
    %c0_i32_0 = arith.constant 0 : i32
    %c0_i32_1 = arith.constant 0 : i32
    return %c0_i32, %c0_i32_0 : i32, i32
  }
  func.func @transform_2(%arg0: i32, %arg1: i32) -> (i32, i32) {
    %c0_i32 = arith.constant 0 : i32
    %c0_i32_0 = arith.constant 0 : i32
    %c0_i32_1 = arith.constant 0 : i32
    return %c0_i32, %c0_i32_0 : i32, i32
  }
  func.func @transform_3(%arg0: i32, %arg1: i32) -> (i32, i32, i32) {
    %c0_i32 = arith.constant 0 : i32
    %c0_i32_0 = arith.constant 0 : i32
    %c0_i32_1 = arith.constant 0 : i32
    return %arg0, %c0_i32, %c0_i32_0 : i32, i32, i32
  }
  func.func @transform_4(%arg0: i32, %arg1: i32) -> (i32, i32, i32) {
    %c0_i32 = arith.constant 0 : i32
    %c0_i32_0 = arith.constant 0 : i32
    %c0_i32_1 = arith.constant 0 : i32
    return %arg0, %c0_i32, %c0_i32_0 : i32, i32, i32
  }
  func.func @transform_5(%arg0: i32, %arg1: i32) -> (i32, i32, i32) {
    %c0_i32 = arith.constant 0 : i32
    %c0_i32_0 = arith.constant 0 : i32
    %c0_i32_1 = arith.constant 0 : i32
    return %arg0, %c0_i32, %c0_i32_0 : i32, i32, i32
  }
}

</mosaic_0001>

<llo_original>
// kernel: sub.32
$region0: #{sub.32}
  #allocation0 [shape = 's32[1]{0}', space=sflag, size = 0x4, scoped, tag = 'scoped memory for sub.32']
  %s0 = inlined_call_operand.vmem [shape: f32[1,256], index: 0, kind: input, shape index: {}]
  %s1 = inlined_call_operand.vmem [shape: f32[1,256], index: 1, kind: input, shape index: {}]
  %s2 = inlined_call_operand.vmem [shape: f32[1,256], index: 2, kind: output, shape index: {}]
  %v3 = vld [vmem:[%s0] sm:$0x1]
  %v4 = vld [vmem:[%s1] sm:$0x1]
  %5 = xla_tuple %v3, %v4
  %6 = xla_tuple %5
  %v7 = vsub.f32 %v3, %v4
  %8 = xla_tuple %v7
  %9 = vst [vmem:[%s2] sm:$0x1] %v7
  %s10 = scalar_lea.vmem %s0, 1
  %v11 = vld [vmem:[%s10] sm:$0x1]
  %s12 = scalar_lea.vmem %s1, 1
  %v13 = vld [vmem:[%s12] sm:$0x1]
  %14 = xla_tuple %v11, %v13
  %15 = xla_tuple %14
  %v16 = vsub.f32 %v11, %v13
  %17 = xla_tuple %v16
  %s18 = scalar_lea.vmem %s2, 1
  %19 = vst [vmem:[%s18] sm:$0x1] %v16

// kernel: pointnet_encoder_forward.14
$region0: #{pointnet_encoder_forward.14}
  #allocation0 [shape = 'u32[]', space=smem, size = 0x4, offset = 0x4, fixed_abs, tag = 'smem constant byte address 0x4 - core index']
  #allocation1 [shape = 'u32[72,128]{1,0:T(1,128)}', space=vmem, size = 0x9000, scoped, tag = 'internal scratch']
  %s0 = inlined_call_operand.vmem [shape: bf16[128,3], index: 0, kind: input, shape index: {}]
  %s1 = inlined_call_operand.vmem [shape: bf16[3,64], index: 1, kind: input, shape index: {}]
  %s2 = inlined_call_operand.vmem [shape: f32[1,64], index: 2, kind: input, shape index: {}]
  %s3 = inlined_call_operand.vmem [shape: bf16[128,64], index: 3, kind: output, shape index: {0}]
  %s4 = inlined_call_operand.vmem [shape: f32[1,1,64], index: 4, kind: output, shape index: {1}]
  %s5 = inlined_call_operand.vmem [shape: f32[1,1,64], index: 5, kind: output, shape index: {2}]
  %6 = xla_tuple %s3, %s4, %s5
  %s7 = sld [smem:[#allocation0]]
  $region42: #{pointnet_encoder_forward.14} parent=0
    _
  %s9 = ssub.s32 1, %s7
  %s10 = scalar_select 0, %s9, %s7
  // Predicated region
  $region2: #{pointnet_encoder_forward.14} parent=0 // pred_check
    _
  $region3: #{pointnet_encoder_forward.14} parent=0 // pred_check_branch
    %12 = sbr.rel (0) target = $region5
  $region4: #{pointnet_encoder_forward.14} parent=0 // pred_region
    %s13 = sadd.s32 0, 0
    %s14 = smul.u32 16, %s13
    %p15 = scmp.lt.s32.totalorder %s14, 15
    %s16 = scalar_select %p15, %s14, 15
    %s17 = smul.addr %s16, 4
    %s18 = scalar_lea.vmem %s0, %s17
    %s19 = sadd.s32 0, 0
    %s20 = smul.u32 16, %s19
  $region5: #{pointnet_encoder_forward.14} parent=0 // pred_fallthru
    _
  // Predicated region
  $region6: #{pointnet_encoder_forward.14} parent=0 // pred_check
    _
  $region7: #{pointnet_encoder_forward.14} parent=0 // pred_check_branch
    %22 = sbr.rel (0) target = $region9
  $region8: #{pointnet_encoder_forward.14} parent=0 // pred_region
    _
  $region9: #{pointnet_encoder_forward.14} parent=0 // pred_fallthru
    _
  // Predicated region
  $region10: #{pointnet_encoder_forward.14} parent=0 // pred_check
    _
  $region11: #{pointnet_encoder_forward.14} parent=0 // pred_check_branch
    %24 = sbr.rel (0) target = $region13
  $region12: #{pointnet_encoder_forward.14} parent=0 // pred_region
    _
  $region13: #{pointnet_encoder_forward.14} parent=0 // pred_fallthru
    _
  %s25 = sadd.s32 0, 0
  %s26 = smul.u32 16, %s25
  %p27 = scmp.lt.s32.totalorder %s26, 15
  %s28 = scalar_select %p27, %s26, 15
  %s29 = smul.addr %s28, 4
  %s30 = scalar_lea.vmem %s0, %s29
  %s31 = sadd.s32 0, 0
  %s32 = smul.u32 16, %s31
  %p33 = scmp.lt.s32.totalorder %s32, 15
  %s34 = scalar_select %p33, %s32, 15
  %s35 = smul.addr %s34, 4
  %s36 = scalar_lea.vmem %s3, %s35
  %s37 = sadd.s32 0, 0
  %s38 = smul.u32 16, %s37
  %p39 = scmp.lt.s32.totalorder %s38, 15
  %s40 = scalar_select %p39, %s38, 15
  %s41 = smul.addr %s40, 4
  %s42 = scalar_lea.vmem %s0, %s41
  %s43 = sadd.s32 0, 0
  %s44 = smul.u32 16, %s43
  %s45 = sadd.s32 0, 0
  %s46 = smul.u32 16, %s45
  %p47 = scmp.lt.s32.totalorder %s46, 15
  %s48 = scalar_select %p47, %s46, 15
  %s49 = smul.addr %s48, 4
  %s50 = scalar_lea.vmem %s3, %s49
  %s51 = sadd.s32 0, 0
  %s52 = smul.u32 16, %s51
  %v54 = vld [vmem:[%s42] sm:$0xf]
  %v55 = vld [vmem:[%s42 + $0x4] sm:$0xf]
  %v56 = vld [vmem:[%s42 + $0x8] sm:$0xf]
  %v57 = vld [vmem:[%s42 + $0xc] sm:$0xf]
  %v58 = vld [vmem:[%s42 + $0x10] sm:$0xf]
  %v59 = vld [vmem:[%s42 + $0x14] sm:$0xf]
  %v60 = vld [vmem:[%s42 + $0x18] sm:$0xf]
  %v61 = vld [vmem:[%s42 + $0x1c] sm:$0xf]
  %v62 = vld [vmem:[%s42 + $0x20] sm:$0xf]
  %v63 = vld [vmem:[%s42 + $0x24] sm:$0xf]
  %v64 = vld [vmem:[%s42 + $0x28] sm:$0xf]
  %v65 = vld [vmem:[%s42 + $0x2c] sm:$0xf]
  %v66 = vld [vmem:[%s42 + $0x30] sm:$0xf]
  %v67 = vld [vmem:[%s42 + $0x34] sm:$0xf]
  %v68 = vld [vmem:[%s42 + $0x38] sm:$0xf]
  %v69 = vld [vmem:[%s42 + $0x3c] sm:$0xf]
  %v70 = vld [vmem:[%s1] sm:$0x3]
  %v71 = vld [vmem:[%s2] sm:$0x1]
  %v73 = vperm.slane %v71, 0
  %v91 = vunpack.c.l.b16 %v54
  %v92 = vunpack.c.l.b16 %v55
  %v93 = vunpack.c.l.b16 %v56
  %v94 = vunpack.c.l.b16 %v57
  %v95 = vunpack.c.l.b16 %v58
  %v96 = vunpack.c.l.b16 %v59
  %v97 = vunpack.c.l.b16 %v60
  %v98 = vunpack.c.l.b16 %v61
  %v99 = vunpack.c.l.b16 %v62
  %v100 = vunpack.c.l.b16 %v63
  %v101 = vunpack.c.l.b16 %v64
  %v102 = vunpack.c.l.b16 %v65
  %v103 = vunpack.c.l.b16 %v66
  %v104 = vunpack.c.l.b16 %v67
  %v105 = vunpack.c.l.b16 %v68
  %v106 = vunpack.c.l.b16 %v69
  %v107 = vpack.c.b16 %v92, %v91
  %v108 = vpack.c.b16 %v94, %v93
  %v109 = vpack.c.b16 %v96, %v95
  %v110 = vpack.c.b16 %v98, %v97
  %v111 = vpack.c.b16 %v100, %v99
  %v112 = vpack.c.b16 %v102, %v101
  %v113 = vpack.c.b16 %v104, %v103
  %v114 = vpack.c.b16 %v106, %v105
  %vm115 = vcmask 23552
  %v117 = vsel %vm115, %v107, 0
  %v120 = vsel %vm115, %v108, 0
  %v123 = vsel %vm115, %v109, 0
  %v126 = vsel %vm115, %v110, 0
  %v129 = vsel %vm115, %v111, 0
  %v132 = vsel %vm115, %v112, 0
  %v135 = vsel %vm115, %v113, 0
  %v138 = vsel %vm115, %v114, 0
  %vm140 = vcmask 1040384
  %vm141 = vcmask 1041408
  %v142 = vsel %vm140, 4294967295, 65535
  %v143 = vsel %vm141, %v142, 0
  %v145 = vand.u32 %v70, %v143
  %147 = vmatpush.bf16.msra.mxu0 0
  %148 = vmatpush.bf16.msra.mxu0 0
  %149 = vmatpush.bf16.msra.mxu0 0
  %150 = vmatpush.bf16.msra.mxu0 0
  %151 = vmatpush.bf16.msra.mxu0 0
  %152 = vmatpush.bf16.msra.mxu0 0
  %153 = vmatpush.bf16.msra.mxu0 0
  %154 = vmatpush.bf16.msra.mxu0 %v145
  %155 = vmatmul.bf16.gmra.mxu0 %v117
  %v156 = vpop.f32.mrf.mxu0
  %v157 = vadd.f32 %v73, %v156
  %v158 = vpop.f32.mrf.mxu0
  %v159 = vadd.f32 %v73, %v158
  %160 = vmatmul.bf16.gmra.mxu0 %v120
  %v161 = vpop.f32.mrf.mxu0
  %v162 = vadd.f32 %v73, %v161
  %v163 = vpop.f32.mrf.mxu0
  %v164 = vadd.f32 %v73, %v163
  %165 = vmatmul.bf16.gmra.mxu0 %v123
  %v166 = vpop.f32.mrf.mxu0
  %v167 = vadd.f32 %v73, %v166
  %v168 = vpop.f32.mrf.mxu0
  %v169 = vadd.f32 %v73, %v168
  %170 = vmatmul.bf16.gmra.mxu0 %v126
  %v171 = vpop.f32.mrf.mxu0
  %v172 = vadd.f32 %v73, %v171
  %v173 = vpop.f32.mrf.mxu0
  %v174 = vadd.f32 %v73, %v173
  %175 = vmatmul.bf16.gmra.mxu0 %v129
  %v176 = vpop.f32.mrf.mxu0
  %v177 = vadd.f32 %v73, %v176
  %v178 = vpop.f32.mrf.mxu0
  %v179 = vadd.f32 %v73, %v178
  %180 = vmatmul.bf16.gmra.mxu0 %v132
  %v181 = vpop.f32.mrf.mxu0
  %v182 = vadd.f32 %v73, %v181
  %v183 = vpop.f32.mrf.mxu0
  %v184 = vadd.f32 %v73, %v183
  %185 = vmatmul.bf16.gmra.mxu0 %v135
  %v186 = vpop.f32.mrf.mxu0
  %v187 = vadd.f32 %v73, %v186
  %v188 = vpop.f32.mrf.mxu0
  %v189 = vadd.f32 %v73, %v188
  %190 = vmatmul.bf16.gmra.mxu0 %v138
  %v191 = vpop.f32.mrf.mxu0
  %v192 = vadd.f32 %v73, %v191
  %v193 = vpop.f32.mrf.mxu0
  %v194 = vadd.f32 %v73, %v193
  %195 = vdwg.mxu0
  %v196 = vmax.f32 %v157, 0.0
  %v197 = vmax.f32 %v159, 0.0
  %v198 = vmax.f32 %v162, 0.0
  %v199 = vmax.f32 %v164, 0.0
  %v200 = vmax.f32 %v167, 0.0
  %v201 = vmax.f32 %v169, 0.0
  %v202 = vmax.f32 %v172, 0.0
  %v203 = vmax.f32 %v174, 0.0
  %v204 = vmax.f32 %v177, 0.0
  %v205 = vmax.f32 %v179, 0.0
  %v206 = vmax.f32 %v182, 0.0
  %v207 = vmax.f32 %v184, 0.0
  %v208 = vmax.f32 %v187, 0.0
  %v209 = vmax.f32 %v189, 0.0
  %v210 = vmax.f32 %v192, 0.0
  %v211 = vmax.f32 %v194, 0.0
  %v212 = vpack.c.bf16 %v196, %v196
  %v213 = vpack.c.bf16 %v197, %v197
  %v214 = vpack.c.bf16 %v198, %v198
  %v215 = vpack.c.bf16 %v199, %v199
  %v216 = vpack.c.bf16 %v200, %v200
  %v217 = vpack.c.bf16 %v201, %v201
  %v218 = vpack.c.bf16 %v202, %v202
  %v219 = vpack.c.bf16 %v203, %v203
  %v220 = vpack.c.bf16 %v204, %v204
  %v221 = vpack.c.bf16 %v205, %v205
  %v222 = vpack.c.bf16 %v206, %v206
  %v223 = vpack.c.bf16 %v207, %v207
  %v224 = vpack.c.bf16 %v208, %v208
  %v225 = vpack.c.bf16 %v209, %v209
  %v226 = vpack.c.bf16 %v210, %v210
  %v227 = vpack.c.bf16 %v211, %v211
  %vm228 = vcmask 519168
  %229 = vst.msk [vmem:[%s50] sm:$0xf] %vm228, %v212
  %230 = vst.msk [vmem:[%s50 + $0x4] sm:$0xf] %vm228, %v213
  %231 = vst.msk [vmem:[%s50 + $0x8] sm:$0xf] %vm228, %v214
  %232 = vst.msk [vmem:[%s50 + $0xc] sm:$0xf] %vm228, %v215
  %233 = vst.msk [vmem:[%s50 + $0x10] sm:$0xf] %vm228, %v216
  %234 = vst.msk [vmem:[%s50 + $0x14] sm:$0xf] %vm228, %v217
  %235 = vst.msk [vmem:[%s50 + $0x18] sm:$0xf] %vm228, %v218
  %236 = vst.msk [vmem:[%s50 + $0x1c] sm:$0xf] %vm228, %v219
  %237 = vst.msk [vmem:[%s50 + $0x20] sm:$0xf] %vm228, %v220
  %238 = vst.msk [vmem:[%s50 + $0x24] sm:$0xf] %vm228, %v221
  %239 = vst.msk [vmem:[%s50 + $0x28] sm:$0xf] %vm228, %v222
  %240 = vst.msk [vmem:[%s50 + $0x2c] sm:$0xf] %vm228, %v223
  %241 = vst.msk [vmem:[%s50 + $0x30] sm:$0xf] %vm228, %v224
  %242 = vst.msk [vmem:[%s50 + $0x34] sm:$0xf] %vm228, %v225
  %243 = vst.msk [vmem:[%s50 + $0x38] sm:$0xf] %vm228, %v226
  %244 = vst.msk [vmem:[%s50 + $0x3c] sm:$0xf] %vm228, %v227
  %p245 = scmp.eq.s32.totalorder 0, 0
  // Predicated region
  $region14: #{pointnet_encoder_forward.14} parent=0 // pred_check
    %p246 = pneg %p245
  $region15: #{pointnet_encoder_forward.14} parent=0 // pred_check_branch
    %248 = sbr.rel (%p246) target = $region17
  $region16: #{pointnet_encoder_forward.14} parent=0 // pred_region
    %vm249 = vcmask 516096
    %250 = vst.msk [vmem:[%s4] sm:$0x1] %vm249, 0.0
    %251 = vst.msk [vmem:[%s5] sm:$0x1] %vm249, 0.0
  $region17: #{pointnet_encoder_forward.14} parent=0 // pred_fallthru
    _
  %v252 = vld [vmem:[%s4] sm:$0x1]
  %vm253 = vcmask 523264
  %v254 = vsel %vm253, %v196, 0.0
  %v255 = vsel %vm253, %v197, 0.0
  %v256 = vadd.f32 %v254, %v255
  %v257 = vsel %vm253, %v198, 0.0
  %v258 = vadd.f32 %v256, %v257
  %v259 = vsel %vm253, %v199, 0.0
  %v260 = vadd.f32 %v258, %v259
  %v261 = vsel %vm253, %v200, 0.0
  %v262 = vadd.f32 %v260, %v261
  %v263 = vsel %vm253, %v201, 0.0
  %v264 = vadd.f32 %v262, %v263
  %v265 = vsel %vm253, %v202, 0.0
  %v266 = vadd.f32 %v264, %v265
  %v267 = vsel %vm253, %v203, 0.0
  %v268 = vadd.f32 %v266, %v267
  %v269 = vsel %vm253, %v204, 0.0
  %v270 = vadd.f32 %v268, %v269
  %v271 = vsel %vm253, %v205, 0.0
  %v272 = vadd.f32 %v270, %v271
  %v273 = vsel %vm253, %v206, 0.0
  %v274 = vadd.f32 %v272, %v273
  %v275 = vsel %vm253, %v207, 0.0
  %v276 = vadd.f32 %v274, %v275
  %v277 = vsel %vm253, %v208, 0.0
  %v278 = vadd.f32 %v276, %v277
  %v279 = vsel %vm253, %v209, 0.0
  %v280 = vadd.f32 %v278, %v279
  %v281 = vsel %vm253, %v210, 0.0
  %v282 = vadd.f32 %v280, %v281
  %v283 = vsel %vm253, %v211, 0.0
  %v284 = vadd.f32 %v282, %v283
  %v285 = vrot.slane %v284, 4
  %v286 = vadd.f32 %v284, %v285
  %v287 = vrot.slane %v286, 2
  %v288 = vadd.f32 %v286, %v287
  %v289 = vrot.slane %v288, 1
  %v290 = vadd.f32 %v288, %v289
  %v291 = vadd.f32 %v252, %v290
  %vm292 = vcmask 516096
  %293 = vst.msk [vmem:[%s4] sm:$0x1] %vm292, %v291
  %v294 = vld [vmem:[%s5] sm:$0x1]
  %v295 = vmul.f32 %v196, %v196
  %v296 = vmul.f32 %v197, %v197
  %v297 = vmul.f32 %v198, %v198
  %v298 = vmul.f32 %v199, %v199
  %v299 = vmul.f32 %v200, %v200
  %v300 = vmul.f32 %v201, %v201
  %v301 = vmul.f32 %v202, %v202
  %v302 = vmul.f32 %v203, %v203
  %v303 = vmul.f32 %v204, %v204
  %v304 = vmul.f32 %v205, %v205
  %v305 = vmul.f32 %v206, %v206
  %v306 = vmul.f32 %v207, %v207
  %v307 = vmul.f32 %v208, %v208
  %v308 = vmul.f32 %v209, %v209
  %v309 = vmul.f32 %v210, %v210
  %v310 = vmul.f32 %v211, %v211
  %v311 = vsel %vm253, %v295, 0.0
  %v312 = vsel %vm253, %v296, 0.0
  %v313 = vadd.f32 %v311, %v312
  %v314 = vsel %vm253, %v297, 0.0
  %v315 = vadd.f32 %v313, %v314
  %v316 = vsel %vm253, %v298, 0.0
  %v317 = vadd.f32 %v315, %v316
  %v318 = vsel %vm253, %v299, 0.0
  %v319 = vadd.f32 %v317, %v318
  %v320 = vsel %vm253, %v300, 0.0
  %v321 = vadd.f32 %v319, %v320
  %v322 = vsel %vm253, %v301, 0.0
  %v323 = vadd.f32 %v321, %v322
  %v324 = vsel %vm253, %v302, 0.0
  %v325 = vadd.f32 %v323, %v324
  %v326 = vsel %vm253, %v303, 0.0
  %v327 = vadd.f32 %v325, %v326
  %v328 = vsel %vm253, %v304, 0.0
  %v329 = vadd.f32 %v327, %v328
  %v330 = vsel %vm253, %v305, 0.0
  %v331 = vadd.f32 %v329, %v330
  %v332 = vsel %vm253, %v306, 0.0
  %v333 = vadd.f32 %v331, %v332
  %v334 = vsel %vm253, %v307, 0.0
  %v335 = vadd.f32 %v333, %v334
  %v336 = vsel %vm253, %v308, 0.0
  %v337 = vadd.f32 %v335, %v336
  %v338 = vsel %vm253, %v309, 0.0
  %v339 = vadd.f32 %v337, %v338
  %v340 = vsel %vm253, %v310, 0.0
  %v341 = vadd.f32 %v339, %v340
  %v342 = vrot.slane %v341, 4
  %v343 = vadd.f32 %v341, %v342
  %v344 = vrot.slane %v343, 2
  %v345 = vadd.f32 %v343, %v344
  %v346 = vrot.slane %v345, 1
  %v347 = vadd.f32 %v345, %v346
  %v348 = vadd.f32 %v294, %v347
  %349 = vst.msk [vmem:[%s5] sm:$0x1] %vm292, %v348
  %s350 = sadd.s32 0, 0
  %s351 = smul.u32 16, %s350
  %p352 = scmp.lt.s32.totalorder %s351, 15
  %s353 = scalar_select %p352, %s351, 15
  %s354 = smul.addr %s353, 4
  %s355 = scalar_lea.vmem %s3, %s354
  // Predicated region
  $region18: #{pointnet_encoder_forward.14} parent=0 // pred_check
    _
  $region19: #{pointnet_encoder_forward.14} parent=0 // pred_check_branch
    %357 = sbr.rel (0) target = $region21
  $region20: #{pointnet_encoder_forward.14} parent=0 // pred_region
    %s358 = sadd.s32 0, 0
    %s359 = smul.u32 16, %s358
  $region21: #{pointnet_encoder_forward.14} parent=0 // pred_fallthru
    _
  // Predicated region
  $region22: #{pointnet_encoder_forward.14} parent=0 // pred_check
    _
  $region23: #{pointnet_encoder_forward.14} parent=0 // pred_check_branch
    %361 = sbr.rel (0) target = $region25
  $region24: #{pointnet_encoder_forward.14} parent=0 // pred_region
    _
  $region25: #{pointnet_encoder_forward.14} parent=0 // pred_fallthru
    _
  // Predicated region
  $region26: #{pointnet_encoder_forward.14} parent=0 // pred_check
    _
  $region27: #{pointnet_encoder_forward.14} parent=0 // pred_check_branch
    %363 = sbr.rel (0) target = $region29
  $region28: #{pointnet_encoder_forward.14} parent=0 // pred_region
    _
  $region29: #{pointnet_encoder_forward.14} parent=0 // pred_fallthru
    _
  // Predicated region
  $region30: #{pointnet_encoder_forward.14} parent=0 // pred_check
    _
  $region31: #{pointnet_encoder_forward.14} parent=0 // pred_check_branch
    %365 = sbr.rel (0) target = $region33
  $region32: #{pointnet_encoder_forward.14} parent=0 // pred_region
    %s366 = sadd.s32 0, 0
    %s367 = smul.u32 16, %s366
    %p368 = scmp.lt.s32.totalorder %s367, 15
    %s369 = scalar_select %p368, %s367, 15
    %s370 = smul.addr %s369, 4
    %s371 = scalar_lea.vmem %s3, %s370
  $region33: #{pointnet_encoder_forward.14} parent=0 // pred_fallthru
    _
  // Predicated region
  $region34: #{pointnet_encoder_forward.14} parent=0 // pred_check
    _
  $region35: #{pointnet_encoder_forward.14} parent=0 // pred_check_branch
    %373 = sbr.rel (0) target = $region37
  $region36: #{pointnet_encoder_forward.14} parent=0 // pred_region
    _
  $region37: #{pointnet_encoder_forward.14} parent=0 // pred_fallthru
    _
  // Predicated region
  $region38: #{pointnet_encoder_forward.14} parent=0 // pred_check
    _
  $region39: #{pointnet_encoder_forward.14} parent=0 // pred_check_branch
    %375 = sbr.rel (0) target = $region41
  $region40: #{pointnet_encoder_forward.14} parent=0 // pred_region
    _
  $region41: #{pointnet_encoder_forward.14} parent=0 // pred_fallthru
    _

// kernel: pointnet_encoder_forward.15
$region0: #{pointnet_encoder_forward.15}
  #allocation0 [shape = 'u32[]', space=smem, size = 0x4, offset = 0x4, fixed_abs, tag = 'smem constant byte address 0x4 - core index']
  #allocation1 [shape = 'u32[72,128]{1,0:T(1,128)}', space=vmem, size = 0x9000, scoped, tag = 'internal scratch']
  %s0 = inlined_call_operand.vmem [shape: bf16[128,64], index: 0, kind: input, shape index: {}]
  %s1 = inlined_call_operand.vmem [shape: bf16[64,128], index: 1, kind: input, shape index: {}]
  %s2 = inlined_call_operand.vmem [shape: f32[1,128], index: 2, kind: input, shape index: {}]
  %s3 = inlined_call_operand.vmem [shape: bf16[128,128], index: 3, kind: output, shape index: {0}]
  %s4 = inlined_call_operand.vmem [shape: f32[1,1,128], index: 4, kind: output, shape index: {1}]
  %s5 = inlined_call_operand.vmem [shape: f32[1,1,128], index: 5, kind: output, shape index: {2}]
  %6 = xla_tuple %s3, %s4, %s5
  %s7 = sld [smem:[#allocation0]]
  $region42: #{pointnet_encoder_forward.15} parent=0
    _
  %s9 = ssub.s32 1, %s7
  %s10 = scalar_select 0, %s9, %s7
  // Predicated region
  $region2: #{pointnet_encoder_forward.15} parent=0 // pred_check
    _
  $region3: #{pointnet_encoder_forward.15} parent=0 // pred_check_branch
    %12 = sbr.rel (0) target = $region5
  $region4: #{pointnet_encoder_forward.15} parent=0 // pred_region
    %s13 = sadd.s32 0, 0
    %s14 = smul.u32 16, %s13
    %p15 = scmp.lt.s32.totalorder %s14, 15
    %s16 = scalar_select %p15, %s14, 15
    %s17 = smul.addr %s16, 4
    %s18 = scalar_lea.vmem %s0, %s17
    %s19 = sadd.s32 0, 0
    %s20 = smul.u32 16, %s19
  $region5: #{pointnet_encoder_forward.15} parent=0 // pred_fallthru
    _
  // Predicated region
  $region6: #{pointnet_encoder_forward.15} parent=0 // pred_check
    _
  $region7: #{pointnet_encoder_forward.15} parent=0 // pred_check_branch
    %22 = sbr.rel (0) target = $region9
  $region8: #{pointnet_encoder_forward.15} parent=0 // pred_region
    _
  $region9: #{pointnet_encoder_forward.15} parent=0 // pred_fallthru
    _
  // Predicated region
  $region10: #{pointnet_encoder_forward.15} parent=0 // pred_check
    _
  $region11: #{pointnet_encoder_forward.15} parent=0 // pred_check_branch
    %24 = sbr.rel (0) target = $region13
  $region12: #{pointnet_encoder_forward.15} parent=0 // pred_region
    _
  $region13: #{pointnet_encoder_forward.15} parent=0 // pred_fallthru
    _
  %s25 = sadd.s32 0, 0
  %s26 = smul.u32 16, %s25
  %p27 = scmp.lt.s32.totalorder %s26, 15
  %s28 = scalar_select %p27, %s26, 15
  %s29 = smul.addr %s28, 4
  %s30 = scalar_lea.vmem %s0, %s29
  %s31 = sadd.s32 0, 0
  %s32 = smul.u32 16, %s31
  %p33 = scmp.lt.s32.totalorder %s32, 15
  %s34 = scalar_select %p33, %s32, 15
  %s35 = smul.addr %s34, 4
  %s36 = scalar_lea.vmem %s3, %s35
  %s37 = sadd.s32 0, 0
  %s38 = smul.u32 16, %s37
  %p39 = scmp.lt.s32.totalorder %s38, 15
  %s40 = scalar_select %p39, %s38, 15
  %s41 = smul.addr %s40, 4
  %s42 = scalar_lea.vmem %s0, %s41
  %s43 = sadd.s32 0, 0
  %s44 = smul.u32 16, %s43
  %s45 = sadd.s32 0, 0
  %s46 = smul.u32 16, %s45
  %p47 = scmp.lt.s32.totalorder %s46, 15
  %s48 = scalar_select %p47, %s46, 15
  %s49 = smul.addr %s48, 4
  %s50 = scalar_lea.vmem %s3, %s49
  %s51 = sadd.s32 0, 0
  %s52 = smul.u32 16, %s51
  %v54 = vld [vmem:[%s42] sm:$0xf]
  %v55 = vld [vmem:[%s42 + $0x4] sm:$0xf]
  %v56 = vld [vmem:[%s42 + $0x8] sm:$0xf]
  %v57 = vld [vmem:[%s42 + $0xc] sm:$0xf]
  %v58 = vld [vmem:[%s42 + $0x10] sm:$0xf]
  %v59 = vld [vmem:[%s42 + $0x14] sm:$0xf]
  %v60 = vld [vmem:[%s42 + $0x18] sm:$0xf]
  %v61 = vld [vmem:[%s42 + $0x1c] sm:$0xf]
  %v62 = vld [vmem:[%s42 + $0x20] sm:$0xf]
  %v63 = vld [vmem:[%s42 + $0x24] sm:$0xf]
  %v64 = vld [vmem:[%s42 + $0x28] sm:$0xf]
  %v65 = vld [vmem:[%s42 + $0x2c] sm:$0xf]
  %v66 = vld [vmem:[%s42 + $0x30] sm:$0xf]
  %v67 = vld [vmem:[%s42 + $0x34] sm:$0xf]
  %v68 = vld [vmem:[%s42 + $0x38] sm:$0xf]
  %v69 = vld [vmem:[%s42 + $0x3c] sm:$0xf]
  %v70 = vld [vmem:[%s1] sm:$0xf]
  %v71 = vld [vmem:[%s1 + $0x4] sm:$0xf]
  %v72 = vld [vmem:[%s1 + $0x8] sm:$0xf]
  %v73 = vld [vmem:[%s1 + $0xc] sm:$0xf]
  %v74 = vld [vmem:[%s1 + $0x10] sm:$0xf]
  %v75 = vld [vmem:[%s1 + $0x14] sm:$0xf]
  %v76 = vld [vmem:[%s1 + $0x18] sm:$0xf]
  %v77 = vld [vmem:[%s1 + $0x1c] sm:$0xf]
  %v78 = vld [vmem:[%s2] sm:$0x1]
  %v80 = vperm.slane %v78, 0
  %v98 = vunpack.c.l.b16 %v54
  %v99 = vunpack.c.l.b16 %v55
  %v100 = vunpack.c.l.b16 %v56
  %v101 = vunpack.c.l.b16 %v57
  %v102 = vunpack.c.l.b16 %v58
  %v103 = vunpack.c.l.b16 %v59
  %v104 = vunpack.c.l.b16 %v60
  %v105 = vunpack.c.l.b16 %v61
  %v106 = vunpack.c.l.b16 %v62
  %v107 = vunpack.c.l.b16 %v63
  %v108 = vunpack.c.l.b16 %v64
  %v109 = vunpack.c.l.b16 %v65
  %v110 = vunpack.c.l.b16 %v66
  %v111 = vunpack.c.l.b16 %v67
  %v112 = vunpack.c.l.b16 %v68
  %v113 = vunpack.c.l.b16 %v69
  %v114 = vpack.c.b16 %v99, %v98
  %v115 = vpack.c.b16 %v101, %v100
  %v116 = vpack.c.b16 %v103, %v102
  %v117 = vpack.c.b16 %v105, %v104
  %v118 = vpack.c.b16 %v107, %v106
  %v119 = vpack.c.b16 %v109, %v108
  %v120 = vpack.c.b16 %v111, %v110
  %v121 = vpack.c.b16 %v113, %v112
  %v130 = vunpack.c.l.b16 %v70
  %v131 = vunpack.c.l.b16 %v71
  %v132 = vunpack.c.l.b16 %v72
  %v133 = vunpack.c.l.b16 %v73
  %v134 = vunpack.c.l.b16 %v74
  %v135 = vunpack.c.l.b16 %v75
  %v136 = vunpack.c.l.b16 %v76
  %v137 = vunpack.c.l.b16 %v77
  %v138 = vpack.c.b16 %v131, %v130
  %v139 = vpack.c.b16 %v133, %v132
  %v140 = vpack.c.b16 %v135, %v134
  %v141 = vpack.c.b16 %v137, %v136
  %vm146 = vcmask 523264
  %v148 = vsel %vm146, %v114, 0
  %v151 = vsel %vm146, %v115, 0
  %v154 = vsel %vm146, %v116, 0
  %v157 = vsel %vm146, %v117, 0
  %v160 = vsel %vm146, %v118, 0
  %v163 = vsel %vm146, %v119, 0
  %v166 = vsel %vm146, %v120, 0
  %v169 = vsel %vm146, %v121, 0
  %171 = vmatpush.bf16.msra.mxu0 0
  %172 = vmatpush.bf16.msra.mxu0 0
  %173 = vmatpush.bf16.msra.mxu0 0
  %174 = vmatpush.bf16.msra.mxu0 0
  %175 = vmatpush.bf16.msra.mxu0 %v141
  %176 = vmatpush.bf16.msra.mxu0 %v140
  %177 = vmatpush.bf16.msra.mxu0 %v139
  %178 = vmatpush.bf16.msra.mxu0 %v138
  %179 = vmatmul.bf16.gmra.mxu0 %v148
  %v180 = vpop.f32.mrf.mxu0
  %v181 = vadd.f32 %v80, %v180
  %v182 = vpop.f32.mrf.mxu0
  %v183 = vadd.f32 %v80, %v182
  %184 = vmatmul.bf16.gmra.mxu0 %v151
  %v185 = vpop.f32.mrf.mxu0
  %v186 = vadd.f32 %v80, %v185
  %v187 = vpop.f32.mrf.mxu0
  %v188 = vadd.f32 %v80, %v187
  %189 = vmatmul.bf16.gmra.mxu0 %v154
  %v190 = vpop.f32.mrf.mxu0
  %v191 = vadd.f32 %v80, %v190
  %v192 = vpop.f32.mrf.mxu0
  %v193 = vadd.f32 %v80, %v192
  %194 = vmatmul.bf16.gmra.mxu0 %v157
  %v195 = vpop.f32.mrf.mxu0
  %v196 = vadd.f32 %v80, %v195
  %v197 = vpop.f32.mrf.mxu0
  %v198 = vadd.f32 %v80, %v197
  %199 = vmatmul.bf16.gmra.mxu0 %v160
  %v200 = vpop.f32.mrf.mxu0
  %v201 = vadd.f32 %v80, %v200
  %v202 = vpop.f32.mrf.mxu0
  %v203 = vadd.f32 %v80, %v202
  %204 = vmatmul.bf16.gmra.mxu0 %v163
  %v205 = vpop.f32.mrf.mxu0
  %v206 = vadd.f32 %v80, %v205
  %v207 = vpop.f32.mrf.mxu0
  %v208 = vadd.f32 %v80, %v207
  %209 = vmatmul.bf16.gmra.mxu0 %v166
  %v210 = vpop.f32.mrf.mxu0
  %v211 = vadd.f32 %v80, %v210
  %v212 = vpop.f32.mrf.mxu0
  %v213 = vadd.f32 %v80, %v212
  %214 = vmatmul.bf16.gmra.mxu0 %v169
  %v215 = vpop.f32.mrf.mxu0
  %v216 = vadd.f32 %v80, %v215
  %v217 = vpop.f32.mrf.mxu0
  %v218 = vadd.f32 %v80, %v217
  %219 = vdwg.mxu0
  %v220 = vmax.f32 %v181, 0.0
  %v221 = vmax.f32 %v183, 0.0
  %v222 = vmax.f32 %v186, 0.0
  %v223 = vmax.f32 %v188, 0.0
  %v224 = vmax.f32 %v191, 0.0
  %v225 = vmax.f32 %v193, 0.0
  %v226 = vmax.f32 %v196, 0.0
  %v227 = vmax.f32 %v198, 0.0
  %v228 = vmax.f32 %v201, 0.0
  %v229 = vmax.f32 %v203, 0.0
  %v230 = vmax.f32 %v206, 0.0
  %v231 = vmax.f32 %v208, 0.0
  %v232 = vmax.f32 %v211, 0.0
  %v233 = vmax.f32 %v213, 0.0
  %v234 = vmax.f32 %v216, 0.0
  %v235 = vmax.f32 %v218, 0.0
  %v236 = vpack.c.bf16 %v220, %v220
  %v237 = vpack.c.bf16 %v221, %v221
  %v238 = vpack.c.bf16 %v222, %v222
  %v239 = vpack.c.bf16 %v223, %v223
  %v240 = vpack.c.bf16 %v224, %v224
  %v241 = vpack.c.bf16 %v225, %v225
  %v242 = vpack.c.bf16 %v226, %v226
  %v243 = vpack.c.bf16 %v227, %v227
  %v244 = vpack.c.bf16 %v228, %v228
  %v245 = vpack.c.bf16 %v229, %v229
  %v246 = vpack.c.bf16 %v230, %v230
  %v247 = vpack.c.bf16 %v231, %v231
  %v248 = vpack.c.bf16 %v232, %v232
  %v249 = vpack.c.bf16 %v233, %v233
  %v250 = vpack.c.bf16 %v234, %v234
  %v251 = vpack.c.bf16 %v235, %v235
  %252 = vst [vmem:[%s50] sm:$0xf] %v236
  %253 = vst [vmem:[%s50 + $0x4] sm:$0xf] %v237
  %254 = vst [vmem:[%s50 + $0x8] sm:$0xf] %v238
  %255 = vst [vmem:[%s50 + $0xc] sm:$0xf] %v239
  %256 = vst [vmem:[%s50 + $0x10] sm:$0xf] %v240
  %257 = vst [vmem:[%s50 + $0x14] sm:$0xf] %v241
  %258 = vst [vmem:[%s50 + $0x18] sm:$0xf] %v242
  %259 = vst [vmem:[%s50 + $0x1c] sm:$0xf] %v243
  %260 = vst [vmem:[%s50 + $0x20] sm:$0xf] %v244
  %261 = vst [vmem:[%s50 + $0x24] sm:$0xf] %v245
  %262 = vst [vmem:[%s50 + $0x28] sm:$0xf] %v246
  %263 = vst [vmem:[%s50 + $0x2c] sm:$0xf] %v247
  %264 = vst [vmem:[%s50 + $0x30] sm:$0xf] %v248
  %265 = vst [vmem:[%s50 + $0x34] sm:$0xf] %v249
  %266 = vst [vmem:[%s50 + $0x38] sm:$0xf] %v250
  %267 = vst [vmem:[%s50 + $0x3c] sm:$0xf] %v251
  %p268 = scmp.eq.s32.totalorder 0, 0
  // Predicated region
  $region14: #{pointnet_encoder_forward.15} parent=0 // pred_check
    %p269 = pneg %p268
  $region15: #{pointnet_encoder_forward.15} parent=0 // pred_check_branch
    %271 = sbr.rel (%p269) target = $region17
  $region16: #{pointnet_encoder_forward.15} parent=0 // pred_region
    %272 = vst [vmem:[%s4] sm:$0x1] 0.0
    %273 = vst [vmem:[%s5] sm:$0x1] 0.0
  $region17: #{pointnet_encoder_forward.15} parent=0 // pred_fallthru
    _
  %v274 = vld [vmem:[%s4] sm:$0x1]
  %v275 = vadd.f32 %v220, %v221
  %v276 = vadd.f32 %v275, %v222
  %v277 = vadd.f32 %v276, %v223
  %v278 = vadd.f32 %v277, %v224
  %v279 = vadd.f32 %v278, %v225
  %v280 = vadd.f32 %v279, %v226
  %v281 = vadd.f32 %v280, %v227
  %v282 = vadd.f32 %v281, %v228
  %v283 = vadd.f32 %v282, %v229
  %v284 = vadd.f32 %v283, %v230
  %v285 = vadd.f32 %v284, %v231
  %v286 = vadd.f32 %v285, %v232
  %v287 = vadd.f32 %v286, %v233
  %v288 = vadd.f32 %v287, %v234
  %v289 = vadd.f32 %v288, %v235
  %v290 = vrot.slane %v289, 4
  %v291 = vadd.f32 %v289, %v290
  %v292 = vrot.slane %v291, 2
  %v293 = vadd.f32 %v291, %v292
  %v294 = vrot.slane %v293, 1
  %v295 = vadd.f32 %v293, %v294
  %v296 = vadd.f32 %v274, %v295
  %297 = vst [vmem:[%s4] sm:$0x1] %v296
  %v298 = vld [vmem:[%s5] sm:$0x1]
  %v299 = vmul.f32 %v220, %v220
  %v300 = vmul.f32 %v221, %v221
  %v301 = vmul.f32 %v222, %v222
  %v302 = vmul.f32 %v223, %v223
  %v303 = vmul.f32 %v224, %v224
  %v304 = vmul.f32 %v225, %v225
  %v305 = vmul.f32 %v226, %v226
  %v306 = vmul.f32 %v227, %v227
  %v307 = vmul.f32 %v228, %v228
  %v308 = vmul.f32 %v229, %v229
  %v309 = vmul.f32 %v230, %v230
  %v310 = vmul.f32 %v231, %v231
  %v311 = vmul.f32 %v232, %v232
  %v312 = vmul.f32 %v233, %v233
  %v313 = vmul.f32 %v234, %v234
  %v314 = vmul.f32 %v235, %v235
  %v315 = vadd.f32 %v299, %v300
  %v316 = vadd.f32 %v315, %v301
  %v317 = vadd.f32 %v316, %v302
  %v318 = vadd.f32 %v317, %v303
  %v319 = vadd.f32 %v318, %v304
  %v320 = vadd.f32 %v319, %v305
  %v321 = vadd.f32 %v320, %v306
  %v322 = vadd.f32 %v321, %v307
  %v323 = vadd.f32 %v322, %v308
  %v324 = vadd.f32 %v323, %v309
  %v325 = vadd.f32 %v324, %v310
  %v326 = vadd.f32 %v325, %v311
  %v327 = vadd.f32 %v326, %v312
  %v328 = vadd.f32 %v327, %v313
  %v329 = vadd.f32 %v328, %v314
  %v330 = vrot.slane %v329, 4
  %v331 = vadd.f32 %v329, %v330
  %v332 = vrot.slane %v331, 2
  %v333 = vadd.f32 %v331, %v332
  %v334 = vrot.slane %v333, 1
  %v335 = vadd.f32 %v333, %v334
  %v336 = vadd.f32 %v298, %v335
  %337 = vst [vmem:[%s5] sm:$0x1] %v336
  %s338 = sadd.s32 0, 0
  %s339 = smul.u32 16, %s338
  %p340 = scmp.lt.s32.totalorder %s339, 15
  %s341 = scalar_select %p340, %s339, 15
  %s342 = smul.addr %s341, 4
  %s343 = scalar_lea.vmem %s3, %s342
  // Predicated region
  $region18: #{pointnet_encoder_forward.15} parent=0 // pred_check
    _
  $region19: #{pointnet_encoder_forward.15} parent=0 // pred_check_branch
    %345 = sbr.rel (0) target = $region21
  $region20: #{pointnet_encoder_forward.15} parent=0 // pred_region
    %s346 = sadd.s32 0, 0
    %s347 = smul.u32 16, %s346
  $region21: #{pointnet_encoder_forward.15} parent=0 // pred_fallthru
    _
  // Predicated region
  $region22: #{pointnet_encoder_forward.15} parent=0 // pred_check
    _
  $region23: #{pointnet_encoder_forward.15} parent=0 // pred_check_branch
    %349 = sbr.rel (0) target = $region25
  $region24: #{pointnet_encoder_forward.15} parent=0 // pred_region
    _
  $region25: #{pointnet_encoder_forward.15} parent=0 // pred_fallthru
    _
  // Predicated region
  $region26: #{pointnet_encoder_forward.15} parent=0 // pred_check
    _
  $region27: #{pointnet_encoder_forward.15} parent=0 // pred_check_branch
    %351 = sbr.rel (0) target = $region29
  $region28: #{pointnet_encoder_forward.15} parent=0 // pred_region
    _
  $region29: #{pointnet_encoder_forward.15} parent=0 // pred_fallthru
    _
  // Predicated region
  $region30: #{pointnet_encoder_forward.15} parent=0 // pred_check
    _
  $region31: #{pointnet_encoder_forward.15} parent=0 // pred_check_branch
    %353 = sbr.rel (0) target = $region33
  $region32: #{pointnet_encoder_forward.15} parent=0 // pred_region
    %s354 = sadd.s32 0, 0
    %s355 = smul.u32 16, %s354
    %p356 = scmp.lt.s32.totalorder %s355, 15
    %s357 = scalar_select %p356, %s355, 15
    %s358 = smul.addr %s357, 4
    %s359 = scalar_lea.vmem %s3, %s358
  $region33: #{pointnet_encoder_forward.15} parent=0 // pred_fallthru
    _
  // Predicated region
  $region34: #{pointnet_encoder_forward.15} parent=0 // pred_check
    _
  $region35: #{pointnet_encoder_forward.15} parent=0 // pred_check_branch
    %361 = sbr.rel (0) target = $region37
  $region36: #{pointnet_encoder_forward.15} parent=0 // pred_region
    _
  $region37: #{pointnet_encoder_forward.15} parent=0 // pred_fallthru
    _
  // Predicated region
  $region38: #{pointnet_encoder_forward.15} parent=0 // pred_check
    _
  $region39: #{pointnet_encoder_forward.15} parent=0 // pred_check_branch
    %363 = sbr.rel (0) target = $region41
  $region40: #{pointnet_encoder_forward.15} parent=0 // pred_region
    _
  $region41: #{pointnet_encoder_forward.15} parent=0 // pred_fallthru
    _

// kernel: pointnet_encoder_forward.16
$region0: #{pointnet_encoder_forward.16}
  #allocation0 [shape = 'u32[]', space=smem, size = 0x4, offset = 0x4, fixed_abs, tag = 'smem constant byte address 0x4 - core index']
  #allocation1 [shape = 'u32[72,128]{1,0:T(1,128)}', space=vmem, size = 0x9000, scoped, tag = 'internal scratch']
  %s0 = inlined_call_operand.vmem [shape: bf16[2,64,128], index: 0, kind: input, shape index: {}]
  %s1 = inlined_call_operand.vmem [shape: bf16[128,256], index: 1, kind: input, shape index: {}]
  %s2 = inlined_call_operand.vmem [shape: f32[1,256], index: 2, kind: input, shape index: {}]
  %s3 = inlined_call_operand.vmem [shape: f32[2,1,256], index: 3, kind: output, shape index: {0}]
  %s4 = inlined_call_operand.vmem [shape: f32[2,1,256], index: 4, kind: output, shape index: {1}]
  %s5 = inlined_call_operand.vmem [shape: f32[2,1,256], index: 5, kind: output, shape index: {2}]
  %6 = xla_tuple %s3, %s4, %s5
  %s7 = sld [smem:[#allocation0]]
  $region65: #{pointnet_encoder_forward.16} parent=0
    _
  %s9 = ssub.s32 1, %s7
  %s10 = scalar_select 0, %s9, %s7
  loop: start=0, step=1, limit=4
  $region2: #{pointnet_encoder_forward.16} parent=0 // loop_pre_header
    _
  $region3: #{pointnet_encoder_forward.16} parent=0 // loop_header
    %s12 = sphi 0, %s16
    %p13 = scmp.ge.s32.totalorder %s12, 4
    %s19 = sphi 0, %s31
    %s20 = sphi 0, %s27
    %s21 = sphi 0, %s19
    %s22 = sphi 0, %s20
    %s23 = sphi 0, %s21
    %s24 = sphi 0, %s22
    %s36 = sphi 0, %s38
    %s39 = sphi 0, %s36
    %s40 = sphi 0, %s39
    %s56 = sphi 0, %s40
    %s60 = sphi 0, %s60
    %s62 = sphi 0, %s60
    %s63 = sphi 0, %s62
    %s77 = sphi 0, %s63
    %s81 = sphi 0, %s81
    %s83 = sphi 0, %s81
    %s84 = sphi 0, %s83
    %s98 = sphi 0, %s84
    %s104 = sphi 0, %s106
    %s107 = sphi 0, %s104
    %s108 = sphi 0, %s107
    %s124 = sphi 0, %s108
    %s130 = sphi 0, %s132
    %s133 = sphi 0, %s130
    %s134 = sphi 0, %s133
    %s150 = sphi 0, %s134
    %s156 = sphi 0, %s158
    %s159 = sphi 0, %s156
    %s160 = sphi 0, %s159
    %s176 = sphi 0, %s160
  $region4: #{pointnet_encoder_forward.16} parent=0 // loop_header_branch
    %15 = sbr.rel (%p13) target = $region8
  $region5: #{pointnet_encoder_forward.16} parent=0 // loop_body
    %s17 = ssub.s32 %s12, 1
    %s18 = ssub.s32 %s12, 2
    %s25 = sadd.s32 1, %s20
    %p26 = scmp.ge.s32.totalorder %s25, 1
    %s27 = scalar_select %p26, 0, %s25
    %s28 = sadd.s32 1, %s19
    %s29 = scalar_select %p26, %s28, %s19
    %p30 = scmp.ge.s32.totalorder %s29, 2
    %s31 = scalar_select %p30, 0, %s29
    %s32 = ssub.s32 %s19, %s31
    %s33 = ssub.s32 %s20, %s27
    %s34 = sor.u32 %s32, %s33
    %p35 = scmp.eq.s32.totalorder %s34, 0
    %s37 = sadd.s32 %s36, 1
    %s38 = scalar_select %p35, %s36, %s37
    %p41 = pneg %p35
    %p42 = scmp.eq.s32.totalorder %s12, 1
    %p43 = por %p41, %p42
    %p44 = scmp.ne.s32.totalorder %s36, %s39
    %p45 = scmp.eq.s32.totalorder %s12, 0
    %p46 = por %p44, %p45
    %p47 = scmp.ne.s32.totalorder %s36, %s39
    %p48 = scmp.eq.s32.totalorder %s17, 1
    %p49 = por %p47, %p48
    %p50 = scmp.ne.s32.totalorder %s39, %s40
    %p51 = scmp.eq.s32.totalorder %s17, 0
    %p52 = por %p50, %p51
    %p53 = scmp.ne.s32.totalorder %s39, %s40
    %p54 = scmp.eq.s32.totalorder %s18, 1
    %p55 = por %p53, %p54
    %p57 = scmp.ne.s32.totalorder %s40, %s56
    %p58 = scmp.eq.s32.totalorder %s18, 0
    %p59 = por %p57, %p58
    %s61 = sadd.s32 %s60, 1
    %p64 = scmp.eq.s32.totalorder %s12, 1
    %p65 = scmp.ne.s32.totalorder %s60, %s62
    %p66 = scmp.eq.s32.totalorder %s12, 0
    %p67 = por %p65, %p66
    %p68 = scmp.ne.s32.totalorder %s60, %s62
    %p69 = scmp.eq.s32.totalorder %s17, 1
    %p70 = por %p68, %p69
    %p71 = scmp.ne.s32.totalorder %s62, %s63
    %p72 = scmp.eq.s32.totalorder %s17, 0
    %p73 = por %p71, %p72
    %p74 = scmp.ne.s32.totalorder %s62, %s63
    %p75 = scmp.eq.s32.totalorder %s18, 1
    %p76 = por %p74, %p75
    %p78 = scmp.ne.s32.totalorder %s63, %s77
    %p79 = scmp.eq.s32.totalorder %s18, 0
    %p80 = por %p78, %p79
    %s82 = sadd.s32 %s81, 1
    %p85 = scmp.eq.s32.totalorder %s12, 1
    %p86 = scmp.ne.s32.totalorder %s81, %s83
    %p87 = scmp.eq.s32.totalorder %s12, 0
    %p88 = por %p86, %p87
    %p89 = scmp.ne.s32.totalorder %s81, %s83
    %p90 = scmp.eq.s32.totalorder %s17, 1
    %p91 = por %p89, %p90
    %p92 = scmp.ne.s32.totalorder %s83, %s84
    %p93 = scmp.eq.s32.totalorder %s17, 0
    %p94 = por %p92, %p93
    %p95 = scmp.ne.s32.totalorder %s83, %s84
    %p96 = scmp.eq.s32.totalorder %s18, 1
    %p97 = por %p95, %p96
    %p99 = scmp.ne.s32.totalorder %s84, %s98
    %p100 = scmp.eq.s32.totalorder %s18, 0
    %p101 = por %p99, %p100
    %s102 = ssub.s32 %s19, %s31
    %p103 = scmp.eq.s32.totalorder %s102, 0
    %s105 = sadd.s32 %s104, 1
    %s106 = scalar_select %p103, %s104, %s105
    %p109 = pneg %p103
    %p110 = scmp.eq.s32.totalorder %s12, 1
    %p111 = por %p109, %p110
    %p112 = scmp.ne.s32.totalorder %s104, %s107
    %p113 = scmp.eq.s32.totalorder %s12, 0
    %p114 = por %p112, %p113
    %p115 = scmp.ne.s32.totalorder %s104, %s107
    %p116 = scmp.eq.s32.totalorder %s17, 1
    %p117 = por %p115, %p116
    %p118 = scmp.ne.s32.totalorder %s107, %s108
    %p119 = scmp.eq.s32.totalorder %s17, 0
    %p120 = por %p118, %p119
    %p121 = scmp.ne.s32.totalorder %s107, %s108
    %p122 = scmp.eq.s32.totalorder %s18, 1
    %p123 = por %p121, %p122
    %p125 = scmp.ne.s32.totalorder %s108, %s124
    %p126 = scmp.eq.s32.totalorder %s18, 0
    %p127 = por %p125, %p126
    %s128 = ssub.s32 %s19, %s31
    %p129 = scmp.eq.s32.totalorder %s128, 0
    %s131 = sadd.s32 %s130, 1
    %s132 = scalar_select %p129, %s130, %s131
    %p135 = pneg %p129
    %p136 = scmp.eq.s32.totalorder %s12, 1
    %p137 = por %p135, %p136
    %p138 = scmp.ne.s32.totalorder %s130, %s133
    %p139 = scmp.eq.s32.totalorder %s12, 0
    %p140 = por %p138, %p139
    %p141 = scmp.ne.s32.totalorder %s130, %s133
    %p142 = scmp.eq.s32.totalorder %s17, 1
    %p143 = por %p141, %p142
    %p144 = scmp.ne.s32.totalorder %s133, %s134
    %p145 = scmp.eq.s32.totalorder %s17, 0
    %p146 = por %p144, %p145
    %p147 = scmp.ne.s32.totalorder %s133, %s134
    %p148 = scmp.eq.s32.totalorder %s18, 1
    %p149 = por %p147, %p148
    %p151 = scmp.ne.s32.totalorder %s134, %s150
    %p152 = scmp.eq.s32.totalorder %s18, 0
    %p153 = por %p151, %p152
    %s154 = ssub.s32 %s19, %s31
    %p155 = scmp.eq.s32.totalorder %s154, 0
    %s157 = sadd.s32 %s156, 1
    %s158 = scalar_select %p155, %s156, %s157
    %p161 = pneg %p155
    %p162 = scmp.eq.s32.totalorder %s12, 1
    %p163 = por %p161, %p162
    %p164 = scmp.ne.s32.totalorder %s156, %s159
    %p165 = scmp.eq.s32.totalorder %s12, 0
    %p166 = por %p164, %p165
    %p167 = scmp.ne.s32.totalorder %s156, %s159
    %p168 = scmp.eq.s32.totalorder %s17, 1
    %p169 = por %p167, %p168
    %p170 = scmp.ne.s32.totalorder %s159, %s160
    %p171 = scmp.eq.s32.totalorder %s17, 0
    %p172 = por %p170, %p171
    %p173 = scmp.ne.s32.totalorder %s159, %s160
    %p174 = scmp.eq.s32.totalorder %s18, 1
    %p175 = por %p173, %p174
    %p177 = scmp.ne.s32.totalorder %s160, %s176
    %p178 = scmp.eq.s32.totalorder %s18, 0
    %p179 = por %p177, %p178
    %p180 = scmp.le.s32.totalorder 1, %s12
    %p181 = scmp.lt.s32.totalorder %s12, 3
    %p182 = pnand %p180, %p181
    %p183 = pneg %p182
    // Predicated region
    $region9: #{pointnet_encoder_forward.16} parent=5 // pred_check
      _
    $region10: #{pointnet_encoder_forward.16} parent=5 // pred_check_branch
      %185 = sbr.rel (%p182) target = $region12
    $region11: #{pointnet_encoder_forward.16} parent=5 // pred_region
      %s186 = ssub.s32 %s12, 1
      // Predicated region
      $region13: #{pointnet_encoder_forward.16} parent=11 // pred_check
        %p187 = pneg %p73
      $region14: #{pointnet_encoder_forward.16} parent=11 // pred_check_branch
        %189 = sbr.rel (%p187) target = $region16
      $region15: #{pointnet_encoder_forward.16} parent=11 // pred_region
        _
      $region16: #{pointnet_encoder_forward.16} parent=11 // pred_fallthru
        _
      // Predicated region
      $region17: #{pointnet_encoder_forward.16} parent=11 // pred_check
        %p190 = pneg %p94
      $region18: #{pointnet_encoder_forward.16} parent=11 // pred_check_branch
        %192 = sbr.rel (%p190) target = $region20
      $region19: #{pointnet_encoder_forward.16} parent=11 // pred_region
        _
      $region20: #{pointnet_encoder_forward.16} parent=11 // pred_fallthru
        _
    $region12: #{pointnet_encoder_forward.16} parent=5 // pred_fallthru
      _
    %p193 = scmp.lt.s32.totalorder %s12, 2
    // Predicated region
    $region21: #{pointnet_encoder_forward.16} parent=5 // pred_check
      %p194 = pneg %p193
    $region22: #{pointnet_encoder_forward.16} parent=5 // pred_check_branch
      %196 = sbr.rel (%p194) target = $region24
    $region23: #{pointnet_encoder_forward.16} parent=5 // pred_region
      // Predicated region
      $region25: #{pointnet_encoder_forward.16} parent=23 // pred_check
        %p197 = pneg %p46
      $region26: #{pointnet_encoder_forward.16} parent=23 // pred_check_branch
        %199 = sbr.rel (%p197) target = $region28
      $region27: #{pointnet_encoder_forward.16} parent=23 // pred_region
        %s200 = smul.u32 8, %s20
        %p201 = scmp.lt.s32.totalorder %s19, 1
        %s202 = scalar_select %p201, %s19, 1
        %p203 = scmp.lt.s32.totalorder %s200, 7
        %s204 = scalar_select %p203, %s200, 7
        %s205 = smul.addr %s202, 8
        %s206 = sadd.s32 %s204, %s205
        %s207 = smul.addr %s206, 4
        %s208 = scalar_lea.vmem %s0, %s207
        %s209 = smul.u32 8, %s20
      $region28: #{pointnet_encoder_forward.16} parent=23 // pred_fallthru
        _
    $region24: #{pointnet_encoder_forward.16} parent=5 // pred_fallthru
      _
    %p210 = scmp.le.s32.totalorder 1, %s12
    %p211 = scmp.lt.s32.totalorder %s12, 3
    %p212 = pnand %p210, %p211
    %p213 = pneg %p212
    // Predicated region
    $region29: #{pointnet_encoder_forward.16} parent=5 // pred_check
      _
    $region30: #{pointnet_encoder_forward.16} parent=5 // pred_check_branch
      %215 = sbr.rel (%p212) target = $region32
    $region31: #{pointnet_encoder_forward.16} parent=5 // pred_region
      %s216 = ssub.s32 %s12, 1
      %s217 = smul.u32 8, %s22
      %p218 = scmp.lt.s32.totalorder %s21, 1
      %s219 = scalar_select %p218, %s21, 1
      %p220 = scmp.lt.s32.totalorder %s217, 7
      %s221 = scalar_select %p220, %s217, 7
      %s222 = smul.addr %s219, 8
      %s223 = sadd.s32 %s221, %s222
      %s224 = smul.addr %s223, 4
      %s225 = scalar_lea.vmem %s0, %s224
      %p226 = pneg %p52
      %p227 = pneg %p49
      %p228 = pneg %p73
      %p229 = pneg %p70
      %p230 = pneg %p94
      %p231 = pneg %p91
      %p232 = pneg %p120
      %p233 = pneg %p117
      %p234 = scmp.lt.s32.totalorder %s21, 1
      %s235 = scalar_select %p234, %s21, 1
      %s236 = smul.addr %s235, 2
      %s237 = scalar_lea.vmem %s3, %s236
      %p238 = pneg %p146
      %p239 = pneg %p143
      %p240 = scmp.lt.s32.totalorder %s21, 1
      %s241 = scalar_select %p240, %s21, 1
      %s242 = smul.addr %s241, 2
      %s243 = scalar_lea.vmem %s4, %s242
      %p244 = pneg %p172
      %p245 = pneg %p169
      %p246 = scmp.lt.s32.totalorder %s21, 1
      %s247 = scalar_select %p246, %s21, 1
      %s248 = smul.addr %s247, 2
      %s249 = scalar_lea.vmem %s5, %s248
      %s250 = smul.u32 8, %s22
      %p251 = scmp.lt.s32.totalorder %s21, 1
      %s252 = scalar_select %p251, %s21, 1
      %p253 = scmp.lt.s32.totalorder %s250, 7
      %s254 = scalar_select %p253, %s250, 7
      %s255 = smul.addr %s252, 8
      %s256 = sadd.s32 %s254, %s255
      %s257 = smul.addr %s256, 4
      %s258 = scalar_lea.vmem %s0, %s257
      %s259 = smul.u32 8, %s22
      %p260 = scmp.lt.s32.totalorder %s21, 1
      %s261 = scalar_select %p260, %s21, 1
      %s262 = smul.addr %s261, 2
      %s263 = scalar_lea.vmem %s3, %s262
      %p264 = scmp.lt.s32.totalorder %s21, 1
      %s265 = scalar_select %p264, %s21, 1
      %s266 = smul.addr %s265, 2
      %s267 = scalar_lea.vmem %s4, %s266
      %p268 = scmp.lt.s32.totalorder %s21, 1
      %s269 = scalar_select %p268, %s21, 1
      %s270 = smul.addr %s269, 2
      %s271 = scalar_lea.vmem %s5, %s270
      %v272 = vld [vmem:[%s258] sm:$0xf]
      %v273 = vld [vmem:[%s258 + $0x4] sm:$0xf]
      %v274 = vld [vmem:[%s258 + $0x8] sm:$0xf]
      %v275 = vld [vmem:[%s258 + $0xc] sm:$0xf]
      %v276 = vld [vmem:[%s258 + $0x10] sm:$0xf]
      %v277 = vld [vmem:[%s258 + $0x14] sm:$0xf]
      %v278 = vld [vmem:[%s258 + $0x18] sm:$0xf]
      %v279 = vld [vmem:[%s258 + $0x1c] sm:$0xf]
      %v280 = vld [vmem:[%s1] sm:$0xff]
      %v281 = vld [vmem:[%s1 + $0x8] sm:$0xff]
      %v282 = vld [vmem:[%s1 + $0x10] sm:$0xff]
      %v283 = vld [vmem:[%s1 + $0x18] sm:$0xff]
      %v284 = vld [vmem:[%s1 + $0x20] sm:$0xff]
      %v285 = vld [vmem:[%s1 + $0x28] sm:$0xff]
      %v286 = vld [vmem:[%s1 + $0x30] sm:$0xff]
      %v287 = vld [vmem:[%s1 + $0x38] sm:$0xff]
      %v288 = vld [vmem:[%s1 + $0x40] sm:$0xff]
      %v289 = vld [vmem:[%s1 + $0x48] sm:$0xff]
      %v290 = vld [vmem:[%s1 + $0x50] sm:$0xff]
      %v291 = vld [vmem:[%s1 + $0x58] sm:$0xff]
      %v292 = vld [vmem:[%s1 + $0x60] sm:$0xff]
      %v293 = vld [vmem:[%s1 + $0x68] sm:$0xff]
      %v294 = vld [vmem:[%s1 + $0x70] sm:$0xff]
      %v295 = vld [vmem:[%s1 + $0x78] sm:$0xff]
      %v296 = vld [vmem:[%s2] sm:$0x3]
      %v298 = vperm.slane %v296, 0
      %v299 = vperm.slane %v296, 1
      %v310 = vunpack.c.l.b16 %v272
      %v311 = vunpack.c.l.b16 %v273
      %v312 = vunpack.c.l.b16 %v274
      %v313 = vunpack.c.l.b16 %v275
      %v314 = vunpack.c.l.b16 %v276
      %v315 = vunpack.c.l.b16 %v277
      %v316 = vunpack.c.l.b16 %v278
      %v317 = vunpack.c.l.b16 %v279
      %v318 = vpack.c.b16 %v311, %v310
      %v319 = vpack.c.b16 %v313, %v312
      %v320 = vpack.c.b16 %v315, %v314
      %v321 = vpack.c.b16 %v317, %v316
      %v342 = vunpack.c.l.b16 %v280
      %v343 = vunpack.c.h.b16 %v280
      %v344 = vunpack.c.l.b16 %v281
      %v345 = vunpack.c.h.b16 %v281
      %v346 = vunpack.c.l.b16 %v282
      %v347 = vunpack.c.h.b16 %v282
      %v348 = vunpack.c.l.b16 %v283
      %v349 = vunpack.c.h.b16 %v283
      %v350 = vunpack.c.l.b16 %v284
      %v351 = vunpack.c.h.b16 %v284
      %v352 = vunpack.c.l.b16 %v285
      %v353 = vunpack.c.h.b16 %v285
      %v354 = vunpack.c.l.b16 %v286
      %v355 = vunpack.c.h.b16 %v286
      %v356 = vunpack.c.l.b16 %v287
      %v357 = vunpack.c.h.b16 %v287
      %v358 = vunpack.c.l.b16 %v288
      %v359 = vunpack.c.h.b16 %v288
      %v360 = vunpack.c.l.b16 %v289
      %v361 = vunpack.c.h.b16 %v289
      %v362 = vunpack.c.l.b16 %v290
      %v363 = vunpack.c.h.b16 %v290
      %v364 = vunpack.c.l.b16 %v291
      %v365 = vunpack.c.h.b16 %v291
      %v366 = vunpack.c.l.b16 %v292
      %v367 = vunpack.c.h.b16 %v292
      %v368 = vunpack.c.l.b16 %v293
      %v369 = vunpack.c.h.b16 %v293
      %v370 = vunpack.c.l.b16 %v294
      %v371 = vunpack.c.h.b16 %v294
      %v372 = vunpack.c.l.b16 %v295
      %v373 = vunpack.c.h.b16 %v295
      %v374 = vpack.c.b16 %v344, %v342
      %v375 = vpack.c.b16 %v345, %v343
      %v376 = vpack.c.b16 %v348, %v346
      %v377 = vpack.c.b16 %v349, %v347
      %v378 = vpack.c.b16 %v352, %v350
      %v379 = vpack.c.b16 %v353, %v351
      %v380 = vpack.c.b16 %v356, %v354
      %v381 = vpack.c.b16 %v357, %v355
      %v382 = vpack.c.b16 %v360, %v358
      %v383 = vpack.c.b16 %v361, %v359
      %v384 = vpack.c.b16 %v364, %v362
      %v385 = vpack.c.b16 %v365, %v363
      %v386 = vpack.c.b16 %v368, %v366
      %v387 = vpack.c.b16 %v369, %v367
      %v388 = vpack.c.b16 %v372, %v370
      %v389 = vpack.c.b16 %v373, %v371
      %406 = vmatpush.bf16.msra.mxu0 %v388
      %407 = vmatpush.bf16.msra.mxu0 %v386
      %408 = vmatpush.bf16.msra.mxu0 %v384
      %409 = vmatpush.bf16.msra.mxu0 %v382
      %410 = vmatpush.bf16.msra.mxu0 %v380
      %411 = vmatpush.bf16.msra.mxu0 %v378
      %412 = vmatpush.bf16.msra.mxu0 %v376
      %413 = vmatpush.bf16.msra.mxu0 %v374
      %414 = vmatmul.bf16.gmra.mxu0 %v318
      %v415 = vpop.f32.mrf.mxu0
      %v416 = vadd.f32 %v298, %v415
      %v417 = vpop.f32.mrf.mxu0
      %v418 = vadd.f32 %v298, %v417
      %419 = vmatmul.bf16.gmra.mxu0 %v319
      %v420 = vpop.f32.mrf.mxu0
      %v421 = vadd.f32 %v298, %v420
      %v422 = vpop.f32.mrf.mxu0
      %v423 = vadd.f32 %v298, %v422
      %424 = vmatmul.bf16.gmra.mxu0 %v320
      %v425 = vpop.f32.mrf.mxu0
      %v426 = vadd.f32 %v298, %v425
      %v427 = vpop.f32.mrf.mxu0
      %v428 = vadd.f32 %v298, %v427
      %429 = vmatmul.bf16.gmra.mxu0 %v321
      %v430 = vpop.f32.mrf.mxu0
      %v431 = vadd.f32 %v298, %v430
      %v432 = vpop.f32.mrf.mxu0
      %v433 = vadd.f32 %v298, %v432
      %434 = vdwg.mxu0
      %435 = vmatpush.bf16.msra.mxu0 %v389
      %436 = vmatpush.bf16.msra.mxu0 %v387
      %437 = vmatpush.bf16.msra.mxu0 %v385
      %438 = vmatpush.bf16.msra.mxu0 %v383
      %439 = vmatpush.bf16.msra.mxu0 %v381
      %440 = vmatpush.bf16.msra.mxu0 %v379
      %441 = vmatpush.bf16.msra.mxu0 %v377
      %442 = vmatpush.bf16.msra.mxu0 %v375
      %443 = vmatmul.bf16.gmra.mxu0 %v318
      %v444 = vpop.f32.mrf.mxu0
      %v445 = vadd.f32 %v299, %v444
      %v446 = vpop.f32.mrf.mxu0
      %v447 = vadd.f32 %v299, %v446
      %448 = vmatmul.bf16.gmra.mxu0 %v319
      %v449 = vpop.f32.mrf.mxu0
      %v450 = vadd.f32 %v299, %v449
      %v451 = vpop.f32.mrf.mxu0
      %v452 = vadd.f32 %v299, %v451
      %453 = vmatmul.bf16.gmra.mxu0 %v320
      %v454 = vpop.f32.mrf.mxu0
      %v455 = vadd.f32 %v299, %v454
      %v456 = vpop.f32.mrf.mxu0
      %v457 = vadd.f32 %v299, %v456
      %458 = vmatmul.bf16.gmra.mxu0 %v321
      %v459 = vpop.f32.mrf.mxu0
      %v460 = vadd.f32 %v299, %v459
      %v461 = vpop.f32.mrf.mxu0
      %v462 = vadd.f32 %v299, %v461
      %463 = vdwg.mxu0
      %v464 = vmax.f32 %v416, 0.0
      %v465 = vmax.f32 %v445, 0.0
      %v466 = vmax.f32 %v418, 0.0
      %v467 = vmax.f32 %v447, 0.0
      %v468 = vmax.f32 %v421, 0.0
      %v469 = vmax.f32 %v450, 0.0
      %v470 = vmax.f32 %v423, 0.0
      %v471 = vmax.f32 %v452, 0.0
      %v472 = vmax.f32 %v426, 0.0
      %v473 = vmax.f32 %v455, 0.0
      %v474 = vmax.f32 %v428, 0.0
      %v475 = vmax.f32 %v457, 0.0
      %v476 = vmax.f32 %v431, 0.0
      %v477 = vmax.f32 %v460, 0.0
      %v478 = vmax.f32 %v433, 0.0
      %v479 = vmax.f32 %v462, 0.0
      %p480 = scmp.eq.s32.totalorder %s22, 0
      // Predicated region
      $region33: #{pointnet_encoder_forward.16} parent=31 // pred_check
        %p481 = pneg %p480
      $region34: #{pointnet_encoder_forward.16} parent=31 // pred_check_branch
        %483 = sbr.rel (%p481) target = $region36
      $region35: #{pointnet_encoder_forward.16} parent=31 // pred_region
        %v484 = vlaneseq
        %vm485 = vcmp.ge.s32.totalorder %v484, 0
        %vm486 = vcmp.lt.s32.totalorder %v484, 256
        %vm487 = vmand %vm485, %vm486
        %488 = vst.msk [vmem:[%s263] sm:$0x3] %vm487, -inf
        %489 = vst.msk [vmem:[%s267] sm:$0x3] %vm487, 0.0
        %490 = vst.msk [vmem:[%s271] sm:$0x3] %vm487, 0.0
      $region36: #{pointnet_encoder_forward.16} parent=31 // pred_fallthru
        _
      %v491 = vld [vmem:[%s263] sm:$0x3]
      %v492 = vmax.f32 %v464, %v468
      %v493 = vmax.f32 %v466, %v470
      %v494 = vmax.f32 %v492, %v472
      %v495 = vmax.f32 %v493, %v474
      %v496 = vmax.f32 %v494, %v476
      %v497 = vmax.f32 %v495, %v478
      %v498 = vmax.f32 %v496, %v497
      %v499 = vrot.slane %v498, 4
      %v500 = vmax.f32 %v498, %v499
      %v501 = vrot.slane %v500, 2
      %v502 = vmax.f32 %v500, %v501
      %v503 = vrot.slane %v502, 1
      %v504 = vmax.f32 %v502, %v503
      %v505 = vmax.f32 %v465, %v469
      %v506 = vmax.f32 %v467, %v471
      %v507 = vmax.f32 %v505, %v473
      %v508 = vmax.f32 %v506, %v475
      %v509 = vmax.f32 %v507, %v477
      %v510 = vmax.f32 %v508, %v479
      %v511 = vmax.f32 %v509, %v510
      %v512 = vrot.slane %v511, 4
      %v513 = vmax.f32 %v511, %v512
      %v514 = vrot.slane %v513, 2
      %v515 = vmax.f32 %v513, %v514
      %v516 = vrot.slane %v515, 1
      %v517 = vmax.f32 %v515, %v516
      %v520 = vrot.slane %v517, 7
      %vm521 = vcmask 1040384
      %v522 = vsel %vm521, %v504, %v520
      %v524 = vmax.f32 %v491, %v522
      %v525 = vlaneseq
      %vm526 = vcmp.ge.s32.totalorder %v525, 0
      %vm527 = vcmp.lt.s32.totalorder %v525, 256
      %vm528 = vmand %vm526, %vm527
      %529 = vst.msk [vmem:[%s263] sm:$0x3] %vm528, %v524
      %v530 = vld [vmem:[%s267] sm:$0x3]
      %v531 = vadd.f32 %v464, %v466
      %v532 = vadd.f32 %v531, %v468
      %v533 = vadd.f32 %v532, %v470
      %v534 = vadd.f32 %v533, %v472
      %v535 = vadd.f32 %v534, %v474
      %v536 = vadd.f32 %v535, %v476
      %v537 = vadd.f32 %v536, %v478
      %v538 = vrot.slane %v537, 4
      %v539 = vadd.f32 %v537, %v538
      %v540 = vrot.slane %v539, 2
      %v541 = vadd.f32 %v539, %v540
      %v542 = vrot.slane %v541, 1
      %v543 = vadd.f32 %v541, %v542
      %v544 = vadd.f32 %v465, %v467
      %v545 = vadd.f32 %v544, %v469
      %v546 = vadd.f32 %v545, %v471
      %v547 = vadd.f32 %v546, %v473
      %v548 = vadd.f32 %v547, %v475
      %v549 = vadd.f32 %v548, %v477
      %v550 = vadd.f32 %v549, %v479
      %v551 = vrot.slane %v550, 4
      %v552 = vadd.f32 %v550, %v551
      %v553 = vrot.slane %v552, 2
      %v554 = vadd.f32 %v552, %v553
      %v555 = vrot.slane %v554, 1
      %v556 = vadd.f32 %v554, %v555
      %v559 = vrot.slane %v556, 7
      %v560 = vsel %vm521, %v543, %v559
      %v562 = vadd.f32 %v530, %v560
      %563 = vst.msk [vmem:[%s267] sm:$0x3] %vm528, %v562
      %v564 = vld [vmem:[%s271] sm:$0x3]
      %v565 = vmul.f32 %v464, %v464
      %v566 = vmul.f32 %v465, %v465
      %v567 = vmul.f32 %v466, %v466
      %v568 = vmul.f32 %v467, %v467
      %v569 = vmul.f32 %v468, %v468
      %v570 = vmul.f32 %v469, %v469
      %v571 = vmul.f32 %v470, %v470
      %v572 = vmul.f32 %v471, %v471
      %v573 = vmul.f32 %v472, %v472
      %v574 = vmul.f32 %v473, %v473
      %v575 = vmul.f32 %v474, %v474
      %v576 = vmul.f32 %v475, %v475
      %v577 = vmul.f32 %v476, %v476
      %v578 = vmul.f32 %v477, %v477
      %v579 = vmul.f32 %v478, %v478
      %v580 = vmul.f32 %v479, %v479
      %v581 = vadd.f32 %v565, %v567
      %v582 = vadd.f32 %v581, %v569
      %v583 = vadd.f32 %v582, %v571
      %v584 = vadd.f32 %v583, %v573
      %v585 = vadd.f32 %v584, %v575
      %v586 = vadd.f32 %v585, %v577
      %v587 = vadd.f32 %v586, %v579
      %v588 = vrot.slane %v587, 4
      %v589 = vadd.f32 %v587, %v588
      %v590 = vrot.slane %v589, 2
      %v591 = vadd.f32 %v589, %v590
      %v592 = vrot.slane %v591, 1
      %v593 = vadd.f32 %v591, %v592
      %v594 = vadd.f32 %v566, %v568
      %v595 = vadd.f32 %v594, %v570
      %v596 = vadd.f32 %v595, %v572
      %v597 = vadd.f32 %v596, %v574
      %v598 = vadd.f32 %v597, %v576
      %v599 = vadd.f32 %v598, %v578
      %v600 = vadd.f32 %v599, %v580
      %v601 = vrot.slane %v600, 4
      %v602 = vadd.f32 %v600, %v601
      %v603 = vrot.slane %v602, 2
      %v604 = vadd.f32 %v602, %v603
      %v605 = vrot.slane %v604, 1
      %v606 = vadd.f32 %v604, %v605
      %v609 = vrot.slane %v606, 7
      %v610 = vsel %vm521, %v593, %v609
      %v612 = vadd.f32 %v564, %v610
      %613 = vst.msk [vmem:[%s271] sm:$0x3] %vm528, %v612
      %p614 = scmp.lt.s32.totalorder %s21, 1
      %s615 = scalar_select %p614, %s21, 1
      %s616 = smul.addr %s615, 2
      %s617 = scalar_lea.vmem %s3, %s616
      %p618 = scmp.lt.s32.totalorder %s21, 1
      %s619 = scalar_select %p618, %s21, 1
      %s620 = smul.addr %s619, 2
      %s621 = scalar_lea.vmem %s4, %s620
      %p622 = scmp.lt.s32.totalorder %s21, 1
      %s623 = scalar_select %p622, %s21, 1
      %s624 = smul.addr %s623, 2
      %s625 = scalar_lea.vmem %s5, %s624
      // Predicated region
      $region37: #{pointnet_encoder_forward.16} parent=31 // pred_check
        %p626 = pneg %p117
      $region38: #{pointnet_encoder_forward.16} parent=31 // pred_check_branch
        %628 = sbr.rel (%p626) target = $region40
      $region39: #{pointnet_encoder_forward.16} parent=31 // pred_region
        _
      $region40: #{pointnet_encoder_forward.16} parent=31 // pred_fallthru
        _
      // Predicated region
      $region41: #{pointnet_encoder_forward.16} parent=31 // pred_check
        %p629 = pneg %p143
      $region42: #{pointnet_encoder_forward.16} parent=31 // pred_check_branch
        %631 = sbr.rel (%p629) target = $region44
      $region43: #{pointnet_encoder_forward.16} parent=31 // pred_region
        _
      $region44: #{pointnet_encoder_forward.16} parent=31 // pred_fallthru
        _
      // Predicated region
      $region45: #{pointnet_encoder_forward.16} parent=31 // pred_check
        %p632 = pneg %p169
      $region46: #{pointnet_encoder_forward.16} parent=31 // pred_check_branch
        %634 = sbr.rel (%p632) target = $region48
      $region47: #{pointnet_encoder_forward.16} parent=31 // pred_region
        _
      $region48: #{pointnet_encoder_forward.16} parent=31 // pred_fallthru
        _
    $region32: #{pointnet_encoder_forward.16} parent=5 // pred_fallthru
      _
    %p635 = scmp.le.s32.totalorder 2, %s12
    // Predicated region
    $region49: #{pointnet_encoder_forward.16} parent=5 // pred_check
      %p636 = pneg %p635
    $region50: #{pointnet_encoder_forward.16} parent=5 // pred_check_branch
      %638 = sbr.rel (%p636) target = $region52
    $region51: #{pointnet_encoder_forward.16} parent=5 // pred_region
      %s639 = ssub.s32 %s12, 2
      // Predicated region
      $region53: #{pointnet_encoder_forward.16} parent=51 // pred_check
        %p640 = pneg %p123
      $region54: #{pointnet_encoder_forward.16} parent=51 // pred_check_branch
        %642 = sbr.rel (%p640) target = $region56
      $region55: #{pointnet_encoder_forward.16} parent=51 // pred_region
        %p643 = scmp.lt.s32.totalorder %s23, 1
        %s644 = scalar_select %p643, %s23, 1
        %s645 = smul.addr %s644, 2
        %s646 = scalar_lea.vmem %s3, %s645
      $region56: #{pointnet_encoder_forward.16} parent=51 // pred_fallthru
        _
      // Predicated region
      $region57: #{pointnet_encoder_forward.16} parent=51 // pred_check
        %p647 = pneg %p149
      $region58: #{pointnet_encoder_forward.16} parent=51 // pred_check_branch
        %649 = sbr.rel (%p647) target = $region60
      $region59: #{pointnet_encoder_forward.16} parent=51 // pred_region
        %p650 = scmp.lt.s32.totalorder %s23, 1
        %s651 = scalar_select %p650, %s23, 1
        %s652 = smul.addr %s651, 2
        %s653 = scalar_lea.vmem %s4, %s652
      $region60: #{pointnet_encoder_forward.16} parent=51 // pred_fallthru
        _
      // Predicated region
      $region61: #{pointnet_encoder_forward.16} parent=51 // pred_check
        %p654 = pneg %p175
      $region62: #{pointnet_encoder_forward.16} parent=51 // pred_check_branch
        %656 = sbr.rel (%p654) target = $region64
      $region63: #{pointnet_encoder_forward.16} parent=51 // pred_region
        %p657 = scmp.lt.s32.totalorder %s23, 1
        %s658 = scalar_select %p657, %s23, 1
        %s659 = smul.addr %s658, 2
        %s660 = scalar_lea.vmem %s5, %s659
      $region64: #{pointnet_encoder_forward.16} parent=51 // pred_fallthru
        _
    $region52: #{pointnet_encoder_forward.16} parent=5 // pred_fallthru
      _
  $region6: #{pointnet_encoder_forward.16} parent=0 // loop_footer
    %s16 = sadd.s32 1, %s12
  $region7: #{pointnet_encoder_forward.16} parent=0 // loop_footer_branch
    %11 = sbr.rel target = $region3
  $region8: #{pointnet_encoder_forward.16} parent=0 // loop_exit
    _

// kernel: pointnet_encoder_forward.17
$region0: #{pointnet_encoder_forward.17}
  #allocation0 [shape = 'u32[]', space=smem, size = 0x4, offset = 0x4, fixed_abs, tag = 'smem constant byte address 0x4 - core index']
  #allocation1 [shape = 'u32[72,128]{1,0:T(1,128)}', space=vmem, size = 0x9000, scoped, tag = 'internal scratch']
  %s0 = inlined_call_operand.vmem [shape: f32[2,256], index: 0, kind: input, shape index: {}]
  %s1 = inlined_call_operand.vmem [shape: f32[256,128], index: 1, kind: input, shape index: {}]
  %s2 = inlined_call_operand.vmem [shape: f32[1,128], index: 2, kind: input, shape index: {}]
  %s3 = inlined_call_operand.vmem [shape: f32[128,64], index: 3, kind: input, shape index: {}]
  %s4 = inlined_call_operand.vmem [shape: f32[1,64], index: 4, kind: input, shape index: {}]
  %s5 = inlined_call_operand.vmem [shape: f32[64,9], index: 5, kind: input, shape index: {}]
  %s6 = inlined_call_operand.vmem [shape: f32[1,9], index: 6, kind: input, shape index: {}]
  %s7 = inlined_call_operand.vmem [shape: f32[2,9], index: 7, kind: output, shape index: {}]
  %s8 = sld [smem:[#allocation0]]
  $region38: #{pointnet_encoder_forward.17} parent=0
    _
  %s10 = ssub.s32 1, %s8
  %s11 = scalar_select 0, %s10, %s8
  // Predicated region
  $region2: #{pointnet_encoder_forward.17} parent=0 // pred_check
    _
  $region3: #{pointnet_encoder_forward.17} parent=0 // pred_check_branch
    %13 = sbr.rel (0) target = $region5
  $region4: #{pointnet_encoder_forward.17} parent=0 // pred_region
    _
  $region5: #{pointnet_encoder_forward.17} parent=0 // pred_fallthru
    _
  // Predicated region
  $region6: #{pointnet_encoder_forward.17} parent=0 // pred_check
    _
  $region7: #{pointnet_encoder_forward.17} parent=0 // pred_check_branch
    %15 = sbr.rel (0) target = $region9
  $region8: #{pointnet_encoder_forward.17} parent=0 // pred_region
    _
  $region9: #{pointnet_encoder_forward.17} parent=0 // pred_fallthru
    _
  // Predicated region
  $region10: #{pointnet_encoder_forward.17} parent=0 // pred_check
    _
  $region11: #{pointnet_encoder_forward.17} parent=0 // pred_check_branch
    %17 = sbr.rel (0) target = $region13
  $region12: #{pointnet_encoder_forward.17} parent=0 // pred_region
    _
  $region13: #{pointnet_encoder_forward.17} parent=0 // pred_fallthru
    _
  // Predicated region
  $region14: #{pointnet_encoder_forward.17} parent=0 // pred_check
    _
  $region15: #{pointnet_encoder_forward.17} parent=0 // pred_check_branch
    %19 = sbr.rel (0) target = $region17
  $region16: #{pointnet_encoder_forward.17} parent=0 // pred_region
    _
  $region17: #{pointnet_encoder_forward.17} parent=0 // pred_fallthru
    _
  // Predicated region
  $region18: #{pointnet_encoder_forward.17} parent=0 // pred_check
    _
  $region19: #{pointnet_encoder_forward.17} parent=0 // pred_check_branch
    %21 = sbr.rel (0) target = $region21
  $region20: #{pointnet_encoder_forward.17} parent=0 // pred_region
    _
  $region21: #{pointnet_encoder_forward.17} parent=0 // pred_fallthru
    _
  // Predicated region
  $region22: #{pointnet_encoder_forward.17} parent=0 // pred_check
    _
  $region23: #{pointnet_encoder_forward.17} parent=0 // pred_check_branch
    %23 = sbr.rel (0) target = $region25
  $region24: #{pointnet_encoder_forward.17} parent=0 // pred_region
    _
  $region25: #{pointnet_encoder_forward.17} parent=0 // pred_fallthru
    _
  // Predicated region
  $region26: #{pointnet_encoder_forward.17} parent=0 // pred_check
    _
  $region27: #{pointnet_encoder_forward.17} parent=0 // pred_check_branch
    %25 = sbr.rel (0) target = $region29
  $region28: #{pointnet_encoder_forward.17} parent=0 // pred_region
    _
  $region29: #{pointnet_encoder_forward.17} parent=0 // pred_fallthru
    _
  %v26 = vld [vmem:[%s0] sm:$0xf]
  %v27 = vld [vmem:[%s1] sm:$0xff]
  %v28 = vld [vmem:[%s1 + $0x8] sm:$0xff]
  %v29 = vld [vmem:[%s1 + $0x10] sm:$0xff]
  %v30 = vld [vmem:[%s1 + $0x18] sm:$0xff]
  %v31 = vld [vmem:[%s1 + $0x20] sm:$0xff]
  %v32 = vld [vmem:[%s1 + $0x28] sm:$0xff]
  %v33 = vld [vmem:[%s1 + $0x30] sm:$0xff]
  %v34 = vld [vmem:[%s1 + $0x38] sm:$0xff]
  %v35 = vld [vmem:[%s1 + $0x40] sm:$0xff]
  %v36 = vld [vmem:[%s1 + $0x48] sm:$0xff]
  %v37 = vld [vmem:[%s1 + $0x50] sm:$0xff]
  %v38 = vld [vmem:[%s1 + $0x58] sm:$0xff]
  %v39 = vld [vmem:[%s1 + $0x60] sm:$0xff]
  %v40 = vld [vmem:[%s1 + $0x68] sm:$0xff]
  %v41 = vld [vmem:[%s1 + $0x70] sm:$0xff]
  %v42 = vld [vmem:[%s1 + $0x78] sm:$0xff]
  %v43 = vld [vmem:[%s1 + $0x80] sm:$0xff]
  %v44 = vld [vmem:[%s1 + $0x88] sm:$0xff]
  %v45 = vld [vmem:[%s1 + $0x90] sm:$0xff]
  %v46 = vld [vmem:[%s1 + $0x98] sm:$0xff]
  %v47 = vld [vmem:[%s1 + $0xa0] sm:$0xff]
  %v48 = vld [vmem:[%s1 + $0xa8] sm:$0xff]
  %v49 = vld [vmem:[%s1 + $0xb0] sm:$0xff]
  %v50 = vld [vmem:[%s1 + $0xb8] sm:$0xff]
  %v51 = vld [vmem:[%s1 + $0xc0] sm:$0xff]
  %v52 = vld [vmem:[%s1 + $0xc8] sm:$0xff]
  %v53 = vld [vmem:[%s1 + $0xd0] sm:$0xff]
  %v54 = vld [vmem:[%s1 + $0xd8] sm:$0xff]
  %v55 = vld [vmem:[%s1 + $0xe0] sm:$0xff]
  %v56 = vld [vmem:[%s1 + $0xe8] sm:$0xff]
  %v57 = vld [vmem:[%s1 + $0xf0] sm:$0xff]
  %v58 = vld [vmem:[%s1 + $0xf8] sm:$0xff]
  %v59 = vld [vmem:[%s2] sm:$0x1]
  %v61 = vperm.slane %v59, 0
  %64 = vst [vmem:[#allocation1] ss:$4 sm:$0xff] %v26
  %v65 = vld.sshfl [vmem:[#allocation1] sm:$0xff pattern:$0x73625140]
  %v66 = vld.sshfl [vmem:[#allocation1 + $0x8] sm:$0xff pattern:$0x73625140]
  %69 = vmatpush.msra.mxu0 %v42
  %70 = vmatpush.msra.mxu0 %v41
  %71 = vmatpush.msra.mxu0 %v40
  %72 = vmatpush.msra.mxu0 %v39
  %73 = vmatpush.msra.mxu0 %v38
  %74 = vmatpush.msra.mxu0 %v37
  %75 = vmatpush.msra.mxu0 %v36
  %76 = vmatpush.msra.mxu0 %v35
  %77 = vmatpush.msra.mxu0 %v34
  %78 = vmatpush.msra.mxu0 %v33
  %79 = vmatpush.msra.mxu0 %v32
  %80 = vmatpush.msra.mxu0 %v31
  %81 = vmatpush.msra.mxu0 %v30
  %82 = vmatpush.msra.mxu0 %v29
  %83 = vmatpush.msra.mxu0 %v28
  %84 = vmatpush.msra.mxu0 %v27
  %85 = vmatmul.f32.gmra.mxu0 %v65
  %v86 = vpop.f32.mrf.mxu0
  %v87 = vadd.f32 %v61, %v86
  %88 = vdwg.mxu0
  %89 = vmatpush.msra.mxu0 %v58
  %90 = vmatpush.msra.mxu0 %v57
  %91 = vmatpush.msra.mxu0 %v56
  %92 = vmatpush.msra.mxu0 %v55
  %93 = vmatpush.msra.mxu0 %v54
  %94 = vmatpush.msra.mxu0 %v53
  %95 = vmatpush.msra.mxu0 %v52
  %96 = vmatpush.msra.mxu0 %v51
  %97 = vmatpush.msra.mxu0 %v50
  %98 = vmatpush.msra.mxu0 %v49
  %99 = vmatpush.msra.mxu0 %v48
  %100 = vmatpush.msra.mxu0 %v47
  %101 = vmatpush.msra.mxu0 %v46
  %102 = vmatpush.msra.mxu0 %v45
  %103 = vmatpush.msra.mxu0 %v44
  %104 = vmatpush.msra.mxu0 %v43
  %105 = vmatmul.f32.gmra.mxu0 %v66
  %v106 = vpop.f32.mrf.mxu0
  %v107 = vadd.f32 %v87, %v106
  %108 = vdwg.mxu0
  %v109 = vmax.f32 %v107, 0.0
  %vm110 = vcmask 1041408
  %v111 = vsel %vm110, %v109, 0.0
  %v112 = vrot.slane %v111, 4
  %v113 = vadd.f32 %v111, %v112
  %v114 = vrot.slane %v113, 2
  %v115 = vadd.f32 %v113, %v114
  %v116 = vrot.slane %v115, 1
  %v117 = vadd.f32 %v115, %v116
  %v118 = vrcp.pop 2.0
  %v119 = vmul.f32 2.0, %v118
  %v120 = vsub.f32 1.0, %v119
  %v121 = vmul.f32 %v118, %v120
  %v122 = vadd.f32 %v118, %v121
  %vm123 = vweird.f32 %v118
  %v124 = vsel %vm123, %v118, %v122
  %v125 = vmul.f32 %v117, %v124
  %v126 = vsub.f32 %v109, %v125
  %v127 = vmul.f32 %v126, %v126
  %v128 = vsel %vm110, %v127, 0.0
  %v129 = vrot.slane %v128, 4
  %v130 = vadd.f32 %v128, %v129
  %v131 = vrot.slane %v130, 2
  %v132 = vadd.f32 %v130, %v131
  %v133 = vrot.slane %v132, 1
  %v134 = vadd.f32 %v132, %v133
  %v135 = vmul.f32 %v134, %v124
  %v136 = vadd.f32 %v135, 1e-05
  %v137 = vrsqrt.pop %v136
  %v138 = vmul.f32 %v137, %v136
  %v139 = vmul.f32 %v138, %v137
  %v140 = vmul.f32 0.5, %v139
  %v141 = vsub.f32 1.5, %v140
  %v142 = vmul.f32 %v137, %v141
  %vm143 = vweird.f32 %v136
  %vm144 = vweird.f32 %v137
  %vm145 = vmor %vm143, %vm144
  %v146 = vsel %vm145, %v137, %v142
  %v147 = vmul.f32 %v126, %v146
  %v148 = vld [vmem:[%s3] sm:$0xff]
  %v149 = vld [vmem:[%s3 + $0x8] sm:$0xff]
  %v150 = vld [vmem:[%s3 + $0x10] sm:$0xff]
  %v151 = vld [vmem:[%s3 + $0x18] sm:$0xff]
  %v152 = vld [vmem:[%s3 + $0x20] sm:$0xff]
  %v153 = vld [vmem:[%s3 + $0x28] sm:$0xff]
  %v154 = vld [vmem:[%s3 + $0x30] sm:$0xff]
  %v155 = vld [vmem:[%s3 + $0x38] sm:$0xff]
  %v156 = vld [vmem:[%s3 + $0x40] sm:$0xff]
  %v157 = vld [vmem:[%s3 + $0x48] sm:$0xff]
  %v158 = vld [vmem:[%s3 + $0x50] sm:$0xff]
  %v159 = vld [vmem:[%s3 + $0x58] sm:$0xff]
  %v160 = vld [vmem:[%s3 + $0x60] sm:$0xff]
  %v161 = vld [vmem:[%s3 + $0x68] sm:$0xff]
  %v162 = vld [vmem:[%s3 + $0x70] sm:$0xff]
  %v163 = vld [vmem:[%s3 + $0x78] sm:$0xff]
  %v164 = vld [vmem:[%s4] sm:$0x1]
  %v166 = vperm.slane %v164, 0
  %168 = vmatpush.msra.mxu0 %v163
  %169 = vmatpush.msra.mxu0 %v162
  %170 = vmatpush.msra.mxu0 %v161
  %171 = vmatpush.msra.mxu0 %v160
  %172 = vmatpush.msra.mxu0 %v159
  %173 = vmatpush.msra.mxu0 %v158
  %174 = vmatpush.msra.mxu0 %v157
  %175 = vmatpush.msra.mxu0 %v156
  %176 = vmatpush.msra.mxu0 %v155
  %177 = vmatpush.msra.mxu0 %v154
  %178 = vmatpush.msra.mxu0 %v153
  %179 = vmatpush.msra.mxu0 %v152
  %180 = vmatpush.msra.mxu0 %v151
  %181 = vmatpush.msra.mxu0 %v150
  %182 = vmatpush.msra.mxu0 %v149
  %183 = vmatpush.msra.mxu0 %v148
  %184 = vmatmul.f32.gmra.mxu0 %v147
  %v185 = vpop.f32.mrf.mxu0
  %v186 = vadd.f32 %v166, %v185
  %187 = vdwg.mxu0
  %v188 = vmax.f32 %v186, 0.0
  %vm189 = vcmask 517120
  %v190 = vsel %vm189, %v188, 0.0
  %v191 = vrot.slane %v190, 4
  %v192 = vadd.f32 %v190, %v191
  %v193 = vrot.slane %v192, 2
  %v194 = vadd.f32 %v192, %v193
  %v195 = vrot.slane %v194, 1
  %v196 = vadd.f32 %v194, %v195
  %v197 = vmul.f32 %v196, %v124
  %v198 = vsub.f32 %v188, %v197
  %v199 = vmul.f32 %v198, %v198
  %v200 = vsel %vm189, %v199, 0.0
  %v201 = vrot.slane %v200, 4
  %v202 = vadd.f32 %v200, %v201
  %v203 = vrot.slane %v202, 2
  %v204 = vadd.f32 %v202, %v203
  %v205 = vrot.slane %v204, 1
  %v206 = vadd.f32 %v204, %v205
  %v207 = vmul.f32 %v206, %v124
  %v208 = vadd.f32 %v207, 1e-05
  %v209 = vrsqrt.pop %v208
  %v210 = vmul.f32 %v209, %v208
  %v211 = vmul.f32 %v210, %v209
  %v212 = vmul.f32 0.5, %v211
  %v213 = vsub.f32 1.5, %v212
  %v214 = vmul.f32 %v209, %v213
  %vm215 = vweird.f32 %v208
  %vm216 = vweird.f32 %v209
  %vm217 = vmor %vm215, %vm216
  %v218 = vsel %vm217, %v209, %v214
  %v219 = vmul.f32 %v198, %v218
  %v220 = vld [vmem:[%s5] sm:$0xff]
  %v221 = vld [vmem:[%s5 + $0x8] sm:$0xff]
  %v222 = vld [vmem:[%s5 + $0x10] sm:$0xff]
  %v223 = vld [vmem:[%s5 + $0x18] sm:$0xff]
  %v224 = vld [vmem:[%s5 + $0x20] sm:$0xff]
  %v225 = vld [vmem:[%s5 + $0x28] sm:$0xff]
  %v226 = vld [vmem:[%s5 + $0x30] sm:$0xff]
  %v227 = vld [vmem:[%s5 + $0x38] sm:$0xff]
  %v228 = vld [vmem:[%s6] sm:$0x1]
  %v230 = vperm.slane %v228, 0
  %vm232 = vcmask 523264
  %v234 = vsel %vm232, %v219, 0
  %236 = vmatpush.msra.mxu0 0.0
  %237 = vmatpush.msra.mxu0 0.0
  %238 = vmatpush.msra.mxu0 0.0
  %239 = vmatpush.msra.mxu0 0.0
  %240 = vmatpush.msra.mxu0 0.0
  %241 = vmatpush.msra.mxu0 0.0
  %242 = vmatpush.msra.mxu0 0.0
  %243 = vmatpush.msra.mxu0 0.0
  %244 = vmatpush.msra.mxu0 %v227
  %245 = vmatpush.msra.mxu0 %v226
  %246 = vmatpush.msra.mxu0 %v225
  %247 = vmatpush.msra.mxu0 %v224
  %248 = vmatpush.msra.mxu0 %v223
  %249 = vmatpush.msra.mxu0 %v222
  %250 = vmatpush.msra.mxu0 %v221
  %251 = vmatpush.msra.mxu0 %v220
  %252 = vmatmul.f32.gmra.mxu0 %v234
  %v253 = vpop.f32.mrf.mxu0
  %v254 = vadd.f32 %v230, %v253
  %255 = vdwg.mxu0
  %vm256 = vcmask 66560
  %257 = vst.msk [vmem:[%s7] sm:$0x3] %vm256, %v254
  // Predicated region
  $region30: #{pointnet_encoder_forward.17} parent=0 // pred_check
    _
  $region31: #{pointnet_encoder_forward.17} parent=0 // pred_check_branch
    %259 = sbr.rel (0) target = $region33
  $region32: #{pointnet_encoder_forward.17} parent=0 // pred_region
    _
  $region33: #{pointnet_encoder_forward.17} parent=0 // pred_fallthru
    _
  // Predicated region
  $region34: #{pointnet_encoder_forward.17} parent=0 // pred_check
    _
  $region35: #{pointnet_encoder_forward.17} parent=0 // pred_check_branch
    %261 = sbr.rel (0) target = $region37
  $region36: #{pointnet_encoder_forward.17} parent=0 // pred_region
    _
  $region37: #{pointnet_encoder_forward.17} parent=0 // pred_fallthru
    _

// kernel: pointnet_encoder_forward.18
$region0: #{pointnet_encoder_forward.18}
  #allocation0 [shape = 'u32[]', space=smem, size = 0x4, offset = 0x4, fixed_abs, tag = 'smem constant byte address 0x4 - core index']
  #allocation1 [shape = 'u32[72,128]{1,0:T(1,128)}', space=vmem, size = 0x9000, scoped, tag = 'internal scratch']
  %s0 = inlined_call_operand.vmem [shape: bf16[2,64,3], index: 0, kind: input, shape index: {}]
  %s1 = inlined_call_operand.vmem [shape: f32[2,3,3], index: 1, kind: input, shape index: {}]
  %s2 = inlined_call_operand.vmem [shape: f32[1,3], index: 2, kind: input, shape index: {}]
  %s3 = inlined_call_operand.vmem [shape: f32[1,3], index: 3, kind: input, shape index: {}]
  %s4 = inlined_call_operand.vmem [shape: bf16[2,64,3], index: 4, kind: output, shape index: {}]
  %s5 = sld [smem:[#allocation0]]
  $region49: #{pointnet_encoder_forward.18} parent=0
    _
  %s7 = ssub.s32 1, %s5
  %s8 = scalar_select 0, %s7, %s5
  loop: start=0, step=1, limit=4
  $region2: #{pointnet_encoder_forward.18} parent=0 // loop_pre_header
    _
  $region3: #{pointnet_encoder_forward.18} parent=0 // loop_header
    %s10 = sphi 0, %s14
    %p11 = scmp.ge.s32.totalorder %s10, 4
    %s17 = sphi 0, %s29
    %s18 = sphi 0, %s25
    %s19 = sphi 0, %s17
    %s20 = sphi 0, %s18
    %s21 = sphi 0, %s19
    %s22 = sphi 0, %s20
    %s34 = sphi 0, %s36
    %s37 = sphi 0, %s34
    %s38 = sphi 0, %s37
    %s54 = sphi 0, %s38
    %s60 = sphi 0, %s62
    %s63 = sphi 0, %s60
    %s64 = sphi 0, %s63
    %s80 = sphi 0, %s64
    %s84 = sphi 0, %s84
    %s86 = sphi 0, %s84
    %s87 = sphi 0, %s86
    %s101 = sphi 0, %s87
    %s105 = sphi 0, %s105
    %s107 = sphi 0, %s105
    %s108 = sphi 0, %s107
    %s122 = sphi 0, %s108
    %s130 = sphi 0, %s132
    %s133 = sphi 0, %s130
    %s134 = sphi 0, %s133
    %s150 = sphi 0, %s134
  $region4: #{pointnet_encoder_forward.18} parent=0 // loop_header_branch
    %13 = sbr.rel (%p11) target = $region8
  $region5: #{pointnet_encoder_forward.18} parent=0 // loop_body
    %s15 = ssub.s32 %s10, 1
    %s16 = ssub.s32 %s10, 2
    %s23 = sadd.s32 1, %s18
    %p24 = scmp.ge.s32.totalorder %s23, 1
    %s25 = scalar_select %p24, 0, %s23
    %s26 = sadd.s32 1, %s17
    %s27 = scalar_select %p24, %s26, %s17
    %p28 = scmp.ge.s32.totalorder %s27, 2
    %s29 = scalar_select %p28, 0, %s27
    %s30 = ssub.s32 %s17, %s29
    %s31 = ssub.s32 %s18, %s25
    %s32 = sor.u32 %s30, %s31
    %p33 = scmp.eq.s32.totalorder %s32, 0
    %s35 = sadd.s32 %s34, 1
    %s36 = scalar_select %p33, %s34, %s35
    %p39 = pneg %p33
    %p40 = scmp.eq.s32.totalorder %s10, 1
    %p41 = por %p39, %p40
    %p42 = scmp.ne.s32.totalorder %s34, %s37
    %p43 = scmp.eq.s32.totalorder %s10, 0
    %p44 = por %p42, %p43
    %p45 = scmp.ne.s32.totalorder %s34, %s37
    %p46 = scmp.eq.s32.totalorder %s15, 1
    %p47 = por %p45, %p46
    %p48 = scmp.ne.s32.totalorder %s37, %s38
    %p49 = scmp.eq.s32.totalorder %s15, 0
    %p50 = por %p48, %p49
    %p51 = scmp.ne.s32.totalorder %s37, %s38
    %p52 = scmp.eq.s32.totalorder %s16, 1
    %p53 = por %p51, %p52
    %p55 = scmp.ne.s32.totalorder %s38, %s54
    %p56 = scmp.eq.s32.totalorder %s16, 0
    %p57 = por %p55, %p56
    %s58 = ssub.s32 %s17, %s29
    %p59 = scmp.eq.s32.totalorder %s58, 0
    %s61 = sadd.s32 %s60, 1
    %s62 = scalar_select %p59, %s60, %s61
    %p65 = pneg %p59
    %p66 = scmp.eq.s32.totalorder %s10, 1
    %p67 = por %p65, %p66
    %p68 = scmp.ne.s32.totalorder %s60, %s63
    %p69 = scmp.eq.s32.totalorder %s10, 0
    %p70 = por %p68, %p69
    %p71 = scmp.ne.s32.totalorder %s60, %s63
    %p72 = scmp.eq.s32.totalorder %s15, 1
    %p73 = por %p71, %p72
    %p74 = scmp.ne.s32.totalorder %s63, %s64
    %p75 = scmp.eq.s32.totalorder %s15, 0
    %p76 = por %p74, %p75
    %p77 = scmp.ne.s32.totalorder %s63, %s64
    %p78 = scmp.eq.s32.totalorder %s16, 1
    %p79 = por %p77, %p78
    %p81 = scmp.ne.s32.totalorder %s64, %s80
    %p82 = scmp.eq.s32.totalorder %s16, 0
    %p83 = por %p81, %p82
    %s85 = sadd.s32 %s84, 1
    %p88 = scmp.eq.s32.totalorder %s10, 1
    %p89 = scmp.ne.s32.totalorder %s84, %s86
    %p90 = scmp.eq.s32.totalorder %s10, 0
    %p91 = por %p89, %p90
    %p92 = scmp.ne.s32.totalorder %s84, %s86
    %p93 = scmp.eq.s32.totalorder %s15, 1
    %p94 = por %p92, %p93
    %p95 = scmp.ne.s32.totalorder %s86, %s87
    %p96 = scmp.eq.s32.totalorder %s15, 0
    %p97 = por %p95, %p96
    %p98 = scmp.ne.s32.totalorder %s86, %s87
    %p99 = scmp.eq.s32.totalorder %s16, 1
    %p100 = por %p98, %p99
    %p102 = scmp.ne.s32.totalorder %s87, %s101
    %p103 = scmp.eq.s32.totalorder %s16, 0
    %p104 = por %p102, %p103
    %s106 = sadd.s32 %s105, 1
    %p109 = scmp.eq.s32.totalorder %s10, 1
    %p110 = scmp.ne.s32.totalorder %s105, %s107
    %p111 = scmp.eq.s32.totalorder %s10, 0
    %p112 = por %p110, %p111
    %p113 = scmp.ne.s32.totalorder %s105, %s107
    %p114 = scmp.eq.s32.totalorder %s15, 1
    %p115 = por %p113, %p114
    %p116 = scmp.ne.s32.totalorder %s107, %s108
    %p117 = scmp.eq.s32.totalorder %s15, 0
    %p118 = por %p116, %p117
    %p119 = scmp.ne.s32.totalorder %s107, %s108
    %p120 = scmp.eq.s32.totalorder %s16, 1
    %p121 = por %p119, %p120
    %p123 = scmp.ne.s32.totalorder %s108, %s122
    %p124 = scmp.eq.s32.totalorder %s16, 0
    %p125 = por %p123, %p124
    %s126 = ssub.s32 %s17, %s29
    %s127 = ssub.s32 %s18, %s25
    %s128 = sor.u32 %s126, %s127
    %p129 = scmp.eq.s32.totalorder %s128, 0
    %s131 = sadd.s32 %s130, 1
    %s132 = scalar_select %p129, %s130, %s131
    %p135 = pneg %p129
    %p136 = scmp.eq.s32.totalorder %s10, 1
    %p137 = por %p135, %p136
    %p138 = scmp.ne.s32.totalorder %s130, %s133
    %p139 = scmp.eq.s32.totalorder %s10, 0
    %p140 = por %p138, %p139
    %p141 = scmp.ne.s32.totalorder %s130, %s133
    %p142 = scmp.eq.s32.totalorder %s15, 1
    %p143 = por %p141, %p142
    %p144 = scmp.ne.s32.totalorder %s133, %s134
    %p145 = scmp.eq.s32.totalorder %s15, 0
    %p146 = por %p144, %p145
    %p147 = scmp.ne.s32.totalorder %s133, %s134
    %p148 = scmp.eq.s32.totalorder %s16, 1
    %p149 = por %p147, %p148
    %p151 = scmp.ne.s32.totalorder %s134, %s150
    %p152 = scmp.eq.s32.totalorder %s16, 0
    %p153 = por %p151, %p152
    %p154 = scmp.le.s32.totalorder 1, %s10
    %p155 = scmp.lt.s32.totalorder %s10, 3
    %p156 = pnand %p154, %p155
    %p157 = pneg %p156
    // Predicated region
    $region9: #{pointnet_encoder_forward.18} parent=5 // pred_check
      _
    $region10: #{pointnet_encoder_forward.18} parent=5 // pred_check_branch
      %159 = sbr.rel (%p156) target = $region12
    $region11: #{pointnet_encoder_forward.18} parent=5 // pred_region
      %s160 = ssub.s32 %s10, 1
      // Predicated region
      $region13: #{pointnet_encoder_forward.18} parent=11 // pred_check
        %p161 = pneg %p97
      $region14: #{pointnet_encoder_forward.18} parent=11 // pred_check_branch
        %163 = sbr.rel (%p161) target = $region16
      $region15: #{pointnet_encoder_forward.18} parent=11 // pred_region
        _
      $region16: #{pointnet_encoder_forward.18} parent=11 // pred_fallthru
        _
      // Predicated region
      $region17: #{pointnet_encoder_forward.18} parent=11 // pred_check
        %p164 = pneg %p118
      $region18: #{pointnet_encoder_forward.18} parent=11 // pred_check_branch
        %166 = sbr.rel (%p164) target = $region20
      $region19: #{pointnet_encoder_forward.18} parent=11 // pred_region
        _
      $region20: #{pointnet_encoder_forward.18} parent=11 // pred_fallthru
        _
    $region12: #{pointnet_encoder_forward.18} parent=5 // pred_fallthru
      _
    %p167 = scmp.lt.s32.totalorder %s10, 2
    // Predicated region
    $region21: #{pointnet_encoder_forward.18} parent=5 // pred_check
      %p168 = pneg %p167
    $region22: #{pointnet_encoder_forward.18} parent=5 // pred_check_branch
      %170 = sbr.rel (%p168) target = $region24
    $region23: #{pointnet_encoder_forward.18} parent=5 // pred_region
      // Predicated region
      $region25: #{pointnet_encoder_forward.18} parent=23 // pred_check
        %p171 = pneg %p44
      $region26: #{pointnet_encoder_forward.18} parent=23 // pred_check_branch
        %173 = sbr.rel (%p171) target = $region28
      $region27: #{pointnet_encoder_forward.18} parent=23 // pred_region
        %s174 = smul.u32 8, %s18
        %p175 = scmp.lt.s32.totalorder %s17, 1
        %s176 = scalar_select %p175, %s17, 1
        %p177 = scmp.lt.s32.totalorder %s174, 7
        %s178 = scalar_select %p177, %s174, 7
        %s179 = smul.addr %s176, 8
        %s180 = sadd.s32 %s178, %s179
        %s181 = smul.addr %s180, 4
        %s182 = scalar_lea.vmem %s0, %s181
        %s183 = smul.u32 8, %s18
      $region28: #{pointnet_encoder_forward.18} parent=23 // pred_fallthru
        _
      // Predicated region
      $region29: #{pointnet_encoder_forward.18} parent=23 // pred_check
        %p184 = pneg %p70
      $region30: #{pointnet_encoder_forward.18} parent=23 // pred_check_branch
        %186 = sbr.rel (%p184) target = $region32
      $region31: #{pointnet_encoder_forward.18} parent=23 // pred_region
        %p187 = scmp.lt.s32.totalorder %s17, 1
        %s188 = scalar_select %p187, %s17, 1
        %s189 = smul.addr %s188, 4
        %s190 = scalar_lea.vmem %s1, %s189
      $region32: #{pointnet_encoder_forward.18} parent=23 // pred_fallthru
        _
    $region24: #{pointnet_encoder_forward.18} parent=5 // pred_fallthru
      _
    %p191 = scmp.le.s32.totalorder 1, %s10
    %p192 = scmp.lt.s32.totalorder %s10, 3
    %p193 = pnand %p191, %p192
    %p194 = pneg %p193
    // Predicated region
    $region33: #{pointnet_encoder_forward.18} parent=5 // pred_check
      _
    $region34: #{pointnet_encoder_forward.18} parent=5 // pred_check_branch
      %196 = sbr.rel (%p193) target = $region36
    $region35: #{pointnet_encoder_forward.18} parent=5 // pred_region
      %s197 = ssub.s32 %s10, 1
      %s198 = smul.u32 8, %s20
      %p199 = scmp.lt.s32.totalorder %s19, 1
      %s200 = scalar_select %p199, %s19, 1
      %p201 = scmp.lt.s32.totalorder %s198, 7
      %s202 = scalar_select %p201, %s198, 7
      %s203 = smul.addr %s200, 8
      %s204 = sadd.s32 %s202, %s203
      %s205 = smul.addr %s204, 4
      %s206 = scalar_lea.vmem %s0, %s205
      %p207 = pneg %p50
      %p208 = pneg %p47
      %p209 = scmp.lt.s32.totalorder %s19, 1
      %s210 = scalar_select %p209, %s19, 1
      %s211 = smul.addr %s210, 4
      %s212 = scalar_lea.vmem %s1, %s211
      %p213 = pneg %p76
      %p214 = pneg %p73
      %p215 = pneg %p97
      %p216 = pneg %p94
      %p217 = pneg %p118
      %p218 = pneg %p115
      %p219 = pneg %p146
      %p220 = pneg %p143
      %s221 = smul.u32 8, %s20
      %p222 = scmp.lt.s32.totalorder %s19, 1
      %s223 = scalar_select %p222, %s19, 1
      %p224 = scmp.lt.s32.totalorder %s221, 7
      %s225 = scalar_select %p224, %s221, 7
      %s226 = smul.addr %s223, 8
      %s227 = sadd.s32 %s225, %s226
      %s228 = smul.addr %s227, 4
      %s229 = scalar_lea.vmem %s4, %s228
      %s230 = smul.u32 8, %s20
      %p231 = scmp.lt.s32.totalorder %s19, 1
      %s232 = scalar_select %p231, %s19, 1
      %p233 = scmp.lt.s32.totalorder %s230, 7
      %s234 = scalar_select %p233, %s230, 7
      %s235 = smul.addr %s232, 8
      %s236 = sadd.s32 %s234, %s235
      %s237 = smul.addr %s236, 4
      %s238 = scalar_lea.vmem %s0, %s237
      %s239 = smul.u32 8, %s20
      %p240 = scmp.lt.s32.totalorder %s19, 1
      %s241 = scalar_select %p240, %s19, 1
      %s242 = smul.addr %s241, 4
      %s243 = scalar_lea.vmem %s1, %s242
      %s244 = smul.u32 8, %s20
      %p245 = scmp.lt.s32.totalorder %s19, 1
      %s246 = scalar_select %p245, %s19, 1
      %p247 = scmp.lt.s32.totalorder %s244, 7
      %s248 = scalar_select %p247, %s244, 7
      %s249 = smul.addr %s246, 8
      %s250 = sadd.s32 %s248, %s249
      %s251 = smul.addr %s250, 4
      %s252 = scalar_lea.vmem %s4, %s251
      %s253 = smul.u32 8, %s20
      %v254 = vld [vmem:[%s238] sm:$0xf]
      %v255 = vld [vmem:[%s238 + $0x4] sm:$0xf]
      %v256 = vld [vmem:[%s238 + $0x8] sm:$0xf]
      %v257 = vld [vmem:[%s238 + $0xc] sm:$0xf]
      %v258 = vld [vmem:[%s238 + $0x10] sm:$0xf]
      %v259 = vld [vmem:[%s238 + $0x14] sm:$0xf]
      %v260 = vld [vmem:[%s238 + $0x18] sm:$0xf]
      %v261 = vld [vmem:[%s238 + $0x1c] sm:$0xf]
      %v262 = vunpack.c.l.bf16 %v254
      %v263 = vunpack.c.l.bf16 %v255
      %v264 = vunpack.c.l.bf16 %v256
      %v265 = vunpack.c.l.bf16 %v257
      %v266 = vunpack.c.l.bf16 %v258
      %v267 = vunpack.c.l.bf16 %v259
      %v268 = vunpack.c.l.bf16 %v260
      %v269 = vunpack.c.l.bf16 %v261
      %v270 = vld [vmem:[%s2] sm:$0x1]
      %v272 = vperm.slane %v270, 0
      %v274 = vsub.f32 %v262, %v272
      %v275 = vsub.f32 %v263, %v272
      %v276 = vsub.f32 %v264, %v272
      %v277 = vsub.f32 %v265, %v272
      %v278 = vsub.f32 %v266, %v272
      %v279 = vsub.f32 %v267, %v272
      %v280 = vsub.f32 %v268, %v272
      %v281 = vsub.f32 %v269, %v272
      %v282 = vld [vmem:[%s3] sm:$0x1]
      %v284 = vperm.slane %v282, 0
      %v286 = vmul.f32 %v274, %v284
      %v287 = vmul.f32 %v275, %v284
      %v288 = vmul.f32 %v276, %v284
      %v289 = vmul.f32 %v277, %v284
      %v290 = vmul.f32 %v278, %v284
      %v291 = vmul.f32 %v279, %v284
      %v292 = vmul.f32 %v280, %v284
      %v293 = vmul.f32 %v281, %v284
      %v294 = vld [vmem:[%s243] sm:$0x7]
      %vm295 = vcmask 23552
      %v297 = vsel %vm295, %v286, 0
      %v300 = vsel %vm295, %v287, 0
      %v303 = vsel %vm295, %v288, 0
      %v306 = vsel %vm295, %v289, 0
      %v309 = vsel %vm295, %v290, 0
      %v312 = vsel %vm295, %v291, 0
      %v315 = vsel %vm295, %v292, 0
      %v318 = vsel %vm295, %v293, 0
      %vm320 = vcmask 1042432
      %v322 = vsel %vm320, %v294, 0
      %324 = vmatpush.msra.mxu0 0.0
      %325 = vmatpush.msra.mxu0 0.0
      %326 = vmatpush.msra.mxu0 0.0
      %327 = vmatpush.msra.mxu0 0.0
      %328 = vmatpush.msra.mxu0 0.0
      %329 = vmatpush.msra.mxu0 0.0
      %330 = vmatpush.msra.mxu0 0.0
      %331 = vmatpush.msra.mxu0 0.0
      %332 = vmatpush.msra.mxu0 0.0
      %333 = vmatpush.msra.mxu0 0.0
      %334 = vmatpush.msra.mxu0 0.0
      %335 = vmatpush.msra.mxu0 0.0
      %336 = vmatpush.msra.mxu0 0.0
      %337 = vmatpush.msra.mxu0 0.0
      %338 = vmatpush.msra.mxu0 0.0
      %339 = vmatpush.msra.mxu0 %v322
      %340 = vmatmul.f32.gmra.mxu0 %v297
      %v341 = vpop.f32.mrf.mxu0
      %v342 = vadd.f32 0.0, %v341
      %343 = vmatmul.f32.gmra.mxu0 %v300
      %v344 = vpop.f32.mrf.mxu0
      %v345 = vadd.f32 0.0, %v344
      %346 = vmatmul.f32.gmra.mxu0 %v303
      %v347 = vpop.f32.mrf.mxu0
      %v348 = vadd.f32 0.0, %v347
      %349 = vmatmul.f32.gmra.mxu0 %v306
      %v350 = vpop.f32.mrf.mxu0
      %v351 = vadd.f32 0.0, %v350
      %352 = vmatmul.f32.gmra.mxu0 %v309
      %v353 = vpop.f32.mrf.mxu0
      %v354 = vadd.f32 0.0, %v353
      %355 = vmatmul.f32.gmra.mxu0 %v312
      %v356 = vpop.f32.mrf.mxu0
      %v357 = vadd.f32 0.0, %v356
      %358 = vmatmul.f32.gmra.mxu0 %v315
      %v359 = vpop.f32.mrf.mxu0
      %v360 = vadd.f32 0.0, %v359
      %361 = vmatmul.f32.gmra.mxu0 %v318
      %v362 = vpop.f32.mrf.mxu0
      %v363 = vadd.f32 0.0, %v362
      %364 = vdwg.mxu0
      %v365 = vpack.c.bf16 %v342, %v342
      %v366 = vpack.c.bf16 %v345, %v345
      %v367 = vpack.c.bf16 %v348, %v348
      %v368 = vpack.c.bf16 %v351, %v351
      %v369 = vpack.c.bf16 %v354, %v354
      %v370 = vpack.c.bf16 %v357, %v357
      %v371 = vpack.c.bf16 %v360, %v360
      %v372 = vpack.c.bf16 %v363, %v363
      %vm373 = vcmask 19456
      %374 = vst.msk [vmem:[%s252] sm:$0xf] %vm373, %v365
      %375 = vst.msk [vmem:[%s252 + $0x4] sm:$0xf] %vm373, %v366
      %376 = vst.msk [vmem:[%s252 + $0x8] sm:$0xf] %vm373, %v367
      %377 = vst.msk [vmem:[%s252 + $0xc] sm:$0xf] %vm373, %v368
      %378 = vst.msk [vmem:[%s252 + $0x10] sm:$0xf] %vm373, %v369
      %379 = vst.msk [vmem:[%s252 + $0x14] sm:$0xf] %vm373, %v370
      %380 = vst.msk [vmem:[%s252 + $0x18] sm:$0xf] %vm373, %v371
      %381 = vst.msk [vmem:[%s252 + $0x1c] sm:$0xf] %vm373, %v372
      %s382 = smul.u32 8, %s20
      %p383 = scmp.lt.s32.totalorder %s19, 1
      %s384 = scalar_select %p383, %s19, 1
      %p385 = scmp.lt.s32.totalorder %s382, 7
      %s386 = scalar_select %p385, %s382, 7
      %s387 = smul.addr %s384, 8
      %s388 = sadd.s32 %s386, %s387
      %s389 = smul.addr %s388, 4
      %s390 = scalar_lea.vmem %s4, %s389
      // Predicated region
      $region37: #{pointnet_encoder_forward.18} parent=35 // pred_check
        %p391 = pneg %p143
      $region38: #{pointnet_encoder_forward.18} parent=35 // pred_check_branch
        %393 = sbr.rel (%p391) target = $region40
      $region39: #{pointnet_encoder_forward.18} parent=35 // pred_region
        %s394 = smul.u32 8, %s20
      $region40: #{pointnet_encoder_forward.18} parent=35 // pred_fallthru
        _
    $region36: #{pointnet_encoder_forward.18} parent=5 // pred_fallthru
      _
    %p395 = scmp.le.s32.totalorder 2, %s10
    // Predicated region
    $region41: #{pointnet_encoder_forward.18} parent=5 // pred_check
      %p396 = pneg %p395
    $region42: #{pointnet_encoder_forward.18} parent=5 // pred_check_branch
      %398 = sbr.rel (%p396) target = $region44
    $region43: #{pointnet_encoder_forward.18} parent=5 // pred_region
      %s399 = ssub.s32 %s10, 2
      // Predicated region
      $region45: #{pointnet_encoder_forward.18} parent=43 // pred_check
        %p400 = pneg %p149
      $region46: #{pointnet_encoder_forward.18} parent=43 // pred_check_branch
        %402 = sbr.rel (%p400) target = $region48
      $region47: #{pointnet_encoder_forward.18} parent=43 // pred_region
        %s403 = smul.u32 8, %s22
        %p404 = scmp.lt.s32.totalorder %s21, 1
        %s405 = scalar_select %p404, %s21, 1
        %p406 = scmp.lt.s32.totalorder %s403, 7
        %s407 = scalar_select %p406, %s403, 7
        %s408 = smul.addr %s405, 8
        %s409 = sadd.s32 %s407, %s408
        %s410 = smul.addr %s409, 4
        %s411 = scalar_lea.vmem %s4, %s410
      $region48: #{pointnet_encoder_forward.18} parent=43 // pred_fallthru
        _
    $region44: #{pointnet_encoder_forward.18} parent=5 // pred_fallthru
      _
  $region6: #{pointnet_encoder_forward.18} parent=0 // loop_footer
    %s14 = sadd.s32 1, %s10
  $region7: #{pointnet_encoder_forward.18} parent=0 // loop_footer_branch
    %9 = sbr.rel target = $region3
  $region8: #{pointnet_encoder_forward.18} parent=0 // loop_exit
    _

// kernel: pointnet_encoder_forward.20
$region0: #{pointnet_encoder_forward.20}
  #allocation0 [shape = 'u32[]', space=smem, size = 0x4, offset = 0x4, fixed_abs, tag = 'smem constant byte address 0x4 - core index']
  #allocation1 [shape = 'u32[72,128]{1,0:T(1,128)}', space=vmem, size = 0x9000, scoped, tag = 'internal scratch']
  %s0 = inlined_call_operand.vmem [shape: bf16[128,8], index: 0, kind: input, shape index: {}]
  %s1 = inlined_call_operand.vmem [shape: bf16[8,8], index: 1, kind: input, shape index: {}]
  %s2 = inlined_call_operand.vmem [shape: f32[1,8], index: 2, kind: input, shape index: {}]
  %s3 = inlined_call_operand.vmem [shape: bf16[128,8], index: 3, kind: output, shape index: {0}]
  %s4 = inlined_call_operand.vmem [shape: f32[1,1,8], index: 4, kind: output, shape index: {1}]
  %s5 = inlined_call_operand.vmem [shape: f32[1,1,8], index: 5, kind: output, shape index: {2}]
  %6 = xla_tuple %s3, %s4, %s5
  %s7 = sld [smem:[#allocation0]]
  $region42: #{pointnet_encoder_forward.20} parent=0
    _
  %s9 = ssub.s32 1, %s7
  %s10 = scalar_select 0, %s9, %s7
  // Predicated region
  $region2: #{pointnet_encoder_forward.20} parent=0 // pred_check
    _
  $region3: #{pointnet_encoder_forward.20} parent=0 // pred_check_branch
    %12 = sbr.rel (0) target = $region5
  $region4: #{pointnet_encoder_forward.20} parent=0 // pred_region
    %s13 = sadd.s32 0, 0
    %s14 = smul.u32 16, %s13
    %p15 = scmp.lt.s32.totalorder %s14, 15
    %s16 = scalar_select %p15, %s14, 15
    %s17 = smul.addr %s16, 4
    %s18 = scalar_lea.vmem %s0, %s17
    %s19 = sadd.s32 0, 0
    %s20 = smul.u32 16, %s19
  $region5: #{pointnet_encoder_forward.20} parent=0 // pred_fallthru
    _
  // Predicated region
  $region6: #{pointnet_encoder_forward.20} parent=0 // pred_check
    _
  $region7: #{pointnet_encoder_forward.20} parent=0 // pred_check_branch
    %22 = sbr.rel (0) target = $region9
  $region8: #{pointnet_encoder_forward.20} parent=0 // pred_region
    _
  $region9: #{pointnet_encoder_forward.20} parent=0 // pred_fallthru
    _
  // Predicated region
  $region10: #{pointnet_encoder_forward.20} parent=0 // pred_check
    _
  $region11: #{pointnet_encoder_forward.20} parent=0 // pred_check_branch
    %24 = sbr.rel (0) target = $region13
  $region12: #{pointnet_encoder_forward.20} parent=0 // pred_region
    _
  $region13: #{pointnet_encoder_forward.20} parent=0 // pred_fallthru
    _
  %s25 = sadd.s32 0, 0
  %s26 = smul.u32 16, %s25
  %p27 = scmp.lt.s32.totalorder %s26, 15
  %s28 = scalar_select %p27, %s26, 15
  %s29 = smul.addr %s28, 4
  %s30 = scalar_lea.vmem %s0, %s29
  %s31 = sadd.s32 0, 0
  %s32 = smul.u32 16, %s31
  %p33 = scmp.lt.s32.totalorder %s32, 15
  %s34 = scalar_select %p33, %s32, 15
  %s35 = smul.addr %s34, 4
  %s36 = scalar_lea.vmem %s3, %s35
  %s37 = sadd.s32 0, 0
  %s38 = smul.u32 16, %s37
  %p39 = scmp.lt.s32.totalorder %s38, 15
  %s40 = scalar_select %p39, %s38, 15
  %s41 = smul.addr %s40, 4
  %s42 = scalar_lea.vmem %s0, %s41
  %s43 = sadd.s32 0, 0
  %s44 = smul.u32 16, %s43
  %s45 = sadd.s32 0, 0
  %s46 = smul.u32 16, %s45
  %p47 = scmp.lt.s32.totalorder %s46, 15
  %s48 = scalar_select %p47, %s46, 15
  %s49 = smul.addr %s48, 4
  %s50 = scalar_lea.vmem %s3, %s49
  %s51 = sadd.s32 0, 0
  %s52 = smul.u32 16, %s51
  %v54 = vld [vmem:[%s42] sm:$0xf]
  %v55 = vld [vmem:[%s42 + $0x4] sm:$0xf]
  %v56 = vld [vmem:[%s42 + $0x8] sm:$0xf]
  %v57 = vld [vmem:[%s42 + $0xc] sm:$0xf]
  %v58 = vld [vmem:[%s42 + $0x10] sm:$0xf]
  %v59 = vld [vmem:[%s42 + $0x14] sm:$0xf]
  %v60 = vld [vmem:[%s42 + $0x18] sm:$0xf]
  %v61 = vld [vmem:[%s42 + $0x1c] sm:$0xf]
  %v62 = vld [vmem:[%s42 + $0x20] sm:$0xf]
  %v63 = vld [vmem:[%s42 + $0x24] sm:$0xf]
  %v64 = vld [vmem:[%s42 + $0x28] sm:$0xf]
  %v65 = vld [vmem:[%s42 + $0x2c] sm:$0xf]
  %v66 = vld [vmem:[%s42 + $0x30] sm:$0xf]
  %v67 = vld [vmem:[%s42 + $0x34] sm:$0xf]
  %v68 = vld [vmem:[%s42 + $0x38] sm:$0xf]
  %v69 = vld [vmem:[%s42 + $0x3c] sm:$0xf]
  %v70 = vld [vmem:[%s1] sm:$0xf]
  %v71 = vld [vmem:[%s2] sm:$0x1]
  %v73 = vperm.slane %v71, 0
  %v91 = vunpack.c.l.b16 %v54
  %v92 = vunpack.c.l.b16 %v55
  %v93 = vunpack.c.l.b16 %v56
  %v94 = vunpack.c.l.b16 %v57
  %v95 = vunpack.c.l.b16 %v58
  %v96 = vunpack.c.l.b16 %v59
  %v97 = vunpack.c.l.b16 %v60
  %v98 = vunpack.c.l.b16 %v61
  %v99 = vunpack.c.l.b16 %v62
  %v100 = vunpack.c.l.b16 %v63
  %v101 = vunpack.c.l.b16 %v64
  %v102 = vunpack.c.l.b16 %v65
  %v103 = vunpack.c.l.b16 %v66
  %v104 = vunpack.c.l.b16 %v67
  %v105 = vunpack.c.l.b16 %v68
  %v106 = vunpack.c.l.b16 %v69
  %v107 = vpack.c.b16 %v92, %v91
  %v108 = vpack.c.b16 %v94, %v93
  %v109 = vpack.c.b16 %v96, %v95
  %v110 = vpack.c.b16 %v98, %v97
  %v111 = vpack.c.b16 %v100, %v99
  %v112 = vpack.c.b16 %v102, %v101
  %v113 = vpack.c.b16 %v104, %v103
  %v114 = vpack.c.b16 %v106, %v105
  %vm115 = vcmask 64512
  %v117 = vsel %vm115, %v107, 0
  %v120 = vsel %vm115, %v108, 0
  %v123 = vsel %vm115, %v109, 0
  %v126 = vsel %vm115, %v110, 0
  %v129 = vsel %vm115, %v111, 0
  %v132 = vsel %vm115, %v112, 0
  %v135 = vsel %vm115, %v113, 0
  %v138 = vsel %vm115, %v114, 0
  %vm140 = vcmask 1043456
  %v142 = vsel %vm140, %v70, 0
  %144 = vmatpush.bf16.msra.mxu0 0
  %145 = vmatpush.bf16.msra.mxu0 0
  %146 = vmatpush.bf16.msra.mxu0 0
  %147 = vmatpush.bf16.msra.mxu0 0
  %148 = vmatpush.bf16.msra.mxu0 0
  %149 = vmatpush.bf16.msra.mxu0 0
  %150 = vmatpush.bf16.msra.mxu0 0
  %151 = vmatpush.bf16.msra.mxu0 %v142
  %152 = vmatmul.bf16.gmra.mxu0 %v117
  %v153 = vpop.f32.mrf.mxu0
  %v154 = vadd.f32 %v73, %v153
  %v155 = vpop.f32.mrf.mxu0
  %v156 = vadd.f32 %v73, %v155
  %157 = vmatmul.bf16.gmra.mxu0 %v120
  %v158 = vpop.f32.mrf.mxu0
  %v159 = vadd.f32 %v73, %v158
  %v160 = vpop.f32.mrf.mxu0
  %v161 = vadd.f32 %v73, %v160
  %162 = vmatmul.bf16.gmra.mxu0 %v123
  %v163 = vpop.f32.mrf.mxu0
  %v164 = vadd.f32 %v73, %v163
  %v165 = vpop.f32.mrf.mxu0
  %v166 = vadd.f32 %v73, %v165
  %167 = vmatmul.bf16.gmra.mxu0 %v126
  %v168 = vpop.f32.mrf.mxu0
  %v169 = vadd.f32 %v73, %v168
  %v170 = vpop.f32.mrf.mxu0
  %v171 = vadd.f32 %v73, %v170
  %172 = vmatmul.bf16.gmra.mxu0 %v129
  %v173 = vpop.f32.mrf.mxu0
  %v174 = vadd.f32 %v73, %v173
  %v175 = vpop.f32.mrf.mxu0
  %v176 = vadd.f32 %v73, %v175
  %177 = vmatmul.bf16.gmra.mxu0 %v132
  %v178 = vpop.f32.mrf.mxu0
  %v179 = vadd.f32 %v73, %v178
  %v180 = vpop.f32.mrf.mxu0
  %v181 = vadd.f32 %v73, %v180
  %182 = vmatmul.bf16.gmra.mxu0 %v135
  %v183 = vpop.f32.mrf.mxu0
  %v184 = vadd.f32 %v73, %v183
  %v185 = vpop.f32.mrf.mxu0
  %v186 = vadd.f32 %v73, %v185
  %187 = vmatmul.bf16.gmra.mxu0 %v138
  %v188 = vpop.f32.mrf.mxu0
  %v189 = vadd.f32 %v73, %v188
  %v190 = vpop.f32.mrf.mxu0
  %v191 = vadd.f32 %v73, %v190
  %192 = vdwg.mxu0
  %v193 = vmax.f32 %v154, 0.0
  %v194 = vmax.f32 %v156, 0.0
  %v195 = vmax.f32 %v159, 0.0
  %v196 = vmax.f32 %v161, 0.0
  %v197 = vmax.f32 %v164, 0.0
  %v198 = vmax.f32 %v166, 0.0
  %v199 = vmax.f32 %v169, 0.0
  %v200 = vmax.f32 %v171, 0.0
  %v201 = vmax.f32 %v174, 0.0
  %v202 = vmax.f32 %v176, 0.0
  %v203 = vmax.f32 %v179, 0.0
  %v204 = vmax.f32 %v181, 0.0
  %v205 = vmax.f32 %v184, 0.0
  %v206 = vmax.f32 %v186, 0.0
  %v207 = vmax.f32 %v189, 0.0
  %v208 = vmax.f32 %v191, 0.0
  %v209 = vpack.c.bf16 %v193, %v193
  %v210 = vpack.c.bf16 %v194, %v194
  %v211 = vpack.c.bf16 %v195, %v195
  %v212 = vpack.c.bf16 %v196, %v196
  %v213 = vpack.c.bf16 %v197, %v197
  %v214 = vpack.c.bf16 %v198, %v198
  %v215 = vpack.c.bf16 %v199, %v199
  %v216 = vpack.c.bf16 %v200, %v200
  %v217 = vpack.c.bf16 %v201, %v201
  %v218 = vpack.c.bf16 %v202, %v202
  %v219 = vpack.c.bf16 %v203, %v203
  %v220 = vpack.c.bf16 %v204, %v204
  %v221 = vpack.c.bf16 %v205, %v205
  %v222 = vpack.c.bf16 %v206, %v206
  %v223 = vpack.c.bf16 %v207, %v207
  %v224 = vpack.c.bf16 %v208, %v208
  %vm225 = vcmask 60416
  %226 = vst.msk [vmem:[%s50] sm:$0xf] %vm225, %v209
  %227 = vst.msk [vmem:[%s50 + $0x4] sm:$0xf] %vm225, %v210
  %228 = vst.msk [vmem:[%s50 + $0x8] sm:$0xf] %vm225, %v211
  %229 = vst.msk [vmem:[%s50 + $0xc] sm:$0xf] %vm225, %v212
  %230 = vst.msk [vmem:[%s50 + $0x10] sm:$0xf] %vm225, %v213
  %231 = vst.msk [vmem:[%s50 + $0x14] sm:$0xf] %vm225, %v214
  %232 = vst.msk [vmem:[%s50 + $0x18] sm:$0xf] %vm225, %v215
  %233 = vst.msk [vmem:[%s50 + $0x1c] sm:$0xf] %vm225, %v216
  %234 = vst.msk [vmem:[%s50 + $0x20] sm:$0xf] %vm225, %v217
  %235 = vst.msk [vmem:[%s50 + $0x24] sm:$0xf] %vm225, %v218
  %236 = vst.msk [vmem:[%s50 + $0x28] sm:$0xf] %vm225, %v219
  %237 = vst.msk [vmem:[%s50 + $0x2c] sm:$0xf] %vm225, %v220
  %238 = vst.msk [vmem:[%s50 + $0x30] sm:$0xf] %vm225, %v221
  %239 = vst.msk [vmem:[%s50 + $0x34] sm:$0xf] %vm225, %v222
  %240 = vst.msk [vmem:[%s50 + $0x38] sm:$0xf] %vm225, %v223
  %241 = vst.msk [vmem:[%s50 + $0x3c] sm:$0xf] %vm225, %v224
  %p242 = scmp.eq.s32.totalorder 0, 0
  // Predicated region
  $region14: #{pointnet_encoder_forward.20} parent=0 // pred_check
    %p243 = pneg %p242
  $region15: #{pointnet_encoder_forward.20} parent=0 // pred_check_branch
    %245 = sbr.rel (%p243) target = $region17
  $region16: #{pointnet_encoder_forward.20} parent=0 // pred_region
    %vm246 = vcmask 57344
    %247 = vst.msk [vmem:[%s4] sm:$0x1] %vm246, 0.0
    %248 = vst.msk [vmem:[%s5] sm:$0x1] %vm246, 0.0
  $region17: #{pointnet_encoder_forward.20} parent=0 // pred_fallthru
    _
  %v249 = vld [vmem:[%s4] sm:$0x1]
  %v250 = vsel %vm115, %v193, 0.0
  %v251 = vsel %vm115, %v194, 0.0
  %v252 = vadd.f32 %v250, %v251
  %v253 = vsel %vm115, %v195, 0.0
  %v254 = vadd.f32 %v252, %v253
  %v255 = vsel %vm115, %v196, 0.0
  %v256 = vadd.f32 %v254, %v255
  %v257 = vsel %vm115, %v197, 0.0
  %v258 = vadd.f32 %v256, %v257
  %v259 = vsel %vm115, %v198, 0.0
  %v260 = vadd.f32 %v258, %v259
  %v261 = vsel %vm115, %v199, 0.0
  %v262 = vadd.f32 %v260, %v261
  %v263 = vsel %vm115, %v200, 0.0
  %v264 = vadd.f32 %v262, %v263
  %v265 = vsel %vm115, %v201, 0.0
  %v266 = vadd.f32 %v264, %v265
  %v267 = vsel %vm115, %v202, 0.0
  %v268 = vadd.f32 %v266, %v267
  %v269 = vsel %vm115, %v203, 0.0
  %v270 = vadd.f32 %v268, %v269
  %v271 = vsel %vm115, %v204, 0.0
  %v272 = vadd.f32 %v270, %v271
  %v273 = vsel %vm115, %v205, 0.0
  %v274 = vadd.f32 %v272, %v273
  %v275 = vsel %vm115, %v206, 0.0
  %v276 = vadd.f32 %v274, %v275
  %v277 = vsel %vm115, %v207, 0.0
  %v278 = vadd.f32 %v276, %v277
  %v279 = vsel %vm115, %v208, 0.0
  %v280 = vadd.f32 %v278, %v279
  %v281 = vrot.slane %v280, 4
  %v282 = vadd.f32 %v280, %v281
  %v283 = vrot.slane %v282, 2
  %v284 = vadd.f32 %v282, %v283
  %v285 = vrot.slane %v284, 1
  %v286 = vadd.f32 %v284, %v285
  %v287 = vadd.f32 %v249, %v286
  %vm288 = vcmask 57344
  %289 = vst.msk [vmem:[%s4] sm:$0x1] %vm288, %v287
  %v290 = vld [vmem:[%s5] sm:$0x1]
  %v291 = vmul.f32 %v193, %v193
  %v292 = vmul.f32 %v194, %v194
  %v293 = vmul.f32 %v195, %v195
  %v294 = vmul.f32 %v196, %v196
  %v295 = vmul.f32 %v197, %v197
  %v296 = vmul.f32 %v198, %v198
  %v297 = vmul.f32 %v199, %v199
  %v298 = vmul.f32 %v200, %v200
  %v299 = vmul.f32 %v201, %v201
  %v300 = vmul.f32 %v202, %v202
  %v301 = vmul.f32 %v203, %v203
  %v302 = vmul.f32 %v204, %v204
  %v303 = vmul.f32 %v205, %v205
  %v304 = vmul.f32 %v206, %v206
  %v305 = vmul.f32 %v207, %v207
  %v306 = vmul.f32 %v208, %v208
  %v307 = vsel %vm115, %v291, 0.0
  %v308 = vsel %vm115, %v292, 0.0
  %v309 = vadd.f32 %v307, %v308
  %v310 = vsel %vm115, %v293, 0.0
  %v311 = vadd.f32 %v309, %v310
  %v312 = vsel %vm115, %v294, 0.0
  %v313 = vadd.f32 %v311, %v312
  %v314 = vsel %vm115, %v295, 0.0
  %v315 = vadd.f32 %v313, %v314
  %v316 = vsel %vm115, %v296, 0.0
  %v317 = vadd.f32 %v315, %v316
  %v318 = vsel %vm115, %v297, 0.0
  %v319 = vadd.f32 %v317, %v318
  %v320 = vsel %vm115, %v298, 0.0
  %v321 = vadd.f32 %v319, %v320
  %v322 = vsel %vm115, %v299, 0.0
  %v323 = vadd.f32 %v321, %v322
  %v324 = vsel %vm115, %v300, 0.0
  %v325 = vadd.f32 %v323, %v324
  %v326 = vsel %vm115, %v301, 0.0
  %v327 = vadd.f32 %v325, %v326
  %v328 = vsel %vm115, %v302, 0.0
  %v329 = vadd.f32 %v327, %v328
  %v330 = vsel %vm115, %v303, 0.0
  %v331 = vadd.f32 %v329, %v330
  %v332 = vsel %vm115, %v304, 0.0
  %v333 = vadd.f32 %v331, %v332
  %v334 = vsel %vm115, %v305, 0.0
  %v335 = vadd.f32 %v333, %v334
  %v336 = vsel %vm115, %v306, 0.0
  %v337 = vadd.f32 %v335, %v336
  %v338 = vrot.slane %v337, 4
  %v339 = vadd.f32 %v337, %v338
  %v340 = vrot.slane %v339, 2
  %v341 = vadd.f32 %v339, %v340
  %v342 = vrot.slane %v341, 1
  %v343 = vadd.f32 %v341, %v342
  %v344 = vadd.f32 %v290, %v343
  %345 = vst.msk [vmem:[%s5] sm:$0x1] %vm288, %v344
  %s346 = sadd.s32 0, 0
  %s347 = smul.u32 16, %s346
  %p348 = scmp.lt.s32.totalorder %s347, 15
  %s349 = scalar_select %p348, %s347, 15
  %s350 = smul.addr %s349, 4
  %s351 = scalar_lea.vmem %s3, %s350
  // Predicated region
  $region18: #{pointnet_encoder_forward.20} parent=0 // pred_check
    _
  $region19: #{pointnet_encoder_forward.20} parent=0 // pred_check_branch
    %353 = sbr.rel (0) target = $region21
  $region20: #{pointnet_encoder_forward.20} parent=0 // pred_region
    %s354 = sadd.s32 0, 0
    %s355 = smul.u32 16, %s354
  $region21: #{pointnet_encoder_forward.20} parent=0 // pred_fallthru
    _
  // Predicated region
  $region22: #{pointnet_encoder_forward.20} parent=0 // pred_check
    _
  $region23: #{pointnet_encoder_forward.20} parent=0 // pred_check_branch
    %357 = sbr.rel (0) target = $region25
  $region24: #{pointnet_encoder_forward.20} parent=0 // pred_region
    _
  $region25: #{pointnet_encoder_forward.20} parent=0 // pred_fallthru
    _
  // Predicated region
  $region26: #{pointnet_encoder_forward.20} parent=0 // pred_check
    _
  $region27: #{pointnet_encoder_forward.20} parent=0 // pred_check_branch
    %359 = sbr.rel (0) target = $region29
  $region28: #{pointnet_encoder_forward.20} parent=0 // pred_region
    _
  $region29: #{pointnet_encoder_forward.20} parent=0 // pred_fallthru
    _
  // Predicated region
  $region30: #{pointnet_encoder_forward.20} parent=0 // pred_check
    _
  $region31: #{pointnet_encoder_forward.20} parent=0 // pred_check_branch
    %361 = sbr.rel (0) target = $region33
  $region32: #{pointnet_encoder_forward.20} parent=0 // pred_region
    %s362 = sadd.s32 0, 0
    %s363 = smul.u32 16, %s362
    %p364 = scmp.lt.s32.totalorder %s363, 15
    %s365 = scalar_select %p364, %s363, 15
    %s366 = smul.addr %s365, 4
    %s367 = scalar_lea.vmem %s3, %s366
  $region33: #{pointnet_encoder_forward.20} parent=0 // pred_fallthru
    _
  // Predicated region
  $region34: #{pointnet_encoder_forward.20} parent=0 // pred_check
    _
  $region35: #{pointnet_encoder_forward.20} parent=0 // pred_check_branch
    %369 = sbr.rel (0) target = $region37
  $region36: #{pointnet_encoder_forward.20} parent=0 // pred_region
    _
  $region37: #{pointnet_encoder_forward.20} parent=0 // pred_fallthru
    _
  // Predicated region
  $region38: #{pointnet_encoder_forward.20} parent=0 // pred_check
    _
  $region39: #{pointnet_encoder_forward.20} parent=0 // pred_check_branch
    %371 = sbr.rel (0) target = $region41
  $region40: #{pointnet_encoder_forward.20} parent=0 // pred_region
    _
  $region41: #{pointnet_encoder_forward.20} parent=0 // pred_fallthru
    _

// kernel: pointnet_encoder_forward.19
$region0: #{pointnet_encoder_forward.19}
  #allocation0 [shape = 'u32[]', space=smem, size = 0x4, offset = 0x4, fixed_abs, tag = 'smem constant byte address 0x4 - core index']
  #allocation1 [shape = 'u32[72,128]{1,0:T(1,128)}', space=vmem, size = 0x9000, scoped, tag = 'internal scratch']
  %s0 = inlined_call_operand.vmem [shape: bf16[128,3], index: 0, kind: input, shape index: {}]
  %s1 = inlined_call_operand.vmem [shape: bf16[3,8], index: 1, kind: input, shape index: {}]
  %s2 = inlined_call_operand.vmem [shape: f32[1,8], index: 2, kind: input, shape index: {}]
  %s3 = inlined_call_operand.vmem [shape: bf16[128,8], index: 3, kind: output, shape index: {0}]
  %s4 = inlined_call_operand.vmem [shape: f32[1,1,8], index: 4, kind: output, shape index: {1}]
  %s5 = inlined_call_operand.vmem [shape: f32[1,1,8], index: 5, kind: output, shape index: {2}]
  %6 = xla_tuple %s3, %s4, %s5
  %s7 = sld [smem:[#allocation0]]
  $region42: #{pointnet_encoder_forward.19} parent=0
    _
  %s9 = ssub.s32 1, %s7
  %s10 = scalar_select 0, %s9, %s7
  // Predicated region
  $region2: #{pointnet_encoder_forward.19} parent=0 // pred_check
    _
  $region3: #{pointnet_encoder_forward.19} parent=0 // pred_check_branch
    %12 = sbr.rel (0) target = $region5
  $region4: #{pointnet_encoder_forward.19} parent=0 // pred_region
    %s13 = sadd.s32 0, 0
    %s14 = smul.u32 16, %s13
    %p15 = scmp.lt.s32.totalorder %s14, 15
    %s16 = scalar_select %p15, %s14, 15
    %s17 = smul.addr %s16, 4
    %s18 = scalar_lea.vmem %s0, %s17
    %s19 = sadd.s32 0, 0
    %s20 = smul.u32 16, %s19
  $region5: #{pointnet_encoder_forward.19} parent=0 // pred_fallthru
    _
  // Predicated region
  $region6: #{pointnet_encoder_forward.19} parent=0 // pred_check
    _
  $region7: #{pointnet_encoder_forward.19} parent=0 // pred_check_branch
    %22 = sbr.rel (0) target = $region9
  $region8: #{pointnet_encoder_forward.19} parent=0 // pred_region
    _
  $region9: #{pointnet_encoder_forward.19} parent=0 // pred_fallthru
    _
  // Predicated region
  $region10: #{pointnet_encoder_forward.19} parent=0 // pred_check
    _
  $region11: #{pointnet_encoder_forward.19} parent=0 // pred_check_branch
    %24 = sbr.rel (0) target = $region13
  $region12: #{pointnet_encoder_forward.19} parent=0 // pred_region
    _
  $region13: #{pointnet_encoder_forward.19} parent=0 // pred_fallthru
    _
  %s25 = sadd.s32 0, 0
  %s26 = smul.u32 16, %s25
  %p27 = scmp.lt.s32.totalorder %s26, 15
  %s28 = scalar_select %p27, %s26, 15
  %s29 = smul.addr %s28, 4
  %s30 = scalar_lea.vmem %s0, %s29
  %s31 = sadd.s32 0, 0
  %s32 = smul.u32 16, %s31
  %p33 = scmp.lt.s32.totalorder %s32, 15
  %s34 = scalar_select %p33, %s32, 15
  %s35 = smul.addr %s34, 4
  %s36 = scalar_lea.vmem %s3, %s35
  %s37 = sadd.s32 0, 0
  %s38 = smul.u32 16, %s37
  %p39 = scmp.lt.s32.totalorder %s38, 15
  %s40 = scalar_select %p39, %s38, 15
  %s41 = smul.addr %s40, 4
  %s42 = scalar_lea.vmem %s0, %s41
  %s43 = sadd.s32 0, 0
  %s44 = smul.u32 16, %s43
  %s45 = sadd.s32 0, 0
  %s46 = smul.u32 16, %s45
  %p47 = scmp.lt.s32.totalorder %s46, 15
  %s48 = scalar_select %p47, %s46, 15
  %s49 = smul.addr %s48, 4
  %s50 = scalar_lea.vmem %s3, %s49
  %s51 = sadd.s32 0, 0
  %s52 = smul.u32 16, %s51
  %v54 = vld [vmem:[%s42] sm:$0xf]
  %v55 = vld [vmem:[%s42 + $0x4] sm:$0xf]
  %v56 = vld [vmem:[%s42 + $0x8] sm:$0xf]
  %v57 = vld [vmem:[%s42 + $0xc] sm:$0xf]
  %v58 = vld [vmem:[%s42 + $0x10] sm:$0xf]
  %v59 = vld [vmem:[%s42 + $0x14] sm:$0xf]
  %v60 = vld [vmem:[%s42 + $0x18] sm:$0xf]
  %v61 = vld [vmem:[%s42 + $0x1c] sm:$0xf]
  %v62 = vld [vmem:[%s42 + $0x20] sm:$0xf]
  %v63 = vld [vmem:[%s42 + $0x24] sm:$0xf]
  %v64 = vld [vmem:[%s42 + $0x28] sm:$0xf]
  %v65 = vld [vmem:[%s42 + $0x2c] sm:$0xf]
  %v66 = vld [vmem:[%s42 + $0x30] sm:$0xf]
  %v67 = vld [vmem:[%s42 + $0x34] sm:$0xf]
  %v68 = vld [vmem:[%s42 + $0x38] sm:$0xf]
  %v69 = vld [vmem:[%s42 + $0x3c] sm:$0xf]
  %v70 = vld [vmem:[%s1] sm:$0x3]
  %v71 = vld [vmem:[%s2] sm:$0x1]
  %v73 = vperm.slane %v71, 0
  %v91 = vunpack.c.l.b16 %v54
  %v92 = vunpack.c.l.b16 %v55
  %v93 = vunpack.c.l.b16 %v56
  %v94 = vunpack.c.l.b16 %v57
  %v95 = vunpack.c.l.b16 %v58
  %v96 = vunpack.c.l.b16 %v59
  %v97 = vunpack.c.l.b16 %v60
  %v98 = vunpack.c.l.b16 %v61
  %v99 = vunpack.c.l.b16 %v62
  %v100 = vunpack.c.l.b16 %v63
  %v101 = vunpack.c.l.b16 %v64
  %v102 = vunpack.c.l.b16 %v65
  %v103 = vunpack.c.l.b16 %v66
  %v104 = vunpack.c.l.b16 %v67
  %v105 = vunpack.c.l.b16 %v68
  %v106 = vunpack.c.l.b16 %v69
  %v107 = vpack.c.b16 %v92, %v91
  %v108 = vpack.c.b16 %v94, %v93
  %v109 = vpack.c.b16 %v96, %v95
  %v110 = vpack.c.b16 %v98, %v97
  %v111 = vpack.c.b16 %v100, %v99
  %v112 = vpack.c.b16 %v102, %v101
  %v113 = vpack.c.b16 %v104, %v103
  %v114 = vpack.c.b16 %v106, %v105
  %vm115 = vcmask 23552
  %v117 = vsel %vm115, %v107, 0
  %v120 = vsel %vm115, %v108, 0
  %v123 = vsel %vm115, %v109, 0
  %v126 = vsel %vm115, %v110, 0
  %v129 = vsel %vm115, %v111, 0
  %v132 = vsel %vm115, %v112, 0
  %v135 = vsel %vm115, %v113, 0
  %v138 = vsel %vm115, %v114, 0
  %vm140 = vcmask 1040384
  %vm141 = vcmask 1041408
  %v142 = vsel %vm140, 4294967295, 65535
  %v143 = vsel %vm141, %v142, 0
  %v145 = vand.u32 %v70, %v143
  %147 = vmatpush.bf16.msra.mxu0 0
  %148 = vmatpush.bf16.msra.mxu0 0
  %149 = vmatpush.bf16.msra.mxu0 0
  %150 = vmatpush.bf16.msra.mxu0 0
  %151 = vmatpush.bf16.msra.mxu0 0
  %152 = vmatpush.bf16.msra.mxu0 0
  %153 = vmatpush.bf16.msra.mxu0 0
  %154 = vmatpush.bf16.msra.mxu0 %v145
  %155 = vmatmul.bf16.gmra.mxu0 %v117
  %v156 = vpop.f32.mrf.mxu0
  %v157 = vadd.f32 %v73, %v156
  %v158 = vpop.f32.mrf.mxu0
  %v159 = vadd.f32 %v73, %v158
  %160 = vmatmul.bf16.gmra.mxu0 %v120
  %v161 = vpop.f32.mrf.mxu0
  %v162 = vadd.f32 %v73, %v161
  %v163 = vpop.f32.mrf.mxu0
  %v164 = vadd.f32 %v73, %v163
  %165 = vmatmul.bf16.gmra.mxu0 %v123
  %v166 = vpop.f32.mrf.mxu0
  %v167 = vadd.f32 %v73, %v166
  %v168 = vpop.f32.mrf.mxu0
  %v169 = vadd.f32 %v73, %v168
  %170 = vmatmul.bf16.gmra.mxu0 %v126
  %v171 = vpop.f32.mrf.mxu0
  %v172 = vadd.f32 %v73, %v171
  %v173 = vpop.f32.mrf.mxu0
  %v174 = vadd.f32 %v73, %v173
  %175 = vmatmul.bf16.gmra.mxu0 %v129
  %v176 = vpop.f32.mrf.mxu0
  %v177 = vadd.f32 %v73, %v176
  %v178 = vpop.f32.mrf.mxu0
  %v179 = vadd.f32 %v73, %v178
  %180 = vmatmul.bf16.gmra.mxu0 %v132
  %v181 = vpop.f32.mrf.mxu0
  %v182 = vadd.f32 %v73, %v181
  %v183 = vpop.f32.mrf.mxu0
  %v184 = vadd.f32 %v73, %v183
  %185 = vmatmul.bf16.gmra.mxu0 %v135
  %v186 = vpop.f32.mrf.mxu0
  %v187 = vadd.f32 %v73, %v186
  %v188 = vpop.f32.mrf.mxu0
  %v189 = vadd.f32 %v73, %v188
  %190 = vmatmul.bf16.gmra.mxu0 %v138
  %v191 = vpop.f32.mrf.mxu0
  %v192 = vadd.f32 %v73, %v191
  %v193 = vpop.f32.mrf.mxu0
  %v194 = vadd.f32 %v73, %v193
  %195 = vdwg.mxu0
  %v196 = vmax.f32 %v157, 0.0
  %v197 = vmax.f32 %v159, 0.0
  %v198 = vmax.f32 %v162, 0.0
  %v199 = vmax.f32 %v164, 0.0
  %v200 = vmax.f32 %v167, 0.0
  %v201 = vmax.f32 %v169, 0.0
  %v202 = vmax.f32 %v172, 0.0
  %v203 = vmax.f32 %v174, 0.0
  %v204 = vmax.f32 %v177, 0.0
  %v205 = vmax.f32 %v179, 0.0
  %v206 = vmax.f32 %v182, 0.0
  %v207 = vmax.f32 %v184, 0.0
  %v208 = vmax.f32 %v187, 0.0
  %v209 = vmax.f32 %v189, 0.0
  %v210 = vmax.f32 %v192, 0.0
  %v211 = vmax.f32 %v194, 0.0
  %v212 = vpack.c.bf16 %v196, %v196
  %v213 = vpack.c.bf16 %v197, %v197
  %v214 = vpack.c.bf16 %v198, %v198
  %v215 = vpack.c.bf16 %v199, %v199
  %v216 = vpack.c.bf16 %v200, %v200
  %v217 = vpack.c.bf16 %v201, %v201
  %v218 = vpack.c.bf16 %v202, %v202
  %v219 = vpack.c.bf16 %v203, %v203
  %v220 = vpack.c.bf16 %v204, %v204
  %v221 = vpack.c.bf16 %v205, %v205
  %v222 = vpack.c.bf16 %v206, %v206
  %v223 = vpack.c.bf16 %v207, %v207
  %v224 = vpack.c.bf16 %v208, %v208
  %v225 = vpack.c.bf16 %v209, %v209
  %v226 = vpack.c.bf16 %v210, %v210
  %v227 = vpack.c.bf16 %v211, %v211
  %vm228 = vcmask 60416
  %229 = vst.msk [vmem:[%s50] sm:$0xf] %vm228, %v212
  %230 = vst.msk [vmem:[%s50 + $0x4] sm:$0xf] %vm228, %v213
  %231 = vst.msk [vmem:[%s50 + $0x8] sm:$0xf] %vm228, %v214
  %232 = vst.msk [vmem:[%s50 + $0xc] sm:$0xf] %vm228, %v215
  %233 = vst.msk [vmem:[%s50 + $0x10] sm:$0xf] %vm228, %v216
  %234 = vst.msk [vmem:[%s50 + $0x14] sm:$0xf] %vm228, %v217
  %235 = vst.msk [vmem:[%s50 + $0x18] sm:$0xf] %vm228, %v218
  %236 = vst.msk [vmem:[%s50 + $0x1c] sm:$0xf] %vm228, %v219
  %237 = vst.msk [vmem:[%s50 + $0x20] sm:$0xf] %vm228, %v220
  %238 = vst.msk [vmem:[%s50 + $0x24] sm:$0xf] %vm228, %v221
  %239 = vst.msk [vmem:[%s50 + $0x28] sm:$0xf] %vm228, %v222
  %240 = vst.msk [vmem:[%s50 + $0x2c] sm:$0xf] %vm228, %v223
  %241 = vst.msk [vmem:[%s50 + $0x30] sm:$0xf] %vm228, %v224
  %242 = vst.msk [vmem:[%s50 + $0x34] sm:$0xf] %vm228, %v225
  %243 = vst.msk [vmem:[%s50 + $0x38] sm:$0xf] %vm228, %v226
  %244 = vst.msk [vmem:[%s50 + $0x3c] sm:$0xf] %vm228, %v227
  %p245 = scmp.eq.s32.totalorder 0, 0
  // Predicated region
  $region14: #{pointnet_encoder_forward.19} parent=0 // pred_check
    %p246 = pneg %p245
  $region15: #{pointnet_encoder_forward.19} parent=0 // pred_check_branch
    %248 = sbr.rel (%p246) target = $region17
  $region16: #{pointnet_encoder_forward.19} parent=0 // pred_region
    %vm249 = vcmask 57344
    %250 = vst.msk [vmem:[%s4] sm:$0x1] %vm249, 0.0
    %251 = vst.msk [vmem:[%s5] sm:$0x1] %vm249, 0.0
  $region17: #{pointnet_encoder_forward.19} parent=0 // pred_fallthru
    _
  %v252 = vld [vmem:[%s4] sm:$0x1]
  %vm253 = vcmask 64512
  %v254 = vsel %vm253, %v196, 0.0
  %v255 = vsel %vm253, %v197, 0.0
  %v256 = vadd.f32 %v254, %v255
  %v257 = vsel %vm253, %v198, 0.0
  %v258 = vadd.f32 %v256, %v257
  %v259 = vsel %vm253, %v199, 0.0
  %v260 = vadd.f32 %v258, %v259
  %v261 = vsel %vm253, %v200, 0.0
  %v262 = vadd.f32 %v260, %v261
  %v263 = vsel %vm253, %v201, 0.0
  %v264 = vadd.f32 %v262, %v263
  %v265 = vsel %vm253, %v202, 0.0
  %v266 = vadd.f32 %v264, %v265
  %v267 = vsel %vm253, %v203, 0.0
  %v268 = vadd.f32 %v266, %v267
  %v269 = vsel %vm253, %v204, 0.0
  %v270 = vadd.f32 %v268, %v269
  %v271 = vsel %vm253, %v205, 0.0
  %v272 = vadd.f32 %v270, %v271
  %v273 = vsel %vm253, %v206, 0.0
  %v274 = vadd.f32 %v272, %v273
  %v275 = vsel %vm253, %v207, 0.0
  %v276 = vadd.f32 %v274, %v275
  %v277 = vsel %vm253, %v208, 0.0
  %v278 = vadd.f32 %v276, %v277
  %v279 = vsel %vm253, %v209, 0.0
  %v280 = vadd.f32 %v278, %v279
  %v281 = vsel %vm253, %v210, 0.0
  %v282 = vadd.f32 %v280, %v281
  %v283 = vsel %vm253, %v211, 0.0
  %v284 = vadd.f32 %v282, %v283
  %v285 = vrot.slane %v284, 4
  %v286 = vadd.f32 %v284, %v285
  %v287 = vrot.slane %v286, 2
  %v288 = vadd.f32 %v286, %v287
  %v289 = vrot.slane %v288, 1
  %v290 = vadd.f32 %v288, %v289
  %v291 = vadd.f32 %v252, %v290
  %vm292 = vcmask 57344
  %293 = vst.msk [vmem:[%s4] sm:$0x1] %vm292, %v291
  %v294 = vld [vmem:[%s5] sm:$0x1]
  %v295 = vmul.f32 %v196, %v196
  %v296 = vmul.f32 %v197, %v197
  %v297 = vmul.f32 %v198, %v198
  %v298 = vmul.f32 %v199, %v199
  %v299 = vmul.f32 %v200, %v200
  %v300 = vmul.f32 %v201, %v201
  %v301 = vmul.f32 %v202, %v202
  %v302 = vmul.f32 %v203, %v203
  %v303 = vmul.f32 %v204, %v204
  %v304 = vmul.f32 %v205, %v205
  %v305 = vmul.f32 %v206, %v206
  %v306 = vmul.f32 %v207, %v207
  %v307 = vmul.f32 %v208, %v208
  %v308 = vmul.f32 %v209, %v209
  %v309 = vmul.f32 %v210, %v210
  %v310 = vmul.f32 %v211, %v211
  %v311 = vsel %vm253, %v295, 0.0
  %v312 = vsel %vm253, %v296, 0.0
  %v313 = vadd.f32 %v311, %v312
  %v314 = vsel %vm253, %v297, 0.0
  %v315 = vadd.f32 %v313, %v314
  %v316 = vsel %vm253, %v298, 0.0
  %v317 = vadd.f32 %v315, %v316
  %v318 = vsel %vm253, %v299, 0.0
  %v319 = vadd.f32 %v317, %v318
  %v320 = vsel %vm253, %v300, 0.0
  %v321 = vadd.f32 %v319, %v320
  %v322 = vsel %vm253, %v301, 0.0
  %v323 = vadd.f32 %v321, %v322
  %v324 = vsel %vm253, %v302, 0.0
  %v325 = vadd.f32 %v323, %v324
  %v326 = vsel %vm253, %v303, 0.0
  %v327 = vadd.f32 %v325, %v326
  %v328 = vsel %vm253, %v304, 0.0
  %v329 = vadd.f32 %v327, %v328
  %v330 = vsel %vm253, %v305, 0.0
  %v331 = vadd.f32 %v329, %v330
  %v332 = vsel %vm253, %v306, 0.0
  %v333 = vadd.f32 %v331, %v332
  %v334 = vsel %vm253, %v307, 0.0
  %v335 = vadd.f32 %v333, %v334
  %v336 = vsel %vm253, %v308, 0.0
  %v337 = vadd.f32 %v335, %v336
  %v338 = vsel %vm253, %v309, 0.0
  %v339 = vadd.f32 %v337, %v338
  %v340 = vsel %vm253, %v310, 0.0
  %v341 = vadd.f32 %v339, %v340
  %v342 = vrot.slane %v341, 4
  %v343 = vadd.f32 %v341, %v342
  %v344 = vrot.slane %v343, 2
  %v345 = vadd.f32 %v343, %v344
  %v346 = vrot.slane %v345, 1
  %v347 = vadd.f32 %v345, %v346
  %v348 = vadd.f32 %v294, %v347
  %349 = vst.msk [vmem:[%s5] sm:$0x1] %vm292, %v348
  %s350 = sadd.s32 0, 0
  %s351 = smul.u32 16, %s350
  %p352 = scmp.lt.s32.totalorder %s351, 15
  %s353 = scalar_select %p352, %s351, 15
  %s354 = smul.addr %s353, 4
  %s355 = scalar_lea.vmem %s3, %s354
  // Predicated region
  $region18: #{pointnet_encoder_forward.19} parent=0 // pred_check
    _
  $region19: #{pointnet_encoder_forward.19} parent=0 // pred_check_branch
    %357 = sbr.rel (0) target = $region21
  $region20: #{pointnet_encoder_forward.19} parent=0 // pred_region
    %s358 = sadd.s32 0, 0
    %s359 = smul.u32 16, %s358
  $region21: #{pointnet_encoder_forward.19} parent=0 // pred_fallthru
    _
  // Predicated region
  $region22: #{pointnet_encoder_forward.19} parent=0 // pred_check
    _
  $region23: #{pointnet_encoder_forward.19} parent=0 // pred_check_branch
    %361 = sbr.rel (0) target = $region25
  $region24: #{pointnet_encoder_forward.19} parent=0 // pred_region
    _
  $region25: #{pointnet_encoder_forward.19} parent=0 // pred_fallthru
    _
  // Predicated region
  $region26: #{pointnet_encoder_forward.19} parent=0 // pred_check
    _
  $region27: #{pointnet_encoder_forward.19} parent=0 // pred_check_branch
    %363 = sbr.rel (0) target = $region29
  $region28: #{pointnet_encoder_forward.19} parent=0 // pred_region
    _
  $region29: #{pointnet_encoder_forward.19} parent=0 // pred_fallthru
    _
  // Predicated region
  $region30: #{pointnet_encoder_forward.19} parent=0 // pred_check
    _
  $region31: #{pointnet_encoder_forward.19} parent=0 // pred_check_branch
    %365 = sbr.rel (0) target = $region33
  $region32: #{pointnet_encoder_forward.19} parent=0 // pred_region
    %s366 = sadd.s32 0, 0
    %s367 = smul.u32 16, %s366
    %p368 = scmp.lt.s32.totalorder %s367, 15
    %s369 = scalar_select %p368, %s367, 15
    %s370 = smul.addr %s369, 4
    %s371 = scalar_lea.vmem %s3, %s370
  $region33: #{pointnet_encoder_forward.19} parent=0 // pred_fallthru
    _
  // Predicated region
  $region34: #{pointnet_encoder_forward.19} parent=0 // pred_check
    _
  $region35: #{pointnet_encoder_forward.19} parent=0 // pred_check_branch
    %373 = sbr.rel (0) target = $region37
  $region36: #{pointnet_encoder_forward.19} parent=0 // pred_region
    _
  $region37: #{pointnet_encoder_forward.19} parent=0 // pred_fallthru
    _
  // Predicated region
  $region38: #{pointnet_encoder_forward.19} parent=0 // pred_check
    _
  $region39: #{pointnet_encoder_forward.19} parent=0 // pred_check_branch
    %375 = sbr.rel (0) target = $region41
  $region40: #{pointnet_encoder_forward.19} parent=0 // pred_region
    _
  $region41: #{pointnet_encoder_forward.19} parent=0 // pred_fallthru
    _

// kernel: pointnet_encoder_forward.21
$region0: #{pointnet_encoder_forward.21}
  #allocation0 [shape = 'u32[]', space=smem, size = 0x4, offset = 0x4, fixed_abs, tag = 'smem constant byte address 0x4 - core index']
  #allocation1 [shape = 'u32[72,128]{1,0:T(1,128)}', space=vmem, size = 0x9000, scoped, tag = 'internal scratch']
  %s0 = inlined_call_operand.vmem [shape: bf16[128,8], index: 0, kind: input, shape index: {}]
  %s1 = inlined_call_operand.vmem [shape: bf16[8,64], index: 1, kind: input, shape index: {}]
  %s2 = inlined_call_operand.vmem [shape: f32[1,64], index: 2, kind: input, shape index: {}]
  %s3 = inlined_call_operand.vmem [shape: bf16[128,64], index: 3, kind: output, shape index: {0}]
  %s4 = inlined_call_operand.vmem [shape: f32[1,1,64], index: 4, kind: output, shape index: {1}]
  %s5 = inlined_call_operand.vmem [shape: f32[1,1,64], index: 5, kind: output, shape index: {2}]
  %6 = xla_tuple %s3, %s4, %s5
  %s7 = sld [smem:[#allocation0]]
  $region42: #{pointnet_encoder_forward.21} parent=0
    _
  %s9 = ssub.s32 1, %s7
  %s10 = scalar_select 0, %s9, %s7
  // Predicated region
  $region2: #{pointnet_encoder_forward.21} parent=0 // pred_check
    _
  $region3: #{pointnet_encoder_forward.21} parent=0 // pred_check_branch
    %12 = sbr.rel (0) target = $region5
  $region4: #{pointnet_encoder_forward.21} parent=0 // pred_region
    %s13 = sadd.s32 0, 0
    %s14 = smul.u32 16, %s13
    %p15 = scmp.lt.s32.totalorder %s14, 15
    %s16 = scalar_select %p15, %s14, 15
    %s17 = smul.addr %s16, 4
    %s18 = scalar_lea.vmem %s0, %s17
    %s19 = sadd.s32 0, 0
    %s20 = smul.u32 16, %s19
  $region5: #{pointnet_encoder_forward.21} parent=0 // pred_fallthru
    _
  // Predicated region
  $region6: #{pointnet_encoder_forward.21} parent=0 // pred_check
    _
  $region7: #{pointnet_encoder_forward.21} parent=0 // pred_check_branch
    %22 = sbr.rel (0) target = $region9
  $region8: #{pointnet_encoder_forward.21} parent=0 // pred_region
    _
  $region9: #{pointnet_encoder_forward.21} parent=0 // pred_fallthru
    _
  // Predicated region
  $region10: #{pointnet_encoder_forward.21} parent=0 // pred_check
    _
  $region11: #{pointnet_encoder_forward.21} parent=0 // pred_check_branch
    %24 = sbr.rel (0) target = $region13
  $region12: #{pointnet_encoder_forward.21} parent=0 // pred_region
    _
  $region13: #{pointnet_encoder_forward.21} parent=0 // pred_fallthru
    _
  %s25 = sadd.s32 0, 0
  %s26 = smul.u32 16, %s25
  %p27 = scmp.lt.s32.totalorder %s26, 15
  %s28 = scalar_select %p27, %s26, 15
  %s29 = smul.addr %s28, 4
  %s30 = scalar_lea.vmem %s0, %s29
  %s31 = sadd.s32 0, 0
  %s32 = smul.u32 16, %s31
  %p33 = scmp.lt.s32.totalorder %s32, 15
  %s34 = scalar_select %p33, %s32, 15
  %s35 = smul.addr %s34, 4
  %s36 = scalar_lea.vmem %s3, %s35
  %s37 = sadd.s32 0, 0
  %s38 = smul.u32 16, %s37
  %p39 = scmp.lt.s32.totalorder %s38, 15
  %s40 = scalar_select %p39, %s38, 15
  %s41 = smul.addr %s40, 4
  %s42 = scalar_lea.vmem %s0, %s41
  %s43 = sadd.s32 0, 0
  %s44 = smul.u32 16, %s43
  %s45 = sadd.s32 0, 0
  %s46 = smul.u32 16, %s45
  %p47 = scmp.lt.s32.totalorder %s46, 15
  %s48 = scalar_select %p47, %s46, 15
  %s49 = smul.addr %s48, 4
  %s50 = scalar_lea.vmem %s3, %s49
  %s51 = sadd.s32 0, 0
  %s52 = smul.u32 16, %s51
  %v54 = vld [vmem:[%s42] sm:$0xf]
  %v55 = vld [vmem:[%s42 + $0x4] sm:$0xf]
  %v56 = vld [vmem:[%s42 + $0x8] sm:$0xf]
  %v57 = vld [vmem:[%s42 + $0xc] sm:$0xf]
  %v58 = vld [vmem:[%s42 + $0x10] sm:$0xf]
  %v59 = vld [vmem:[%s42 + $0x14] sm:$0xf]
  %v60 = vld [vmem:[%s42 + $0x18] sm:$0xf]
  %v61 = vld [vmem:[%s42 + $0x1c] sm:$0xf]
  %v62 = vld [vmem:[%s42 + $0x20] sm:$0xf]
  %v63 = vld [vmem:[%s42 + $0x24] sm:$0xf]
  %v64 = vld [vmem:[%s42 + $0x28] sm:$0xf]
  %v65 = vld [vmem:[%s42 + $0x2c] sm:$0xf]
  %v66 = vld [vmem:[%s42 + $0x30] sm:$0xf]
  %v67 = vld [vmem:[%s42 + $0x34] sm:$0xf]
  %v68 = vld [vmem:[%s42 + $0x38] sm:$0xf]
  %v69 = vld [vmem:[%s42 + $0x3c] sm:$0xf]
  %v70 = vld [vmem:[%s1] sm:$0xf]
  %v71 = vld [vmem:[%s2] sm:$0x1]
  %v73 = vperm.slane %v71, 0
  %v91 = vunpack.c.l.b16 %v54
  %v92 = vunpack.c.l.b16 %v55
  %v93 = vunpack.c.l.b16 %v56
  %v94 = vunpack.c.l.b16 %v57
  %v95 = vunpack.c.l.b16 %v58
  %v96 = vunpack.c.l.b16 %v59
  %v97 = vunpack.c.l.b16 %v60
  %v98 = vunpack.c.l.b16 %v61
  %v99 = vunpack.c.l.b16 %v62
  %v100 = vunpack.c.l.b16 %v63
  %v101 = vunpack.c.l.b16 %v64
  %v102 = vunpack.c.l.b16 %v65
  %v103 = vunpack.c.l.b16 %v66
  %v104 = vunpack.c.l.b16 %v67
  %v105 = vunpack.c.l.b16 %v68
  %v106 = vunpack.c.l.b16 %v69
  %v107 = vpack.c.b16 %v92, %v91
  %v108 = vpack.c.b16 %v94, %v93
  %v109 = vpack.c.b16 %v96, %v95
  %v110 = vpack.c.b16 %v98, %v97
  %v111 = vpack.c.b16 %v100, %v99
  %v112 = vpack.c.b16 %v102, %v101
  %v113 = vpack.c.b16 %v104, %v103
  %v114 = vpack.c.b16 %v106, %v105
  %vm115 = vcmask 64512
  %v117 = vsel %vm115, %v107, 0
  %v120 = vsel %vm115, %v108, 0
  %v123 = vsel %vm115, %v109, 0
  %v126 = vsel %vm115, %v110, 0
  %v129 = vsel %vm115, %v111, 0
  %v132 = vsel %vm115, %v112, 0
  %v135 = vsel %vm115, %v113, 0
  %v138 = vsel %vm115, %v114, 0
  %vm140 = vcmask 1043456
  %v142 = vsel %vm140, %v70, 0
  %144 = vmatpush.bf16.msra.mxu0 0
  %145 = vmatpush.bf16.msra.mxu0 0
  %146 = vmatpush.bf16.msra.mxu0 0
  %147 = vmatpush.bf16.msra.mxu0 0
  %148 = vmatpush.bf16.msra.mxu0 0
  %149 = vmatpush.bf16.msra.mxu0 0
  %150 = vmatpush.bf16.msra.mxu0 0
  %151 = vmatpush.bf16.msra.mxu0 %v142
  %152 = vmatmul.bf16.gmra.mxu0 %v117
  %v153 = vpop.f32.mrf.mxu0
  %v154 = vadd.f32 %v73, %v153
  %v155 = vpop.f32.mrf.mxu0
  %v156 = vadd.f32 %v73, %v155
  %157 = vmatmul.bf16.gmra.mxu0 %v120
  %v158 = vpop.f32.mrf.mxu0
  %v159 = vadd.f32 %v73, %v158
  %v160 = vpop.f32.mrf.mxu0
  %v161 = vadd.f32 %v73, %v160
  %162 = vmatmul.bf16.gmra.mxu0 %v123
  %v163 = vpop.f32.mrf.mxu0
  %v164 = vadd.f32 %v73, %v163
  %v165 = vpop.f32.mrf.mxu0
  %v166 = vadd.f32 %v73, %v165
  %167 = vmatmul.bf16.gmra.mxu0 %v126
  %v168 = vpop.f32.mrf.mxu0
  %v169 = vadd.f32 %v73, %v168
  %v170 = vpop.f32.mrf.mxu0
  %v171 = vadd.f32 %v73, %v170
  %172 = vmatmul.bf16.gmra.mxu0 %v129
  %v173 = vpop.f32.mrf.mxu0
  %v174 = vadd.f32 %v73, %v173
  %v175 = vpop.f32.mrf.mxu0
  %v176 = vadd.f32 %v73, %v175
  %177 = vmatmul.bf16.gmra.mxu0 %v132
  %v178 = vpop.f32.mrf.mxu0
  %v179 = vadd.f32 %v73, %v178
  %v180 = vpop.f32.mrf.mxu0
  %v181 = vadd.f32 %v73, %v180
  %182 = vmatmul.bf16.gmra.mxu0 %v135
  %v183 = vpop.f32.mrf.mxu0
  %v184 = vadd.f32 %v73, %v183
  %v185 = vpop.f32.mrf.mxu0
  %v186 = vadd.f32 %v73, %v185
  %187 = vmatmul.bf16.gmra.mxu0 %v138
  %v188 = vpop.f32.mrf.mxu0
  %v189 = vadd.f32 %v73, %v188
  %v190 = vpop.f32.mrf.mxu0
  %v191 = vadd.f32 %v73, %v190
  %192 = vdwg.mxu0
  %v193 = vmax.f32 %v154, 0.0
  %v194 = vmax.f32 %v156, 0.0
  %v195 = vmax.f32 %v159, 0.0
  %v196 = vmax.f32 %v161, 0.0
  %v197 = vmax.f32 %v164, 0.0
  %v198 = vmax.f32 %v166, 0.0
  %v199 = vmax.f32 %v169, 0.0
  %v200 = vmax.f32 %v171, 0.0
  %v201 = vmax.f32 %v174, 0.0
  %v202 = vmax.f32 %v176, 0.0
  %v203 = vmax.f32 %v179, 0.0
  %v204 = vmax.f32 %v181, 0.0
  %v205 = vmax.f32 %v184, 0.0
  %v206 = vmax.f32 %v186, 0.0
  %v207 = vmax.f32 %v189, 0.0
  %v208 = vmax.f32 %v191, 0.0
  %v209 = vpack.c.bf16 %v193, %v193
  %v210 = vpack.c.bf16 %v194, %v194
  %v211 = vpack.c.bf16 %v195, %v195
  %v212 = vpack.c.bf16 %v196, %v196
  %v213 = vpack.c.bf16 %v197, %v197
  %v214 = vpack.c.bf16 %v198, %v198
  %v215 = vpack.c.bf16 %v199, %v199
  %v216 = vpack.c.bf16 %v200, %v200
  %v217 = vpack.c.bf16 %v201, %v201
  %v218 = vpack.c.bf16 %v202, %v202
  %v219 = vpack.c.bf16 %v203, %v203
  %v220 = vpack.c.bf16 %v204, %v204
  %v221 = vpack.c.bf16 %v205, %v205
  %v222 = vpack.c.bf16 %v206, %v206
  %v223 = vpack.c.bf16 %v207, %v207
  %v224 = vpack.c.bf16 %v208, %v208
  %vm225 = vcmask 519168
  %226 = vst.msk [vmem:[%s50] sm:$0xf] %vm225, %v209
  %227 = vst.msk [vmem:[%s50 + $0x4] sm:$0xf] %vm225, %v210
  %228 = vst.msk [vmem:[%s50 + $0x8] sm:$0xf] %vm225, %v211
  %229 = vst.msk [vmem:[%s50 + $0xc] sm:$0xf] %vm225, %v212
  %230 = vst.msk [vmem:[%s50 + $0x10] sm:$0xf] %vm225, %v213
  %231 = vst.msk [vmem:[%s50 + $0x14] sm:$0xf] %vm225, %v214
  %232 = vst.msk [vmem:[%s50 + $0x18] sm:$0xf] %vm225, %v215
  %233 = vst.msk [vmem:[%s50 + $0x1c] sm:$0xf] %vm225, %v216
  %234 = vst.msk [vmem:[%s50 + $0x20] sm:$0xf] %vm225, %v217
  %235 = vst.msk [vmem:[%s50 + $0x24] sm:$0xf] %vm225, %v218
  %236 = vst.msk [vmem:[%s50 + $0x28] sm:$0xf] %vm225, %v219
  %237 = vst.msk [vmem:[%s50 + $0x2c] sm:$0xf] %vm225, %v220
  %238 = vst.msk [vmem:[%s50 + $0x30] sm:$0xf] %vm225, %v221
  %239 = vst.msk [vmem:[%s50 + $0x34] sm:$0xf] %vm225, %v222
  %240 = vst.msk [vmem:[%s50 + $0x38] sm:$0xf] %vm225, %v223
  %241 = vst.msk [vmem:[%s50 + $0x3c] sm:$0xf] %vm225, %v224
  %p242 = scmp.eq.s32.totalorder 0, 0
  // Predicated region
  $region14: #{pointnet_encoder_forward.21} parent=0 // pred_check
    %p243 = pneg %p242
  $region15: #{pointnet_encoder_forward.21} parent=0 // pred_check_branch
    %245 = sbr.rel (%p243) target = $region17
  $region16: #{pointnet_encoder_forward.21} parent=0 // pred_region
    %vm246 = vcmask 516096
    %247 = vst.msk [vmem:[%s4] sm:$0x1] %vm246, 0.0
    %248 = vst.msk [vmem:[%s5] sm:$0x1] %vm246, 0.0
  $region17: #{pointnet_encoder_forward.21} parent=0 // pred_fallthru
    _
  %v249 = vld [vmem:[%s4] sm:$0x1]
  %vm250 = vcmask 523264
  %v251 = vsel %vm250, %v193, 0.0
  %v252 = vsel %vm250, %v194, 0.0
  %v253 = vadd.f32 %v251, %v252
  %v254 = vsel %vm250, %v195, 0.0
  %v255 = vadd.f32 %v253, %v254
  %v256 = vsel %vm250, %v196, 0.0
  %v257 = vadd.f32 %v255, %v256
  %v258 = vsel %vm250, %v197, 0.0
  %v259 = vadd.f32 %v257, %v258
  %v260 = vsel %vm250, %v198, 0.0
  %v261 = vadd.f32 %v259, %v260
  %v262 = vsel %vm250, %v199, 0.0
  %v263 = vadd.f32 %v261, %v262
  %v264 = vsel %vm250, %v200, 0.0
  %v265 = vadd.f32 %v263, %v264
  %v266 = vsel %vm250, %v201, 0.0
  %v267 = vadd.f32 %v265, %v266
  %v268 = vsel %vm250, %v202, 0.0
  %v269 = vadd.f32 %v267, %v268
  %v270 = vsel %vm250, %v203, 0.0
  %v271 = vadd.f32 %v269, %v270
  %v272 = vsel %vm250, %v204, 0.0
  %v273 = vadd.f32 %v271, %v272
  %v274 = vsel %vm250, %v205, 0.0
  %v275 = vadd.f32 %v273, %v274
  %v276 = vsel %vm250, %v206, 0.0
  %v277 = vadd.f32 %v275, %v276
  %v278 = vsel %vm250, %v207, 0.0
  %v279 = vadd.f32 %v277, %v278
  %v280 = vsel %vm250, %v208, 0.0
  %v281 = vadd.f32 %v279, %v280
  %v282 = vrot.slane %v281, 4
  %v283 = vadd.f32 %v281, %v282
  %v284 = vrot.slane %v283, 2
  %v285 = vadd.f32 %v283, %v284
  %v286 = vrot.slane %v285, 1
  %v287 = vadd.f32 %v285, %v286
  %v288 = vadd.f32 %v249, %v287
  %vm289 = vcmask 516096
  %290 = vst.msk [vmem:[%s4] sm:$0x1] %vm289, %v288
  %v291 = vld [vmem:[%s5] sm:$0x1]
  %v292 = vmul.f32 %v193, %v193
  %v293 = vmul.f32 %v194, %v194
  %v294 = vmul.f32 %v195, %v195
  %v295 = vmul.f32 %v196, %v196
  %v296 = vmul.f32 %v197, %v197
  %v297 = vmul.f32 %v198, %v198
  %v298 = vmul.f32 %v199, %v199
  %v299 = vmul.f32 %v200, %v200
  %v300 = vmul.f32 %v201, %v201
  %v301 = vmul.f32 %v202, %v202
  %v302 = vmul.f32 %v203, %v203
  %v303 = vmul.f32 %v204, %v204
  %v304 = vmul.f32 %v205, %v205
  %v305 = vmul.f32 %v206, %v206
  %v306 = vmul.f32 %v207, %v207
  %v307 = vmul.f32 %v208, %v208
  %v308 = vsel %vm250, %v292, 0.0
  %v309 = vsel %vm250, %v293, 0.0
  %v310 = vadd.f32 %v308, %v309
  %v311 = vsel %vm250, %v294, 0.0
  %v312 = vadd.f32 %v310, %v311
  %v313 = vsel %vm250, %v295, 0.0
  %v314 = vadd.f32 %v312, %v313
  %v315 = vsel %vm250, %v296, 0.0
  %v316 = vadd.f32 %v314, %v315
  %v317 = vsel %vm250, %v297, 0.0
  %v318 = vadd.f32 %v316, %v317
  %v319 = vsel %vm250, %v298, 0.0
  %v320 = vadd.f32 %v318, %v319
  %v321 = vsel %vm250, %v299, 0.0
  %v322 = vadd.f32 %v320, %v321
  %v323 = vsel %vm250, %v300, 0.0
  %v324 = vadd.f32 %v322, %v323
  %v325 = vsel %vm250, %v301, 0.0
  %v326 = vadd.f32 %v324, %v325
  %v327 = vsel %vm250, %v302, 0.0
  %v328 = vadd.f32 %v326, %v327
  %v329 = vsel %vm250, %v303, 0.0
  %v330 = vadd.f32 %v328, %v329
  %v331 = vsel %vm250, %v304, 0.0
  %v332 = vadd.f32 %v330, %v331
  %v333 = vsel %vm250, %v305, 0.0
  %v334 = vadd.f32 %v332, %v333
  %v335 = vsel %vm250, %v306, 0.0
  %v336 = vadd.f32 %v334, %v335
  %v337 = vsel %vm250, %v307, 0.0
  %v338 = vadd.f32 %v336, %v337
  %v339 = vrot.slane %v338, 4
  %v340 = vadd.f32 %v338, %v339
  %v341 = vrot.slane %v340, 2
  %v342 = vadd.f32 %v340, %v341
  %v343 = vrot.slane %v342, 1
  %v344 = vadd.f32 %v342, %v343
  %v345 = vadd.f32 %v291, %v344
  %346 = vst.msk [vmem:[%s5] sm:$0x1] %vm289, %v345
  %s347 = sadd.s32 0, 0
  %s348 = smul.u32 16, %s347
  %p349 = scmp.lt.s32.totalorder %s348, 15
  %s350 = scalar_select %p349, %s348, 15
  %s351 = smul.addr %s350, 4
  %s352 = scalar_lea.vmem %s3, %s351
  // Predicated region
  $region18: #{pointnet_encoder_forward.21} parent=0 // pred_check
    _
  $region19: #{pointnet_encoder_forward.21} parent=0 // pred_check_branch
    %354 = sbr.rel (0) target = $region21
  $region20: #{pointnet_encoder_forward.21} parent=0 // pred_region
    %s355 = sadd.s32 0, 0
    %s356 = smul.u32 16, %s355
  $region21: #{pointnet_encoder_forward.21} parent=0 // pred_fallthru
    _
  // Predicated region
  $region22: #{pointnet_encoder_forward.21} parent=0 // pred_check
    _
  $region23: #{pointnet_encoder_forward.21} parent=0 // pred_check_branch
    %358 = sbr.rel (0) target = $region25
  $region24: #{pointnet_encoder_forward.21} parent=0 // pred_region
    _
  $region25: #{pointnet_encoder_forward.21} parent=0 // pred_fallthru
    _
  // Predicated region
  $region26: #{pointnet_encoder_forward.21} parent=0 // pred_check
    _
  $region27: #{pointnet_encoder_forward.21} parent=0 // pred_check_branch
    %360 = sbr.rel (0) target = $region29
  $region28: #{pointnet_encoder_forward.21} parent=0 // pred_region
    _
  $region29: #{pointnet_encoder_forward.21} parent=0 // pred_fallthru
    _
  // Predicated region
  $region30: #{pointnet_encoder_forward.21} parent=0 // pred_check
    _
  $region31: #{pointnet_encoder_forward.21} parent=0 // pred_check_branch
    %362 = sbr.rel (0) target = $region33
  $region32: #{pointnet_encoder_forward.21} parent=0 // pred_region
    %s363 = sadd.s32 0, 0
    %s364 = smul.u32 16, %s363
    %p365 = scmp.lt.s32.totalorder %s364, 15
    %s366 = scalar_select %p365, %s364, 15
    %s367 = smul.addr %s366, 4
    %s368 = scalar_lea.vmem %s3, %s367
  $region33: #{pointnet_encoder_forward.21} parent=0 // pred_fallthru
    _
  // Predicated region
  $region34: #{pointnet_encoder_forward.21} parent=0 // pred_check
    _
  $region35: #{pointnet_encoder_forward.21} parent=0 // pred_check_branch
    %370 = sbr.rel (0) target = $region37
  $region36: #{pointnet_encoder_forward.21} parent=0 // pred_region
    _
  $region37: #{pointnet_encoder_forward.21} parent=0 // pred_fallthru
    _
  // Predicated region
  $region38: #{pointnet_encoder_forward.21} parent=0 // pred_check
    _
  $region39: #{pointnet_encoder_forward.21} parent=0 // pred_check_branch
    %372 = sbr.rel (0) target = $region41
  $region40: #{pointnet_encoder_forward.21} parent=0 // pred_region
    _
  $region41: #{pointnet_encoder_forward.21} parent=0 // pred_fallthru
    _

// kernel: pointnet_encoder_forward.24
$region0: #{pointnet_encoder_forward.24}
  #allocation0 [shape = 'u32[]', space=smem, size = 0x4, offset = 0x4, fixed_abs, tag = 'smem constant byte address 0x4 - core index']
  #allocation1 [shape = 'u32[72,128]{1,0:T(1,128)}', space=vmem, size = 0x9000, scoped, tag = 'internal scratch']
  %s0 = inlined_call_operand.vmem [shape: f32[2,256], index: 0, kind: input, shape index: {}]
  %s1 = inlined_call_operand.vmem [shape: f32[256,128], index: 1, kind: input, shape index: {}]
  %s2 = inlined_call_operand.vmem [shape: f32[1,128], index: 2, kind: input, shape index: {}]
  %s3 = inlined_call_operand.vmem [shape: f32[128,64], index: 3, kind: input, shape index: {}]
  %s4 = inlined_call_operand.vmem [shape: f32[1,64], index: 4, kind: input, shape index: {}]
  %s5 = inlined_call_operand.vmem [shape: f32[64,64], index: 5, kind: input, shape index: {}]
  %s6 = inlined_call_operand.vmem [shape: f32[1,64], index: 6, kind: input, shape index: {}]
  %s7 = inlined_call_operand.vmem [shape: f32[2,64], index: 7, kind: output, shape index: {}]
  %s8 = sld [smem:[#allocation0]]
  $region38: #{pointnet_encoder_forward.24} parent=0
    _
  %s10 = ssub.s32 1, %s8
  %s11 = scalar_select 0, %s10, %s8
  // Predicated region
  $region2: #{pointnet_encoder_forward.24} parent=0 // pred_check
    _
  $region3: #{pointnet_encoder_forward.24} parent=0 // pred_check_branch
    %13 = sbr.rel (0) target = $region5
  $region4: #{pointnet_encoder_forward.24} parent=0 // pred_region
    _
  $region5: #{pointnet_encoder_forward.24} parent=0 // pred_fallthru
    _
  // Predicated region
  $region6: #{pointnet_encoder_forward.24} parent=0 // pred_check
    _
  $region7: #{pointnet_encoder_forward.24} parent=0 // pred_check_branch
    %15 = sbr.rel (0) target = $region9
  $region8: #{pointnet_encoder_forward.24} parent=0 // pred_region
    _
  $region9: #{pointnet_encoder_forward.24} parent=0 // pred_fallthru
    _
  // Predicated region
  $region10: #{pointnet_encoder_forward.24} parent=0 // pred_check
    _
  $region11: #{pointnet_encoder_forward.24} parent=0 // pred_check_branch
    %17 = sbr.rel (0) target = $region13
  $region12: #{pointnet_encoder_forward.24} parent=0 // pred_region
    _
  $region13: #{pointnet_encoder_forward.24} parent=0 // pred_fallthru
    _
  // Predicated region
  $region14: #{pointnet_encoder_forward.24} parent=0 // pred_check
    _
  $region15: #{pointnet_encoder_forward.24} parent=0 // pred_check_branch
    %19 = sbr.rel (0) target = $region17
  $region16: #{pointnet_encoder_forward.24} parent=0 // pred_region
    _
  $region17: #{pointnet_encoder_forward.24} parent=0 // pred_fallthru
    _
  // Predicated region
  $region18: #{pointnet_encoder_forward.24} parent=0 // pred_check
    _
  $region19: #{pointnet_encoder_forward.24} parent=0 // pred_check_branch
    %21 = sbr.rel (0) target = $region21
  $region20: #{pointnet_encoder_forward.24} parent=0 // pred_region
    _
  $region21: #{pointnet_encoder_forward.24} parent=0 // pred_fallthru
    _
  // Predicated region
  $region22: #{pointnet_encoder_forward.24} parent=0 // pred_check
    _
  $region23: #{pointnet_encoder_forward.24} parent=0 // pred_check_branch
    %23 = sbr.rel (0) target = $region25
  $region24: #{pointnet_encoder_forward.24} parent=0 // pred_region
    _
  $region25: #{pointnet_encoder_forward.24} parent=0 // pred_fallthru
    _
  // Predicated region
  $region26: #{pointnet_encoder_forward.24} parent=0 // pred_check
    _
  $region27: #{pointnet_encoder_forward.24} parent=0 // pred_check_branch
    %25 = sbr.rel (0) target = $region29
  $region28: #{pointnet_encoder_forward.24} parent=0 // pred_region
    _
  $region29: #{pointnet_encoder_forward.24} parent=0 // pred_fallthru
    _
  %v26 = vld [vmem:[%s0] sm:$0xf]
  %v27 = vld [vmem:[%s1] sm:$0xff]
  %v28 = vld [vmem:[%s1 + $0x8] sm:$0xff]
  %v29 = vld [vmem:[%s1 + $0x10] sm:$0xff]
  %v30 = vld [vmem:[%s1 + $0x18] sm:$0xff]
  %v31 = vld [vmem:[%s1 + $0x20] sm:$0xff]
  %v32 = vld [vmem:[%s1 + $0x28] sm:$0xff]
  %v33 = vld [vmem:[%s1 + $0x30] sm:$0xff]
  %v34 = vld [vmem:[%s1 + $0x38] sm:$0xff]
  %v35 = vld [vmem:[%s1 + $0x40] sm:$0xff]
  %v36 = vld [vmem:[%s1 + $0x48] sm:$0xff]
  %v37 = vld [vmem:[%s1 + $0x50] sm:$0xff]
  %v38 = vld [vmem:[%s1 + $0x58] sm:$0xff]
  %v39 = vld [vmem:[%s1 + $0x60] sm:$0xff]
  %v40 = vld [vmem:[%s1 + $0x68] sm:$0xff]
  %v41 = vld [vmem:[%s1 + $0x70] sm:$0xff]
  %v42 = vld [vmem:[%s1 + $0x78] sm:$0xff]
  %v43 = vld [vmem:[%s1 + $0x80] sm:$0xff]
  %v44 = vld [vmem:[%s1 + $0x88] sm:$0xff]
  %v45 = vld [vmem:[%s1 + $0x90] sm:$0xff]
  %v46 = vld [vmem:[%s1 + $0x98] sm:$0xff]
  %v47 = vld [vmem:[%s1 + $0xa0] sm:$0xff]
  %v48 = vld [vmem:[%s1 + $0xa8] sm:$0xff]
  %v49 = vld [vmem:[%s1 + $0xb0] sm:$0xff]
  %v50 = vld [vmem:[%s1 + $0xb8] sm:$0xff]
  %v51 = vld [vmem:[%s1 + $0xc0] sm:$0xff]
  %v52 = vld [vmem:[%s1 + $0xc8] sm:$0xff]
  %v53 = vld [vmem:[%s1 + $0xd0] sm:$0xff]
  %v54 = vld [vmem:[%s1 + $0xd8] sm:$0xff]
  %v55 = vld [vmem:[%s1 + $0xe0] sm:$0xff]
  %v56 = vld [vmem:[%s1 + $0xe8] sm:$0xff]
  %v57 = vld [vmem:[%s1 + $0xf0] sm:$0xff]
  %v58 = vld [vmem:[%s1 + $0xf8] sm:$0xff]
  %v59 = vld [vmem:[%s2] sm:$0x1]
  %v61 = vperm.slane %v59, 0
  %64 = vst [vmem:[#allocation1] ss:$4 sm:$0xff] %v26
  %v65 = vld.sshfl [vmem:[#allocation1] sm:$0xff pattern:$0x73625140]
  %v66 = vld.sshfl [vmem:[#allocation1 + $0x8] sm:$0xff pattern:$0x73625140]
  %69 = vmatpush.msra.mxu0 %v42
  %70 = vmatpush.msra.mxu0 %v41
  %71 = vmatpush.msra.mxu0 %v40
  %72 = vmatpush.msra.mxu0 %v39
  %73 = vmatpush.msra.mxu0 %v38
  %74 = vmatpush.msra.mxu0 %v37
  %75 = vmatpush.msra.mxu0 %v36
  %76 = vmatpush.msra.mxu0 %v35
  %77 = vmatpush.msra.mxu0 %v34
  %78 = vmatpush.msra.mxu0 %v33
  %79 = vmatpush.msra.mxu0 %v32
  %80 = vmatpush.msra.mxu0 %v31
  %81 = vmatpush.msra.mxu0 %v30
  %82 = vmatpush.msra.mxu0 %v29
  %83 = vmatpush.msra.mxu0 %v28
  %84 = vmatpush.msra.mxu0 %v27
  %85 = vmatmul.f32.gmra.mxu0 %v65
  %v86 = vpop.f32.mrf.mxu0
  %v87 = vadd.f32 %v61, %v86
  %88 = vdwg.mxu0
  %89 = vmatpush.msra.mxu0 %v58
  %90 = vmatpush.msra.mxu0 %v57
  %91 = vmatpush.msra.mxu0 %v56
  %92 = vmatpush.msra.mxu0 %v55
  %93 = vmatpush.msra.mxu0 %v54
  %94 = vmatpush.msra.mxu0 %v53
  %95 = vmatpush.msra.mxu0 %v52
  %96 = vmatpush.msra.mxu0 %v51
  %97 = vmatpush.msra.mxu0 %v50
  %98 = vmatpush.msra.mxu0 %v49
  %99 = vmatpush.msra.mxu0 %v48
  %100 = vmatpush.msra.mxu0 %v47
  %101 = vmatpush.msra.mxu0 %v46
  %102 = vmatpush.msra.mxu0 %v45
  %103 = vmatpush.msra.mxu0 %v44
  %104 = vmatpush.msra.mxu0 %v43
  %105 = vmatmul.f32.gmra.mxu0 %v66
  %v106 = vpop.f32.mrf.mxu0
  %v107 = vadd.f32 %v87, %v106
  %108 = vdwg.mxu0
  %v109 = vmax.f32 %v107, 0.0
  %vm110 = vcmask 1041408
  %v111 = vsel %vm110, %v109, 0.0
  %v112 = vrot.slane %v111, 4
  %v113 = vadd.f32 %v111, %v112
  %v114 = vrot.slane %v113, 2
  %v115 = vadd.f32 %v113, %v114
  %v116 = vrot.slane %v115, 1
  %v117 = vadd.f32 %v115, %v116
  %v118 = vrcp.pop 2.0
  %v119 = vmul.f32 2.0, %v118
  %v120 = vsub.f32 1.0, %v119
  %v121 = vmul.f32 %v118, %v120
  %v122 = vadd.f32 %v118, %v121
  %vm123 = vweird.f32 %v118
  %v124 = vsel %vm123, %v118, %v122
  %v125 = vmul.f32 %v117, %v124
  %v126 = vsub.f32 %v109, %v125
  %v127 = vmul.f32 %v126, %v126
  %v128 = vsel %vm110, %v127, 0.0
  %v129 = vrot.slane %v128, 4
  %v130 = vadd.f32 %v128, %v129
  %v131 = vrot.slane %v130, 2
  %v132 = vadd.f32 %v130, %v131
  %v133 = vrot.slane %v132, 1
  %v134 = vadd.f32 %v132, %v133
  %v135 = vmul.f32 %v134, %v124
  %v136 = vadd.f32 %v135, 1e-05
  %v137 = vrsqrt.pop %v136
  %v138 = vmul.f32 %v137, %v136
  %v139 = vmul.f32 %v138, %v137
  %v140 = vmul.f32 0.5, %v139
  %v141 = vsub.f32 1.5, %v140
  %v142 = vmul.f32 %v137, %v141
  %vm143 = vweird.f32 %v136
  %vm144 = vweird.f32 %v137
  %vm145 = vmor %vm143, %vm144
  %v146 = vsel %vm145, %v137, %v142
  %v147 = vmul.f32 %v126, %v146
  %v148 = vld [vmem:[%s3] sm:$0xff]
  %v149 = vld [vmem:[%s3 + $0x8] sm:$0xff]
  %v150 = vld [vmem:[%s3 + $0x10] sm:$0xff]
  %v151 = vld [vmem:[%s3 + $0x18] sm:$0xff]
  %v152 = vld [vmem:[%s3 + $0x20] sm:$0xff]
  %v153 = vld [vmem:[%s3 + $0x28] sm:$0xff]
  %v154 = vld [vmem:[%s3 + $0x30] sm:$0xff]
  %v155 = vld [vmem:[%s3 + $0x38] sm:$0xff]
  %v156 = vld [vmem:[%s3 + $0x40] sm:$0xff]
  %v157 = vld [vmem:[%s3 + $0x48] sm:$0xff]
  %v158 = vld [vmem:[%s3 + $0x50] sm:$0xff]
  %v159 = vld [vmem:[%s3 + $0x58] sm:$0xff]
  %v160 = vld [vmem:[%s3 + $0x60] sm:$0xff]
  %v161 = vld [vmem:[%s3 + $0x68] sm:$0xff]
  %v162 = vld [vmem:[%s3 + $0x70] sm:$0xff]
  %v163 = vld [vmem:[%s3 + $0x78] sm:$0xff]
  %v164 = vld [vmem:[%s4] sm:$0x1]
  %v166 = vperm.slane %v164, 0
  %168 = vmatpush.msra.mxu0 %v163
  %169 = vmatpush.msra.mxu0 %v162
  %170 = vmatpush.msra.mxu0 %v161
  %171 = vmatpush.msra.mxu0 %v160
  %172 = vmatpush.msra.mxu0 %v159
  %173 = vmatpush.msra.mxu0 %v158
  %174 = vmatpush.msra.mxu0 %v157
  %175 = vmatpush.msra.mxu0 %v156
  %176 = vmatpush.msra.mxu0 %v155
  %177 = vmatpush.msra.mxu0 %v154
  %178 = vmatpush.msra.mxu0 %v153
  %179 = vmatpush.msra.mxu0 %v152
  %180 = vmatpush.msra.mxu0 %v151
  %181 = vmatpush.msra.mxu0 %v150
  %182 = vmatpush.msra.mxu0 %v149
  %183 = vmatpush.msra.mxu0 %v148
  %184 = vmatmul.f32.gmra.mxu0 %v147
  %v185 = vpop.f32.mrf.mxu0
  %v186 = vadd.f32 %v166, %v185
  %187 = vdwg.mxu0
  %v188 = vmax.f32 %v186, 0.0
  %vm189 = vcmask 517120
  %v190 = vsel %vm189, %v188, 0.0
  %v191 = vrot.slane %v190, 4
  %v192 = vadd.f32 %v190, %v191
  %v193 = vrot.slane %v192, 2
  %v194 = vadd.f32 %v192, %v193
  %v195 = vrot.slane %v194, 1
  %v196 = vadd.f32 %v194, %v195
  %v197 = vmul.f32 %v196, %v124
  %v198 = vsub.f32 %v188, %v197
  %v199 = vmul.f32 %v198, %v198
  %v200 = vsel %vm189, %v199, 0.0
  %v201 = vrot.slane %v200, 4
  %v202 = vadd.f32 %v200, %v201
  %v203 = vrot.slane %v202, 2
  %v204 = vadd.f32 %v202, %v203
  %v205 = vrot.slane %v204, 1
  %v206 = vadd.f32 %v204, %v205
  %v207 = vmul.f32 %v206, %v124
  %v208 = vadd.f32 %v207, 1e-05
  %v209 = vrsqrt.pop %v208
  %v210 = vmul.f32 %v209, %v208
  %v211 = vmul.f32 %v210, %v209
  %v212 = vmul.f32 0.5, %v211
  %v213 = vsub.f32 1.5, %v212
  %v214 = vmul.f32 %v209, %v213
  %vm215 = vweird.f32 %v208
  %vm216 = vweird.f32 %v209
  %vm217 = vmor %vm215, %vm216
  %v218 = vsel %vm217, %v209, %v214
  %v219 = vmul.f32 %v198, %v218
  %v220 = vld [vmem:[%s5] sm:$0xff]
  %v221 = vld [vmem:[%s5 + $0x8] sm:$0xff]
  %v222 = vld [vmem:[%s5 + $0x10] sm:$0xff]
  %v223 = vld [vmem:[%s5 + $0x18] sm:$0xff]
  %v224 = vld [vmem:[%s5 + $0x20] sm:$0xff]
  %v225 = vld [vmem:[%s5 + $0x28] sm:$0xff]
  %v226 = vld [vmem:[%s5 + $0x30] sm:$0xff]
  %v227 = vld [vmem:[%s5 + $0x38] sm:$0xff]
  %v228 = vld [vmem:[%s6] sm:$0x1]
  %v230 = vperm.slane %v228, 0
  %vm232 = vcmask 523264
  %v234 = vsel %vm232, %v219, 0
  %236 = vmatpush.msra.mxu0 0.0
  %237 = vmatpush.msra.mxu0 0.0
  %238 = vmatpush.msra.mxu0 0.0
  %239 = vmatpush.msra.mxu0 0.0
  %240 = vmatpush.msra.mxu0 0.0
  %241 = vmatpush.msra.mxu0 0.0
  %242 = vmatpush.msra.mxu0 0.0
  %243 = vmatpush.msra.mxu0 0.0
  %244 = vmatpush.msra.mxu0 %v227
  %245 = vmatpush.msra.mxu0 %v226
  %246 = vmatpush.msra.mxu0 %v225
  %247 = vmatpush.msra.mxu0 %v224
  %248 = vmatpush.msra.mxu0 %v223
  %249 = vmatpush.msra.mxu0 %v222
  %250 = vmatpush.msra.mxu0 %v221
  %251 = vmatpush.msra.mxu0 %v220
  %252 = vmatmul.f32.gmra.mxu0 %v234
  %v253 = vpop.f32.mrf.mxu0
  %v254 = vadd.f32 %v230, %v253
  %255 = vdwg.mxu0
  %256 = vst.msk [vmem:[%s7] sm:$0x3] %vm189, %v254
  // Predicated region
  $region30: #{pointnet_encoder_forward.24} parent=0 // pred_check
    _
  $region31: #{pointnet_encoder_forward.24} parent=0 // pred_check_branch
    %258 = sbr.rel (0) target = $region33
  $region32: #{pointnet_encoder_forward.24} parent=0 // pred_region
    _
  $region33: #{pointnet_encoder_forward.24} parent=0 // pred_fallthru
    _
  // Predicated region
  $region34: #{pointnet_encoder_forward.24} parent=0 // pred_check
    _
  $region35: #{pointnet_encoder_forward.24} parent=0 // pred_check_branch
    %260 = sbr.rel (0) target = $region37
  $region36: #{pointnet_encoder_forward.24} parent=0 // pred_region
    _
  $region37: #{pointnet_encoder_forward.24} parent=0 // pred_fallthru
    _

// kernel: pointnet_encoder_forward.25
$region0: #{pointnet_encoder_forward.25}
  #allocation0 [shape = 'u32[]', space=smem, size = 0x4, offset = 0x4, fixed_abs, tag = 'smem constant byte address 0x4 - core index']
  #allocation1 [shape = 'u32[72,128]{1,0:T(1,128)}', space=vmem, size = 0x9000, scoped, tag = 'internal scratch']
  %s0 = inlined_call_operand.vmem [shape: bf16[2,64,8], index: 0, kind: input, shape index: {}]
  %s1 = inlined_call_operand.vmem [shape: f32[2,8,8], index: 1, kind: input, shape index: {}]
  %s2 = inlined_call_operand.vmem [shape: f32[1,8], index: 2, kind: input, shape index: {}]
  %s3 = inlined_call_operand.vmem [shape: f32[1,8], index: 3, kind: input, shape index: {}]
  %s4 = inlined_call_operand.vmem [shape: bf16[2,64,8], index: 4, kind: output, shape index: {}]
  %s5 = sld [smem:[#allocation0]]
  $region49: #{pointnet_encoder_forward.25} parent=0
    _
  %s7 = ssub.s32 1, %s5
  %s8 = scalar_select 0, %s7, %s5
  loop: start=0, step=1, limit=4
  $region2: #{pointnet_encoder_forward.25} parent=0 // loop_pre_header
    _
  $region3: #{pointnet_encoder_forward.25} parent=0 // loop_header
    %s10 = sphi 0, %s14
    %p11 = scmp.ge.s32.totalorder %s10, 4
    %s17 = sphi 0, %s29
    %s18 = sphi 0, %s25
    %s19 = sphi 0, %s17
    %s20 = sphi 0, %s18
    %s21 = sphi 0, %s19
    %s22 = sphi 0, %s20
    %s34 = sphi 0, %s36
    %s37 = sphi 0, %s34
    %s38 = sphi 0, %s37
    %s54 = sphi 0, %s38
    %s60 = sphi 0, %s62
    %s63 = sphi 0, %s60
    %s64 = sphi 0, %s63
    %s80 = sphi 0, %s64
    %s84 = sphi 0, %s84
    %s86 = sphi 0, %s84
    %s87 = sphi 0, %s86
    %s101 = sphi 0, %s87
    %s105 = sphi 0, %s105
    %s107 = sphi 0, %s105
    %s108 = sphi 0, %s107
    %s122 = sphi 0, %s108
    %s130 = sphi 0, %s132
    %s133 = sphi 0, %s130
    %s134 = sphi 0, %s133
    %s150 = sphi 0, %s134
  $region4: #{pointnet_encoder_forward.25} parent=0 // loop_header_branch
    %13 = sbr.rel (%p11) target = $region8
  $region5: #{pointnet_encoder_forward.25} parent=0 // loop_body
    %s15 = ssub.s32 %s10, 1
    %s16 = ssub.s32 %s10, 2
    %s23 = sadd.s32 1, %s18
    %p24 = scmp.ge.s32.totalorder %s23, 1
    %s25 = scalar_select %p24, 0, %s23
    %s26 = sadd.s32 1, %s17
    %s27 = scalar_select %p24, %s26, %s17
    %p28 = scmp.ge.s32.totalorder %s27, 2
    %s29 = scalar_select %p28, 0, %s27
    %s30 = ssub.s32 %s17, %s29
    %s31 = ssub.s32 %s18, %s25
    %s32 = sor.u32 %s30, %s31
    %p33 = scmp.eq.s32.totalorder %s32, 0
    %s35 = sadd.s32 %s34, 1
    %s36 = scalar_select %p33, %s34, %s35
    %p39 = pneg %p33
    %p40 = scmp.eq.s32.totalorder %s10, 1
    %p41 = por %p39, %p40
    %p42 = scmp.ne.s32.totalorder %s34, %s37
    %p43 = scmp.eq.s32.totalorder %s10, 0
    %p44 = por %p42, %p43
    %p45 = scmp.ne.s32.totalorder %s34, %s37
    %p46 = scmp.eq.s32.totalorder %s15, 1
    %p47 = por %p45, %p46
    %p48 = scmp.ne.s32.totalorder %s37, %s38
    %p49 = scmp.eq.s32.totalorder %s15, 0
    %p50 = por %p48, %p49
    %p51 = scmp.ne.s32.totalorder %s37, %s38
    %p52 = scmp.eq.s32.totalorder %s16, 1
    %p53 = por %p51, %p52
    %p55 = scmp.ne.s32.totalorder %s38, %s54
    %p56 = scmp.eq.s32.totalorder %s16, 0
    %p57 = por %p55, %p56
    %s58 = ssub.s32 %s17, %s29
    %p59 = scmp.eq.s32.totalorder %s58, 0
    %s61 = sadd.s32 %s60, 1
    %s62 = scalar_select %p59, %s60, %s61
    %p65 = pneg %p59
    %p66 = scmp.eq.s32.totalorder %s10, 1
    %p67 = por %p65, %p66
    %p68 = scmp.ne.s32.totalorder %s60, %s63
    %p69 = scmp.eq.s32.totalorder %s10, 0
    %p70 = por %p68, %p69
    %p71 = scmp.ne.s32.totalorder %s60, %s63
    %p72 = scmp.eq.s32.totalorder %s15, 1
    %p73 = por %p71, %p72
    %p74 = scmp.ne.s32.totalorder %s63, %s64
    %p75 = scmp.eq.s32.totalorder %s15, 0
    %p76 = por %p74, %p75
    %p77 = scmp.ne.s32.totalorder %s63, %s64
    %p78 = scmp.eq.s32.totalorder %s16, 1
    %p79 = por %p77, %p78
    %p81 = scmp.ne.s32.totalorder %s64, %s80
    %p82 = scmp.eq.s32.totalorder %s16, 0
    %p83 = por %p81, %p82
    %s85 = sadd.s32 %s84, 1
    %p88 = scmp.eq.s32.totalorder %s10, 1
    %p89 = scmp.ne.s32.totalorder %s84, %s86
    %p90 = scmp.eq.s32.totalorder %s10, 0
    %p91 = por %p89, %p90
    %p92 = scmp.ne.s32.totalorder %s84, %s86
    %p93 = scmp.eq.s32.totalorder %s15, 1
    %p94 = por %p92, %p93
    %p95 = scmp.ne.s32.totalorder %s86, %s87
    %p96 = scmp.eq.s32.totalorder %s15, 0
    %p97 = por %p95, %p96
    %p98 = scmp.ne.s32.totalorder %s86, %s87
    %p99 = scmp.eq.s32.totalorder %s16, 1
    %p100 = por %p98, %p99
    %p102 = scmp.ne.s32.totalorder %s87, %s101
    %p103 = scmp.eq.s32.totalorder %s16, 0
    %p104 = por %p102, %p103
    %s106 = sadd.s32 %s105, 1
    %p109 = scmp.eq.s32.totalorder %s10, 1
    %p110 = scmp.ne.s32.totalorder %s105, %s107
    %p111 = scmp.eq.s32.totalorder %s10, 0
    %p112 = por %p110, %p111
    %p113 = scmp.ne.s32.totalorder %s105, %s107
    %p114 = scmp.eq.s32.totalorder %s15, 1
    %p115 = por %p113, %p114
    %p116 = scmp.ne.s32.totalorder %s107, %s108
    %p117 = scmp.eq.s32.totalorder %s15, 0
    %p118 = por %p116, %p117
    %p119 = scmp.ne.s32.totalorder %s107, %s108
    %p120 = scmp.eq.s32.totalorder %s16, 1
    %p121 = por %p119, %p120
    %p123 = scmp.ne.s32.totalorder %s108, %s122
    %p124 = scmp.eq.s32.totalorder %s16, 0
    %p125 = por %p123, %p124
    %s126 = ssub.s32 %s17, %s29
    %s127 = ssub.s32 %s18, %s25
    %s128 = sor.u32 %s126, %s127
    %p129 = scmp.eq.s32.totalorder %s128, 0
    %s131 = sadd.s32 %s130, 1
    %s132 = scalar_select %p129, %s130, %s131
    %p135 = pneg %p129
    %p136 = scmp.eq.s32.totalorder %s10, 1
    %p137 = por %p135, %p136
    %p138 = scmp.ne.s32.totalorder %s130, %s133
    %p139 = scmp.eq.s32.totalorder %s10, 0
    %p140 = por %p138, %p139
    %p141 = scmp.ne.s32.totalorder %s130, %s133
    %p142 = scmp.eq.s32.totalorder %s15, 1
    %p143 = por %p141, %p142
    %p144 = scmp.ne.s32.totalorder %s133, %s134
    %p145 = scmp.eq.s32.totalorder %s15, 0
    %p146 = por %p144, %p145
    %p147 = scmp.ne.s32.totalorder %s133, %s134
    %p148 = scmp.eq.s32.totalorder %s16, 1
    %p149 = por %p147, %p148
    %p151 = scmp.ne.s32.totalorder %s134, %s150
    %p152 = scmp.eq.s32.totalorder %s16, 0
    %p153 = por %p151, %p152
    %p154 = scmp.le.s32.totalorder 1, %s10
    %p155 = scmp.lt.s32.totalorder %s10, 3
    %p156 = pnand %p154, %p155
    %p157 = pneg %p156
    // Predicated region
    $region9: #{pointnet_encoder_forward.25} parent=5 // pred_check
      _
    $region10: #{pointnet_encoder_forward.25} parent=5 // pred_check_branch
      %159 = sbr.rel (%p156) target = $region12
    $region11: #{pointnet_encoder_forward.25} parent=5 // pred_region
      %s160 = ssub.s32 %s10, 1
      // Predicated region
      $region13: #{pointnet_encoder_forward.25} parent=11 // pred_check
        %p161 = pneg %p97
      $region14: #{pointnet_encoder_forward.25} parent=11 // pred_check_branch
        %163 = sbr.rel (%p161) target = $region16
      $region15: #{pointnet_encoder_forward.25} parent=11 // pred_region
        _
      $region16: #{pointnet_encoder_forward.25} parent=11 // pred_fallthru
        _
      // Predicated region
      $region17: #{pointnet_encoder_forward.25} parent=11 // pred_check
        %p164 = pneg %p118
      $region18: #{pointnet_encoder_forward.25} parent=11 // pred_check_branch
        %166 = sbr.rel (%p164) target = $region20
      $region19: #{pointnet_encoder_forward.25} parent=11 // pred_region
        _
      $region20: #{pointnet_encoder_forward.25} parent=11 // pred_fallthru
        _
    $region12: #{pointnet_encoder_forward.25} parent=5 // pred_fallthru
      _
    %p167 = scmp.lt.s32.totalorder %s10, 2
    // Predicated region
    $region21: #{pointnet_encoder_forward.25} parent=5 // pred_check
      %p168 = pneg %p167
    $region22: #{pointnet_encoder_forward.25} parent=5 // pred_check_branch
      %170 = sbr.rel (%p168) target = $region24
    $region23: #{pointnet_encoder_forward.25} parent=5 // pred_region
      // Predicated region
      $region25: #{pointnet_encoder_forward.25} parent=23 // pred_check
        %p171 = pneg %p44
      $region26: #{pointnet_encoder_forward.25} parent=23 // pred_check_branch
        %173 = sbr.rel (%p171) target = $region28
      $region27: #{pointnet_encoder_forward.25} parent=23 // pred_region
        %s174 = smul.u32 8, %s18
        %p175 = scmp.lt.s32.totalorder %s17, 1
        %s176 = scalar_select %p175, %s17, 1
        %p177 = scmp.lt.s32.totalorder %s174, 7
        %s178 = scalar_select %p177, %s174, 7
        %s179 = smul.addr %s176, 8
        %s180 = sadd.s32 %s178, %s179
        %s181 = smul.addr %s180, 4
        %s182 = scalar_lea.vmem %s0, %s181
        %s183 = smul.u32 8, %s18
      $region28: #{pointnet_encoder_forward.25} parent=23 // pred_fallthru
        _
      // Predicated region
      $region29: #{pointnet_encoder_forward.25} parent=23 // pred_check
        %p184 = pneg %p70
      $region30: #{pointnet_encoder_forward.25} parent=23 // pred_check_branch
        %186 = sbr.rel (%p184) target = $region32
      $region31: #{pointnet_encoder_forward.25} parent=23 // pred_region
        %p187 = scmp.lt.s32.totalorder %s17, 1
        %s188 = scalar_select %p187, %s17, 1
        %s189 = smul.addr %s188, 8
        %s190 = scalar_lea.vmem %s1, %s189
      $region32: #{pointnet_encoder_forward.25} parent=23 // pred_fallthru
        _
    $region24: #{pointnet_encoder_forward.25} parent=5 // pred_fallthru
      _
    %p191 = scmp.le.s32.totalorder 1, %s10
    %p192 = scmp.lt.s32.totalorder %s10, 3
    %p193 = pnand %p191, %p192
    %p194 = pneg %p193
    // Predicated region
    $region33: #{pointnet_encoder_forward.25} parent=5 // pred_check
      _
    $region34: #{pointnet_encoder_forward.25} parent=5 // pred_check_branch
      %196 = sbr.rel (%p193) target = $region36
    $region35: #{pointnet_encoder_forward.25} parent=5 // pred_region
      %s197 = ssub.s32 %s10, 1
      %s198 = smul.u32 8, %s20
      %p199 = scmp.lt.s32.totalorder %s19, 1
      %s200 = scalar_select %p199, %s19, 1
      %p201 = scmp.lt.s32.totalorder %s198, 7
      %s202 = scalar_select %p201, %s198, 7
      %s203 = smul.addr %s200, 8
      %s204 = sadd.s32 %s202, %s203
      %s205 = smul.addr %s204, 4
      %s206 = scalar_lea.vmem %s0, %s205
      %p207 = pneg %p50
      %p208 = pneg %p47
      %p209 = scmp.lt.s32.totalorder %s19, 1
      %s210 = scalar_select %p209, %s19, 1
      %s211 = smul.addr %s210, 8
      %s212 = scalar_lea.vmem %s1, %s211
      %p213 = pneg %p76
      %p214 = pneg %p73
      %p215 = pneg %p97
      %p216 = pneg %p94
      %p217 = pneg %p118
      %p218 = pneg %p115
      %p219 = pneg %p146
      %p220 = pneg %p143
      %s221 = smul.u32 8, %s20
      %p222 = scmp.lt.s32.totalorder %s19, 1
      %s223 = scalar_select %p222, %s19, 1
      %p224 = scmp.lt.s32.totalorder %s221, 7
      %s225 = scalar_select %p224, %s221, 7
      %s226 = smul.addr %s223, 8
      %s227 = sadd.s32 %s225, %s226
      %s228 = smul.addr %s227, 4
      %s229 = scalar_lea.vmem %s4, %s228
      %s230 = smul.u32 8, %s20
      %p231 = scmp.lt.s32.totalorder %s19, 1
      %s232 = scalar_select %p231, %s19, 1
      %p233 = scmp.lt.s32.totalorder %s230, 7
      %s234 = scalar_select %p233, %s230, 7
      %s235 = smul.addr %s232, 8
      %s236 = sadd.s32 %s234, %s235
      %s237 = smul.addr %s236, 4
      %s238 = scalar_lea.vmem %s0, %s237
      %s239 = smul.u32 8, %s20
      %p240 = scmp.lt.s32.totalorder %s19, 1
      %s241 = scalar_select %p240, %s19, 1
      %s242 = smul.addr %s241, 8
      %s243 = scalar_lea.vmem %s1, %s242
      %s244 = smul.u32 8, %s20
      %p245 = scmp.lt.s32.totalorder %s19, 1
      %s246 = scalar_select %p245, %s19, 1
      %p247 = scmp.lt.s32.totalorder %s244, 7
      %s248 = scalar_select %p247, %s244, 7
      %s249 = smul.addr %s246, 8
      %s250 = sadd.s32 %s248, %s249
      %s251 = smul.addr %s250, 4
      %s252 = scalar_lea.vmem %s4, %s251
      %s253 = smul.u32 8, %s20
      %v254 = vld [vmem:[%s238] sm:$0xf]
      %v255 = vld [vmem:[%s238 + $0x4] sm:$0xf]
      %v256 = vld [vmem:[%s238 + $0x8] sm:$0xf]
      %v257 = vld [vmem:[%s238 + $0xc] sm:$0xf]
      %v258 = vld [vmem:[%s238 + $0x10] sm:$0xf]
      %v259 = vld [vmem:[%s238 + $0x14] sm:$0xf]
      %v260 = vld [vmem:[%s238 + $0x18] sm:$0xf]
      %v261 = vld [vmem:[%s238 + $0x1c] sm:$0xf]
      %v262 = vunpack.c.l.bf16 %v254
      %v263 = vunpack.c.l.bf16 %v255
      %v264 = vunpack.c.l.bf16 %v256
      %v265 = vunpack.c.l.bf16 %v257
      %v266 = vunpack.c.l.bf16 %v258
      %v267 = vunpack.c.l.bf16 %v259
      %v268 = vunpack.c.l.bf16 %v260
      %v269 = vunpack.c.l.bf16 %v261
      %v270 = vld [vmem:[%s2] sm:$0x1]
      %v272 = vperm.slane %v270, 0
      %v274 = vsub.f32 %v262, %v272
      %v275 = vsub.f32 %v263, %v272
      %v276 = vsub.f32 %v264, %v272
      %v277 = vsub.f32 %v265, %v272
      %v278 = vsub.f32 %v266, %v272
      %v279 = vsub.f32 %v267, %v272
      %v280 = vsub.f32 %v268, %v272
      %v281 = vsub.f32 %v269, %v272
      %v282 = vld [vmem:[%s3] sm:$0x1]
      %v284 = vperm.slane %v282, 0
      %v286 = vmul.f32 %v274, %v284
      %v287 = vmul.f32 %v275, %v284
      %v288 = vmul.f32 %v276, %v284
      %v289 = vmul.f32 %v277, %v284
      %v290 = vmul.f32 %v278, %v284
      %v291 = vmul.f32 %v279, %v284
      %v292 = vmul.f32 %v280, %v284
      %v293 = vmul.f32 %v281, %v284
      %v294 = vld [vmem:[%s243] sm:$0xff]
      %vm295 = vcmask 64512
      %v297 = vsel %vm295, %v286, 0
      %v300 = vsel %vm295, %v287, 0
      %v303 = vsel %vm295, %v288, 0
      %v306 = vsel %vm295, %v289, 0
      %v309 = vsel %vm295, %v290, 0
      %v312 = vsel %vm295, %v291, 0
      %v315 = vsel %vm295, %v292, 0
      %v318 = vsel %vm295, %v293, 0
      %320 = vmatpush.msra.mxu0 0.0
      %321 = vmatpush.msra.mxu0 0.0
      %322 = vmatpush.msra.mxu0 0.0
      %323 = vmatpush.msra.mxu0 0.0
      %324 = vmatpush.msra.mxu0 0.0
      %325 = vmatpush.msra.mxu0 0.0
      %326 = vmatpush.msra.mxu0 0.0
      %327 = vmatpush.msra.mxu0 0.0
      %328 = vmatpush.msra.mxu0 0.0
      %329 = vmatpush.msra.mxu0 0.0
      %330 = vmatpush.msra.mxu0 0.0
      %331 = vmatpush.msra.mxu0 0.0
      %332 = vmatpush.msra.mxu0 0.0
      %333 = vmatpush.msra.mxu0 0.0
      %334 = vmatpush.msra.mxu0 0.0
      %335 = vmatpush.msra.mxu0 %v294
      %336 = vmatmul.f32.gmra.mxu0 %v297
      %v337 = vpop.f32.mrf.mxu0
      %v338 = vadd.f32 0.0, %v337
      %339 = vmatmul.f32.gmra.mxu0 %v300
      %v340 = vpop.f32.mrf.mxu0
      %v341 = vadd.f32 0.0, %v340
      %342 = vmatmul.f32.gmra.mxu0 %v303
      %v343 = vpop.f32.mrf.mxu0
      %v344 = vadd.f32 0.0, %v343
      %345 = vmatmul.f32.gmra.mxu0 %v306
      %v346 = vpop.f32.mrf.mxu0
      %v347 = vadd.f32 0.0, %v346
      %348 = vmatmul.f32.gmra.mxu0 %v309
      %v349 = vpop.f32.mrf.mxu0
      %v350 = vadd.f32 0.0, %v349
      %351 = vmatmul.f32.gmra.mxu0 %v312
      %v352 = vpop.f32.mrf.mxu0
      %v353 = vadd.f32 0.0, %v352
      %354 = vmatmul.f32.gmra.mxu0 %v315
      %v355 = vpop.f32.mrf.mxu0
      %v356 = vadd.f32 0.0, %v355
      %357 = vmatmul.f32.gmra.mxu0 %v318
      %v358 = vpop.f32.mrf.mxu0
      %v359 = vadd.f32 0.0, %v358
      %360 = vdwg.mxu0
      %v361 = vpack.c.bf16 %v338, %v338
      %v362 = vpack.c.bf16 %v341, %v341
      %v363 = vpack.c.bf16 %v344, %v344
      %v364 = vpack.c.bf16 %v347, %v347
      %v365 = vpack.c.bf16 %v350, %v350
      %v366 = vpack.c.bf16 %v353, %v353
      %v367 = vpack.c.bf16 %v356, %v356
      %v368 = vpack.c.bf16 %v359, %v359
      %vm369 = vcmask 60416
      %370 = vst.msk [vmem:[%s252] sm:$0xf] %vm369, %v361
      %371 = vst.msk [vmem:[%s252 + $0x4] sm:$0xf] %vm369, %v362
      %372 = vst.msk [vmem:[%s252 + $0x8] sm:$0xf] %vm369, %v363
      %373 = vst.msk [vmem:[%s252 + $0xc] sm:$0xf] %vm369, %v364
      %374 = vst.msk [vmem:[%s252 + $0x10] sm:$0xf] %vm369, %v365
      %375 = vst.msk [vmem:[%s252 + $0x14] sm:$0xf] %vm369, %v366
      %376 = vst.msk [vmem:[%s252 + $0x18] sm:$0xf] %vm369, %v367
      %377 = vst.msk [vmem:[%s252 + $0x1c] sm:$0xf] %vm369, %v368
      %s378 = smul.u32 8, %s20
      %p379 = scmp.lt.s32.totalorder %s19, 1
      %s380 = scalar_select %p379, %s19, 1
      %p381 = scmp.lt.s32.totalorder %s378, 7
      %s382 = scalar_select %p381, %s378, 7
      %s383 = smul.addr %s380, 8
      %s384 = sadd.s32 %s382, %s383
      %s385 = smul.addr %s384, 4
      %s386 = scalar_lea.vmem %s4, %s385
      // Predicated region
      $region37: #{pointnet_encoder_forward.25} parent=35 // pred_check
        %p387 = pneg %p143
      $region38: #{pointnet_encoder_forward.25} parent=35 // pred_check_branch
        %389 = sbr.rel (%p387) target = $region40
      $region39: #{pointnet_encoder_forward.25} parent=35 // pred_region
        %s390 = smul.u32 8, %s20
      $region40: #{pointnet_encoder_forward.25} parent=35 // pred_fallthru
        _
    $region36: #{pointnet_encoder_forward.25} parent=5 // pred_fallthru
      _
    %p391 = scmp.le.s32.totalorder 2, %s10
    // Predicated region
    $region41: #{pointnet_encoder_forward.25} parent=5 // pred_check
      %p392 = pneg %p391
    $region42: #{pointnet_encoder_forward.25} parent=5 // pred_check_branch
      %394 = sbr.rel (%p392) target = $region44
    $region43: #{pointnet_encoder_forward.25} parent=5 // pred_region
      %s395 = ssub.s32 %s10, 2
      // Predicated region
      $region45: #{pointnet_encoder_forward.25} parent=43 // pred_check
        %p396 = pneg %p149
      $region46: #{pointnet_encoder_forward.25} parent=43 // pred_check_branch
        %398 = sbr.rel (%p396) target = $region48
      $region47: #{pointnet_encoder_forward.25} parent=43 // pred_region
        %s399 = smul.u32 8, %s22
        %p400 = scmp.lt.s32.totalorder %s21, 1
        %s401 = scalar_select %p400, %s21, 1
        %p402 = scmp.lt.s32.totalorder %s399, 7
        %s403 = scalar_select %p402, %s399, 7
        %s404 = smul.addr %s401, 8
        %s405 = sadd.s32 %s403, %s404
        %s406 = smul.addr %s405, 4
        %s407 = scalar_lea.vmem %s4, %s406
      $region48: #{pointnet_encoder_forward.25} parent=43 // pred_fallthru
        _
    $region44: #{pointnet_encoder_forward.25} parent=5 // pred_fallthru
      _
  $region6: #{pointnet_encoder_forward.25} parent=0 // loop_footer
    %s14 = sadd.s32 1, %s10
  $region7: #{pointnet_encoder_forward.25} parent=0 // loop_footer_branch
    %9 = sbr.rel target = $region3
  $region8: #{pointnet_encoder_forward.25} parent=0 // loop_exit
    _

// kernel: pointnet_encoder_forward.26
$region0: #{pointnet_encoder_forward.26}
  #allocation0 [shape = 'u32[]', space=smem, size = 0x4, offset = 0x4, fixed_abs, tag = 'smem constant byte address 0x4 - core index']
  #allocation1 [shape = 'u32[72,128]{1,0:T(1,128)}', space=vmem, size = 0x9000, scoped, tag = 'internal scratch']
  %s0 = inlined_call_operand.vmem [shape: bf16[128,8], index: 0, kind: input, shape index: {}]
  %s1 = inlined_call_operand.vmem [shape: bf16[8,16], index: 1, kind: input, shape index: {}]
  %s2 = inlined_call_operand.vmem [shape: f32[1,16], index: 2, kind: input, shape index: {}]
  %s3 = inlined_call_operand.vmem [shape: bf16[128,16], index: 3, kind: output, shape index: {0}]
  %s4 = inlined_call_operand.vmem [shape: f32[1,1,16], index: 4, kind: output, shape index: {1}]
  %s5 = inlined_call_operand.vmem [shape: f32[1,1,16], index: 5, kind: output, shape index: {2}]
  %6 = xla_tuple %s3, %s4, %s5
  %s7 = sld [smem:[#allocation0]]
  $region42: #{pointnet_encoder_forward.26} parent=0
    _
  %s9 = ssub.s32 1, %s7
  %s10 = scalar_select 0, %s9, %s7
  // Predicated region
  $region2: #{pointnet_encoder_forward.26} parent=0 // pred_check
    _
  $region3: #{pointnet_encoder_forward.26} parent=0 // pred_check_branch
    %12 = sbr.rel (0) target = $region5
  $region4: #{pointnet_encoder_forward.26} parent=0 // pred_region
    %s13 = sadd.s32 0, 0
    %s14 = smul.u32 16, %s13
    %p15 = scmp.lt.s32.totalorder %s14, 15
    %s16 = scalar_select %p15, %s14, 15
    %s17 = smul.addr %s16, 4
    %s18 = scalar_lea.vmem %s0, %s17
    %s19 = sadd.s32 0, 0
    %s20 = smul.u32 16, %s19
  $region5: #{pointnet_encoder_forward.26} parent=0 // pred_fallthru
    _
  // Predicated region
  $region6: #{pointnet_encoder_forward.26} parent=0 // pred_check
    _
  $region7: #{pointnet_encoder_forward.26} parent=0 // pred_check_branch
    %22 = sbr.rel (0) target = $region9
  $region8: #{pointnet_encoder_forward.26} parent=0 // pred_region
    _
  $region9: #{pointnet_encoder_forward.26} parent=0 // pred_fallthru
    _
  // Predicated region
  $region10: #{pointnet_encoder_forward.26} parent=0 // pred_check
    _
  $region11: #{pointnet_encoder_forward.26} parent=0 // pred_check_branch
    %24 = sbr.rel (0) target = $region13
  $region12: #{pointnet_encoder_forward.26} parent=0 // pred_region
    _
  $region13: #{pointnet_encoder_forward.26} parent=0 // pred_fallthru
    _
  %s25 = sadd.s32 0, 0
  %s26 = smul.u32 16, %s25
  %p27 = scmp.lt.s32.totalorder %s26, 15
  %s28 = scalar_select %p27, %s26, 15
  %s29 = smul.addr %s28, 4
  %s30 = scalar_lea.vmem %s0, %s29
  %s31 = sadd.s32 0, 0
  %s32 = smul.u32 16, %s31
  %p33 = scmp.lt.s32.totalorder %s32, 15
  %s34 = scalar_select %p33, %s32, 15
  %s35 = smul.addr %s34, 4
  %s36 = scalar_lea.vmem %s3, %s35
  %s37 = sadd.s32 0, 0
  %s38 = smul.u32 16, %s37
  %p39 = scmp.lt.s32.totalorder %s38, 15
  %s40 = scalar_select %p39, %s38, 15
  %s41 = smul.addr %s40, 4
  %s42 = scalar_lea.vmem %s0, %s41
  %s43 = sadd.s32 0, 0
  %s44 = smul.u32 16, %s43
  %s45 = sadd.s32 0, 0
  %s46 = smul.u32 16, %s45
  %p47 = scmp.lt.s32.totalorder %s46, 15
  %s48 = scalar_select %p47, %s46, 15
  %s49 = smul.addr %s48, 4
  %s50 = scalar_lea.vmem %s3, %s49
  %s51 = sadd.s32 0, 0
  %s52 = smul.u32 16, %s51
  %v54 = vld [vmem:[%s42] sm:$0xf]
  %v55 = vld [vmem:[%s42 + $0x4] sm:$0xf]
  %v56 = vld [vmem:[%s42 + $0x8] sm:$0xf]
  %v57 = vld [vmem:[%s42 + $0xc] sm:$0xf]
  %v58 = vld [vmem:[%s42 + $0x10] sm:$0xf]
  %v59 = vld [vmem:[%s42 + $0x14] sm:$0xf]
  %v60 = vld [vmem:[%s42 + $0x18] sm:$0xf]
  %v61 = vld [vmem:[%s42 + $0x1c] sm:$0xf]
  %v62 = vld [vmem:[%s42 + $0x20] sm:$0xf]
  %v63 = vld [vmem:[%s42 + $0x24] sm:$0xf]
  %v64 = vld [vmem:[%s42 + $0x28] sm:$0xf]
  %v65 = vld [vmem:[%s42 + $0x2c] sm:$0xf]
  %v66 = vld [vmem:[%s42 + $0x30] sm:$0xf]
  %v67 = vld [vmem:[%s42 + $0x34] sm:$0xf]
  %v68 = vld [vmem:[%s42 + $0x38] sm:$0xf]
  %v69 = vld [vmem:[%s42 + $0x3c] sm:$0xf]
  %v70 = vld [vmem:[%s1] sm:$0xf]
  %v71 = vld [vmem:[%s2] sm:$0x1]
  %v73 = vperm.slane %v71, 0
  %v91 = vunpack.c.l.b16 %v54
  %v92 = vunpack.c.l.b16 %v55
  %v93 = vunpack.c.l.b16 %v56
  %v94 = vunpack.c.l.b16 %v57
  %v95 = vunpack.c.l.b16 %v58
  %v96 = vunpack.c.l.b16 %v59
  %v97 = vunpack.c.l.b16 %v60
  %v98 = vunpack.c.l.b16 %v61
  %v99 = vunpack.c.l.b16 %v62
  %v100 = vunpack.c.l.b16 %v63
  %v101 = vunpack.c.l.b16 %v64
  %v102 = vunpack.c.l.b16 %v65
  %v103 = vunpack.c.l.b16 %v66
  %v104 = vunpack.c.l.b16 %v67
  %v105 = vunpack.c.l.b16 %v68
  %v106 = vunpack.c.l.b16 %v69
  %v107 = vpack.c.b16 %v92, %v91
  %v108 = vpack.c.b16 %v94, %v93
  %v109 = vpack.c.b16 %v96, %v95
  %v110 = vpack.c.b16 %v98, %v97
  %v111 = vpack.c.b16 %v100, %v99
  %v112 = vpack.c.b16 %v102, %v101
  %v113 = vpack.c.b16 %v104, %v103
  %v114 = vpack.c.b16 %v106, %v105
  %vm115 = vcmask 64512
  %v117 = vsel %vm115, %v107, 0
  %v120 = vsel %vm115, %v108, 0
  %v123 = vsel %vm115, %v109, 0
  %v126 = vsel %vm115, %v110, 0
  %v129 = vsel %vm115, %v111, 0
  %v132 = vsel %vm115, %v112, 0
  %v135 = vsel %vm115, %v113, 0
  %v138 = vsel %vm115, %v114, 0
  %vm140 = vcmask 1043456
  %v142 = vsel %vm140, %v70, 0
  %144 = vmatpush.bf16.msra.mxu0 0
  %145 = vmatpush.bf16.msra.mxu0 0
  %146 = vmatpush.bf16.msra.mxu0 0
  %147 = vmatpush.bf16.msra.mxu0 0
  %148 = vmatpush.bf16.msra.mxu0 0
  %149 = vmatpush.bf16.msra.mxu0 0
  %150 = vmatpush.bf16.msra.mxu0 0
  %151 = vmatpush.bf16.msra.mxu0 %v142
  %152 = vmatmul.bf16.gmra.mxu0 %v117
  %v153 = vpop.f32.mrf.mxu0
  %v154 = vadd.f32 %v73, %v153
  %v155 = vpop.f32.mrf.mxu0
  %v156 = vadd.f32 %v73, %v155
  %157 = vmatmul.bf16.gmra.mxu0 %v120
  %v158 = vpop.f32.mrf.mxu0
  %v159 = vadd.f32 %v73, %v158
  %v160 = vpop.f32.mrf.mxu0
  %v161 = vadd.f32 %v73, %v160
  %162 = vmatmul.bf16.gmra.mxu0 %v123
  %v163 = vpop.f32.mrf.mxu0
  %v164 = vadd.f32 %v73, %v163
  %v165 = vpop.f32.mrf.mxu0
  %v166 = vadd.f32 %v73, %v165
  %167 = vmatmul.bf16.gmra.mxu0 %v126
  %v168 = vpop.f32.mrf.mxu0
  %v169 = vadd.f32 %v73, %v168
  %v170 = vpop.f32.mrf.mxu0
  %v171 = vadd.f32 %v73, %v170
  %172 = vmatmul.bf16.gmra.mxu0 %v129
  %v173 = vpop.f32.mrf.mxu0
  %v174 = vadd.f32 %v73, %v173
  %v175 = vpop.f32.mrf.mxu0
  %v176 = vadd.f32 %v73, %v175
  %177 = vmatmul.bf16.gmra.mxu0 %v132
  %v178 = vpop.f32.mrf.mxu0
  %v179 = vadd.f32 %v73, %v178
  %v180 = vpop.f32.mrf.mxu0
  %v181 = vadd.f32 %v73, %v180
  %182 = vmatmul.bf16.gmra.mxu0 %v135
  %v183 = vpop.f32.mrf.mxu0
  %v184 = vadd.f32 %v73, %v183
  %v185 = vpop.f32.mrf.mxu0
  %v186 = vadd.f32 %v73, %v185
  %187 = vmatmul.bf16.gmra.mxu0 %v138
  %v188 = vpop.f32.mrf.mxu0
  %v189 = vadd.f32 %v73, %v188
  %v190 = vpop.f32.mrf.mxu0
  %v191 = vadd.f32 %v73, %v190
  %192 = vdwg.mxu0
  %v193 = vmax.f32 %v154, 0.0
  %v194 = vmax.f32 %v156, 0.0
  %v195 = vmax.f32 %v159, 0.0
  %v196 = vmax.f32 %v161, 0.0
  %v197 = vmax.f32 %v164, 0.0
  %v198 = vmax.f32 %v166, 0.0
  %v199 = vmax.f32 %v169, 0.0
  %v200 = vmax.f32 %v171, 0.0
  %v201 = vmax.f32 %v174, 0.0
  %v202 = vmax.f32 %v176, 0.0
  %v203 = vmax.f32 %v179, 0.0
  %v204 = vmax.f32 %v181, 0.0
  %v205 = vmax.f32 %v184, 0.0
  %v206 = vmax.f32 %v186, 0.0
  %v207 = vmax.f32 %v189, 0.0
  %v208 = vmax.f32 %v191, 0.0
  %v209 = vpack.c.bf16 %v193, %v193
  %v210 = vpack.c.bf16 %v194, %v194
  %v211 = vpack.c.bf16 %v195, %v195
  %v212 = vpack.c.bf16 %v196, %v196
  %v213 = vpack.c.bf16 %v197, %v197
  %v214 = vpack.c.bf16 %v198, %v198
  %v215 = vpack.c.bf16 %v199, %v199
  %v216 = vpack.c.bf16 %v200, %v200
  %v217 = vpack.c.bf16 %v201, %v201
  %v218 = vpack.c.bf16 %v202, %v202
  %v219 = vpack.c.bf16 %v203, %v203
  %v220 = vpack.c.bf16 %v204, %v204
  %v221 = vpack.c.bf16 %v205, %v205
  %v222 = vpack.c.bf16 %v206, %v206
  %v223 = vpack.c.bf16 %v207, %v207
  %v224 = vpack.c.bf16 %v208, %v208
  %vm225 = vcmask 125952
  %226 = vst.msk [vmem:[%s50] sm:$0xf] %vm225, %v209
  %227 = vst.msk [vmem:[%s50 + $0x4] sm:$0xf] %vm225, %v210
  %228 = vst.msk [vmem:[%s50 + $0x8] sm:$0xf] %vm225, %v211
  %229 = vst.msk [vmem:[%s50 + $0xc] sm:$0xf] %vm225, %v212
  %230 = vst.msk [vmem:[%s50 + $0x10] sm:$0xf] %vm225, %v213
  %231 = vst.msk [vmem:[%s50 + $0x14] sm:$0xf] %vm225, %v214
  %232 = vst.msk [vmem:[%s50 + $0x18] sm:$0xf] %vm225, %v215
  %233 = vst.msk [vmem:[%s50 + $0x1c] sm:$0xf] %vm225, %v216
  %234 = vst.msk [vmem:[%s50 + $0x20] sm:$0xf] %vm225, %v217
  %235 = vst.msk [vmem:[%s50 + $0x24] sm:$0xf] %vm225, %v218
  %236 = vst.msk [vmem:[%s50 + $0x28] sm:$0xf] %vm225, %v219
  %237 = vst.msk [vmem:[%s50 + $0x2c] sm:$0xf] %vm225, %v220
  %238 = vst.msk [vmem:[%s50 + $0x30] sm:$0xf] %vm225, %v221
  %239 = vst.msk [vmem:[%s50 + $0x34] sm:$0xf] %vm225, %v222
  %240 = vst.msk [vmem:[%s50 + $0x38] sm:$0xf] %vm225, %v223
  %241 = vst.msk [vmem:[%s50 + $0x3c] sm:$0xf] %vm225, %v224
  %p242 = scmp.eq.s32.totalorder 0, 0
  // Predicated region
  $region14: #{pointnet_encoder_forward.26} parent=0 // pred_check
    %p243 = pneg %p242
  $region15: #{pointnet_encoder_forward.26} parent=0 // pred_check_branch
    %245 = sbr.rel (%p243) target = $region17
  $region16: #{pointnet_encoder_forward.26} parent=0 // pred_region
    %vm246 = vcmask 122880
    %247 = vst.msk [vmem:[%s4] sm:$0x1] %vm246, 0.0
    %248 = vst.msk [vmem:[%s5] sm:$0x1] %vm246, 0.0
  $region17: #{pointnet_encoder_forward.26} parent=0 // pred_fallthru
    _
  %v249 = vld [vmem:[%s4] sm:$0x1]
  %vm250 = vcmask 130048
  %v251 = vsel %vm250, %v193, 0.0
  %v252 = vsel %vm250, %v194, 0.0
  %v253 = vadd.f32 %v251, %v252
  %v254 = vsel %vm250, %v195, 0.0
  %v255 = vadd.f32 %v253, %v254
  %v256 = vsel %vm250, %v196, 0.0
  %v257 = vadd.f32 %v255, %v256
  %v258 = vsel %vm250, %v197, 0.0
  %v259 = vadd.f32 %v257, %v258
  %v260 = vsel %vm250, %v198, 0.0
  %v261 = vadd.f32 %v259, %v260
  %v262 = vsel %vm250, %v199, 0.0
  %v263 = vadd.f32 %v261, %v262
  %v264 = vsel %vm250, %v200, 0.0
  %v265 = vadd.f32 %v263, %v264
  %v266 = vsel %vm250, %v201, 0.0
  %v267 = vadd.f32 %v265, %v266
  %v268 = vsel %vm250, %v202, 0.0
  %v269 = vadd.f32 %v267, %v268
  %v270 = vsel %vm250, %v203, 0.0
  %v271 = vadd.f32 %v269, %v270
  %v272 = vsel %vm250, %v204, 0.0
  %v273 = vadd.f32 %v271, %v272
  %v274 = vsel %vm250, %v205, 0.0
  %v275 = vadd.f32 %v273, %v274
  %v276 = vsel %vm250, %v206, 0.0
  %v277 = vadd.f32 %v275, %v276
  %v278 = vsel %vm250, %v207, 0.0
  %v279 = vadd.f32 %v277, %v278
  %v280 = vsel %vm250, %v208, 0.0
  %v281 = vadd.f32 %v279, %v280
  %v282 = vrot.slane %v281, 4
  %v283 = vadd.f32 %v281, %v282
  %v284 = vrot.slane %v283, 2
  %v285 = vadd.f32 %v283, %v284
  %v286 = vrot.slane %v285, 1
  %v287 = vadd.f32 %v285, %v286
  %v288 = vadd.f32 %v249, %v287
  %vm289 = vcmask 122880
  %290 = vst.msk [vmem:[%s4] sm:$0x1] %vm289, %v288
  %v291 = vld [vmem:[%s5] sm:$0x1]
  %v292 = vmul.f32 %v193, %v193
  %v293 = vmul.f32 %v194, %v194
  %v294 = vmul.f32 %v195, %v195
  %v295 = vmul.f32 %v196, %v196
  %v296 = vmul.f32 %v197, %v197
  %v297 = vmul.f32 %v198, %v198
  %v298 = vmul.f32 %v199, %v199
  %v299 = vmul.f32 %v200, %v200
  %v300 = vmul.f32 %v201, %v201
  %v301 = vmul.f32 %v202, %v202
  %v302 = vmul.f32 %v203, %v203
  %v303 = vmul.f32 %v204, %v204
  %v304 = vmul.f32 %v205, %v205
  %v305 = vmul.f32 %v206, %v206
  %v306 = vmul.f32 %v207, %v207
  %v307 = vmul.f32 %v208, %v208
  %v308 = vsel %vm250, %v292, 0.0
  %v309 = vsel %vm250, %v293, 0.0
  %v310 = vadd.f32 %v308, %v309
  %v311 = vsel %vm250, %v294, 0.0
  %v312 = vadd.f32 %v310, %v311
  %v313 = vsel %vm250, %v295, 0.0
  %v314 = vadd.f32 %v312, %v313
  %v315 = vsel %vm250, %v296, 0.0
  %v316 = vadd.f32 %v314, %v315
  %v317 = vsel %vm250, %v297, 0.0
  %v318 = vadd.f32 %v316, %v317
  %v319 = vsel %vm250, %v298, 0.0
  %v320 = vadd.f32 %v318, %v319
  %v321 = vsel %vm250, %v299, 0.0
  %v322 = vadd.f32 %v320, %v321
  %v323 = vsel %vm250, %v300, 0.0
  %v324 = vadd.f32 %v322, %v323
  %v325 = vsel %vm250, %v301, 0.0
  %v326 = vadd.f32 %v324, %v325
  %v327 = vsel %vm250, %v302, 0.0
  %v328 = vadd.f32 %v326, %v327
  %v329 = vsel %vm250, %v303, 0.0
  %v330 = vadd.f32 %v328, %v329
  %v331 = vsel %vm250, %v304, 0.0
  %v332 = vadd.f32 %v330, %v331
  %v333 = vsel %vm250, %v305, 0.0
  %v334 = vadd.f32 %v332, %v333
  %v335 = vsel %vm250, %v306, 0.0
  %v336 = vadd.f32 %v334, %v335
  %v337 = vsel %vm250, %v307, 0.0
  %v338 = vadd.f32 %v336, %v337
  %v339 = vrot.slane %v338, 4
  %v340 = vadd.f32 %v338, %v339
  %v341 = vrot.slane %v340, 2
  %v342 = vadd.f32 %v340, %v341
  %v343 = vrot.slane %v342, 1
  %v344 = vadd.f32 %v342, %v343
  %v345 = vadd.f32 %v291, %v344
  %346 = vst.msk [vmem:[%s5] sm:$0x1] %vm289, %v345
  %s347 = sadd.s32 0, 0
  %s348 = smul.u32 16, %s347
  %p349 = scmp.lt.s32.totalorder %s348, 15
  %s350 = scalar_select %p349, %s348, 15
  %s351 = smul.addr %s350, 4
  %s352 = scalar_lea.vmem %s3, %s351
  // Predicated region
  $region18: #{pointnet_encoder_forward.26} parent=0 // pred_check
    _
  $region19: #{pointnet_encoder_forward.26} parent=0 // pred_check_branch
    %354 = sbr.rel (0) target = $region21
  $region20: #{pointnet_encoder_forward.26} parent=0 // pred_region
    %s355 = sadd.s32 0, 0
    %s356 = smul.u32 16, %s355
  $region21: #{pointnet_encoder_forward.26} parent=0 // pred_fallthru
    _
  // Predicated region
  $region22: #{pointnet_encoder_forward.26} parent=0 // pred_check
    _
  $region23: #{pointnet_encoder_forward.26} parent=0 // pred_check_branch
    %358 = sbr.rel (0) target = $region25
  $region24: #{pointnet_encoder_forward.26} parent=0 // pred_region
    _
  $region25: #{pointnet_encoder_forward.26} parent=0 // pred_fallthru
    _
  // Predicated region
  $region26: #{pointnet_encoder_forward.26} parent=0 // pred_check
    _
  $region27: #{pointnet_encoder_forward.26} parent=0 // pred_check_branch
    %360 = sbr.rel (0) target = $region29
  $region28: #{pointnet_encoder_forward.26} parent=0 // pred_region
    _
  $region29: #{pointnet_encoder_forward.26} parent=0 // pred_fallthru
    _
  // Predicated region
  $region30: #{pointnet_encoder_forward.26} parent=0 // pred_check
    _
  $region31: #{pointnet_encoder_forward.26} parent=0 // pred_check_branch
    %362 = sbr.rel (0) target = $region33
  $region32: #{pointnet_encoder_forward.26} parent=0 // pred_region
    %s363 = sadd.s32 0, 0
    %s364 = smul.u32 16, %s363
    %p365 = scmp.lt.s32.totalorder %s364, 15
    %s366 = scalar_select %p365, %s364, 15
    %s367 = smul.addr %s366, 4
    %s368 = scalar_lea.vmem %s3, %s367
  $region33: #{pointnet_encoder_forward.26} parent=0 // pred_fallthru
    _
  // Predicated region
  $region34: #{pointnet_encoder_forward.26} parent=0 // pred_check
    _
  $region35: #{pointnet_encoder_forward.26} parent=0 // pred_check_branch
    %370 = sbr.rel (0) target = $region37
  $region36: #{pointnet_encoder_forward.26} parent=0 // pred_region
    _
  $region37: #{pointnet_encoder_forward.26} parent=0 // pred_fallthru
    _
  // Predicated region
  $region38: #{pointnet_encoder_forward.26} parent=0 // pred_check
    _
  $region39: #{pointnet_encoder_forward.26} parent=0 // pred_check_branch
    %372 = sbr.rel (0) target = $region41
  $region40: #{pointnet_encoder_forward.26} parent=0 // pred_region
    _
  $region41: #{pointnet_encoder_forward.26} parent=0 // pred_fallthru
    _

// kernel: pointnet_encoder_forward.27
$region0: #{pointnet_encoder_forward.27}
  #allocation0 [shape = 'u32[]', space=smem, size = 0x4, offset = 0x4, fixed_abs, tag = 'smem constant byte address 0x4 - core index']
  #allocation1 [shape = 'u32[72,128]{1,0:T(1,128)}', space=vmem, size = 0x9000, scoped, tag = 'internal scratch']
  %s0 = inlined_call_operand.vmem [shape: bf16[2,64,16], index: 0, kind: input, shape index: {}]
  %s1 = inlined_call_operand.vmem [shape: bf16[16,32], index: 1, kind: input, shape index: {}]
  %s2 = inlined_call_operand.vmem [shape: f32[1,32], index: 2, kind: input, shape index: {}]
  %s3 = inlined_call_operand.vmem [shape: f32[2,1,32], index: 3, kind: output, shape index: {0}]
  %s4 = inlined_call_operand.vmem [shape: f32[2,1,32], index: 4, kind: output, shape index: {1}]
  %s5 = inlined_call_operand.vmem [shape: f32[2,1,32], index: 5, kind: output, shape index: {2}]
  %6 = xla_tuple %s3, %s4, %s5
  %s7 = sld [smem:[#allocation0]]
  $region65: #{pointnet_encoder_forward.27} parent=0
    _
  %s9 = ssub.s32 1, %s7
  %s10 = scalar_select 0, %s9, %s7
  loop: start=0, step=1, limit=4
  $region2: #{pointnet_encoder_forward.27} parent=0 // loop_pre_header
    _
  $region3: #{pointnet_encoder_forward.27} parent=0 // loop_header
    %s12 = sphi 0, %s16
    %p13 = scmp.ge.s32.totalorder %s12, 4
    %s19 = sphi 0, %s31
    %s20 = sphi 0, %s27
    %s21 = sphi 0, %s19
    %s22 = sphi 0, %s20
    %s23 = sphi 0, %s21
    %s24 = sphi 0, %s22
    %s36 = sphi 0, %s38
    %s39 = sphi 0, %s36
    %s40 = sphi 0, %s39
    %s56 = sphi 0, %s40
    %s60 = sphi 0, %s60
    %s62 = sphi 0, %s60
    %s63 = sphi 0, %s62
    %s77 = sphi 0, %s63
    %s81 = sphi 0, %s81
    %s83 = sphi 0, %s81
    %s84 = sphi 0, %s83
    %s98 = sphi 0, %s84
    %s104 = sphi 0, %s106
    %s107 = sphi 0, %s104
    %s108 = sphi 0, %s107
    %s124 = sphi 0, %s108
    %s130 = sphi 0, %s132
    %s133 = sphi 0, %s130
    %s134 = sphi 0, %s133
    %s150 = sphi 0, %s134
    %s156 = sphi 0, %s158
    %s159 = sphi 0, %s156
    %s160 = sphi 0, %s159
    %s176 = sphi 0, %s160
  $region4: #{pointnet_encoder_forward.27} parent=0 // loop_header_branch
    %15 = sbr.rel (%p13) target = $region8
  $region5: #{pointnet_encoder_forward.27} parent=0 // loop_body
    %s17 = ssub.s32 %s12, 1
    %s18 = ssub.s32 %s12, 2
    %s25 = sadd.s32 1, %s20
    %p26 = scmp.ge.s32.totalorder %s25, 1
    %s27 = scalar_select %p26, 0, %s25
    %s28 = sadd.s32 1, %s19
    %s29 = scalar_select %p26, %s28, %s19
    %p30 = scmp.ge.s32.totalorder %s29, 2
    %s31 = scalar_select %p30, 0, %s29
    %s32 = ssub.s32 %s19, %s31
    %s33 = ssub.s32 %s20, %s27
    %s34 = sor.u32 %s32, %s33
    %p35 = scmp.eq.s32.totalorder %s34, 0
    %s37 = sadd.s32 %s36, 1
    %s38 = scalar_select %p35, %s36, %s37
    %p41 = pneg %p35
    %p42 = scmp.eq.s32.totalorder %s12, 1
    %p43 = por %p41, %p42
    %p44 = scmp.ne.s32.totalorder %s36, %s39
    %p45 = scmp.eq.s32.totalorder %s12, 0
    %p46 = por %p44, %p45
    %p47 = scmp.ne.s32.totalorder %s36, %s39
    %p48 = scmp.eq.s32.totalorder %s17, 1
    %p49 = por %p47, %p48
    %p50 = scmp.ne.s32.totalorder %s39, %s40
    %p51 = scmp.eq.s32.totalorder %s17, 0
    %p52 = por %p50, %p51
    %p53 = scmp.ne.s32.totalorder %s39, %s40
    %p54 = scmp.eq.s32.totalorder %s18, 1
    %p55 = por %p53, %p54
    %p57 = scmp.ne.s32.totalorder %s40, %s56
    %p58 = scmp.eq.s32.totalorder %s18, 0
    %p59 = por %p57, %p58
    %s61 = sadd.s32 %s60, 1
    %p64 = scmp.eq.s32.totalorder %s12, 1
    %p65 = scmp.ne.s32.totalorder %s60, %s62
    %p66 = scmp.eq.s32.totalorder %s12, 0
    %p67 = por %p65, %p66
    %p68 = scmp.ne.s32.totalorder %s60, %s62
    %p69 = scmp.eq.s32.totalorder %s17, 1
    %p70 = por %p68, %p69
    %p71 = scmp.ne.s32.totalorder %s62, %s63
    %p72 = scmp.eq.s32.totalorder %s17, 0
    %p73 = por %p71, %p72
    %p74 = scmp.ne.s32.totalorder %s62, %s63
    %p75 = scmp.eq.s32.totalorder %s18, 1
    %p76 = por %p74, %p75
    %p78 = scmp.ne.s32.totalorder %s63, %s77
    %p79 = scmp.eq.s32.totalorder %s18, 0
    %p80 = por %p78, %p79
    %s82 = sadd.s32 %s81, 1
    %p85 = scmp.eq.s32.totalorder %s12, 1
    %p86 = scmp.ne.s32.totalorder %s81, %s83
    %p87 = scmp.eq.s32.totalorder %s12, 0
    %p88 = por %p86, %p87
    %p89 = scmp.ne.s32.totalorder %s81, %s83
    %p90 = scmp.eq.s32.totalorder %s17, 1
    %p91 = por %p89, %p90
    %p92 = scmp.ne.s32.totalorder %s83, %s84
    %p93 = scmp.eq.s32.totalorder %s17, 0
    %p94 = por %p92, %p93
    %p95 = scmp.ne.s32.totalorder %s83, %s84
    %p96 = scmp.eq.s32.totalorder %s18, 1
    %p97 = por %p95, %p96
    %p99 = scmp.ne.s32.totalorder %s84, %s98
    %p100 = scmp.eq.s32.totalorder %s18, 0
    %p101 = por %p99, %p100
    %s102 = ssub.s32 %s19, %s31
    %p103 = scmp.eq.s32.totalorder %s102, 0
    %s105 = sadd.s32 %s104, 1
    %s106 = scalar_select %p103, %s104, %s105
    %p109 = pneg %p103
    %p110 = scmp.eq.s32.totalorder %s12, 1
    %p111 = por %p109, %p110
    %p112 = scmp.ne.s32.totalorder %s104, %s107
    %p113 = scmp.eq.s32.totalorder %s12, 0
    %p114 = por %p112, %p113
    %p115 = scmp.ne.s32.totalorder %s104, %s107
    %p116 = scmp.eq.s32.totalorder %s17, 1
    %p117 = por %p115, %p116
    %p118 = scmp.ne.s32.totalorder %s107, %s108
    %p119 = scmp.eq.s32.totalorder %s17, 0
    %p120 = por %p118, %p119
    %p121 = scmp.ne.s32.totalorder %s107, %s108
    %p122 = scmp.eq.s32.totalorder %s18, 1
    %p123 = por %p121, %p122
    %p125 = scmp.ne.s32.totalorder %s108, %s124
    %p126 = scmp.eq.s32.totalorder %s18, 0
    %p127 = por %p125, %p126
    %s128 = ssub.s32 %s19, %s31
    %p129 = scmp.eq.s32.totalorder %s128, 0
    %s131 = sadd.s32 %s130, 1
    %s132 = scalar_select %p129, %s130, %s131
    %p135 = pneg %p129
    %p136 = scmp.eq.s32.totalorder %s12, 1
    %p137 = por %p135, %p136
    %p138 = scmp.ne.s32.totalorder %s130, %s133
    %p139 = scmp.eq.s32.totalorder %s12, 0
    %p140 = por %p138, %p139
    %p141 = scmp.ne.s32.totalorder %s130, %s133
    %p142 = scmp.eq.s32.totalorder %s17, 1
    %p143 = por %p141, %p142
    %p144 = scmp.ne.s32.totalorder %s133, %s134
    %p145 = scmp.eq.s32.totalorder %s17, 0
    %p146 = por %p144, %p145
    %p147 = scmp.ne.s32.totalorder %s133, %s134
    %p148 = scmp.eq.s32.totalorder %s18, 1
    %p149 = por %p147, %p148
    %p151 = scmp.ne.s32.totalorder %s134, %s150
    %p152 = scmp.eq.s32.totalorder %s18, 0
    %p153 = por %p151, %p152
    %s154 = ssub.s32 %s19, %s31
    %p155 = scmp.eq.s32.totalorder %s154, 0
    %s157 = sadd.s32 %s156, 1
    %s158 = scalar_select %p155, %s156, %s157
    %p161 = pneg %p155
    %p162 = scmp.eq.s32.totalorder %s12, 1
    %p163 = por %p161, %p162
    %p164 = scmp.ne.s32.totalorder %s156, %s159
    %p165 = scmp.eq.s32.totalorder %s12, 0
    %p166 = por %p164, %p165
    %p167 = scmp.ne.s32.totalorder %s156, %s159
    %p168 = scmp.eq.s32.totalorder %s17, 1
    %p169 = por %p167, %p168
    %p170 = scmp.ne.s32.totalorder %s159, %s160
    %p171 = scmp.eq.s32.totalorder %s17, 0
    %p172 = por %p170, %p171
    %p173 = scmp.ne.s32.totalorder %s159, %s160
    %p174 = scmp.eq.s32.totalorder %s18, 1
    %p175 = por %p173, %p174
    %p177 = scmp.ne.s32.totalorder %s160, %s176
    %p178 = scmp.eq.s32.totalorder %s18, 0
    %p179 = por %p177, %p178
    %p180 = scmp.le.s32.totalorder 1, %s12
    %p181 = scmp.lt.s32.totalorder %s12, 3
    %p182 = pnand %p180, %p181
    %p183 = pneg %p182
    // Predicated region
    $region9: #{pointnet_encoder_forward.27} parent=5 // pred_check
      _
    $region10: #{pointnet_encoder_forward.27} parent=5 // pred_check_branch
      %185 = sbr.rel (%p182) target = $region12
    $region11: #{pointnet_encoder_forward.27} parent=5 // pred_region
      %s186 = ssub.s32 %s12, 1
      // Predicated region
      $region13: #{pointnet_encoder_forward.27} parent=11 // pred_check
        %p187 = pneg %p73
      $region14: #{pointnet_encoder_forward.27} parent=11 // pred_check_branch
        %189 = sbr.rel (%p187) target = $region16
      $region15: #{pointnet_encoder_forward.27} parent=11 // pred_region
        _
      $region16: #{pointnet_encoder_forward.27} parent=11 // pred_fallthru
        _
      // Predicated region
      $region17: #{pointnet_encoder_forward.27} parent=11 // pred_check
        %p190 = pneg %p94
      $region18: #{pointnet_encoder_forward.27} parent=11 // pred_check_branch
        %192 = sbr.rel (%p190) target = $region20
      $region19: #{pointnet_encoder_forward.27} parent=11 // pred_region
        _
      $region20: #{pointnet_encoder_forward.27} parent=11 // pred_fallthru
        _
    $region12: #{pointnet_encoder_forward.27} parent=5 // pred_fallthru
      _
    %p193 = scmp.lt.s32.totalorder %s12, 2
    // Predicated region
    $region21: #{pointnet_encoder_forward.27} parent=5 // pred_check
      %p194 = pneg %p193
    $region22: #{pointnet_encoder_forward.27} parent=5 // pred_check_branch
      %196 = sbr.rel (%p194) target = $region24
    $region23: #{pointnet_encoder_forward.27} parent=5 // pred_region
      // Predicated region
      $region25: #{pointnet_encoder_forward.27} parent=23 // pred_check
        %p197 = pneg %p46
      $region26: #{pointnet_encoder_forward.27} parent=23 // pred_check_branch
        %199 = sbr.rel (%p197) target = $region28
      $region27: #{pointnet_encoder_forward.27} parent=23 // pred_region
        %s200 = smul.u32 8, %s20
        %p201 = scmp.lt.s32.totalorder %s19, 1
        %s202 = scalar_select %p201, %s19, 1
        %p203 = scmp.lt.s32.totalorder %s200, 7
        %s204 = scalar_select %p203, %s200, 7
        %s205 = smul.addr %s202, 8
        %s206 = sadd.s32 %s204, %s205
        %s207 = smul.addr %s206, 4
        %s208 = scalar_lea.vmem %s0, %s207
        %s209 = smul.u32 8, %s20
      $region28: #{pointnet_encoder_forward.27} parent=23 // pred_fallthru
        _
    $region24: #{pointnet_encoder_forward.27} parent=5 // pred_fallthru
      _
    %p210 = scmp.le.s32.totalorder 1, %s12
    %p211 = scmp.lt.s32.totalorder %s12, 3
    %p212 = pnand %p210, %p211
    %p213 = pneg %p212
    // Predicated region
    $region29: #{pointnet_encoder_forward.27} parent=5 // pred_check
      _
    $region30: #{pointnet_encoder_forward.27} parent=5 // pred_check_branch
      %215 = sbr.rel (%p212) target = $region32
    $region31: #{pointnet_encoder_forward.27} parent=5 // pred_region
      %s216 = ssub.s32 %s12, 1
      %s217 = smul.u32 8, %s22
      %p218 = scmp.lt.s32.totalorder %s21, 1
      %s219 = scalar_select %p218, %s21, 1
      %p220 = scmp.lt.s32.totalorder %s217, 7
      %s221 = scalar_select %p220, %s217, 7
      %s222 = smul.addr %s219, 8
      %s223 = sadd.s32 %s221, %s222
      %s224 = smul.addr %s223, 4
      %s225 = scalar_lea.vmem %s0, %s224
      %p226 = pneg %p52
      %p227 = pneg %p49
      %p228 = pneg %p73
      %p229 = pneg %p70
      %p230 = pneg %p94
      %p231 = pneg %p91
      %p232 = pneg %p120
      %p233 = pneg %p117
      %p234 = scmp.lt.s32.totalorder %s21, 1
      %s235 = scalar_select %p234, %s21, 1
      %s236 = scalar_lea.vmem %s3, %s235
      %p237 = pneg %p146
      %p238 = pneg %p143
      %p239 = scmp.lt.s32.totalorder %s21, 1
      %s240 = scalar_select %p239, %s21, 1
      %s241 = scalar_lea.vmem %s4, %s240
      %p242 = pneg %p172
      %p243 = pneg %p169
      %p244 = scmp.lt.s32.totalorder %s21, 1
      %s245 = scalar_select %p244, %s21, 1
      %s246 = scalar_lea.vmem %s5, %s245
      %s247 = smul.u32 8, %s22
      %p248 = scmp.lt.s32.totalorder %s21, 1
      %s249 = scalar_select %p248, %s21, 1
      %p250 = scmp.lt.s32.totalorder %s247, 7
      %s251 = scalar_select %p250, %s247, 7
      %s252 = smul.addr %s249, 8
      %s253 = sadd.s32 %s251, %s252
      %s254 = smul.addr %s253, 4
      %s255 = scalar_lea.vmem %s0, %s254
      %s256 = smul.u32 8, %s22
      %p257 = scmp.lt.s32.totalorder %s21, 1
      %s258 = scalar_select %p257, %s21, 1
      %s259 = scalar_lea.vmem %s3, %s258
      %p260 = scmp.lt.s32.totalorder %s21, 1
      %s261 = scalar_select %p260, %s21, 1
      %s262 = scalar_lea.vmem %s4, %s261
      %p263 = scmp.lt.s32.totalorder %s21, 1
      %s264 = scalar_select %p263, %s21, 1
      %s265 = scalar_lea.vmem %s5, %s264
      %v267 = vld [vmem:[%s255] sm:$0xf]
      %v268 = vld [vmem:[%s255 + $0x4] sm:$0xf]
      %v269 = vld [vmem:[%s255 + $0x8] sm:$0xf]
      %v270 = vld [vmem:[%s255 + $0xc] sm:$0xf]
      %v271 = vld [vmem:[%s255 + $0x10] sm:$0xf]
      %v272 = vld [vmem:[%s255 + $0x14] sm:$0xf]
      %v273 = vld [vmem:[%s255 + $0x18] sm:$0xf]
      %v274 = vld [vmem:[%s255 + $0x1c] sm:$0xf]
      %v275 = vld [vmem:[%s1] sm:$0xf]
      %v276 = vld [vmem:[%s1 + $0x4] sm:$0xf]
      %v277 = vld [vmem:[%s2] sm:$0x1]
      %v279 = vperm.slane %v277, 0
      %v289 = vunpack.c.l.b16 %v267
      %v290 = vunpack.c.l.b16 %v268
      %v291 = vunpack.c.l.b16 %v269
      %v292 = vunpack.c.l.b16 %v270
      %v293 = vunpack.c.l.b16 %v271
      %v294 = vunpack.c.l.b16 %v272
      %v295 = vunpack.c.l.b16 %v273
      %v296 = vunpack.c.l.b16 %v274
      %v297 = vpack.c.b16 %v290, %v289
      %v298 = vpack.c.b16 %v292, %v291
      %v299 = vpack.c.b16 %v294, %v293
      %v300 = vpack.c.b16 %v296, %v295
      %v303 = vunpack.c.l.b16 %v275
      %v304 = vunpack.c.l.b16 %v276
      %v305 = vpack.c.b16 %v304, %v303
      %vm307 = vcmask 130048
      %v309 = vsel %vm307, %v297, 0
      %v312 = vsel %vm307, %v298, 0
      %v315 = vsel %vm307, %v299, 0
      %v318 = vsel %vm307, %v300, 0
      %320 = vmatpush.bf16.msra.mxu0 0
      %321 = vmatpush.bf16.msra.mxu0 0
      %322 = vmatpush.bf16.msra.mxu0 0
      %323 = vmatpush.bf16.msra.mxu0 0
      %324 = vmatpush.bf16.msra.mxu0 0
      %325 = vmatpush.bf16.msra.mxu0 0
      %326 = vmatpush.bf16.msra.mxu0 0
      %327 = vmatpush.bf16.msra.mxu0 %v305
      %328 = vmatmul.bf16.gmra.mxu0 %v309
      %v329 = vpop.f32.mrf.mxu0
      %v330 = vadd.f32 %v279, %v329
      %v331 = vpop.f32.mrf.mxu0
      %v332 = vadd.f32 %v279, %v331
      %333 = vmatmul.bf16.gmra.mxu0 %v312
      %v334 = vpop.f32.mrf.mxu0
      %v335 = vadd.f32 %v279, %v334
      %v336 = vpop.f32.mrf.mxu0
      %v337 = vadd.f32 %v279, %v336
      %338 = vmatmul.bf16.gmra.mxu0 %v315
      %v339 = vpop.f32.mrf.mxu0
      %v340 = vadd.f32 %v279, %v339
      %v341 = vpop.f32.mrf.mxu0
      %v342 = vadd.f32 %v279, %v341
      %343 = vmatmul.bf16.gmra.mxu0 %v318
      %v344 = vpop.f32.mrf.mxu0
      %v345 = vadd.f32 %v279, %v344
      %v346 = vpop.f32.mrf.mxu0
      %v347 = vadd.f32 %v279, %v346
      %348 = vdwg.mxu0
      %v349 = vmax.f32 %v330, 0.0
      %v350 = vmax.f32 %v332, 0.0
      %v351 = vmax.f32 %v335, 0.0
      %v352 = vmax.f32 %v337, 0.0
      %v353 = vmax.f32 %v340, 0.0
      %v354 = vmax.f32 %v342, 0.0
      %v355 = vmax.f32 %v345, 0.0
      %v356 = vmax.f32 %v347, 0.0
      %p357 = scmp.eq.s32.totalorder %s22, 0
      // Predicated region
      $region33: #{pointnet_encoder_forward.27} parent=31 // pred_check
        %p358 = pneg %p357
      $region34: #{pointnet_encoder_forward.27} parent=31 // pred_check_branch
        %360 = sbr.rel (%p358) target = $region36
      $region35: #{pointnet_encoder_forward.27} parent=31 // pred_region
        %vm361 = vcmask 253952
        %362 = vst.msk [vmem:[%s259] sm:$0x1] %vm361, -inf
        %363 = vst.msk [vmem:[%s262] sm:$0x1] %vm361, 0.0
        %364 = vst.msk [vmem:[%s265] sm:$0x1] %vm361, 0.0
      $region36: #{pointnet_encoder_forward.27} parent=31 // pred_fallthru
        _
      %v365 = vld [vmem:[%s259] sm:$0x1]
      %vm366 = vcmask 261120
      %v367 = vsel %vm366, %v349, -inf
      %v368 = vsel %vm366, %v350, -inf
      %v369 = vsel %vm366, %v351, -inf
      %v370 = vsel %vm366, %v352, -inf
      %v371 = vsel %vm366, %v353, -inf
      %v372 = vmax.f32 %v367, %v371
      %v373 = vsel %vm366, %v354, -inf
      %v374 = vmax.f32 %v368, %v373
      %v375 = vsel %vm366, %v355, -inf
      %v376 = vmax.f32 %v369, %v375
      %v377 = vsel %vm366, %v356, -inf
      %v378 = vmax.f32 %v370, %v377
      %v379 = vmax.f32 %v372, %v374
      %v380 = vmax.f32 %v376, %v378
      %v381 = vmax.f32 %v379, %v380
      %v382 = vrot.slane %v381, 4
      %v383 = vmax.f32 %v381, %v382
      %v384 = vrot.slane %v383, 2
      %v385 = vmax.f32 %v383, %v384
      %v386 = vrot.slane %v385, 1
      %v387 = vmax.f32 %v385, %v386
      %v388 = vmax.f32 %v365, %v387
      %vm389 = vcmask 253952
      %390 = vst.msk [vmem:[%s259] sm:$0x1] %vm389, %v388
      %v391 = vld [vmem:[%s262] sm:$0x1]
      %v392 = vsel %vm366, %v349, 0.0
      %v393 = vsel %vm366, %v350, 0.0
      %v394 = vadd.f32 %v392, %v393
      %v395 = vsel %vm366, %v351, 0.0
      %v396 = vadd.f32 %v394, %v395
      %v397 = vsel %vm366, %v352, 0.0
      %v398 = vadd.f32 %v396, %v397
      %v399 = vsel %vm366, %v353, 0.0
      %v400 = vadd.f32 %v398, %v399
      %v401 = vsel %vm366, %v354, 0.0
      %v402 = vadd.f32 %v400, %v401
      %v403 = vsel %vm366, %v355, 0.0
      %v404 = vadd.f32 %v402, %v403
      %v405 = vsel %vm366, %v356, 0.0
      %v406 = vadd.f32 %v404, %v405
      %v407 = vrot.slane %v406, 4
      %v408 = vadd.f32 %v406, %v407
      %v409 = vrot.slane %v408, 2
      %v410 = vadd.f32 %v408, %v409
      %v411 = vrot.slane %v410, 1
      %v412 = vadd.f32 %v410, %v411
      %v413 = vadd.f32 %v391, %v412
      %414 = vst.msk [vmem:[%s262] sm:$0x1] %vm389, %v413
      %v415 = vld [vmem:[%s265] sm:$0x1]
      %v416 = vmul.f32 %v349, %v349
      %v417 = vmul.f32 %v350, %v350
      %v418 = vmul.f32 %v351, %v351
      %v419 = vmul.f32 %v352, %v352
      %v420 = vmul.f32 %v353, %v353
      %v421 = vmul.f32 %v354, %v354
      %v422 = vmul.f32 %v355, %v355
      %v423 = vmul.f32 %v356, %v356
      %v424 = vsel %vm366, %v416, 0.0
      %v425 = vsel %vm366, %v417, 0.0
      %v426 = vadd.f32 %v424, %v425
      %v427 = vsel %vm366, %v418, 0.0
      %v428 = vadd.f32 %v426, %v427
      %v429 = vsel %vm366, %v419, 0.0
      %v430 = vadd.f32 %v428, %v429
      %v431 = vsel %vm366, %v420, 0.0
      %v432 = vadd.f32 %v430, %v431
      %v433 = vsel %vm366, %v421, 0.0
      %v434 = vadd.f32 %v432, %v433
      %v435 = vsel %vm366, %v422, 0.0
      %v436 = vadd.f32 %v434, %v435
      %v437 = vsel %vm366, %v423, 0.0
      %v438 = vadd.f32 %v436, %v437
      %v439 = vrot.slane %v438, 4
      %v440 = vadd.f32 %v438, %v439
      %v441 = vrot.slane %v440, 2
      %v442 = vadd.f32 %v440, %v441
      %v443 = vrot.slane %v442, 1
      %v444 = vadd.f32 %v442, %v443
      %v445 = vadd.f32 %v415, %v444
      %446 = vst.msk [vmem:[%s265] sm:$0x1] %vm389, %v445
      %p447 = scmp.lt.s32.totalorder %s21, 1
      %s448 = scalar_select %p447, %s21, 1
      %s449 = scalar_lea.vmem %s3, %s448
      %p450 = scmp.lt.s32.totalorder %s21, 1
      %s451 = scalar_select %p450, %s21, 1
      %s452 = scalar_lea.vmem %s4, %s451
      %p453 = scmp.lt.s32.totalorder %s21, 1
      %s454 = scalar_select %p453, %s21, 1
      %s455 = scalar_lea.vmem %s5, %s454
      // Predicated region
      $region37: #{pointnet_encoder_forward.27} parent=31 // pred_check
        %p456 = pneg %p117
      $region38: #{pointnet_encoder_forward.27} parent=31 // pred_check_branch
        %458 = sbr.rel (%p456) target = $region40
      $region39: #{pointnet_encoder_forward.27} parent=31 // pred_region
        _
      $region40: #{pointnet_encoder_forward.27} parent=31 // pred_fallthru
        _
      // Predicated region
      $region41: #{pointnet_encoder_forward.27} parent=31 // pred_check
        %p459 = pneg %p143
      $region42: #{pointnet_encoder_forward.27} parent=31 // pred_check_branch
        %461 = sbr.rel (%p459) target = $region44
      $region43: #{pointnet_encoder_forward.27} parent=31 // pred_region
        _
      $region44: #{pointnet_encoder_forward.27} parent=31 // pred_fallthru
        _
      // Predicated region
      $region45: #{pointnet_encoder_forward.27} parent=31 // pred_check
        %p462 = pneg %p169
      $region46: #{pointnet_encoder_forward.27} parent=31 // pred_check_branch
        %464 = sbr.rel (%p462) target = $region48
      $region47: #{pointnet_encoder_forward.27} parent=31 // pred_region
        _
      $region48: #{pointnet_encoder_forward.27} parent=31 // pred_fallthru
        _
    $region32: #{pointnet_encoder_forward.27} parent=5 // pred_fallthru
      _
    %p465 = scmp.le.s32.totalorder 2, %s12
    // Predicated region
    $region49: #{pointnet_encoder_forward.27} parent=5 // pred_check
      %p466 = pneg %p465
    $region50: #{pointnet_encoder_forward.27} parent=5 // pred_check_branch
      %468 = sbr.rel (%p466) target = $region52
    $region51: #{pointnet_encoder_forward.27} parent=5 // pred_region
      %s469 = ssub.s32 %s12, 2
      // Predicated region
      $region53: #{pointnet_encoder_forward.27} parent=51 // pred_check
        %p470 = pneg %p123
      $region54: #{pointnet_encoder_forward.27} parent=51 // pred_check_branch
        %472 = sbr.rel (%p470) target = $region56
      $region55: #{pointnet_encoder_forward.27} parent=51 // pred_region
        %p473 = scmp.lt.s32.totalorder %s23, 1
        %s474 = scalar_select %p473, %s23, 1
        %s475 = scalar_lea.vmem %s3, %s474
      $region56: #{pointnet_encoder_forward.27} parent=51 // pred_fallthru
        _
      // Predicated region
      $region57: #{pointnet_encoder_forward.27} parent=51 // pred_check
        %p476 = pneg %p149
      $region58: #{pointnet_encoder_forward.27} parent=51 // pred_check_branch
        %478 = sbr.rel (%p476) target = $region60
      $region59: #{pointnet_encoder_forward.27} parent=51 // pred_region
        %p479 = scmp.lt.s32.totalorder %s23, 1
        %s480 = scalar_select %p479, %s23, 1
        %s481 = scalar_lea.vmem %s4, %s480
      $region60: #{pointnet_encoder_forward.27} parent=51 // pred_fallthru
        _
      // Predicated region
      $region61: #{pointnet_encoder_forward.27} parent=51 // pred_check
        %p482 = pneg %p175
      $region62: #{pointnet_encoder_forward.27} parent=51 // pred_check_branch
        %484 = sbr.rel (%p482) target = $region64
      $region63: #{pointnet_encoder_forward.27} parent=51 // pred_region
        %p485 = scmp.lt.s32.totalorder %s23, 1
        %s486 = scalar_select %p485, %s23, 1
        %s487 = scalar_lea.vmem %s5, %s486
      $region64: #{pointnet_encoder_forward.27} parent=51 // pred_fallthru
        _
    $region52: #{pointnet_encoder_forward.27} parent=5 // pred_fallthru
      _
  $region6: #{pointnet_encoder_forward.27} parent=0 // loop_footer
    %s16 = sadd.s32 1, %s12
  $region7: #{pointnet_encoder_forward.27} parent=0 // loop_footer_branch
    %11 = sbr.rel target = $region3
  $region8: #{pointnet_encoder_forward.27} parent=0 // loop_exit
    _

</llo_original>
